<compile_context>
chip_gen: v6e
topology: v6e:2x2x1
jax: 0.10.0
libtpu: 0.0.40
codegen_flags: <defaults>
</compile_context>

<pallas_src>
import inspect
import math

import jax
import jax.numpy as jnp
from jax.experimental import pallas as pl
from jax.experimental.pallas import tpu as pltpu

DROP_P = 0.8
KEEP_P = 1.0 - DROP_P

# Single-buffer resident weights only if this JAX version supports pipeline_mode.
_HAS_BUFFERED = (
    hasattr(pl, "Buffered")
    and "pipeline_mode" in inspect.signature(pl.BlockSpec).parameters
)


def _const_block_spec(shape):
    """Full-array block with a constant index map -> DMA'd once, resident in VMEM."""
    if _HAS_BUFFERED:
        return pl.BlockSpec(shape, lambda i: (0, 0), pipeline_mode=pl.Buffered(1))
    return pl.BlockSpec(shape, lambda i: (0, 0))


def autoencoder_kernel(x_ref, mask_ref,
                       w1_ref, b1_ref, w2_ref, b2_ref, w3_ref, b3_ref,
                       w4_ref, b4_ref, w5_ref, b5_ref, w6_ref, b6_ref,
                       o_ref):
    def lin_relu(h, w_ref, b_ref, out_dtype=jnp.bfloat16):
        # bf16 operands into the MXU, f32 accumulation; bias add + ReLU stay in f32.
        y = jnp.dot(h, w_ref[...], preferred_element_type=jnp.float32)
        y = jnp.maximum(y + b_ref[...], 0.0)        # (1, out) broadcasts over tile
        return y.astype(out_dtype)

    h = x_ref[...].astype(jnp.bfloat16)             # (TB, input_size)

    # ---- encode ----
    h = lin_relu(h, w1_ref, b1_ref)                 # (TB, 1024)
    h = lin_relu(h, w2_ref, b2_ref)                 # (TB, 512)
    h = lin_relu(h, w3_ref, b3_ref)                 # (TB, 512)

    # ---- dropout(p=0.8): keep-mask is {0,1}; 1/keep_p scale is folded into W4 ----
    h = h * mask_ref[...]

    # ---- decode ----
    h = lin_relu(h, w4_ref, b4_ref)                 # (TB, 512)
    h = lin_relu(h, w5_ref, b5_ref)                 # (TB, 1024)
    h = lin_relu(h, w6_ref, b6_ref, out_dtype=jnp.float32)   # (TB, input_size)

    o_ref[...] = h


def prepare_params(params):
    """One-time param prep: fold dropout scale into W4, cast weights to bf16.

    params: list of 6 (W_(in,out) f32, b_(1,out) f32) tuples, layer order l1..l6.
    """
    prepped = []
    for idx, (w, b) in enumerate(params):
        w = w.astype(jnp.float32)
        if idx == 3:                                # l4 consumes the dropped-out acts
            w = w * (1.0 / KEEP_P)
        prepped.append((w.astype(jnp.bfloat16), b.astype(jnp.float32)))
    return prepped


def _pick_batch_tile(B):
    # Prefer >= 2 grid steps (v7x has 2 TensorCores; "parallel" shards them) with the
    # largest tile that fills the 256-wide MXU; otherwise take the largest divisor.
    for tb in (512, 256, 128):
        if B % tb == 0 and B // tb >= 2:
            return tb
    for tb in (512, 256, 128, 64, 32, 16, 8):
        if B % tb == 0:
            return tb
    return B


def autoencoder_forward(x, prepped_params, mask, *, tb=None):
    """x: (B, input_size) f32; prepped_params: from prepare_params;
    mask: (B, 512) bf16 keep-mask in {0, 1}."""
    B, input_size = x.shape
    bottleneck = prepped_params[2][0].shape[1]      # 512
    assert mask.shape == (B, bottleneck)

    if tb is None:
        tb = _pick_batch_tile(B)
    assert B % tb == 0, "batch must be divisible by the batch tile"
    assert tb == B or tb % 8 == 0, "batch tile must be a multiple of 8"

    flat_params = []
    in_specs = [
        pl.BlockSpec((tb, input_size), lambda i: (i, 0)),
        pl.BlockSpec((tb, bottleneck), lambda i: (i, 0)),
    ]
    for w, b in prepped_params:
        flat_params.extend((w, b))
        in_specs.append(_const_block_spec(w.shape))
        in_specs.append(_const_block_spec(b.shape))

    flops = 2 * B * sum(w.shape[0] * w.shape[1] for w, _ in prepped_params)
    bytes_accessed = (
        sum(w.size * w.dtype.itemsize + b.size * b.dtype.itemsize
            for w, b in prepped_params)
        + x.size * 4 + mask.size * mask.dtype.itemsize + B * input_size * 4
    )

    return pl.pallas_call(
        autoencoder_kernel,
        out_shape=jax.ShapeDtypeStruct((B, input_size), jnp.float32),
        grid=(B // tb,),
        in_specs=in_specs,
        out_specs=pl.BlockSpec((tb, input_size), lambda i: (i, 0)),
        compiler_params=pltpu.CompilerParams(
            dimension_semantics=("parallel",),
            vmem_limit_bytes=32 * 1024 * 1024,      # v7x (64 MiB physical) safe
        ),
        cost_estimate=pl.CostEstimate(flops=flops, transcendentals=0,
                                      bytes_accessed=bytes_accessed),
    )(x, mask, *flat_params)


def reference_forward(x, prepped_params, mask):
    """Pure-JAX reference with the same bf16-operand / f32-accum math as the kernel."""
    h = x.astype(jnp.bfloat16)
    n = len(prepped_params)
    for idx, (w, b) in enumerate(prepped_params):
        y = jnp.maximum(jnp.dot(h, w, preferred_element_type=jnp.float32) + b, 0.0)
        h = y if idx == n - 1 else y.astype(jnp.bfloat16)
        if idx == 2:
            h = h * mask
    return h


def init_linear(key, fan_in, fan_out):
    # PyTorch nn.Linear default init: U(-1/sqrt(fan_in), 1/sqrt(fan_in)) for W and b.
    kw, kb = jax.random.split(key)
    bound = 1.0 / math.sqrt(fan_in)
    w = jax.random.uniform(kw, (fan_in, fan_out), jnp.float32, -bound, bound)
    b = jax.random.uniform(kb, (1, fan_out), jnp.float32, -bound, bound)
    return w, b


if __name__ == "__main__":
    input_size = 256
    batch = 256                       # -> auto batch tile 128, grid = 2

    key = jax.random.PRNGKey(0)
    keys = jax.random.split(key, 8)

    layer_dims = [(input_size, 1024), (1024, 512), (512, 512),
                  (512, 512), (512, 1024), (1024, input_size)]
    params = [init_linear(keys[i], fin, fout)
              for i, (fin, fout) in enumerate(layer_dims)]
    prepped = prepare_params(params)  # one-time bf16 cast + dropout-scale fold

    x = jax.random.normal(keys[6], (batch, input_size), jnp.float32)
    # F.dropout(p=0.8, training=True): keep each element w.p. 0.2, scale by 5
    # (the scale lives in W4).
    mask = jax.random.bernoulli(keys[7], KEEP_P, (batch, 512)).astype(jnp.bfloat16)

    out = autoencoder_forward(x, prepped, mask)
    jax.block_until_ready(out)

    ref = reference_forward(x, prepped, mask)
    rel = float(jnp.max(jnp.abs(out - ref)) / (jnp.max(jnp.abs(ref)) + 1e-9))

    assert out.shape == (batch, input_size)
    assert out.dtype == jnp.float32
    assert bool(jnp.all(jnp.isfinite(out)))
    assert rel < 5e-2, f"relative error too large: {rel}"
    print("KERNEL_OK")
</pallas_src>

<mosaic_0001>
module attributes {stable_mosaic.version = 11 : i64} {
  func.func @autoencoder_kernel(%arg0: i32, %arg1: memref<128x256xf32, #tpu.memory_space<vmem>>, %arg2: memref<128x512xbf16, #tpu.memory_space<vmem>>, %arg3: memref<256x1024xbf16, #tpu.memory_space<vmem>>, %arg4: memref<1x1024xf32, #tpu.memory_space<vmem>>, %arg5: memref<1024x512xbf16, #tpu.memory_space<vmem>>, %arg6: memref<1x512xf32, #tpu.memory_space<vmem>>, %arg7: memref<512x512xbf16, #tpu.memory_space<vmem>>, %arg8: memref<1x512xf32, #tpu.memory_space<vmem>>, %arg9: memref<512x512xbf16, #tpu.memory_space<vmem>>, %arg10: memref<1x512xf32, #tpu.memory_space<vmem>>, %arg11: memref<512x1024xbf16, #tpu.memory_space<vmem>>, %arg12: memref<1x1024xf32, #tpu.memory_space<vmem>>, %arg13: memref<1024x256xbf16, #tpu.memory_space<vmem>>, %arg14: memref<1x256xf32, #tpu.memory_space<vmem>>, %arg15: memref<128x256xf32, #tpu.memory_space<vmem>>) attributes {dimension_semantics = [#tpu.dimension_semantics<parallel>], iteration_bounds = array<i64: 2>, scalar_prefetch = 0 : i64, scratch_operands = 0 : i64, tpu.core_type = #tpu.core_type<tc>, window_params = [{transform_indices = @transform_0, window_bounds = array<i64: 128, 256>}, {transform_indices = @transform_1, window_bounds = array<i64: 128, 512>}, {pipeline_mode = #tpu.pipeline_mode<synchronous>, transform_indices = @transform_2, window_bounds = array<i64: 256, 1024>}, {pipeline_mode = #tpu.pipeline_mode<synchronous>, transform_indices = @transform_3, window_bounds = array<i64: 1, 1024>}, {pipeline_mode = #tpu.pipeline_mode<synchronous>, transform_indices = @transform_4, window_bounds = array<i64: 1024, 512>}, {pipeline_mode = #tpu.pipeline_mode<synchronous>, transform_indices = @transform_5, window_bounds = array<i64: 1, 512>}, {pipeline_mode = #tpu.pipeline_mode<synchronous>, transform_indices = @transform_6, window_bounds = array<i64: 512, 512>}, {pipeline_mode = #tpu.pipeline_mode<synchronous>, transform_indices = @transform_7, window_bounds = array<i64: 1, 512>}, {pipeline_mode = #tpu.pipeline_mode<synchronous>, transform_indices = @transform_8, window_bounds = array<i64: 512, 512>}, {pipeline_mode = #tpu.pipeline_mode<synchronous>, transform_indices = @transform_9, window_bounds = array<i64: 1, 512>}, {pipeline_mode = #tpu.pipeline_mode<synchronous>, transform_indices = @transform_10, window_bounds = array<i64: 512, 1024>}, {pipeline_mode = #tpu.pipeline_mode<synchronous>, transform_indices = @transform_11, window_bounds = array<i64: 1, 1024>}, {pipeline_mode = #tpu.pipeline_mode<synchronous>, transform_indices = @transform_12, window_bounds = array<i64: 1024, 256>}, {pipeline_mode = #tpu.pipeline_mode<synchronous>, transform_indices = @transform_13, window_bounds = array<i64: 1, 256>}, {transform_indices = @transform_14, window_bounds = array<i64: 128, 256>}]} {
    %c0 = arith.constant 0 : index
    %c0_0 = arith.constant 0 : index
    %0 = vector.load %arg1[%c0, %c0_0] : memref<128x256xf32, #tpu.memory_space<vmem>>, vector<128x256xf32>
    %1 = arith.truncf %0 : vector<128x256xf32> to vector<128x256xbf16>
    %c0_1 = arith.constant 0 : index
    %c0_2 = arith.constant 0 : index
    %2 = vector.load %arg3[%c0_1, %c0_2] : memref<256x1024xbf16, #tpu.memory_space<vmem>>, vector<256x1024xbf16>
    %cst = arith.constant dense<0.000000e+00> : vector<128x1024xf32>
    %3 = tpu.matmul %1, %2, %cst {dimension_numbers = #tpu.dot_dimension_numbers<[1], [0], [0], [1], [0, 0, 1, 1], [], []>} : vector<128x256xbf16>, vector<256x1024xbf16>, vector<128x1024xf32> -> vector<128x1024xf32>
    %c0_3 = arith.constant 0 : index
    %c0_4 = arith.constant 0 : index
    %4 = vector.load %arg4[%c0_3, %c0_4] : memref<1x1024xf32, #tpu.memory_space<vmem>>, vector<1x1024xf32>
    %5 = vector.broadcast %4 : vector<1x1024xf32> to vector<128x1024xf32>
    %6 = arith.addf %3, %5 : vector<128x1024xf32>
    %cst_5 = arith.constant 0.000000e+00 : f32
    %7 = vector.broadcast %cst_5 : f32 to vector<128x1024xf32>
    %8 = arith.maximumf %6, %7 : vector<128x1024xf32>
    %9 = arith.truncf %8 : vector<128x1024xf32> to vector<128x1024xbf16>
    %c0_6 = arith.constant 0 : index
    %c0_7 = arith.constant 0 : index
    %10 = vector.load %arg5[%c0_6, %c0_7] : memref<1024x512xbf16, #tpu.memory_space<vmem>>, vector<1024x512xbf16>
    %cst_8 = arith.constant dense<0.000000e+00> : vector<128x512xf32>
    %11 = tpu.matmul %9, %10, %cst_8 {dimension_numbers = #tpu.dot_dimension_numbers<[1], [0], [0], [1], [0, 0, 1, 1], [], []>} : vector<128x1024xbf16>, vector<1024x512xbf16>, vector<128x512xf32> -> vector<128x512xf32>
    %c0_9 = arith.constant 0 : index
    %c0_10 = arith.constant 0 : index
    %12 = vector.load %arg6[%c0_9, %c0_10] : memref<1x512xf32, #tpu.memory_space<vmem>>, vector<1x512xf32>
    %13 = vector.broadcast %12 : vector<1x512xf32> to vector<128x512xf32>
    %14 = arith.addf %11, %13 : vector<128x512xf32>
    %cst_11 = arith.constant 0.000000e+00 : f32
    %15 = vector.broadcast %cst_11 : f32 to vector<128x512xf32>
    %16 = arith.maximumf %14, %15 : vector<128x512xf32>
    %17 = arith.truncf %16 : vector<128x512xf32> to vector<128x512xbf16>
    %c0_12 = arith.constant 0 : index
    %c0_13 = arith.constant 0 : index
    %18 = vector.load %arg7[%c0_12, %c0_13] : memref<512x512xbf16, #tpu.memory_space<vmem>>, vector<512x512xbf16>
    %cst_14 = arith.constant dense<0.000000e+00> : vector<128x512xf32>
    %19 = tpu.matmul %17, %18, %cst_14 {dimension_numbers = #tpu.dot_dimension_numbers<[1], [0], [0], [1], [0, 0, 1, 1], [], []>} : vector<128x512xbf16>, vector<512x512xbf16>, vector<128x512xf32> -> vector<128x512xf32>
    %c0_15 = arith.constant 0 : index
    %c0_16 = arith.constant 0 : index
    %20 = vector.load %arg8[%c0_15, %c0_16] : memref<1x512xf32, #tpu.memory_space<vmem>>, vector<1x512xf32>
    %21 = vector.broadcast %20 : vector<1x512xf32> to vector<128x512xf32>
    %22 = arith.addf %19, %21 : vector<128x512xf32>
    %cst_17 = arith.constant 0.000000e+00 : f32
    %23 = vector.broadcast %cst_17 : f32 to vector<128x512xf32>
    %24 = arith.maximumf %22, %23 : vector<128x512xf32>
    %25 = arith.truncf %24 : vector<128x512xf32> to vector<128x512xbf16>
    %c0_18 = arith.constant 0 : index
    %c0_19 = arith.constant 0 : index
    %26 = vector.load %arg2[%c0_18, %c0_19] : memref<128x512xbf16, #tpu.memory_space<vmem>>, vector<128x512xbf16>
    %27 = arith.mulf %25, %26 : vector<128x512xbf16>
    %c0_20 = arith.constant 0 : index
    %c0_21 = arith.constant 0 : index
    %28 = vector.load %arg9[%c0_20, %c0_21] : memref<512x512xbf16, #tpu.memory_space<vmem>>, vector<512x512xbf16>
    %cst_22 = arith.constant dense<0.000000e+00> : vector<128x512xf32>
    %29 = tpu.matmul %27, %28, %cst_22 {dimension_numbers = #tpu.dot_dimension_numbers<[1], [0], [0], [1], [0, 0, 1, 1], [], []>} : vector<128x512xbf16>, vector<512x512xbf16>, vector<128x512xf32> -> vector<128x512xf32>
    %c0_23 = arith.constant 0 : index
    %c0_24 = arith.constant 0 : index
    %30 = vector.load %arg10[%c0_23, %c0_24] : memref<1x512xf32, #tpu.memory_space<vmem>>, vector<1x512xf32>
    %31 = vector.broadcast %30 : vector<1x512xf32> to vector<128x512xf32>
    %32 = arith.addf %29, %31 : vector<128x512xf32>
    %cst_25 = arith.constant 0.000000e+00 : f32
    %33 = vector.broadcast %cst_25 : f32 to vector<128x512xf32>
    %34 = arith.maximumf %32, %33 : vector<128x512xf32>
    %35 = arith.truncf %34 : vector<128x512xf32> to vector<128x512xbf16>
    %c0_26 = arith.constant 0 : index
    %c0_27 = arith.constant 0 : index
    %36 = vector.load %arg11[%c0_26, %c0_27] : memref<512x1024xbf16, #tpu.memory_space<vmem>>, vector<512x1024xbf16>
    %cst_28 = arith.constant dense<0.000000e+00> : vector<128x1024xf32>
    %37 = tpu.matmul %35, %36, %cst_28 {dimension_numbers = #tpu.dot_dimension_numbers<[1], [0], [0], [1], [0, 0, 1, 1], [], []>} : vector<128x512xbf16>, vector<512x1024xbf16>, vector<128x1024xf32> -> vector<128x1024xf32>
    %c0_29 = arith.constant 0 : index
    %c0_30 = arith.constant 0 : index
    %38 = vector.load %arg12[%c0_29, %c0_30] : memref<1x1024xf32, #tpu.memory_space<vmem>>, vector<1x1024xf32>
    %39 = vector.broadcast %38 : vector<1x1024xf32> to vector<128x1024xf32>
    %40 = arith.addf %37, %39 : vector<128x1024xf32>
    %cst_31 = arith.constant 0.000000e+00 : f32
    %41 = vector.broadcast %cst_31 : f32 to vector<128x1024xf32>
    %42 = arith.maximumf %40, %41 : vector<128x1024xf32>
    %43 = arith.truncf %42 : vector<128x1024xf32> to vector<128x1024xbf16>
    %c0_32 = arith.constant 0 : index
    %c0_33 = arith.constant 0 : index
    %44 = vector.load %arg13[%c0_32, %c0_33] : memref<1024x256xbf16, #tpu.memory_space<vmem>>, vector<1024x256xbf16>
    %cst_34 = arith.constant dense<0.000000e+00> : vector<128x256xf32>
    %45 = tpu.matmul %43, %44, %cst_34 {dimension_numbers = #tpu.dot_dimension_numbers<[1], [0], [0], [1], [0, 0, 1, 1], [], []>} : vector<128x1024xbf16>, vector<1024x256xbf16>, vector<128x256xf32> -> vector<128x256xf32>
    %c0_35 = arith.constant 0 : index
    %c0_36 = arith.constant 0 : index
    %46 = vector.load %arg14[%c0_35, %c0_36] : memref<1x256xf32, #tpu.memory_space<vmem>>, vector<1x256xf32>
    %47 = vector.broadcast %46 : vector<1x256xf32> to vector<128x256xf32>
    %48 = arith.addf %45, %47 : vector<128x256xf32>
    %cst_37 = arith.constant 0.000000e+00 : f32
    %49 = vector.broadcast %cst_37 : f32 to vector<128x256xf32>
    %50 = arith.maximumf %48, %49 : vector<128x256xf32>
    %c0_38 = arith.constant 0 : index
    %c0_39 = arith.constant 0 : index
    %51 = vector.load %arg15[%c0_38, %c0_39] : memref<128x256xf32, #tpu.memory_space<vmem>>, vector<128x256xf32>
    tpu.vector_store %arg15[%c0_38, %c0_39], %50 {strides = array<i32>} : memref<128x256xf32, #tpu.memory_space<vmem>>, vector<128x256xf32>,
    return
  }
  func.func @transform_0(%arg0: i32) -> (i32, i32) {
    %c0_i32 = arith.constant 0 : i32
    %c0_i32_0 = arith.constant 0 : i32
    return %arg0, %c0_i32 : i32, i32
  }
  func.func @transform_1(%arg0: i32) -> (i32, i32) {
    %c0_i32 = arith.constant 0 : i32
    %c0_i32_0 = arith.constant 0 : i32
    return %arg0, %c0_i32 : i32, i32
  }
  func.func @transform_2(%arg0: i32) -> (i32, i32) {
    %c0_i32 = arith.constant 0 : i32
    %c0_i32_0 = arith.constant 0 : i32
    %c0_i32_1 = arith.constant 0 : i32
    return %c0_i32, %c0_i32_0 : i32, i32
  }
  func.func @transform_3(%arg0: i32) -> (i32, i32) {
    %c0_i32 = arith.constant 0 : i32
    %c0_i32_0 = arith.constant 0 : i32
    %c0_i32_1 = arith.constant 0 : i32
    return %c0_i32, %c0_i32_0 : i32, i32
  }
  func.func @transform_4(%arg0: i32) -> (i32, i32) {
    %c0_i32 = arith.constant 0 : i32
    %c0_i32_0 = arith.constant 0 : i32
    %c0_i32_1 = arith.constant 0 : i32
    return %c0_i32, %c0_i32_0 : i32, i32
  }
  func.func @transform_5(%arg0: i32) -> (i32, i32) {
    %c0_i32 = arith.constant 0 : i32
    %c0_i32_0 = arith.constant 0 : i32
    %c0_i32_1 = arith.constant 0 : i32
    return %c0_i32, %c0_i32_0 : i32, i32
  }
  func.func @transform_6(%arg0: i32) -> (i32, i32) {
    %c0_i32 = arith.constant 0 : i32
    %c0_i32_0 = arith.constant 0 : i32
    %c0_i32_1 = arith.constant 0 : i32
    return %c0_i32, %c0_i32_0 : i32, i32
  }
  func.func @transform_7(%arg0: i32) -> (i32, i32) {
    %c0_i32 = arith.constant 0 : i32
    %c0_i32_0 = arith.constant 0 : i32
    %c0_i32_1 = arith.constant 0 : i32
    return %c0_i32, %c0_i32_0 : i32, i32
  }
  func.func @transform_8(%arg0: i32) -> (i32, i32) {
    %c0_i32 = arith.constant 0 : i32
    %c0_i32_0 = arith.constant 0 : i32
    %c0_i32_1 = arith.constant 0 : i32
    return %c0_i32, %c0_i32_0 : i32, i32
  }
  func.func @transform_9(%arg0: i32) -> (i32, i32) {
    %c0_i32 = arith.constant 0 : i32
    %c0_i32_0 = arith.constant 0 : i32
    %c0_i32_1 = arith.constant 0 : i32
    return %c0_i32, %c0_i32_0 : i32, i32
  }
  func.func @transform_10(%arg0: i32) -> (i32, i32) {
    %c0_i32 = arith.constant 0 : i32
    %c0_i32_0 = arith.constant 0 : i32
    %c0_i32_1 = arith.constant 0 : i32
    return %c0_i32, %c0_i32_0 : i32, i32
  }
  func.func @transform_11(%arg0: i32) -> (i32, i32) {
    %c0_i32 = arith.constant 0 : i32
    %c0_i32_0 = arith.constant 0 : i32
    %c0_i32_1 = arith.constant 0 : i32
    return %c0_i32, %c0_i32_0 : i32, i32
  }
  func.func @transform_12(%arg0: i32) -> (i32, i32) {
    %c0_i32 = arith.constant 0 : i32
    %c0_i32_0 = arith.constant 0 : i32
    %c0_i32_1 = arith.constant 0 : i32
    return %c0_i32, %c0_i32_0 : i32, i32
  }
  func.func @transform_13(%arg0: i32) -> (i32, i32) {
    %c0_i32 = arith.constant 0 : i32
    %c0_i32_0 = arith.constant 0 : i32
    %c0_i32_1 = arith.constant 0 : i32
    return %c0_i32, %c0_i32_0 : i32, i32
  }
  func.func @transform_14(%arg0: i32) -> (i32, i32) {
    %c0_i32 = arith.constant 0 : i32
    %c0_i32_0 = arith.constant 0 : i32
    return %arg0, %c0_i32 : i32, i32
  }
}

</mosaic_0001>

<llo_original>
// kernel: tpu_custom_call.1
$region0: #{tpu_custom_call.1}
  #allocation0 [shape = 'u32[]', space=smem, size = 0x4, offset = 0x4, fixed_abs, tag = 'smem constant byte address 0x4 - core index']
  #allocation1 [shape = 'u32[144,128]{1,0:T(1,128)}', space=vmem, size = 0x12000, scoped, tag = 'internal scratch']
  %s0 = inlined_call_operand.hbm [shape: f32[256,256], index: 0, kind: input, shape index: {}]
  %s1 = inlined_call_operand.hbm [shape: bf16[256,512], index: 1, kind: input, shape index: {}]
  %s2 = inlined_call_operand.hbm [shape: bf16[256,1024], index: 2, kind: input, shape index: {}]
  %s3 = inlined_call_operand.hbm [shape: f32[1,1024], index: 3, kind: input, shape index: {}]
  %s4 = inlined_call_operand.hbm [shape: bf16[1024,512], index: 4, kind: input, shape index: {}]
  %s5 = inlined_call_operand.vmem [shape: f32[1,512], index: 5, kind: input, shape index: {}]
  %s6 = inlined_call_operand.hbm [shape: bf16[512,512], index: 6, kind: input, shape index: {}]
  %s7 = inlined_call_operand.vmem [shape: f32[1,512], index: 7, kind: input, shape index: {}]
  %s8 = inlined_call_operand.hbm [shape: bf16[512,512], index: 8, kind: input, shape index: {}]
  %s9 = inlined_call_operand.hbm [shape: f32[1,512], index: 9, kind: input, shape index: {}]
  %s10 = inlined_call_operand.hbm [shape: bf16[512,1024], index: 10, kind: input, shape index: {}]
  %s11 = inlined_call_operand.vmem [shape: f32[1,1024], index: 11, kind: input, shape index: {}]
  %s12 = inlined_call_operand.hbm [shape: bf16[1024,256], index: 12, kind: input, shape index: {}]
  %s13 = inlined_call_operand.vmem [shape: f32[1,256], index: 13, kind: input, shape index: {}]
  %s14 = inlined_call_operand.hbm [shape: f32[256,256], index: 14, kind: output, shape index: {}]
  %s15 = sld [smem:[#allocation0]]
  $region129: #{tpu_custom_call.1} parent=0
    _
  %s17 = ssub.s32 1, %s15
  %s18 = scalar_select 0, %s17, %s15
  $region1: #{tpu_custom_call.1} parent=0
    #allocation2 [shape = 'u8[262144]{0}', space=vmem, size = 0x40000, scoped, tag = 'input window, operand 0']
    #allocation3 [shape = 's32[2]{0}', space=sflag, size = 0x8, scoped, tag = 'scoped memory for tpu_custom_call.1']
    #allocation4 [shape = 's32[2]{0}', space=sflag, size = 0x8, scoped, tag = 'scoped memory for tpu_custom_call.1']
    #allocation5 [shape = 'u8[262144]{0}', space=vmem, size = 0x40000, scoped, tag = 'input window, operand 1']
    #allocation6 [shape = 's32[2]{0}', space=sflag, size = 0x8, scoped, tag = 'scoped memory for tpu_custom_call.1']
    #allocation7 [shape = 'u8[524288]{0}', space=vmem, size = 0x80000, scoped, tag = 'input window, operand 2, single buffered']
    #allocation8 [shape = 'u8[4096]{0}', space=vmem, size = 0x1000, scoped, tag = 'input window, operand 3, single buffered']
    #allocation9 [shape = 's32[1]{0}', space=sflag, size = 0x4, scoped, tag = 'scoped memory for tpu_custom_call.1']
    #allocation10 [shape = 'u8[1048576]{0}', space=vmem, size = 0x100000, scoped, tag = 'input window, operand 4, single buffered']
    #allocation11 [shape = 'u8[524288]{0}', space=vmem, size = 0x80000, scoped, tag = 'input window, operand 6, single buffered']
    #allocation12 [shape = 's32[1]{0}', space=sflag, size = 0x4, scoped, tag = 'scoped memory for tpu_custom_call.1']
    #allocation13 [shape = 'u8[524288]{0}', space=vmem, size = 0x80000, scoped, tag = 'input window, operand 8, single buffered']
    #allocation14 [shape = 'u8[2048]{0}', space=vmem, size = 0x800, scoped, tag = 'input window, operand 9, single buffered']
    #allocation15 [shape = 's32[1]{0}', space=sflag, size = 0x4, scoped, tag = 'scoped memory for tpu_custom_call.1']
    #allocation16 [shape = 'u8[1048576]{0}', space=vmem, size = 0x100000, scoped, tag = 'input window, operand 10, single buffered']
    #allocation17 [shape = 'u8[524288]{0}', space=vmem, size = 0x80000, scoped, tag = 'input window, operand 12, single buffered']
    #allocation18 [shape = 's32[1]{0}', space=sflag, size = 0x4, scoped, tag = 'scoped memory for tpu_custom_call.1']
    #allocation19 [shape = 'u8[262144]{0}', space=vmem, size = 0x40000, scoped, tag = 'output window, operand 0']
    %19 = vsyncpa [#allocation3], 0
    %s20 = scalar_lea.sflag [#allocation3], 1
    %21 = vsyncpa %s20, 0
    %22 = vsyncpa [#allocation6], 0
    %s23 = scalar_lea.sflag [#allocation6], 1
    %24 = vsyncpa %s23, 0
    %25 = vsyncpa [#allocation9], 0
    %26 = vsyncpa [#allocation12], 0
    %27 = vsyncpa [#allocation15], 0
    %28 = vsyncpa [#allocation18], 0
    %29 = vsyncpa [#allocation4], 0
    %s30 = scalar_lea.sflag [#allocation4], 1
    %31 = vsyncpa %s30, 0
    loop: start=0, step=1, limit=4
    $region2: #{tpu_custom_call.1} parent=1 // loop_pre_header
      _
    $region3: #{tpu_custom_call.1} parent=1 // loop_header
      %s33 = sphi 0, %s37
      %p34 = scmp.ge.s32.totalorder %s33, 4
      %s43 = sphi 0, %s45
      %s46 = sphi 0, %s43
      %s47 = sphi 0, %s46
      %s63 = sphi 0, %s47
      %s69 = sphi 0, %s71
      %s72 = sphi 0, %s69
      %s73 = sphi 0, %s72
      %s89 = sphi 0, %s73
      %s93 = sphi 0, %s93
      %s95 = sphi 0, %s93
      %s96 = sphi 0, %s95
      %s110 = sphi 0, %s96
      %s114 = sphi 0, %s114
      %s116 = sphi 0, %s114
      %s117 = sphi 0, %s116
      %s131 = sphi 0, %s117
      %s135 = sphi 0, %s135
      %s137 = sphi 0, %s135
      %s138 = sphi 0, %s137
      %s152 = sphi 0, %s138
      %s156 = sphi 0, %s156
      %s158 = sphi 0, %s156
      %s159 = sphi 0, %s158
      %s173 = sphi 0, %s159
      %s177 = sphi 0, %s177
      %s179 = sphi 0, %s177
      %s180 = sphi 0, %s179
      %s194 = sphi 0, %s180
      %s198 = sphi 0, %s198
      %s200 = sphi 0, %s198
      %s201 = sphi 0, %s200
      %s215 = sphi 0, %s201
      %s219 = sphi 0, %s219
      %s221 = sphi 0, %s219
      %s222 = sphi 0, %s221
      %s236 = sphi 0, %s222
      %s240 = sphi 0, %s240
      %s242 = sphi 0, %s240
      %s243 = sphi 0, %s242
      %s257 = sphi 0, %s243
      %s261 = sphi 0, %s261
      %s263 = sphi 0, %s261
      %s264 = sphi 0, %s263
      %s278 = sphi 0, %s264
      %s282 = sphi 0, %s282
      %s284 = sphi 0, %s282
      %s285 = sphi 0, %s284
      %s299 = sphi 0, %s285
      %s303 = sphi 0, %s303
      %s305 = sphi 0, %s303
      %s306 = sphi 0, %s305
      %s320 = sphi 0, %s306
      %s324 = sphi 0, %s324
      %s326 = sphi 0, %s324
      %s327 = sphi 0, %s326
      %s341 = sphi 0, %s327
      %s347 = sphi 0, %s349
      %s350 = sphi 0, %s347
      %s351 = sphi 0, %s350
      %s367 = sphi 0, %s351
    $region4: #{tpu_custom_call.1} parent=1 // loop_header_branch
      %36 = sbr.rel (%p34) target = $region8
    $region5: #{tpu_custom_call.1} parent=1 // loop_body
      %s38 = ssub.s32 %s33, 1
      %s39 = ssub.s32 %s33, 2
      %s40 = sadd.s32 %s33, 1
      %s41 = ssub.s32 %s33, %s40
      %p42 = scmp.eq.s32.totalorder %s41, 0
      %s44 = sadd.s32 %s43, 1
      %s45 = scalar_select %p42, %s43, %s44
      %p48 = pneg %p42
      %p49 = scmp.eq.s32.totalorder %s33, 1
      %p50 = por %p48, %p49
      %p51 = scmp.ne.s32.totalorder %s43, %s46
      %p52 = scmp.eq.s32.totalorder %s33, 0
      %p53 = por %p51, %p52
      %p54 = scmp.ne.s32.totalorder %s43, %s46
      %p55 = scmp.eq.s32.totalorder %s38, 1
      %p56 = por %p54, %p55
      %p57 = scmp.ne.s32.totalorder %s46, %s47
      %p58 = scmp.eq.s32.totalorder %s38, 0
      %p59 = por %p57, %p58
      %p60 = scmp.ne.s32.totalorder %s46, %s47
      %p61 = scmp.eq.s32.totalorder %s39, 1
      %p62 = por %p60, %p61
      %p64 = scmp.ne.s32.totalorder %s47, %s63
      %p65 = scmp.eq.s32.totalorder %s39, 0
      %p66 = por %p64, %p65
      %s67 = ssub.s32 %s33, %s40
      %p68 = scmp.eq.s32.totalorder %s67, 0
      %s70 = sadd.s32 %s69, 1
      %s71 = scalar_select %p68, %s69, %s70
      %p74 = pneg %p68
      %p75 = scmp.eq.s32.totalorder %s33, 1
      %p76 = por %p74, %p75
      %p77 = scmp.ne.s32.totalorder %s69, %s72
      %p78 = scmp.eq.s32.totalorder %s33, 0
      %p79 = por %p77, %p78
      %p80 = scmp.ne.s32.totalorder %s69, %s72
      %p81 = scmp.eq.s32.totalorder %s38, 1
      %p82 = por %p80, %p81
      %p83 = scmp.ne.s32.totalorder %s72, %s73
      %p84 = scmp.eq.s32.totalorder %s38, 0
      %p85 = por %p83, %p84
      %p86 = scmp.ne.s32.totalorder %s72, %s73
      %p87 = scmp.eq.s32.totalorder %s39, 1
      %p88 = por %p86, %p87
      %p90 = scmp.ne.s32.totalorder %s73, %s89
      %p91 = scmp.eq.s32.totalorder %s39, 0
      %p92 = por %p90, %p91
      %s94 = sadd.s32 %s93, 1
      %p97 = scmp.eq.s32.totalorder %s33, 1
      %p98 = scmp.ne.s32.totalorder %s93, %s95
      %p99 = scmp.eq.s32.totalorder %s33, 0
      %p100 = por %p98, %p99
      %p101 = scmp.ne.s32.totalorder %s93, %s95
      %p102 = scmp.eq.s32.totalorder %s38, 1
      %p103 = por %p101, %p102
      %p104 = scmp.ne.s32.totalorder %s95, %s96
      %p105 = scmp.eq.s32.totalorder %s38, 0
      %p106 = por %p104, %p105
      %p107 = scmp.ne.s32.totalorder %s95, %s96
      %p108 = scmp.eq.s32.totalorder %s39, 1
      %p109 = por %p107, %p108
      %p111 = scmp.ne.s32.totalorder %s96, %s110
      %p112 = scmp.eq.s32.totalorder %s39, 0
      %p113 = por %p111, %p112
      %s115 = sadd.s32 %s114, 1
      %p118 = scmp.eq.s32.totalorder %s33, 1
      %p119 = scmp.ne.s32.totalorder %s114, %s116
      %p120 = scmp.eq.s32.totalorder %s33, 0
      %p121 = por %p119, %p120
      %p122 = scmp.ne.s32.totalorder %s114, %s116
      %p123 = scmp.eq.s32.totalorder %s38, 1
      %p124 = por %p122, %p123
      %p125 = scmp.ne.s32.totalorder %s116, %s117
      %p126 = scmp.eq.s32.totalorder %s38, 0
      %p127 = por %p125, %p126
      %p128 = scmp.ne.s32.totalorder %s116, %s117
      %p129 = scmp.eq.s32.totalorder %s39, 1
      %p130 = por %p128, %p129
      %p132 = scmp.ne.s32.totalorder %s117, %s131
      %p133 = scmp.eq.s32.totalorder %s39, 0
      %p134 = por %p132, %p133
      %s136 = sadd.s32 %s135, 1
      %p139 = scmp.eq.s32.totalorder %s33, 1
      %p140 = scmp.ne.s32.totalorder %s135, %s137
      %p141 = scmp.eq.s32.totalorder %s33, 0
      %p142 = por %p140, %p141
      %p143 = scmp.ne.s32.totalorder %s135, %s137
      %p144 = scmp.eq.s32.totalorder %s38, 1
      %p145 = por %p143, %p144
      %p146 = scmp.ne.s32.totalorder %s137, %s138
      %p147 = scmp.eq.s32.totalorder %s38, 0
      %p148 = por %p146, %p147
      %p149 = scmp.ne.s32.totalorder %s137, %s138
      %p150 = scmp.eq.s32.totalorder %s39, 1
      %p151 = por %p149, %p150
      %p153 = scmp.ne.s32.totalorder %s138, %s152
      %p154 = scmp.eq.s32.totalorder %s39, 0
      %p155 = por %p153, %p154
      %s157 = sadd.s32 %s156, 1
      %p160 = scmp.eq.s32.totalorder %s33, 1
      %p161 = scmp.ne.s32.totalorder %s156, %s158
      %p162 = scmp.eq.s32.totalorder %s33, 0
      %p163 = por %p161, %p162
      %p164 = scmp.ne.s32.totalorder %s156, %s158
      %p165 = scmp.eq.s32.totalorder %s38, 1
      %p166 = por %p164, %p165
      %p167 = scmp.ne.s32.totalorder %s158, %s159
      %p168 = scmp.eq.s32.totalorder %s38, 0
      %p169 = por %p167, %p168
      %p170 = scmp.ne.s32.totalorder %s158, %s159
      %p171 = scmp.eq.s32.totalorder %s39, 1
      %p172 = por %p170, %p171
      %p174 = scmp.ne.s32.totalorder %s159, %s173
      %p175 = scmp.eq.s32.totalorder %s39, 0
      %p176 = por %p174, %p175
      %s178 = sadd.s32 %s177, 1
      %p181 = scmp.eq.s32.totalorder %s33, 1
      %p182 = scmp.ne.s32.totalorder %s177, %s179
      %p183 = scmp.eq.s32.totalorder %s33, 0
      %p184 = por %p182, %p183
      %p185 = scmp.ne.s32.totalorder %s177, %s179
      %p186 = scmp.eq.s32.totalorder %s38, 1
      %p187 = por %p185, %p186
      %p188 = scmp.ne.s32.totalorder %s179, %s180
      %p189 = scmp.eq.s32.totalorder %s38, 0
      %p190 = por %p188, %p189
      %p191 = scmp.ne.s32.totalorder %s179, %s180
      %p192 = scmp.eq.s32.totalorder %s39, 1
      %p193 = por %p191, %p192
      %p195 = scmp.ne.s32.totalorder %s180, %s194
      %p196 = scmp.eq.s32.totalorder %s39, 0
      %p197 = por %p195, %p196
      %s199 = sadd.s32 %s198, 1
      %p202 = scmp.eq.s32.totalorder %s33, 1
      %p203 = scmp.ne.s32.totalorder %s198, %s200
      %p204 = scmp.eq.s32.totalorder %s33, 0
      %p205 = por %p203, %p204
      %p206 = scmp.ne.s32.totalorder %s198, %s200
      %p207 = scmp.eq.s32.totalorder %s38, 1
      %p208 = por %p206, %p207
      %p209 = scmp.ne.s32.totalorder %s200, %s201
      %p210 = scmp.eq.s32.totalorder %s38, 0
      %p211 = por %p209, %p210
      %p212 = scmp.ne.s32.totalorder %s200, %s201
      %p213 = scmp.eq.s32.totalorder %s39, 1
      %p214 = por %p212, %p213
      %p216 = scmp.ne.s32.totalorder %s201, %s215
      %p217 = scmp.eq.s32.totalorder %s39, 0
      %p218 = por %p216, %p217
      %s220 = sadd.s32 %s219, 1
      %p223 = scmp.eq.s32.totalorder %s33, 1
      %p224 = scmp.ne.s32.totalorder %s219, %s221
      %p225 = scmp.eq.s32.totalorder %s33, 0
      %p226 = por %p224, %p225
      %p227 = scmp.ne.s32.totalorder %s219, %s221
      %p228 = scmp.eq.s32.totalorder %s38, 1
      %p229 = por %p227, %p228
      %p230 = scmp.ne.s32.totalorder %s221, %s222
      %p231 = scmp.eq.s32.totalorder %s38, 0
      %p232 = por %p230, %p231
      %p233 = scmp.ne.s32.totalorder %s221, %s222
      %p234 = scmp.eq.s32.totalorder %s39, 1
      %p235 = por %p233, %p234
      %p237 = scmp.ne.s32.totalorder %s222, %s236
      %p238 = scmp.eq.s32.totalorder %s39, 0
      %p239 = por %p237, %p238
      %s241 = sadd.s32 %s240, 1
      %p244 = scmp.eq.s32.totalorder %s33, 1
      %p245 = scmp.ne.s32.totalorder %s240, %s242
      %p246 = scmp.eq.s32.totalorder %s33, 0
      %p247 = por %p245, %p246
      %p248 = scmp.ne.s32.totalorder %s240, %s242
      %p249 = scmp.eq.s32.totalorder %s38, 1
      %p250 = por %p248, %p249
      %p251 = scmp.ne.s32.totalorder %s242, %s243
      %p252 = scmp.eq.s32.totalorder %s38, 0
      %p253 = por %p251, %p252
      %p254 = scmp.ne.s32.totalorder %s242, %s243
      %p255 = scmp.eq.s32.totalorder %s39, 1
      %p256 = por %p254, %p255
      %p258 = scmp.ne.s32.totalorder %s243, %s257
      %p259 = scmp.eq.s32.totalorder %s39, 0
      %p260 = por %p258, %p259
      %s262 = sadd.s32 %s261, 1
      %p265 = scmp.eq.s32.totalorder %s33, 1
      %p266 = scmp.ne.s32.totalorder %s261, %s263
      %p267 = scmp.eq.s32.totalorder %s33, 0
      %p268 = por %p266, %p267
      %p269 = scmp.ne.s32.totalorder %s261, %s263
      %p270 = scmp.eq.s32.totalorder %s38, 1
      %p271 = por %p269, %p270
      %p272 = scmp.ne.s32.totalorder %s263, %s264
      %p273 = scmp.eq.s32.totalorder %s38, 0
      %p274 = por %p272, %p273
      %p275 = scmp.ne.s32.totalorder %s263, %s264
      %p276 = scmp.eq.s32.totalorder %s39, 1
      %p277 = por %p275, %p276
      %p279 = scmp.ne.s32.totalorder %s264, %s278
      %p280 = scmp.eq.s32.totalorder %s39, 0
      %p281 = por %p279, %p280
      %s283 = sadd.s32 %s282, 1
      %p286 = scmp.eq.s32.totalorder %s33, 1
      %p287 = scmp.ne.s32.totalorder %s282, %s284
      %p288 = scmp.eq.s32.totalorder %s33, 0
      %p289 = por %p287, %p288
      %p290 = scmp.ne.s32.totalorder %s282, %s284
      %p291 = scmp.eq.s32.totalorder %s38, 1
      %p292 = por %p290, %p291
      %p293 = scmp.ne.s32.totalorder %s284, %s285
      %p294 = scmp.eq.s32.totalorder %s38, 0
      %p295 = por %p293, %p294
      %p296 = scmp.ne.s32.totalorder %s284, %s285
      %p297 = scmp.eq.s32.totalorder %s39, 1
      %p298 = por %p296, %p297
      %p300 = scmp.ne.s32.totalorder %s285, %s299
      %p301 = scmp.eq.s32.totalorder %s39, 0
      %p302 = por %p300, %p301
      %s304 = sadd.s32 %s303, 1
      %p307 = scmp.eq.s32.totalorder %s33, 1
      %p308 = scmp.ne.s32.totalorder %s303, %s305
      %p309 = scmp.eq.s32.totalorder %s33, 0
      %p310 = por %p308, %p309
      %p311 = scmp.ne.s32.totalorder %s303, %s305
      %p312 = scmp.eq.s32.totalorder %s38, 1
      %p313 = por %p311, %p312
      %p314 = scmp.ne.s32.totalorder %s305, %s306
      %p315 = scmp.eq.s32.totalorder %s38, 0
      %p316 = por %p314, %p315
      %p317 = scmp.ne.s32.totalorder %s305, %s306
      %p318 = scmp.eq.s32.totalorder %s39, 1
      %p319 = por %p317, %p318
      %p321 = scmp.ne.s32.totalorder %s306, %s320
      %p322 = scmp.eq.s32.totalorder %s39, 0
      %p323 = por %p321, %p322
      %s325 = sadd.s32 %s324, 1
      %p328 = scmp.eq.s32.totalorder %s33, 1
      %p329 = scmp.ne.s32.totalorder %s324, %s326
      %p330 = scmp.eq.s32.totalorder %s33, 0
      %p331 = por %p329, %p330
      %p332 = scmp.ne.s32.totalorder %s324, %s326
      %p333 = scmp.eq.s32.totalorder %s38, 1
      %p334 = por %p332, %p333
      %p335 = scmp.ne.s32.totalorder %s326, %s327
      %p336 = scmp.eq.s32.totalorder %s38, 0
      %p337 = por %p335, %p336
      %p338 = scmp.ne.s32.totalorder %s326, %s327
      %p339 = scmp.eq.s32.totalorder %s39, 1
      %p340 = por %p338, %p339
      %p342 = scmp.ne.s32.totalorder %s327, %s341
      %p343 = scmp.eq.s32.totalorder %s39, 0
      %p344 = por %p342, %p343
      %s345 = ssub.s32 %s33, %s40
      %p346 = scmp.eq.s32.totalorder %s345, 0
      %s348 = sadd.s32 %s347, 1
      %s349 = scalar_select %p346, %s347, %s348
      %p352 = pneg %p346
      %p353 = scmp.eq.s32.totalorder %s33, 1
      %p354 = por %p352, %p353
      %p355 = scmp.ne.s32.totalorder %s347, %s350
      %p356 = scmp.eq.s32.totalorder %s33, 0
      %p357 = por %p355, %p356
      %p358 = scmp.ne.s32.totalorder %s347, %s350
      %p359 = scmp.eq.s32.totalorder %s38, 1
      %p360 = por %p358, %p359
      %p361 = scmp.ne.s32.totalorder %s350, %s351
      %p362 = scmp.eq.s32.totalorder %s38, 0
      %p363 = por %p361, %p362
      %p364 = scmp.ne.s32.totalorder %s350, %s351
      %p365 = scmp.eq.s32.totalorder %s39, 1
      %p366 = por %p364, %p365
      %p368 = scmp.ne.s32.totalorder %s351, %s367
      %p369 = scmp.eq.s32.totalorder %s39, 0
      %p370 = por %p368, %p369
      %p371 = scmp.le.s32.totalorder 1, %s33
      %p372 = scmp.lt.s32.totalorder %s33, 3
      %p373 = pnand %p371, %p372
      %p374 = pneg %p373
      // Predicated region
      $region9: #{tpu_custom_call.1} parent=5 // pred_check
        _
      $region10: #{tpu_custom_call.1} parent=5 // pred_check_branch
        %376 = sbr.rel (%p373) target = $region12
      $region11: #{tpu_custom_call.1} parent=5 // pred_region
        %s377 = ssub.s32 %s33, 1
        // Predicated region
        $region13: #{tpu_custom_call.1} parent=11 // pred_check
          %p378 = pneg %p106
        $region14: #{tpu_custom_call.1} parent=11 // pred_check_branch
          %380 = sbr.rel (%p378) target = $region16
        $region15: #{tpu_custom_call.1} parent=11 // pred_region
          %s382 = ssub.s32 16384, 16384
          %383 = vsyncadd [#allocation6], %s382
          %s384 = sshll.u32 [#allocation7], 4
          %s385 = int_to_ptr.vmem [resolvable:$true] %s384
          %390 = dma.hbm_to_vmem [thread:$0]  %s2, 16384, %s385, [#allocation6], 512, 512, 32
        $region16: #{tpu_custom_call.1} parent=11 // pred_fallthru
          _
        // Predicated region
        $region17: #{tpu_custom_call.1} parent=11 // pred_check
          %p391 = pneg %p127
        $region18: #{tpu_custom_call.1} parent=11 // pred_check_branch
          %393 = sbr.rel (%p391) target = $region20
        $region19: #{tpu_custom_call.1} parent=11 // pred_region
          %s395 = ssub.s32 128, 128
          %396 = vsyncadd [#allocation9], %s395
          %s398 = sshll.u32 [#allocation8], 4
          %s399 = int_to_ptr.vmem [resolvable:$true] %s398
          %401 = dma.hbm_to_vmem [thread:$0]  %s3, 128, %s399, [#allocation9]
        $region20: #{tpu_custom_call.1} parent=11 // pred_fallthru
          _
        // Predicated region
        $region21: #{tpu_custom_call.1} parent=11 // pred_check
          %p402 = pneg %p148
        $region22: #{tpu_custom_call.1} parent=11 // pred_check_branch
          %404 = sbr.rel (%p402) target = $region24
        $region23: #{tpu_custom_call.1} parent=11 // pred_region
          %s406 = ssub.s32 32768, 32768
          %407 = vsyncadd [#allocation9], %s406
          %s408 = sshll.u32 [#allocation10], 4
          %s409 = int_to_ptr.vmem [resolvable:$true] %s408
          %414 = dma.hbm_to_vmem [thread:$0]  %s4, 32768, %s409, [#allocation9], 256, 256, 16
        $region24: #{tpu_custom_call.1} parent=11 // pred_fallthru
          _
        // Predicated region
        $region25: #{tpu_custom_call.1} parent=11 // pred_check
          %p415 = pneg %p169
        $region26: #{tpu_custom_call.1} parent=11 // pred_check_branch
          %417 = sbr.rel (%p415) target = $region28
        $region27: #{tpu_custom_call.1} parent=11 // pred_region
          _
        $region28: #{tpu_custom_call.1} parent=11 // pred_fallthru
          _
        // Predicated region
        $region29: #{tpu_custom_call.1} parent=11 // pred_check
          %p418 = pneg %p190
        $region30: #{tpu_custom_call.1} parent=11 // pred_check_branch
          %420 = sbr.rel (%p418) target = $region32
        $region31: #{tpu_custom_call.1} parent=11 // pred_region
          %s422 = ssub.s32 16384, 16384
          %423 = vsyncadd [#allocation12], %s422
          %s424 = sshll.u32 [#allocation11], 4
          %s425 = int_to_ptr.vmem [resolvable:$true] %s424
          %430 = dma.hbm_to_vmem [thread:$0]  %s6, 16384, %s425, [#allocation12], 256, 256, 16
        $region32: #{tpu_custom_call.1} parent=11 // pred_fallthru
          _
        // Predicated region
        $region33: #{tpu_custom_call.1} parent=11 // pred_check
          %p431 = pneg %p211
        $region34: #{tpu_custom_call.1} parent=11 // pred_check_branch
          %433 = sbr.rel (%p431) target = $region36
        $region35: #{tpu_custom_call.1} parent=11 // pred_region
          _
        $region36: #{tpu_custom_call.1} parent=11 // pred_fallthru
          _
        // Predicated region
        $region37: #{tpu_custom_call.1} parent=11 // pred_check
          %p434 = pneg %p232
        $region38: #{tpu_custom_call.1} parent=11 // pred_check_branch
          %436 = sbr.rel (%p434) target = $region40
        $region39: #{tpu_custom_call.1} parent=11 // pred_region
          %s438 = ssub.s32 16384, 16384
          %439 = vsyncadd [#allocation12], %s438
          %s440 = sshll.u32 [#allocation13], 4
          %s441 = int_to_ptr.vmem [resolvable:$true] %s440
          %446 = dma.hbm_to_vmem [thread:$0]  %s8, 16384, %s441, [#allocation12], 256, 256, 16
        $region40: #{tpu_custom_call.1} parent=11 // pred_fallthru
          _
        // Predicated region
        $region41: #{tpu_custom_call.1} parent=11 // pred_check
          %p447 = pneg %p253
        $region42: #{tpu_custom_call.1} parent=11 // pred_check_branch
          %449 = sbr.rel (%p447) target = $region44
        $region43: #{tpu_custom_call.1} parent=11 // pred_region
          %s451 = ssub.s32 64, 64
          %452 = vsyncadd [#allocation15], %s451
          %s454 = sshll.u32 [#allocation14], 4
          %s455 = int_to_ptr.vmem [resolvable:$true] %s454
          %457 = dma.hbm_to_vmem [thread:$0]  %s9, 64, %s455, [#allocation15]
        $region44: #{tpu_custom_call.1} parent=11 // pred_fallthru
          _
        // Predicated region
        $region45: #{tpu_custom_call.1} parent=11 // pred_check
          %p458 = pneg %p274
        $region46: #{tpu_custom_call.1} parent=11 // pred_check_branch
          %460 = sbr.rel (%p458) target = $region48
        $region47: #{tpu_custom_call.1} parent=11 // pred_region
          %s462 = ssub.s32 32768, 32768
          %463 = vsyncadd [#allocation15], %s462
          %s464 = sshll.u32 [#allocation16], 4
          %s465 = int_to_ptr.vmem [resolvable:$true] %s464
          %470 = dma.hbm_to_vmem [thread:$0]  %s10, 32768, %s465, [#allocation15], 512, 512, 32
        $region48: #{tpu_custom_call.1} parent=11 // pred_fallthru
          _
        // Predicated region
        $region49: #{tpu_custom_call.1} parent=11 // pred_check
          %p471 = pneg %p295
        $region50: #{tpu_custom_call.1} parent=11 // pred_check_branch
          %473 = sbr.rel (%p471) target = $region52
        $region51: #{tpu_custom_call.1} parent=11 // pred_region
          _
        $region52: #{tpu_custom_call.1} parent=11 // pred_fallthru
          _
        // Predicated region
        $region53: #{tpu_custom_call.1} parent=11 // pred_check
          %p474 = pneg %p316
        $region54: #{tpu_custom_call.1} parent=11 // pred_check_branch
          %476 = sbr.rel (%p474) target = $region56
        $region55: #{tpu_custom_call.1} parent=11 // pred_region
          %s478 = ssub.s32 16384, 16384
          %479 = vsyncadd [#allocation18], %s478
          %s480 = sshll.u32 [#allocation17], 4
          %s481 = int_to_ptr.vmem [resolvable:$true] %s480
          %486 = dma.hbm_to_vmem [thread:$0]  %s12, 16384, %s481, [#allocation18], 128, 128, 8
        $region56: #{tpu_custom_call.1} parent=11 // pred_fallthru
          _
        // Predicated region
        $region57: #{tpu_custom_call.1} parent=11 // pred_check
          %p487 = pneg %p337
        $region58: #{tpu_custom_call.1} parent=11 // pred_check_branch
          %489 = sbr.rel (%p487) target = $region60
        $region59: #{tpu_custom_call.1} parent=11 // pred_region
          _
        $region60: #{tpu_custom_call.1} parent=11 // pred_fallthru
          _
      $region12: #{tpu_custom_call.1} parent=5 // pred_fallthru
        _
      %p490 = scmp.lt.s32.totalorder %s33, 2
      // Predicated region
      $region61: #{tpu_custom_call.1} parent=5 // pred_check
        %p491 = pneg %p490
      $region62: #{tpu_custom_call.1} parent=5 // pred_check_branch
        %493 = sbr.rel (%p491) target = $region64
      $region63: #{tpu_custom_call.1} parent=5 // pred_region
        // Predicated region
        $region65: #{tpu_custom_call.1} parent=63 // pred_check
          %p494 = pneg %p53
        $region66: #{tpu_custom_call.1} parent=63 // pred_check_branch
          %496 = sbr.rel (%p494) target = $region68
        $region67: #{tpu_custom_call.1} parent=63 // pred_region
          %s497 = sand.u32 %s43, 1
          %s498 = scalar_lea.sflag [#allocation3], %s497
          %s499 = sand.u32 %s43, 1
          %s500 = smul.addr %s499, 256
          %s501 = scalar_lea.vmem [#allocation2], %s500
          %s502 = smul.u32 16, %s33
          %s504 = ssub.s32 4096, 4096
          %505 = vsyncadd %s498, %s504
          %s506 = smul.addr %s502, 2
          %s507 = smul.addr %s506, 128
          %s508 = scalar_lea.hbm %s0, %s507
          %s509 = sshll.u32 %s501, 4
          %s510 = int_to_ptr.vmem [resolvable:$true] %s509
          %515 = dma.hbm_to_vmem [thread:$0]  %s508, 4096, %s510, %s498, 256, 256, 16
        $region68: #{tpu_custom_call.1} parent=63 // pred_fallthru
          _
        // Predicated region
        $region69: #{tpu_custom_call.1} parent=63 // pred_check
          %p516 = pneg %p79
        $region70: #{tpu_custom_call.1} parent=63 // pred_check_branch
          %518 = sbr.rel (%p516) target = $region72
        $region71: #{tpu_custom_call.1} parent=63 // pred_region
          %s519 = sand.u32 %s33, 1
          %s520 = scalar_lea.sflag [#allocation6], %s519
          %s521 = sand.u32 %s69, 1
          %s522 = smul.addr %s521, 256
          %s523 = scalar_lea.vmem [#allocation5], %s522
          %s524 = smul.u32 16, %s33
          %s526 = ssub.s32 4096, 4096
          %527 = vsyncadd %s520, %s526
          %s528 = smul.addr %s524, 4
          %s529 = smul.addr %s528, 64
          %s530 = scalar_lea.hbm %s1, %s529
          %s531 = sshll.u32 %s523, 4
          %s532 = int_to_ptr.vmem [resolvable:$true] %s531
          %537 = dma.hbm_to_vmem [thread:$0]  %s530, 4096, %s532, %s520, 256, 256, 16
        $region72: #{tpu_custom_call.1} parent=63 // pred_fallthru
          _
      $region64: #{tpu_custom_call.1} parent=5 // pred_fallthru
        _
      %p538 = scmp.le.s32.totalorder 1, %s33
      %p539 = scmp.lt.s32.totalorder %s33, 3
      %p540 = pnand %p538, %p539
      %p541 = pneg %p540
      // Predicated region
      $region73: #{tpu_custom_call.1} parent=5 // pred_check
        _
      $region74: #{tpu_custom_call.1} parent=5 // pred_check_branch
        %543 = sbr.rel (%p540) target = $region76
      $region75: #{tpu_custom_call.1} parent=5 // pred_region
        %s544 = ssub.s32 %s33, 1
        %s545 = sand.u32 %s46, 1
        %s546 = scalar_lea.sflag [#allocation3], %s545
        %s547 = sand.u32 %s46, 1
        %s548 = smul.addr %s547, 256
        %s549 = scalar_lea.vmem [#allocation2], %s548
        // Predicated region
        $region77: #{tpu_custom_call.1} parent=75 // pred_check
          %p550 = pneg %p59
        $region78: #{tpu_custom_call.1} parent=75 // pred_check_branch
          %552 = sbr.rel (%p550) target = $region80
        $region79: #{tpu_custom_call.1} parent=75 // pred_region
          %553 = dma.done %s546, 4096
        $region80: #{tpu_custom_call.1} parent=75 // pred_fallthru
          _
        %s554 = sand.u32 %s38, 1
        %s555 = scalar_lea.sflag [#allocation6], %s554
        %s556 = sand.u32 %s72, 1
        %s557 = smul.addr %s556, 256
        %s558 = scalar_lea.vmem [#allocation5], %s557
        // Predicated region
        $region81: #{tpu_custom_call.1} parent=75 // pred_check
          %p559 = pneg %p85
        $region82: #{tpu_custom_call.1} parent=75 // pred_check_branch
          %561 = sbr.rel (%p559) target = $region84
        $region83: #{tpu_custom_call.1} parent=75 // pred_region
          %562 = dma.done %s555, 4096
        $region84: #{tpu_custom_call.1} parent=75 // pred_fallthru
          _
        // Predicated region
        $region85: #{tpu_custom_call.1} parent=75 // pred_check
          %p563 = pneg %p106
        $region86: #{tpu_custom_call.1} parent=75 // pred_check_branch
          %565 = sbr.rel (%p563) target = $region88
        $region87: #{tpu_custom_call.1} parent=75 // pred_region
          %566 = dma.done [#allocation6], 16384
        $region88: #{tpu_custom_call.1} parent=75 // pred_fallthru
          _
        // Predicated region
        $region89: #{tpu_custom_call.1} parent=75 // pred_check
          %p567 = pneg %p127
        $region90: #{tpu_custom_call.1} parent=75 // pred_check_branch
          %569 = sbr.rel (%p567) target = $region92
        $region91: #{tpu_custom_call.1} parent=75 // pred_region
          %570 = dma.done [#allocation9], 128
        $region92: #{tpu_custom_call.1} parent=75 // pred_fallthru
          _
        // Predicated region
        $region93: #{tpu_custom_call.1} parent=75 // pred_check
          %p571 = pneg %p148
        $region94: #{tpu_custom_call.1} parent=75 // pred_check_branch
          %573 = sbr.rel (%p571) target = $region96
        $region95: #{tpu_custom_call.1} parent=75 // pred_region
          %574 = dma.done [#allocation9], 32768
        $region96: #{tpu_custom_call.1} parent=75 // pred_fallthru
          _
        // Predicated region
        $region97: #{tpu_custom_call.1} parent=75 // pred_check
          %p575 = pneg %p190
        $region98: #{tpu_custom_call.1} parent=75 // pred_check_branch
          %577 = sbr.rel (%p575) target = $region100
        $region99: #{tpu_custom_call.1} parent=75 // pred_region
          %578 = dma.done [#allocation12], 16384
        $region100: #{tpu_custom_call.1} parent=75 // pred_fallthru
          _
        // Predicated region
        $region101: #{tpu_custom_call.1} parent=75 // pred_check
          %p579 = pneg %p232
        $region102: #{tpu_custom_call.1} parent=75 // pred_check_branch
          %581 = sbr.rel (%p579) target = $region104
        $region103: #{tpu_custom_call.1} parent=75 // pred_region
          %582 = dma.done [#allocation12], 16384
        $region104: #{tpu_custom_call.1} parent=75 // pred_fallthru
          _
        // Predicated region
        $region105: #{tpu_custom_call.1} parent=75 // pred_check
          %p583 = pneg %p253
        $region106: #{tpu_custom_call.1} parent=75 // pred_check_branch
          %585 = sbr.rel (%p583) target = $region108
        $region107: #{tpu_custom_call.1} parent=75 // pred_region
          %586 = dma.done [#allocation15], 64
        $region108: #{tpu_custom_call.1} parent=75 // pred_fallthru
          _
        // Predicated region
        $region109: #{tpu_custom_call.1} parent=75 // pred_check
          %p587 = pneg %p274
        $region110: #{tpu_custom_call.1} parent=75 // pred_check_branch
          %589 = sbr.rel (%p587) target = $region112
        $region111: #{tpu_custom_call.1} parent=75 // pred_region
          %590 = dma.done [#allocation15], 32768
        $region112: #{tpu_custom_call.1} parent=75 // pred_fallthru
          _
        // Predicated region
        $region113: #{tpu_custom_call.1} parent=75 // pred_check
          %p591 = pneg %p316
        $region114: #{tpu_custom_call.1} parent=75 // pred_check_branch
          %593 = sbr.rel (%p591) target = $region116
        $region115: #{tpu_custom_call.1} parent=75 // pred_region
          %594 = dma.done [#allocation18], 16384
        $region116: #{tpu_custom_call.1} parent=75 // pred_fallthru
          _
        %s595 = sand.u32 %s46, 1
        %s596 = scalar_lea.sflag [#allocation3], %s595
        %s597 = sand.u32 %s46, 1
        %s598 = smul.addr %s597, 256
        %s599 = scalar_lea.vmem [#allocation2], %s598
        %p600 = pneg %p59
        %p601 = pneg %p56
        %s602 = sand.u32 %s38, 1
        %s603 = scalar_lea.sflag [#allocation6], %s602
        %s604 = sand.u32 %s72, 1
        %s605 = smul.addr %s604, 256
        %s606 = scalar_lea.vmem [#allocation5], %s605
        %p607 = pneg %p85
        %p608 = pneg %p82
        %p609 = pneg %p106
        %p610 = pneg %p103
        %p611 = pneg %p127
        %p612 = pneg %p124
        %p613 = pneg %p148
        %p614 = pneg %p145
        %p615 = pneg %p169
        %p616 = pneg %p166
        %p617 = pneg %p190
        %p618 = pneg %p187
        %p619 = pneg %p211
        %p620 = pneg %p208
        %p621 = pneg %p232
        %p622 = pneg %p229
        %p623 = pneg %p253
        %p624 = pneg %p250
        %p625 = pneg %p274
        %p626 = pneg %p271
        %p627 = pneg %p295
        %p628 = pneg %p292
        %p629 = pneg %p316
        %p630 = pneg %p313
        %p631 = pneg %p337
        %p632 = pneg %p334
        %p633 = pneg %p363
        %p634 = pneg %p360
        %s635 = sand.u32 %s350, 1
        %s636 = scalar_lea.sflag [#allocation4], %s635
        %s637 = sand.u32 %s350, 1
        %s638 = smul.addr %s637, 256
        %s639 = scalar_lea.vmem [#allocation19], %s638
        %s640 = smul.u32 16, %s38
        %s641 = smul.u32 16, %s38
        %s642 = smul.u32 16, %s38
        %v643 = vld [vmem:[%s549] sm:$0xff]
        %v644 = vld [vmem:[%s549 + $0x8] sm:$0xff]
        %v645 = vld [vmem:[%s549 + $0x10] sm:$0xff]
        %v646 = vld [vmem:[%s549 + $0x18] sm:$0xff]
        %v647 = vld [vmem:[%s549 + $0x20] sm:$0xff]
        %v648 = vld [vmem:[%s549 + $0x28] sm:$0xff]
        %v649 = vld [vmem:[%s549 + $0x30] sm:$0xff]
        %v650 = vld [vmem:[%s549 + $0x38] sm:$0xff]
        %v651 = vld [vmem:[%s549 + $0x40] sm:$0xff]
        %v652 = vld [vmem:[%s549 + $0x48] sm:$0xff]
        %v653 = vld [vmem:[%s549 + $0x50] sm:$0xff]
        %v654 = vld [vmem:[%s549 + $0x58] sm:$0xff]
        %v655 = vld [vmem:[%s549 + $0x60] sm:$0xff]
        %v656 = vld [vmem:[%s549 + $0x68] sm:$0xff]
        %v657 = vld [vmem:[%s549 + $0x70] sm:$0xff]
        %v658 = vld [vmem:[%s549 + $0x78] sm:$0xff]
        %v659 = vld [vmem:[%s549 + $0x80] sm:$0xff]
        %v660 = vld [vmem:[%s549 + $0x88] sm:$0xff]
        %v661 = vld [vmem:[%s549 + $0x90] sm:$0xff]
        %v662 = vld [vmem:[%s549 + $0x98] sm:$0xff]
        %v663 = vld [vmem:[%s549 + $0xa0] sm:$0xff]
        %v664 = vld [vmem:[%s549 + $0xa8] sm:$0xff]
        %v665 = vld [vmem:[%s549 + $0xb0] sm:$0xff]
        %v666 = vld [vmem:[%s549 + $0xb8] sm:$0xff]
        %v667 = vld [vmem:[%s549 + $0xc0] sm:$0xff]
        %v668 = vld [vmem:[%s549 + $0xc8] sm:$0xff]
        %v669 = vld [vmem:[%s549 + $0xd0] sm:$0xff]
        %v670 = vld [vmem:[%s549 + $0xd8] sm:$0xff]
        %v671 = vld [vmem:[%s549 + $0xe0] sm:$0xff]
        %v672 = vld [vmem:[%s549 + $0xe8] sm:$0xff]
        %v673 = vld [vmem:[%s549 + $0xf0] sm:$0xff]
        %v674 = vld [vmem:[%s549 + $0xf8] sm:$0xff]
        %v675 = vpack.c.bf16 %v645, %v643
        %v676 = vpack.c.bf16 %v646, %v644
        %v677 = vpack.c.bf16 %v649, %v647
        %v678 = vpack.c.bf16 %v650, %v648
        %v679 = vpack.c.bf16 %v653, %v651
        %v680 = vpack.c.bf16 %v654, %v652
        %v681 = vpack.c.bf16 %v657, %v655
        %v682 = vpack.c.bf16 %v658, %v656
        %v683 = vpack.c.bf16 %v661, %v659
        %v684 = vpack.c.bf16 %v662, %v660
        %v685 = vpack.c.bf16 %v665, %v663
        %v686 = vpack.c.bf16 %v666, %v664
        %v687 = vpack.c.bf16 %v669, %v667
        %v688 = vpack.c.bf16 %v670, %v668
        %v689 = vpack.c.bf16 %v673, %v671
        %v690 = vpack.c.bf16 %v674, %v672
        %v691 = vld [vmem:[#allocation7] sm:$0xff]
        %v692 = vld [vmem:[#allocation7 + $0x8] sm:$0xff]
        %v693 = vld [vmem:[#allocation7 + $0x10] sm:$0xff]
        %v694 = vld [vmem:[#allocation7 + $0x18] sm:$0xff]
        %v695 = vld [vmem:[#allocation7 + $0x20] sm:$0xff]
        %v696 = vld [vmem:[#allocation7 + $0x28] sm:$0xff]
        %v697 = vld [vmem:[#allocation7 + $0x30] sm:$0xff]
        %v698 = vld [vmem:[#allocation7 + $0x38] sm:$0xff]
        %v699 = vld [vmem:[#allocation7 + $0x40] sm:$0xff]
        %v700 = vld [vmem:[#allocation7 + $0x48] sm:$0xff]
        %v701 = vld [vmem:[#allocation7 + $0x50] sm:$0xff]
        %v702 = vld [vmem:[#allocation7 + $0x58] sm:$0xff]
        %v703 = vld [vmem:[#allocation7 + $0x60] sm:$0xff]
        %v704 = vld [vmem:[#allocation7 + $0x68] sm:$0xff]
        %v705 = vld [vmem:[#allocation7 + $0x70] sm:$0xff]
        %v706 = vld [vmem:[#allocation7 + $0x78] sm:$0xff]
        %v707 = vld [vmem:[#allocation7 + $0x80] sm:$0xff]
        %v708 = vld [vmem:[#allocation7 + $0x88] sm:$0xff]
        %v709 = vld [vmem:[#allocation7 + $0x90] sm:$0xff]
        %v710 = vld [vmem:[#allocation7 + $0x98] sm:$0xff]
        %v711 = vld [vmem:[#allocation7 + $0xa0] sm:$0xff]
        %v712 = vld [vmem:[#allocation7 + $0xa8] sm:$0xff]
        %v713 = vld [vmem:[#allocation7 + $0xb0] sm:$0xff]
        %v714 = vld [vmem:[#allocation7 + $0xb8] sm:$0xff]
        %v715 = vld [vmem:[#allocation7 + $0xc0] sm:$0xff]
        %v716 = vld [vmem:[#allocation7 + $0xc8] sm:$0xff]
        %v717 = vld [vmem:[#allocation7 + $0xd0] sm:$0xff]
        %v718 = vld [vmem:[#allocation7 + $0xd8] sm:$0xff]
        %v719 = vld [vmem:[#allocation7 + $0xe0] sm:$0xff]
        %v720 = vld [vmem:[#allocation7 + $0xe8] sm:$0xff]
        %v721 = vld [vmem:[#allocation7 + $0xf0] sm:$0xff]
        %v722 = vld [vmem:[#allocation7 + $0xf8] sm:$0xff]
        %v723 = vld [vmem:[#allocation7 + $0x100] sm:$0xff]
        %v724 = vld [vmem:[#allocation7 + $0x108] sm:$0xff]
        %v725 = vld [vmem:[#allocation7 + $0x110] sm:$0xff]
        %v726 = vld [vmem:[#allocation7 + $0x118] sm:$0xff]
        %v727 = vld [vmem:[#allocation7 + $0x120] sm:$0xff]
        %v728 = vld [vmem:[#allocation7 + $0x128] sm:$0xff]
        %v729 = vld [vmem:[#allocation7 + $0x130] sm:$0xff]
        %v730 = vld [vmem:[#allocation7 + $0x138] sm:$0xff]
        %v731 = vld [vmem:[#allocation7 + $0x140] sm:$0xff]
        %v732 = vld [vmem:[#allocation7 + $0x148] sm:$0xff]
        %v733 = vld [vmem:[#allocation7 + $0x150] sm:$0xff]
        %v734 = vld [vmem:[#allocation7 + $0x158] sm:$0xff]
        %v735 = vld [vmem:[#allocation7 + $0x160] sm:$0xff]
        %v736 = vld [vmem:[#allocation7 + $0x168] sm:$0xff]
        %v737 = vld [vmem:[#allocation7 + $0x170] sm:$0xff]
        %v738 = vld [vmem:[#allocation7 + $0x178] sm:$0xff]
        %v739 = vld [vmem:[#allocation7 + $0x180] sm:$0xff]
        %v740 = vld [vmem:[#allocation7 + $0x188] sm:$0xff]
        %v741 = vld [vmem:[#allocation7 + $0x190] sm:$0xff]
        %v742 = vld [vmem:[#allocation7 + $0x198] sm:$0xff]
        %v743 = vld [vmem:[#allocation7 + $0x1a0] sm:$0xff]
        %v744 = vld [vmem:[#allocation7 + $0x1a8] sm:$0xff]
        %v745 = vld [vmem:[#allocation7 + $0x1b0] sm:$0xff]
        %v746 = vld [vmem:[#allocation7 + $0x1b8] sm:$0xff]
        %v747 = vld [vmem:[#allocation7 + $0x1c0] sm:$0xff]
        %v748 = vld [vmem:[#allocation7 + $0x1c8] sm:$0xff]
        %v749 = vld [vmem:[#allocation7 + $0x1d0] sm:$0xff]
        %v750 = vld [vmem:[#allocation7 + $0x1d8] sm:$0xff]
        %v751 = vld [vmem:[#allocation7 + $0x1e0] sm:$0xff]
        %v752 = vld [vmem:[#allocation7 + $0x1e8] sm:$0xff]
        %v753 = vld [vmem:[#allocation7 + $0x1f0] sm:$0xff]
        %v754 = vld [vmem:[#allocation7 + $0x1f8] sm:$0xff]
        %v755 = vld [vmem:[#allocation7 + $0x200] sm:$0xff]
        %v756 = vld [vmem:[#allocation7 + $0x208] sm:$0xff]
        %v757 = vld [vmem:[#allocation7 + $0x210] sm:$0xff]
        %v758 = vld [vmem:[#allocation7 + $0x218] sm:$0xff]
        %v759 = vld [vmem:[#allocation7 + $0x220] sm:$0xff]
        %v760 = vld [vmem:[#allocation7 + $0x228] sm:$0xff]
        %v761 = vld [vmem:[#allocation7 + $0x230] sm:$0xff]
        %v762 = vld [vmem:[#allocation7 + $0x238] sm:$0xff]
        %v763 = vld [vmem:[#allocation7 + $0x240] sm:$0xff]
        %v764 = vld [vmem:[#allocation7 + $0x248] sm:$0xff]
        %v765 = vld [vmem:[#allocation7 + $0x250] sm:$0xff]
        %v766 = vld [vmem:[#allocation7 + $0x258] sm:$0xff]
        %v767 = vld [vmem:[#allocation7 + $0x260] sm:$0xff]
        %v768 = vld [vmem:[#allocation7 + $0x268] sm:$0xff]
        %v769 = vld [vmem:[#allocation7 + $0x270] sm:$0xff]
        %v770 = vld [vmem:[#allocation7 + $0x278] sm:$0xff]
        %v771 = vld [vmem:[#allocation7 + $0x280] sm:$0xff]
        %v772 = vld [vmem:[#allocation7 + $0x288] sm:$0xff]
        %v773 = vld [vmem:[#allocation7 + $0x290] sm:$0xff]
        %v774 = vld [vmem:[#allocation7 + $0x298] sm:$0xff]
        %v775 = vld [vmem:[#allocation7 + $0x2a0] sm:$0xff]
        %v776 = vld [vmem:[#allocation7 + $0x2a8] sm:$0xff]
        %v777 = vld [vmem:[#allocation7 + $0x2b0] sm:$0xff]
        %v778 = vld [vmem:[#allocation7 + $0x2b8] sm:$0xff]
        %v779 = vld [vmem:[#allocation7 + $0x2c0] sm:$0xff]
        %v780 = vld [vmem:[#allocation7 + $0x2c8] sm:$0xff]
        %v781 = vld [vmem:[#allocation7 + $0x2d0] sm:$0xff]
        %v782 = vld [vmem:[#allocation7 + $0x2d8] sm:$0xff]
        %v783 = vld [vmem:[#allocation7 + $0x2e0] sm:$0xff]
        %v784 = vld [vmem:[#allocation7 + $0x2e8] sm:$0xff]
        %v785 = vld [vmem:[#allocation7 + $0x2f0] sm:$0xff]
        %v786 = vld [vmem:[#allocation7 + $0x2f8] sm:$0xff]
        %v787 = vld [vmem:[#allocation7 + $0x300] sm:$0xff]
        %v788 = vld [vmem:[#allocation7 + $0x308] sm:$0xff]
        %v789 = vld [vmem:[#allocation7 + $0x310] sm:$0xff]
        %v790 = vld [vmem:[#allocation7 + $0x318] sm:$0xff]
        %v791 = vld [vmem:[#allocation7 + $0x320] sm:$0xff]
        %v792 = vld [vmem:[#allocation7 + $0x328] sm:$0xff]
        %v793 = vld [vmem:[#allocation7 + $0x330] sm:$0xff]
        %v794 = vld [vmem:[#allocation7 + $0x338] sm:$0xff]
        %v795 = vld [vmem:[#allocation7 + $0x340] sm:$0xff]
        %v796 = vld [vmem:[#allocation7 + $0x348] sm:$0xff]
        %v797 = vld [vmem:[#allocation7 + $0x350] sm:$0xff]
        %v798 = vld [vmem:[#allocation7 + $0x358] sm:$0xff]
        %v799 = vld [vmem:[#allocation7 + $0x360] sm:$0xff]
        %v800 = vld [vmem:[#allocation7 + $0x368] sm:$0xff]
        %v801 = vld [vmem:[#allocation7 + $0x370] sm:$0xff]
        %v802 = vld [vmem:[#allocation7 + $0x378] sm:$0xff]
        %v803 = vld [vmem:[#allocation7 + $0x380] sm:$0xff]
        %v804 = vld [vmem:[#allocation7 + $0x388] sm:$0xff]
        %v805 = vld [vmem:[#allocation7 + $0x390] sm:$0xff]
        %v806 = vld [vmem:[#allocation7 + $0x398] sm:$0xff]
        %v807 = vld [vmem:[#allocation7 + $0x3a0] sm:$0xff]
        %v808 = vld [vmem:[#allocation7 + $0x3a8] sm:$0xff]
        %v809 = vld [vmem:[#allocation7 + $0x3b0] sm:$0xff]
        %v810 = vld [vmem:[#allocation7 + $0x3b8] sm:$0xff]
        %v811 = vld [vmem:[#allocation7 + $0x3c0] sm:$0xff]
        %v812 = vld [vmem:[#allocation7 + $0x3c8] sm:$0xff]
        %v813 = vld [vmem:[#allocation7 + $0x3d0] sm:$0xff]
        %v814 = vld [vmem:[#allocation7 + $0x3d8] sm:$0xff]
        %v815 = vld [vmem:[#allocation7 + $0x3e0] sm:$0xff]
        %v816 = vld [vmem:[#allocation7 + $0x3e8] sm:$0xff]
        %v817 = vld [vmem:[#allocation7 + $0x3f0] sm:$0xff]
        %v818 = vld [vmem:[#allocation7 + $0x3f8] sm:$0xff]
        %v819 = vld [vmem:[#allocation8] sm:$0xff]
        %v821 = vlaneseq
        %v822 = vshrl.u32 %v821, 7
        %v823 = vsub.s32 0, %v822
        %v824 = vrot.slane %v819, %v823
        %v825 = vlaneseq
        %v826 = vshrl.u32 %v825, 7
        %v827 = vsub.s32 1, %v826
        %v828 = vrot.slane %v819, %v827
        %v829 = vlaneseq
        %v830 = vshrl.u32 %v829, 7
        %v831 = vsub.s32 2, %v830
        %v832 = vrot.slane %v819, %v831
        %v833 = vlaneseq
        %v834 = vshrl.u32 %v833, 7
        %v835 = vsub.s32 3, %v834
        %v836 = vrot.slane %v819, %v835
        %v837 = vlaneseq
        %v838 = vshrl.u32 %v837, 7
        %v839 = vsub.s32 4, %v838
        %v840 = vrot.slane %v819, %v839
        %v841 = vlaneseq
        %v842 = vshrl.u32 %v841, 7
        %v843 = vsub.s32 5, %v842
        %v844 = vrot.slane %v819, %v843
        %v845 = vlaneseq
        %v846 = vshrl.u32 %v845, 7
        %v847 = vsub.s32 6, %v846
        %v848 = vrot.slane %v819, %v847
        %v849 = vlaneseq
        %v850 = vshrl.u32 %v849, 7
        %v851 = vsub.s32 7, %v850
        %v852 = vrot.slane %v819, %v851
        %v989 = vunpack.c.l.b16 %v691
        %v990 = vunpack.c.h.b16 %v691
        %v991 = vunpack.c.l.b16 %v692
        %v992 = vunpack.c.h.b16 %v692
        %v993 = vunpack.c.l.b16 %v693
        %v994 = vunpack.c.h.b16 %v693
        %v995 = vunpack.c.l.b16 %v694
        %v996 = vunpack.c.h.b16 %v694
        %v997 = vunpack.c.l.b16 %v695
        %v998 = vunpack.c.h.b16 %v695
        %v999 = vunpack.c.l.b16 %v696
        %v1000 = vunpack.c.h.b16 %v696
        %v1001 = vunpack.c.l.b16 %v697
        %v1002 = vunpack.c.h.b16 %v697
        %v1003 = vunpack.c.l.b16 %v698
        %v1004 = vunpack.c.h.b16 %v698
        %v1005 = vunpack.c.l.b16 %v699
        %v1006 = vunpack.c.h.b16 %v699
        %v1007 = vunpack.c.l.b16 %v700
        %v1008 = vunpack.c.h.b16 %v700
        %v1009 = vunpack.c.l.b16 %v701
        %v1010 = vunpack.c.h.b16 %v701
        %v1011 = vunpack.c.l.b16 %v702
        %v1012 = vunpack.c.h.b16 %v702
        %v1013 = vunpack.c.l.b16 %v703
        %v1014 = vunpack.c.h.b16 %v703
        %v1015 = vunpack.c.l.b16 %v704
        %v1016 = vunpack.c.h.b16 %v704
        %v1017 = vunpack.c.l.b16 %v705
        %v1018 = vunpack.c.h.b16 %v705
        %v1019 = vunpack.c.l.b16 %v706
        %v1020 = vunpack.c.h.b16 %v706
        %v1021 = vunpack.c.l.b16 %v707
        %v1022 = vunpack.c.h.b16 %v707
        %v1023 = vunpack.c.l.b16 %v708
        %v1024 = vunpack.c.h.b16 %v708
        %v1025 = vunpack.c.l.b16 %v709
        %v1026 = vunpack.c.h.b16 %v709
        %v1027 = vunpack.c.l.b16 %v710
        %v1028 = vunpack.c.h.b16 %v710
        %v1029 = vunpack.c.l.b16 %v711
        %v1030 = vunpack.c.h.b16 %v711
        %v1031 = vunpack.c.l.b16 %v712
        %v1032 = vunpack.c.h.b16 %v712
        %v1033 = vunpack.c.l.b16 %v713
        %v1034 = vunpack.c.h.b16 %v713
        %v1035 = vunpack.c.l.b16 %v714
        %v1036 = vunpack.c.h.b16 %v714
        %v1037 = vunpack.c.l.b16 %v715
        %v1038 = vunpack.c.h.b16 %v715
        %v1039 = vunpack.c.l.b16 %v716
        %v1040 = vunpack.c.h.b16 %v716
        %v1041 = vunpack.c.l.b16 %v717
        %v1042 = vunpack.c.h.b16 %v717
        %v1043 = vunpack.c.l.b16 %v718
        %v1044 = vunpack.c.h.b16 %v718
        %v1045 = vunpack.c.l.b16 %v719
        %v1046 = vunpack.c.h.b16 %v719
        %v1047 = vunpack.c.l.b16 %v720
        %v1048 = vunpack.c.h.b16 %v720
        %v1049 = vunpack.c.l.b16 %v721
        %v1050 = vunpack.c.h.b16 %v721
        %v1051 = vunpack.c.l.b16 %v722
        %v1052 = vunpack.c.h.b16 %v722
        %v1053 = vunpack.c.l.b16 %v723
        %v1054 = vunpack.c.h.b16 %v723
        %v1055 = vunpack.c.l.b16 %v724
        %v1056 = vunpack.c.h.b16 %v724
        %v1057 = vunpack.c.l.b16 %v725
        %v1058 = vunpack.c.h.b16 %v725
        %v1059 = vunpack.c.l.b16 %v726
        %v1060 = vunpack.c.h.b16 %v726
        %v1061 = vunpack.c.l.b16 %v727
        %v1062 = vunpack.c.h.b16 %v727
        %v1063 = vunpack.c.l.b16 %v728
        %v1064 = vunpack.c.h.b16 %v728
        %v1065 = vunpack.c.l.b16 %v729
        %v1066 = vunpack.c.h.b16 %v729
        %v1067 = vunpack.c.l.b16 %v730
        %v1068 = vunpack.c.h.b16 %v730
        %v1069 = vunpack.c.l.b16 %v731
        %v1070 = vunpack.c.h.b16 %v731
        %v1071 = vunpack.c.l.b16 %v732
        %v1072 = vunpack.c.h.b16 %v732
        %v1073 = vunpack.c.l.b16 %v733
        %v1074 = vunpack.c.h.b16 %v733
        %v1075 = vunpack.c.l.b16 %v734
        %v1076 = vunpack.c.h.b16 %v734
        %v1077 = vunpack.c.l.b16 %v735
        %v1078 = vunpack.c.h.b16 %v735
        %v1079 = vunpack.c.l.b16 %v736
        %v1080 = vunpack.c.h.b16 %v736
        %v1081 = vunpack.c.l.b16 %v737
        %v1082 = vunpack.c.h.b16 %v737
        %v1083 = vunpack.c.l.b16 %v738
        %v1084 = vunpack.c.h.b16 %v738
        %v1085 = vunpack.c.l.b16 %v739
        %v1086 = vunpack.c.h.b16 %v739
        %v1087 = vunpack.c.l.b16 %v740
        %v1088 = vunpack.c.h.b16 %v740
        %v1089 = vunpack.c.l.b16 %v741
        %v1090 = vunpack.c.h.b16 %v741
        %v1091 = vunpack.c.l.b16 %v742
        %v1092 = vunpack.c.h.b16 %v742
        %v1093 = vunpack.c.l.b16 %v743
        %v1094 = vunpack.c.h.b16 %v743
        %v1095 = vunpack.c.l.b16 %v744
        %v1096 = vunpack.c.h.b16 %v744
        %v1097 = vunpack.c.l.b16 %v745
        %v1098 = vunpack.c.h.b16 %v745
        %v1099 = vunpack.c.l.b16 %v746
        %v1100 = vunpack.c.h.b16 %v746
        %v1101 = vunpack.c.l.b16 %v747
        %v1102 = vunpack.c.h.b16 %v747
        %v1103 = vunpack.c.l.b16 %v748
        %v1104 = vunpack.c.h.b16 %v748
        %v1105 = vunpack.c.l.b16 %v749
        %v1106 = vunpack.c.h.b16 %v749
        %v1107 = vunpack.c.l.b16 %v750
        %v1108 = vunpack.c.h.b16 %v750
        %v1109 = vunpack.c.l.b16 %v751
        %v1110 = vunpack.c.h.b16 %v751
        %v1111 = vunpack.c.l.b16 %v752
        %v1112 = vunpack.c.h.b16 %v752
        %v1113 = vunpack.c.l.b16 %v753
        %v1114 = vunpack.c.h.b16 %v753
        %v1115 = vunpack.c.l.b16 %v754
        %v1116 = vunpack.c.h.b16 %v754
        %v1117 = vunpack.c.l.b16 %v755
        %v1118 = vunpack.c.h.b16 %v755
        %v1119 = vunpack.c.l.b16 %v756
        %v1120 = vunpack.c.h.b16 %v756
        %v1121 = vunpack.c.l.b16 %v757
        %v1122 = vunpack.c.h.b16 %v757
        %v1123 = vunpack.c.l.b16 %v758
        %v1124 = vunpack.c.h.b16 %v758
        %v1125 = vunpack.c.l.b16 %v759
        %v1126 = vunpack.c.h.b16 %v759
        %v1127 = vunpack.c.l.b16 %v760
        %v1128 = vunpack.c.h.b16 %v760
        %v1129 = vunpack.c.l.b16 %v761
        %v1130 = vunpack.c.h.b16 %v761
        %v1131 = vunpack.c.l.b16 %v762
        %v1132 = vunpack.c.h.b16 %v762
        %v1133 = vunpack.c.l.b16 %v763
        %v1134 = vunpack.c.h.b16 %v763
        %v1135 = vunpack.c.l.b16 %v764
        %v1136 = vunpack.c.h.b16 %v764
        %v1137 = vunpack.c.l.b16 %v765
        %v1138 = vunpack.c.h.b16 %v765
        %v1139 = vunpack.c.l.b16 %v766
        %v1140 = vunpack.c.h.b16 %v766
        %v1141 = vunpack.c.l.b16 %v767
        %v1142 = vunpack.c.h.b16 %v767
        %v1143 = vunpack.c.l.b16 %v768
        %v1144 = vunpack.c.h.b16 %v768
        %v1145 = vunpack.c.l.b16 %v769
        %v1146 = vunpack.c.h.b16 %v769
        %v1147 = vunpack.c.l.b16 %v770
        %v1148 = vunpack.c.h.b16 %v770
        %v1149 = vunpack.c.l.b16 %v771
        %v1150 = vunpack.c.h.b16 %v771
        %v1151 = vunpack.c.l.b16 %v772
        %v1152 = vunpack.c.h.b16 %v772
        %v1153 = vunpack.c.l.b16 %v773
        %v1154 = vunpack.c.h.b16 %v773
        %v1155 = vunpack.c.l.b16 %v774
        %v1156 = vunpack.c.h.b16 %v774
        %v1157 = vunpack.c.l.b16 %v775
        %v1158 = vunpack.c.h.b16 %v775
        %v1159 = vunpack.c.l.b16 %v776
        %v1160 = vunpack.c.h.b16 %v776
        %v1161 = vunpack.c.l.b16 %v777
        %v1162 = vunpack.c.h.b16 %v777
        %v1163 = vunpack.c.l.b16 %v778
        %v1164 = vunpack.c.h.b16 %v778
        %v1165 = vunpack.c.l.b16 %v779
        %v1166 = vunpack.c.h.b16 %v779
        %v1167 = vunpack.c.l.b16 %v780
        %v1168 = vunpack.c.h.b16 %v780
        %v1169 = vunpack.c.l.b16 %v781
        %v1170 = vunpack.c.h.b16 %v781
        %v1171 = vunpack.c.l.b16 %v782
        %v1172 = vunpack.c.h.b16 %v782
        %v1173 = vunpack.c.l.b16 %v783
        %v1174 = vunpack.c.h.b16 %v783
        %v1175 = vunpack.c.l.b16 %v784
        %v1176 = vunpack.c.h.b16 %v784
        %v1177 = vunpack.c.l.b16 %v785
        %v1178 = vunpack.c.h.b16 %v785
        %v1179 = vunpack.c.l.b16 %v786
        %v1180 = vunpack.c.h.b16 %v786
        %v1181 = vunpack.c.l.b16 %v787
        %v1182 = vunpack.c.h.b16 %v787
        %v1183 = vunpack.c.l.b16 %v788
        %v1184 = vunpack.c.h.b16 %v788
        %v1185 = vunpack.c.l.b16 %v789
        %v1186 = vunpack.c.h.b16 %v789
        %v1187 = vunpack.c.l.b16 %v790
        %v1188 = vunpack.c.h.b16 %v790
        %v1189 = vunpack.c.l.b16 %v791
        %v1190 = vunpack.c.h.b16 %v791
        %v1191 = vunpack.c.l.b16 %v792
        %v1192 = vunpack.c.h.b16 %v792
        %v1193 = vunpack.c.l.b16 %v793
        %v1194 = vunpack.c.h.b16 %v793
        %v1195 = vunpack.c.l.b16 %v794
        %v1196 = vunpack.c.h.b16 %v794
        %v1197 = vunpack.c.l.b16 %v795
        %v1198 = vunpack.c.h.b16 %v795
        %v1199 = vunpack.c.l.b16 %v796
        %v1200 = vunpack.c.h.b16 %v796
        %v1201 = vunpack.c.l.b16 %v797
        %v1202 = vunpack.c.h.b16 %v797
        %v1203 = vunpack.c.l.b16 %v798
        %v1204 = vunpack.c.h.b16 %v798
        %v1205 = vunpack.c.l.b16 %v799
        %v1206 = vunpack.c.h.b16 %v799
        %v1207 = vunpack.c.l.b16 %v800
        %v1208 = vunpack.c.h.b16 %v800
        %v1209 = vunpack.c.l.b16 %v801
        %v1210 = vunpack.c.h.b16 %v801
        %v1211 = vunpack.c.l.b16 %v802
        %v1212 = vunpack.c.h.b16 %v802
        %v1213 = vunpack.c.l.b16 %v803
        %v1214 = vunpack.c.h.b16 %v803
        %v1215 = vunpack.c.l.b16 %v804
        %v1216 = vunpack.c.h.b16 %v804
        %v1217 = vunpack.c.l.b16 %v805
        %v1218 = vunpack.c.h.b16 %v805
        %v1219 = vunpack.c.l.b16 %v806
        %v1220 = vunpack.c.h.b16 %v806
        %v1221 = vunpack.c.l.b16 %v807
        %v1222 = vunpack.c.h.b16 %v807
        %v1223 = vunpack.c.l.b16 %v808
        %v1224 = vunpack.c.h.b16 %v808
        %v1225 = vunpack.c.l.b16 %v809
        %v1226 = vunpack.c.h.b16 %v809
        %v1227 = vunpack.c.l.b16 %v810
        %v1228 = vunpack.c.h.b16 %v810
        %v1229 = vunpack.c.l.b16 %v811
        %v1230 = vunpack.c.h.b16 %v811
        %v1231 = vunpack.c.l.b16 %v812
        %v1232 = vunpack.c.h.b16 %v812
        %v1233 = vunpack.c.l.b16 %v813
        %v1234 = vunpack.c.h.b16 %v813
        %v1235 = vunpack.c.l.b16 %v814
        %v1236 = vunpack.c.h.b16 %v814
        %v1237 = vunpack.c.l.b16 %v815
        %v1238 = vunpack.c.h.b16 %v815
        %v1239 = vunpack.c.l.b16 %v816
        %v1240 = vunpack.c.h.b16 %v816
        %v1241 = vunpack.c.l.b16 %v817
        %v1242 = vunpack.c.h.b16 %v817
        %v1243 = vunpack.c.l.b16 %v818
        %v1244 = vunpack.c.h.b16 %v818
        %v1245 = vpack.c.b16 %v997, %v989
        %v1246 = vpack.c.b16 %v998, %v990
        %v1247 = vpack.c.b16 %v999, %v991
        %v1248 = vpack.c.b16 %v1000, %v992
        %v1249 = vpack.c.b16 %v1001, %v993
        %v1250 = vpack.c.b16 %v1002, %v994
        %v1251 = vpack.c.b16 %v1003, %v995
        %v1252 = vpack.c.b16 %v1004, %v996
        %v1253 = vpack.c.b16 %v1013, %v1005
        %v1254 = vpack.c.b16 %v1014, %v1006
        %v1255 = vpack.c.b16 %v1015, %v1007
        %v1256 = vpack.c.b16 %v1016, %v1008
        %v1257 = vpack.c.b16 %v1017, %v1009
        %v1258 = vpack.c.b16 %v1018, %v1010
        %v1259 = vpack.c.b16 %v1019, %v1011
        %v1260 = vpack.c.b16 %v1020, %v1012
        %v1261 = vpack.c.b16 %v1029, %v1021
        %v1262 = vpack.c.b16 %v1030, %v1022
        %v1263 = vpack.c.b16 %v1031, %v1023
        %v1264 = vpack.c.b16 %v1032, %v1024
        %v1265 = vpack.c.b16 %v1033, %v1025
        %v1266 = vpack.c.b16 %v1034, %v1026
        %v1267 = vpack.c.b16 %v1035, %v1027
        %v1268 = vpack.c.b16 %v1036, %v1028
        %v1269 = vpack.c.b16 %v1045, %v1037
        %v1270 = vpack.c.b16 %v1046, %v1038
        %v1271 = vpack.c.b16 %v1047, %v1039
        %v1272 = vpack.c.b16 %v1048, %v1040
        %v1273 = vpack.c.b16 %v1049, %v1041
        %v1274 = vpack.c.b16 %v1050, %v1042
        %v1275 = vpack.c.b16 %v1051, %v1043
        %v1276 = vpack.c.b16 %v1052, %v1044
        %v1277 = vpack.c.b16 %v1061, %v1053
        %v1278 = vpack.c.b16 %v1062, %v1054
        %v1279 = vpack.c.b16 %v1063, %v1055
        %v1280 = vpack.c.b16 %v1064, %v1056
        %v1281 = vpack.c.b16 %v1065, %v1057
        %v1282 = vpack.c.b16 %v1066, %v1058
        %v1283 = vpack.c.b16 %v1067, %v1059
        %v1284 = vpack.c.b16 %v1068, %v1060
        %v1285 = vpack.c.b16 %v1077, %v1069
        %v1286 = vpack.c.b16 %v1078, %v1070
        %v1287 = vpack.c.b16 %v1079, %v1071
        %v1288 = vpack.c.b16 %v1080, %v1072
        %v1289 = vpack.c.b16 %v1081, %v1073
        %v1290 = vpack.c.b16 %v1082, %v1074
        %v1291 = vpack.c.b16 %v1083, %v1075
        %v1292 = vpack.c.b16 %v1084, %v1076
        %v1293 = vpack.c.b16 %v1093, %v1085
        %v1294 = vpack.c.b16 %v1094, %v1086
        %v1295 = vpack.c.b16 %v1095, %v1087
        %v1296 = vpack.c.b16 %v1096, %v1088
        %v1297 = vpack.c.b16 %v1097, %v1089
        %v1298 = vpack.c.b16 %v1098, %v1090
        %v1299 = vpack.c.b16 %v1099, %v1091
        %v1300 = vpack.c.b16 %v1100, %v1092
        %v1301 = vpack.c.b16 %v1109, %v1101
        %v1302 = vpack.c.b16 %v1110, %v1102
        %v1303 = vpack.c.b16 %v1111, %v1103
        %v1304 = vpack.c.b16 %v1112, %v1104
        %v1305 = vpack.c.b16 %v1113, %v1105
        %v1306 = vpack.c.b16 %v1114, %v1106
        %v1307 = vpack.c.b16 %v1115, %v1107
        %v1308 = vpack.c.b16 %v1116, %v1108
        %v1309 = vpack.c.b16 %v1125, %v1117
        %v1310 = vpack.c.b16 %v1126, %v1118
        %v1311 = vpack.c.b16 %v1127, %v1119
        %v1312 = vpack.c.b16 %v1128, %v1120
        %v1313 = vpack.c.b16 %v1129, %v1121
        %v1314 = vpack.c.b16 %v1130, %v1122
        %v1315 = vpack.c.b16 %v1131, %v1123
        %v1316 = vpack.c.b16 %v1132, %v1124
        %v1317 = vpack.c.b16 %v1141, %v1133
        %v1318 = vpack.c.b16 %v1142, %v1134
        %v1319 = vpack.c.b16 %v1143, %v1135
        %v1320 = vpack.c.b16 %v1144, %v1136
        %v1321 = vpack.c.b16 %v1145, %v1137
        %v1322 = vpack.c.b16 %v1146, %v1138
        %v1323 = vpack.c.b16 %v1147, %v1139
        %v1324 = vpack.c.b16 %v1148, %v1140
        %v1325 = vpack.c.b16 %v1157, %v1149
        %v1326 = vpack.c.b16 %v1158, %v1150
        %v1327 = vpack.c.b16 %v1159, %v1151
        %v1328 = vpack.c.b16 %v1160, %v1152
        %v1329 = vpack.c.b16 %v1161, %v1153
        %v1330 = vpack.c.b16 %v1162, %v1154
        %v1331 = vpack.c.b16 %v1163, %v1155
        %v1332 = vpack.c.b16 %v1164, %v1156
        %v1333 = vpack.c.b16 %v1173, %v1165
        %v1334 = vpack.c.b16 %v1174, %v1166
        %v1335 = vpack.c.b16 %v1175, %v1167
        %v1336 = vpack.c.b16 %v1176, %v1168
        %v1337 = vpack.c.b16 %v1177, %v1169
        %v1338 = vpack.c.b16 %v1178, %v1170
        %v1339 = vpack.c.b16 %v1179, %v1171
        %v1340 = vpack.c.b16 %v1180, %v1172
        %v1341 = vpack.c.b16 %v1189, %v1181
        %v1342 = vpack.c.b16 %v1190, %v1182
        %v1343 = vpack.c.b16 %v1191, %v1183
        %v1344 = vpack.c.b16 %v1192, %v1184
        %v1345 = vpack.c.b16 %v1193, %v1185
        %v1346 = vpack.c.b16 %v1194, %v1186
        %v1347 = vpack.c.b16 %v1195, %v1187
        %v1348 = vpack.c.b16 %v1196, %v1188
        %v1349 = vpack.c.b16 %v1205, %v1197
        %v1350 = vpack.c.b16 %v1206, %v1198
        %v1351 = vpack.c.b16 %v1207, %v1199
        %v1352 = vpack.c.b16 %v1208, %v1200
        %v1353 = vpack.c.b16 %v1209, %v1201
        %v1354 = vpack.c.b16 %v1210, %v1202
        %v1355 = vpack.c.b16 %v1211, %v1203
        %v1356 = vpack.c.b16 %v1212, %v1204
        %v1357 = vpack.c.b16 %v1221, %v1213
        %v1358 = vpack.c.b16 %v1222, %v1214
        %v1359 = vpack.c.b16 %v1223, %v1215
        %v1360 = vpack.c.b16 %v1224, %v1216
        %v1361 = vpack.c.b16 %v1225, %v1217
        %v1362 = vpack.c.b16 %v1226, %v1218
        %v1363 = vpack.c.b16 %v1227, %v1219
        %v1364 = vpack.c.b16 %v1228, %v1220
        %v1365 = vpack.c.b16 %v1237, %v1229
        %v1366 = vpack.c.b16 %v1238, %v1230
        %v1367 = vpack.c.b16 %v1239, %v1231
        %v1368 = vpack.c.b16 %v1240, %v1232
        %v1369 = vpack.c.b16 %v1241, %v1233
        %v1370 = vpack.c.b16 %v1242, %v1234
        %v1371 = vpack.c.b16 %v1243, %v1235
        %v1372 = vpack.c.b16 %v1244, %v1236
        %1501 = vmatprep.subr.bf16.mxu0 %v1302
        %1502 = vmatpush1.bf16.msra.mxu0 %v1301
        %1503 = vmatprep.subr.bf16.mxu0 %v1294
        %1504 = vmatpush1.bf16.msra.mxu0 %v1293
        %1505 = vmatprep.subr.bf16.mxu0 %v1286
        %1506 = vmatpush1.bf16.msra.mxu0 %v1285
        %1507 = vmatprep.subr.bf16.mxu0 %v1278
        %1508 = vmatpush1.bf16.msra.mxu0 %v1277
        %1509 = vmatprep.subr.bf16.mxu0 %v1270
        %1510 = vmatpush1.bf16.msra.mxu0 %v1269
        %1511 = vmatprep.subr.bf16.mxu0 %v1262
        %1512 = vmatpush1.bf16.msra.mxu0 %v1261
        %1513 = vmatprep.subr.bf16.mxu0 %v1254
        %1514 = vmatpush1.bf16.msra.mxu0 %v1253
        %1515 = vmatprep.subr.bf16.mxu0 %v1246
        %1516 = vmatpush1.bf16.msra.mxu0 %v1245
        %1517 = vmatprep.subr.bf16.mxu0 %v1366
        %1518 = vmatpush2.bf16.msra.mxu0 %v1365
        %1519 = vmatprep.subr.bf16.mxu0 %v1358
        %1520 = vmatpush2.bf16.msra.mxu0 %v1357
        %1521 = vmatprep.subr.bf16.mxu0 %v1350
        %1522 = vmatpush2.bf16.msra.mxu0 %v1349
        %1523 = vmatprep.subr.bf16.mxu0 %v1342
        %1524 = vmatpush2.bf16.msra.mxu0 %v1341
        %1525 = vmatprep.subr.bf16.mxu0 %v1334
        %1526 = vmatpush2.bf16.msra.mxu0 %v1333
        %1527 = vmatprep.subr.bf16.mxu0 %v1326
        %1528 = vmatpush2.bf16.msra.mxu0 %v1325
        %1529 = vmatprep.subr.bf16.mxu0 %v1318
        %1530 = vmatpush2.bf16.msra.mxu0 %v1317
        %1531 = vmatprep.subr.bf16.mxu0 %v1310
        %1532 = vmatpush2.bf16.msra.mxu0 %v1309
        %1533 = vmatprep.mubr.bf16.mxu0 %v676
        %1534 = vmatmul.mubr.bf16.gmra.mxu0 %v675
        %v1535 = vpop.f32.mrf.mxu0
        %v1536 = vadd.f32 %v824, %v1535
        %v1537 = vpop.f32.mrf.mxu0
        %v1538 = vadd.f32 %v828, %v1537
        %v1539 = vpop.f32.mrf.mxu0
        %v1540 = vadd.f32 %v824, %v1539
        %v1541 = vpop.f32.mrf.mxu0
        %v1542 = vadd.f32 %v828, %v1541
        %1543 = vmatprep.mubr.bf16.mxu0 %v678
        %1544 = vmatmul.mubr.bf16.gmra.mxu0 %v677
        %v1545 = vpop.f32.mrf.mxu0
        %v1546 = vadd.f32 %v824, %v1545
        %v1547 = vpop.f32.mrf.mxu0
        %v1548 = vadd.f32 %v828, %v1547
        %v1549 = vpop.f32.mrf.mxu0
        %v1550 = vadd.f32 %v824, %v1549
        %v1551 = vpop.f32.mrf.mxu0
        %v1552 = vadd.f32 %v828, %v1551
        %1553 = vmatprep.mubr.bf16.mxu0 %v680
        %1554 = vmatmul.mubr.bf16.gmra.mxu0 %v679
        %v1555 = vpop.f32.mrf.mxu0
        %v1556 = vadd.f32 %v824, %v1555
        %v1557 = vpop.f32.mrf.mxu0
        %v1558 = vadd.f32 %v828, %v1557
        %v1559 = vpop.f32.mrf.mxu0
        %v1560 = vadd.f32 %v824, %v1559
        %v1561 = vpop.f32.mrf.mxu0
        %v1562 = vadd.f32 %v828, %v1561
        %1563 = vmatprep.mubr.bf16.mxu0 %v682
        %1564 = vmatmul.mubr.bf16.gmra.mxu0 %v681
        %v1565 = vpop.f32.mrf.mxu0
        %v1566 = vadd.f32 %v824, %v1565
        %v1567 = vpop.f32.mrf.mxu0
        %v1568 = vadd.f32 %v828, %v1567
        %v1569 = vpop.f32.mrf.mxu0
        %v1570 = vadd.f32 %v824, %v1569
        %v1571 = vpop.f32.mrf.mxu0
        %v1572 = vadd.f32 %v828, %v1571
        %1573 = vmatprep.mubr.bf16.mxu0 %v684
        %1574 = vmatmul.mubr.bf16.gmra.mxu0 %v683
        %v1575 = vpop.f32.mrf.mxu0
        %v1576 = vadd.f32 %v824, %v1575
        %v1577 = vpop.f32.mrf.mxu0
        %v1578 = vadd.f32 %v828, %v1577
        %v1579 = vpop.f32.mrf.mxu0
        %v1580 = vadd.f32 %v824, %v1579
        %v1581 = vpop.f32.mrf.mxu0
        %v1582 = vadd.f32 %v828, %v1581
        %1583 = vmatprep.mubr.bf16.mxu0 %v686
        %1584 = vmatmul.mubr.bf16.gmra.mxu0 %v685
        %v1585 = vpop.f32.mrf.mxu0
        %v1586 = vadd.f32 %v824, %v1585
        %v1587 = vpop.f32.mrf.mxu0
        %v1588 = vadd.f32 %v828, %v1587
        %v1589 = vpop.f32.mrf.mxu0
        %v1590 = vadd.f32 %v824, %v1589
        %v1591 = vpop.f32.mrf.mxu0
        %v1592 = vadd.f32 %v828, %v1591
        %1593 = vmatprep.mubr.bf16.mxu0 %v688
        %1594 = vmatmul.mubr.bf16.gmra.mxu0 %v687
        %v1595 = vpop.f32.mrf.mxu0
        %v1596 = vadd.f32 %v824, %v1595
        %v1597 = vpop.f32.mrf.mxu0
        %v1598 = vadd.f32 %v828, %v1597
        %v1599 = vpop.f32.mrf.mxu0
        %v1600 = vadd.f32 %v824, %v1599
        %v1601 = vpop.f32.mrf.mxu0
        %v1602 = vadd.f32 %v828, %v1601
        %1603 = vmatprep.mubr.bf16.mxu0 %v690
        %1604 = vmatmul.mubr.bf16.gmra.mxu0 %v689
        %v1605 = vpop.f32.mrf.mxu0
        %v1606 = vadd.f32 %v824, %v1605
        %v1607 = vpop.f32.mrf.mxu0
        %v1608 = vadd.f32 %v828, %v1607
        %v1609 = vpop.f32.mrf.mxu0
        %v1610 = vadd.f32 %v824, %v1609
        %v1611 = vpop.f32.mrf.mxu0
        %v1612 = vadd.f32 %v828, %v1611
        %1613 = vdwg.mxu0
        %1614 = vmatprep.subr.bf16.mxu0 %v1304
        %1615 = vmatpush1.bf16.msra.mxu0 %v1303
        %1616 = vmatprep.subr.bf16.mxu0 %v1296
        %1617 = vmatpush1.bf16.msra.mxu0 %v1295
        %1618 = vmatprep.subr.bf16.mxu0 %v1288
        %1619 = vmatpush1.bf16.msra.mxu0 %v1287
        %1620 = vmatprep.subr.bf16.mxu0 %v1280
        %1621 = vmatpush1.bf16.msra.mxu0 %v1279
        %1622 = vmatprep.subr.bf16.mxu0 %v1272
        %1623 = vmatpush1.bf16.msra.mxu0 %v1271
        %1624 = vmatprep.subr.bf16.mxu0 %v1264
        %1625 = vmatpush1.bf16.msra.mxu0 %v1263
        %1626 = vmatprep.subr.bf16.mxu0 %v1256
        %1627 = vmatpush1.bf16.msra.mxu0 %v1255
        %1628 = vmatprep.subr.bf16.mxu0 %v1248
        %1629 = vmatpush1.bf16.msra.mxu0 %v1247
        %1630 = vmatprep.subr.bf16.mxu0 %v1368
        %1631 = vmatpush2.bf16.msra.mxu0 %v1367
        %1632 = vmatprep.subr.bf16.mxu0 %v1360
        %1633 = vmatpush2.bf16.msra.mxu0 %v1359
        %1634 = vmatprep.subr.bf16.mxu0 %v1352
        %1635 = vmatpush2.bf16.msra.mxu0 %v1351
        %1636 = vmatprep.subr.bf16.mxu0 %v1344
        %1637 = vmatpush2.bf16.msra.mxu0 %v1343
        %1638 = vmatprep.subr.bf16.mxu0 %v1336
        %1639 = vmatpush2.bf16.msra.mxu0 %v1335
        %1640 = vmatprep.subr.bf16.mxu0 %v1328
        %1641 = vmatpush2.bf16.msra.mxu0 %v1327
        %1642 = vmatprep.subr.bf16.mxu0 %v1320
        %1643 = vmatpush2.bf16.msra.mxu0 %v1319
        %1644 = vmatprep.subr.bf16.mxu0 %v1312
        %1645 = vmatpush2.bf16.msra.mxu0 %v1311
        %1646 = vmatprep.mubr.bf16.mxu0 %v676
        %1647 = vmatmul.mubr.bf16.gmra.mxu0 %v675
        %v1648 = vpop.f32.mrf.mxu0
        %v1649 = vadd.f32 %v832, %v1648
        %v1650 = vpop.f32.mrf.mxu0
        %v1651 = vadd.f32 %v836, %v1650
        %v1652 = vpop.f32.mrf.mxu0
        %v1653 = vadd.f32 %v832, %v1652
        %v1654 = vpop.f32.mrf.mxu0
        %v1655 = vadd.f32 %v836, %v1654
        %1656 = vmatprep.mubr.bf16.mxu0 %v678
        %1657 = vmatmul.mubr.bf16.gmra.mxu0 %v677
        %v1658 = vpop.f32.mrf.mxu0
        %v1659 = vadd.f32 %v832, %v1658
        %v1660 = vpop.f32.mrf.mxu0
        %v1661 = vadd.f32 %v836, %v1660
        %v1662 = vpop.f32.mrf.mxu0
        %v1663 = vadd.f32 %v832, %v1662
        %v1664 = vpop.f32.mrf.mxu0
        %v1665 = vadd.f32 %v836, %v1664
        %1666 = vmatprep.mubr.bf16.mxu0 %v680
        %1667 = vmatmul.mubr.bf16.gmra.mxu0 %v679
        %v1668 = vpop.f32.mrf.mxu0
        %v1669 = vadd.f32 %v832, %v1668
        %v1670 = vpop.f32.mrf.mxu0
        %v1671 = vadd.f32 %v836, %v1670
        %v1672 = vpop.f32.mrf.mxu0
        %v1673 = vadd.f32 %v832, %v1672
        %v1674 = vpop.f32.mrf.mxu0
        %v1675 = vadd.f32 %v836, %v1674
        %1676 = vmatprep.mubr.bf16.mxu0 %v682
        %1677 = vmatmul.mubr.bf16.gmra.mxu0 %v681
        %v1678 = vpop.f32.mrf.mxu0
        %v1679 = vadd.f32 %v832, %v1678
        %v1680 = vpop.f32.mrf.mxu0
        %v1681 = vadd.f32 %v836, %v1680
        %v1682 = vpop.f32.mrf.mxu0
        %v1683 = vadd.f32 %v832, %v1682
        %v1684 = vpop.f32.mrf.mxu0
        %v1685 = vadd.f32 %v836, %v1684
        %1686 = vmatprep.mubr.bf16.mxu0 %v684
        %1687 = vmatmul.mubr.bf16.gmra.mxu0 %v683
        %v1688 = vpop.f32.mrf.mxu0
        %v1689 = vadd.f32 %v832, %v1688
        %v1690 = vpop.f32.mrf.mxu0
        %v1691 = vadd.f32 %v836, %v1690
        %v1692 = vpop.f32.mrf.mxu0
        %v1693 = vadd.f32 %v832, %v1692
        %v1694 = vpop.f32.mrf.mxu0
        %v1695 = vadd.f32 %v836, %v1694
        %1696 = vmatprep.mubr.bf16.mxu0 %v686
        %1697 = vmatmul.mubr.bf16.gmra.mxu0 %v685
        %v1698 = vpop.f32.mrf.mxu0
        %v1699 = vadd.f32 %v832, %v1698
        %v1700 = vpop.f32.mrf.mxu0
        %v1701 = vadd.f32 %v836, %v1700
        %v1702 = vpop.f32.mrf.mxu0
        %v1703 = vadd.f32 %v832, %v1702
        %v1704 = vpop.f32.mrf.mxu0
        %v1705 = vadd.f32 %v836, %v1704
        %1706 = vmatprep.mubr.bf16.mxu0 %v688
        %1707 = vmatmul.mubr.bf16.gmra.mxu0 %v687
        %v1708 = vpop.f32.mrf.mxu0
        %v1709 = vadd.f32 %v832, %v1708
        %v1710 = vpop.f32.mrf.mxu0
        %v1711 = vadd.f32 %v836, %v1710
        %v1712 = vpop.f32.mrf.mxu0
        %v1713 = vadd.f32 %v832, %v1712
        %v1714 = vpop.f32.mrf.mxu0
        %v1715 = vadd.f32 %v836, %v1714
        %1716 = vmatprep.mubr.bf16.mxu0 %v690
        %1717 = vmatmul.mubr.bf16.gmra.mxu0 %v689
        %v1718 = vpop.f32.mrf.mxu0
        %v1719 = vadd.f32 %v832, %v1718
        %v1720 = vpop.f32.mrf.mxu0
        %v1721 = vadd.f32 %v836, %v1720
        %v1722 = vpop.f32.mrf.mxu0
        %v1723 = vadd.f32 %v832, %v1722
        %v1724 = vpop.f32.mrf.mxu0
        %v1725 = vadd.f32 %v836, %v1724
        %1726 = vdwg.mxu0
        %1727 = vmatprep.subr.bf16.mxu0 %v1306
        %1728 = vmatpush1.bf16.msra.mxu0 %v1305
        %1729 = vmatprep.subr.bf16.mxu0 %v1298
        %1730 = vmatpush1.bf16.msra.mxu0 %v1297
        %1731 = vmatprep.subr.bf16.mxu0 %v1290
        %1732 = vmatpush1.bf16.msra.mxu0 %v1289
        %1733 = vmatprep.subr.bf16.mxu0 %v1282
        %1734 = vmatpush1.bf16.msra.mxu0 %v1281
        %1735 = vmatprep.subr.bf16.mxu0 %v1274
        %1736 = vmatpush1.bf16.msra.mxu0 %v1273
        %1737 = vmatprep.subr.bf16.mxu0 %v1266
        %1738 = vmatpush1.bf16.msra.mxu0 %v1265
        %1739 = vmatprep.subr.bf16.mxu0 %v1258
        %1740 = vmatpush1.bf16.msra.mxu0 %v1257
        %1741 = vmatprep.subr.bf16.mxu0 %v1250
        %1742 = vmatpush1.bf16.msra.mxu0 %v1249
        %1743 = vmatprep.subr.bf16.mxu0 %v1370
        %1744 = vmatpush2.bf16.msra.mxu0 %v1369
        %1745 = vmatprep.subr.bf16.mxu0 %v1362
        %1746 = vmatpush2.bf16.msra.mxu0 %v1361
        %1747 = vmatprep.subr.bf16.mxu0 %v1354
        %1748 = vmatpush2.bf16.msra.mxu0 %v1353
        %1749 = vmatprep.subr.bf16.mxu0 %v1346
        %1750 = vmatpush2.bf16.msra.mxu0 %v1345
        %1751 = vmatprep.subr.bf16.mxu0 %v1338
        %1752 = vmatpush2.bf16.msra.mxu0 %v1337
        %1753 = vmatprep.subr.bf16.mxu0 %v1330
        %1754 = vmatpush2.bf16.msra.mxu0 %v1329
        %1755 = vmatprep.subr.bf16.mxu0 %v1322
        %1756 = vmatpush2.bf16.msra.mxu0 %v1321
        %1757 = vmatprep.subr.bf16.mxu0 %v1314
        %1758 = vmatpush2.bf16.msra.mxu0 %v1313
        %1759 = vmatprep.mubr.bf16.mxu0 %v676
        %1760 = vmatmul.mubr.bf16.gmra.mxu0 %v675
        %v1761 = vpop.f32.mrf.mxu0
        %v1762 = vadd.f32 %v840, %v1761
        %v1763 = vpop.f32.mrf.mxu0
        %v1764 = vadd.f32 %v844, %v1763
        %v1765 = vpop.f32.mrf.mxu0
        %v1766 = vadd.f32 %v840, %v1765
        %v1767 = vpop.f32.mrf.mxu0
        %v1768 = vadd.f32 %v844, %v1767
        %1769 = vmatprep.mubr.bf16.mxu0 %v678
        %1770 = vmatmul.mubr.bf16.gmra.mxu0 %v677
        %v1771 = vpop.f32.mrf.mxu0
        %v1772 = vadd.f32 %v840, %v1771
        %v1773 = vpop.f32.mrf.mxu0
        %v1774 = vadd.f32 %v844, %v1773
        %v1775 = vpop.f32.mrf.mxu0
        %v1776 = vadd.f32 %v840, %v1775
        %v1777 = vpop.f32.mrf.mxu0
        %v1778 = vadd.f32 %v844, %v1777
        %1779 = vmatprep.mubr.bf16.mxu0 %v680
        %1780 = vmatmul.mubr.bf16.gmra.mxu0 %v679
        %v1781 = vpop.f32.mrf.mxu0
        %v1782 = vadd.f32 %v840, %v1781
        %v1783 = vpop.f32.mrf.mxu0
        %v1784 = vadd.f32 %v844, %v1783
        %v1785 = vpop.f32.mrf.mxu0
        %v1786 = vadd.f32 %v840, %v1785
        %v1787 = vpop.f32.mrf.mxu0
        %v1788 = vadd.f32 %v844, %v1787
        %1789 = vmatprep.mubr.bf16.mxu0 %v682
        %1790 = vmatmul.mubr.bf16.gmra.mxu0 %v681
        %v1791 = vpop.f32.mrf.mxu0
        %v1792 = vadd.f32 %v840, %v1791
        %v1793 = vpop.f32.mrf.mxu0
        %v1794 = vadd.f32 %v844, %v1793
        %v1795 = vpop.f32.mrf.mxu0
        %v1796 = vadd.f32 %v840, %v1795
        %v1797 = vpop.f32.mrf.mxu0
        %v1798 = vadd.f32 %v844, %v1797
        %1799 = vmatprep.mubr.bf16.mxu0 %v684
        %1800 = vmatmul.mubr.bf16.gmra.mxu0 %v683
        %v1801 = vpop.f32.mrf.mxu0
        %v1802 = vadd.f32 %v840, %v1801
        %v1803 = vpop.f32.mrf.mxu0
        %v1804 = vadd.f32 %v844, %v1803
        %v1805 = vpop.f32.mrf.mxu0
        %v1806 = vadd.f32 %v840, %v1805
        %v1807 = vpop.f32.mrf.mxu0
        %v1808 = vadd.f32 %v844, %v1807
        %1809 = vmatprep.mubr.bf16.mxu0 %v686
        %1810 = vmatmul.mubr.bf16.gmra.mxu0 %v685
        %v1811 = vpop.f32.mrf.mxu0
        %v1812 = vadd.f32 %v840, %v1811
        %v1813 = vpop.f32.mrf.mxu0
        %v1814 = vadd.f32 %v844, %v1813
        %v1815 = vpop.f32.mrf.mxu0
        %v1816 = vadd.f32 %v840, %v1815
        %v1817 = vpop.f32.mrf.mxu0
        %v1818 = vadd.f32 %v844, %v1817
        %1819 = vmatprep.mubr.bf16.mxu0 %v688
        %1820 = vmatmul.mubr.bf16.gmra.mxu0 %v687
        %v1821 = vpop.f32.mrf.mxu0
        %v1822 = vadd.f32 %v840, %v1821
        %v1823 = vpop.f32.mrf.mxu0
        %v1824 = vadd.f32 %v844, %v1823
        %v1825 = vpop.f32.mrf.mxu0
        %v1826 = vadd.f32 %v840, %v1825
        %v1827 = vpop.f32.mrf.mxu0
        %v1828 = vadd.f32 %v844, %v1827
        %1829 = vmatprep.mubr.bf16.mxu0 %v690
        %1830 = vmatmul.mubr.bf16.gmra.mxu0 %v689
        %v1831 = vpop.f32.mrf.mxu0
        %v1832 = vadd.f32 %v840, %v1831
        %v1833 = vpop.f32.mrf.mxu0
        %v1834 = vadd.f32 %v844, %v1833
        %v1835 = vpop.f32.mrf.mxu0
        %v1836 = vadd.f32 %v840, %v1835
        %v1837 = vpop.f32.mrf.mxu0
        %v1838 = vadd.f32 %v844, %v1837
        %1839 = vdwg.mxu0
        %1840 = vmatprep.subr.bf16.mxu0 %v1308
        %1841 = vmatpush1.bf16.msra.mxu0 %v1307
        %1842 = vmatprep.subr.bf16.mxu0 %v1300
        %1843 = vmatpush1.bf16.msra.mxu0 %v1299
        %1844 = vmatprep.subr.bf16.mxu0 %v1292
        %1845 = vmatpush1.bf16.msra.mxu0 %v1291
        %1846 = vmatprep.subr.bf16.mxu0 %v1284
        %1847 = vmatpush1.bf16.msra.mxu0 %v1283
        %1848 = vmatprep.subr.bf16.mxu0 %v1276
        %1849 = vmatpush1.bf16.msra.mxu0 %v1275
        %1850 = vmatprep.subr.bf16.mxu0 %v1268
        %1851 = vmatpush1.bf16.msra.mxu0 %v1267
        %1852 = vmatprep.subr.bf16.mxu0 %v1260
        %1853 = vmatpush1.bf16.msra.mxu0 %v1259
        %1854 = vmatprep.subr.bf16.mxu0 %v1252
        %1855 = vmatpush1.bf16.msra.mxu0 %v1251
        %1856 = vmatprep.subr.bf16.mxu0 %v1372
        %1857 = vmatpush2.bf16.msra.mxu0 %v1371
        %1858 = vmatprep.subr.bf16.mxu0 %v1364
        %1859 = vmatpush2.bf16.msra.mxu0 %v1363
        %1860 = vmatprep.subr.bf16.mxu0 %v1356
        %1861 = vmatpush2.bf16.msra.mxu0 %v1355
        %1862 = vmatprep.subr.bf16.mxu0 %v1348
        %1863 = vmatpush2.bf16.msra.mxu0 %v1347
        %1864 = vmatprep.subr.bf16.mxu0 %v1340
        %1865 = vmatpush2.bf16.msra.mxu0 %v1339
        %1866 = vmatprep.subr.bf16.mxu0 %v1332
        %1867 = vmatpush2.bf16.msra.mxu0 %v1331
        %1868 = vmatprep.subr.bf16.mxu0 %v1324
        %1869 = vmatpush2.bf16.msra.mxu0 %v1323
        %1870 = vmatprep.subr.bf16.mxu0 %v1316
        %1871 = vmatpush2.bf16.msra.mxu0 %v1315
        %1872 = vmatprep.mubr.bf16.mxu0 %v676
        %1873 = vmatmul.mubr.bf16.gmra.mxu0 %v675
        %v1874 = vpop.f32.mrf.mxu0
        %v1875 = vadd.f32 %v848, %v1874
        %v1876 = vpop.f32.mrf.mxu0
        %v1877 = vadd.f32 %v852, %v1876
        %v1878 = vpop.f32.mrf.mxu0
        %v1879 = vadd.f32 %v848, %v1878
        %v1880 = vpop.f32.mrf.mxu0
        %v1881 = vadd.f32 %v852, %v1880
        %1882 = vmatprep.mubr.bf16.mxu0 %v678
        %1883 = vmatmul.mubr.bf16.gmra.mxu0 %v677
        %v1884 = vpop.f32.mrf.mxu0
        %v1885 = vadd.f32 %v848, %v1884
        %v1886 = vpop.f32.mrf.mxu0
        %v1887 = vadd.f32 %v852, %v1886
        %v1888 = vpop.f32.mrf.mxu0
        %v1889 = vadd.f32 %v848, %v1888
        %v1890 = vpop.f32.mrf.mxu0
        %v1891 = vadd.f32 %v852, %v1890
        %1892 = vmatprep.mubr.bf16.mxu0 %v680
        %1893 = vmatmul.mubr.bf16.gmra.mxu0 %v679
        %v1894 = vpop.f32.mrf.mxu0
        %v1895 = vadd.f32 %v848, %v1894
        %v1896 = vpop.f32.mrf.mxu0
        %v1897 = vadd.f32 %v852, %v1896
        %v1898 = vpop.f32.mrf.mxu0
        %v1899 = vadd.f32 %v848, %v1898
        %v1900 = vpop.f32.mrf.mxu0
        %v1901 = vadd.f32 %v852, %v1900
        %1902 = vmatprep.mubr.bf16.mxu0 %v682
        %1903 = vmatmul.mubr.bf16.gmra.mxu0 %v681
        %v1904 = vpop.f32.mrf.mxu0
        %v1905 = vadd.f32 %v848, %v1904
        %v1906 = vpop.f32.mrf.mxu0
        %v1907 = vadd.f32 %v852, %v1906
        %v1908 = vpop.f32.mrf.mxu0
        %v1909 = vadd.f32 %v848, %v1908
        %v1910 = vpop.f32.mrf.mxu0
        %v1911 = vadd.f32 %v852, %v1910
        %1912 = vmatprep.mubr.bf16.mxu0 %v684
        %1913 = vmatmul.mubr.bf16.gmra.mxu0 %v683
        %v1914 = vpop.f32.mrf.mxu0
        %v1915 = vadd.f32 %v848, %v1914
        %v1916 = vpop.f32.mrf.mxu0
        %v1917 = vadd.f32 %v852, %v1916
        %v1918 = vpop.f32.mrf.mxu0
        %v1919 = vadd.f32 %v848, %v1918
        %v1920 = vpop.f32.mrf.mxu0
        %v1921 = vadd.f32 %v852, %v1920
        %1922 = vmatprep.mubr.bf16.mxu0 %v686
        %1923 = vmatmul.mubr.bf16.gmra.mxu0 %v685
        %v1924 = vpop.f32.mrf.mxu0
        %v1925 = vadd.f32 %v848, %v1924
        %v1926 = vpop.f32.mrf.mxu0
        %v1927 = vadd.f32 %v852, %v1926
        %v1928 = vpop.f32.mrf.mxu0
        %v1929 = vadd.f32 %v848, %v1928
        %v1930 = vpop.f32.mrf.mxu0
        %v1931 = vadd.f32 %v852, %v1930
        %1932 = vmatprep.mubr.bf16.mxu0 %v688
        %1933 = vmatmul.mubr.bf16.gmra.mxu0 %v687
        %v1934 = vpop.f32.mrf.mxu0
        %v1935 = vadd.f32 %v848, %v1934
        %v1936 = vpop.f32.mrf.mxu0
        %v1937 = vadd.f32 %v852, %v1936
        %v1938 = vpop.f32.mrf.mxu0
        %v1939 = vadd.f32 %v848, %v1938
        %v1940 = vpop.f32.mrf.mxu0
        %v1941 = vadd.f32 %v852, %v1940
        %1942 = vmatprep.mubr.bf16.mxu0 %v690
        %1943 = vmatmul.mubr.bf16.gmra.mxu0 %v689
        %v1944 = vpop.f32.mrf.mxu0
        %v1945 = vadd.f32 %v848, %v1944
        %v1946 = vpop.f32.mrf.mxu0
        %v1947 = vadd.f32 %v852, %v1946
        %v1948 = vpop.f32.mrf.mxu0
        %v1949 = vadd.f32 %v848, %v1948
        %v1950 = vpop.f32.mrf.mxu0
        %v1951 = vadd.f32 %v852, %v1950
        %1952 = vdwg.mxu0
        %v1953 = vmax.f32 %v1536, 0.0
        %v1954 = vmax.f32 %v1538, 0.0
        %v1955 = vmax.f32 %v1649, 0.0
        %v1956 = vmax.f32 %v1651, 0.0
        %v1957 = vmax.f32 %v1762, 0.0
        %v1958 = vmax.f32 %v1764, 0.0
        %v1959 = vmax.f32 %v1875, 0.0
        %v1960 = vmax.f32 %v1877, 0.0
        %v1961 = vmax.f32 %v1540, 0.0
        %v1962 = vmax.f32 %v1542, 0.0
        %v1963 = vmax.f32 %v1653, 0.0
        %v1964 = vmax.f32 %v1655, 0.0
        %v1965 = vmax.f32 %v1766, 0.0
        %v1966 = vmax.f32 %v1768, 0.0
        %v1967 = vmax.f32 %v1879, 0.0
        %v1968 = vmax.f32 %v1881, 0.0
        %v1969 = vmax.f32 %v1546, 0.0
        %v1970 = vmax.f32 %v1548, 0.0
        %v1971 = vmax.f32 %v1659, 0.0
        %v1972 = vmax.f32 %v1661, 0.0
        %v1973 = vmax.f32 %v1772, 0.0
        %v1974 = vmax.f32 %v1774, 0.0
        %v1975 = vmax.f32 %v1885, 0.0
        %v1976 = vmax.f32 %v1887, 0.0
        %v1977 = vmax.f32 %v1550, 0.0
        %v1978 = vmax.f32 %v1552, 0.0
        %v1979 = vmax.f32 %v1663, 0.0
        %v1980 = vmax.f32 %v1665, 0.0
        %v1981 = vmax.f32 %v1776, 0.0
        %v1982 = vmax.f32 %v1778, 0.0
        %v1983 = vmax.f32 %v1889, 0.0
        %v1984 = vmax.f32 %v1891, 0.0
        %v1985 = vmax.f32 %v1556, 0.0
        %v1986 = vmax.f32 %v1558, 0.0
        %v1987 = vmax.f32 %v1669, 0.0
        %v1988 = vmax.f32 %v1671, 0.0
        %v1989 = vmax.f32 %v1782, 0.0
        %v1990 = vmax.f32 %v1784, 0.0
        %v1991 = vmax.f32 %v1895, 0.0
        %v1992 = vmax.f32 %v1897, 0.0
        %v1993 = vmax.f32 %v1560, 0.0
        %v1994 = vmax.f32 %v1562, 0.0
        %v1995 = vmax.f32 %v1673, 0.0
        %v1996 = vmax.f32 %v1675, 0.0
        %v1997 = vmax.f32 %v1786, 0.0
        %v1998 = vmax.f32 %v1788, 0.0
        %v1999 = vmax.f32 %v1899, 0.0
        %v2000 = vmax.f32 %v1901, 0.0
        %v2001 = vmax.f32 %v1566, 0.0
        %v2002 = vmax.f32 %v1568, 0.0
        %v2003 = vmax.f32 %v1679, 0.0
        %v2004 = vmax.f32 %v1681, 0.0
        %v2005 = vmax.f32 %v1792, 0.0
        %v2006 = vmax.f32 %v1794, 0.0
        %v2007 = vmax.f32 %v1905, 0.0
        %v2008 = vmax.f32 %v1907, 0.0
        %v2009 = vmax.f32 %v1570, 0.0
        %v2010 = vmax.f32 %v1572, 0.0
        %v2011 = vmax.f32 %v1683, 0.0
        %v2012 = vmax.f32 %v1685, 0.0
        %v2013 = vmax.f32 %v1796, 0.0
        %v2014 = vmax.f32 %v1798, 0.0
        %v2015 = vmax.f32 %v1909, 0.0
        %v2016 = vmax.f32 %v1911, 0.0
        %v2017 = vmax.f32 %v1576, 0.0
        %v2018 = vmax.f32 %v1578, 0.0
        %v2019 = vmax.f32 %v1689, 0.0
        %v2020 = vmax.f32 %v1691, 0.0
        %v2021 = vmax.f32 %v1802, 0.0
        %v2022 = vmax.f32 %v1804, 0.0
        %v2023 = vmax.f32 %v1915, 0.0
        %v2024 = vmax.f32 %v1917, 0.0
        %v2025 = vmax.f32 %v1580, 0.0
        %v2026 = vmax.f32 %v1582, 0.0
        %v2027 = vmax.f32 %v1693, 0.0
        %v2028 = vmax.f32 %v1695, 0.0
        %v2029 = vmax.f32 %v1806, 0.0
        %v2030 = vmax.f32 %v1808, 0.0
        %v2031 = vmax.f32 %v1919, 0.0
        %v2032 = vmax.f32 %v1921, 0.0
        %v2033 = vmax.f32 %v1586, 0.0
        %v2034 = vmax.f32 %v1588, 0.0
        %v2035 = vmax.f32 %v1699, 0.0
        %v2036 = vmax.f32 %v1701, 0.0
        %v2037 = vmax.f32 %v1812, 0.0
        %v2038 = vmax.f32 %v1814, 0.0
        %v2039 = vmax.f32 %v1925, 0.0
        %v2040 = vmax.f32 %v1927, 0.0
        %v2041 = vmax.f32 %v1590, 0.0
        %v2042 = vmax.f32 %v1592, 0.0
        %v2043 = vmax.f32 %v1703, 0.0
        %v2044 = vmax.f32 %v1705, 0.0
        %v2045 = vmax.f32 %v1816, 0.0
        %v2046 = vmax.f32 %v1818, 0.0
        %v2047 = vmax.f32 %v1929, 0.0
        %v2048 = vmax.f32 %v1931, 0.0
        %v2049 = vmax.f32 %v1596, 0.0
        %v2050 = vmax.f32 %v1598, 0.0
        %v2051 = vmax.f32 %v1709, 0.0
        %v2052 = vmax.f32 %v1711, 0.0
        %v2053 = vmax.f32 %v1822, 0.0
        %v2054 = vmax.f32 %v1824, 0.0
        %v2055 = vmax.f32 %v1935, 0.0
        %v2056 = vmax.f32 %v1937, 0.0
        %v2057 = vmax.f32 %v1600, 0.0
        %v2058 = vmax.f32 %v1602, 0.0
        %v2059 = vmax.f32 %v1713, 0.0
        %v2060 = vmax.f32 %v1715, 0.0
        %v2061 = vmax.f32 %v1826, 0.0
        %v2062 = vmax.f32 %v1828, 0.0
        %v2063 = vmax.f32 %v1939, 0.0
        %v2064 = vmax.f32 %v1941, 0.0
        %v2065 = vmax.f32 %v1606, 0.0
        %v2066 = vmax.f32 %v1608, 0.0
        %v2067 = vmax.f32 %v1719, 0.0
        %v2068 = vmax.f32 %v1721, 0.0
        %v2069 = vmax.f32 %v1832, 0.0
        %v2070 = vmax.f32 %v1834, 0.0
        %v2071 = vmax.f32 %v1945, 0.0
        %v2072 = vmax.f32 %v1947, 0.0
        %v2073 = vmax.f32 %v1610, 0.0
        %v2074 = vmax.f32 %v1612, 0.0
        %v2075 = vmax.f32 %v1723, 0.0
        %v2076 = vmax.f32 %v1725, 0.0
        %v2077 = vmax.f32 %v1836, 0.0
        %v2078 = vmax.f32 %v1838, 0.0
        %v2079 = vmax.f32 %v1949, 0.0
        %v2080 = vmax.f32 %v1951, 0.0
        %v2081 = vpack.c.bf16 %v1961, %v1953
        %v2082 = vpack.c.bf16 %v1962, %v1954
        %v2083 = vpack.c.bf16 %v1963, %v1955
        %v2084 = vpack.c.bf16 %v1964, %v1956
        %v2085 = vpack.c.bf16 %v1965, %v1957
        %v2086 = vpack.c.bf16 %v1966, %v1958
        %v2087 = vpack.c.bf16 %v1967, %v1959
        %v2088 = vpack.c.bf16 %v1968, %v1960
        %v2089 = vpack.c.bf16 %v1977, %v1969
        %v2090 = vpack.c.bf16 %v1978, %v1970
        %v2091 = vpack.c.bf16 %v1979, %v1971
        %v2092 = vpack.c.bf16 %v1980, %v1972
        %v2093 = vpack.c.bf16 %v1981, %v1973
        %v2094 = vpack.c.bf16 %v1982, %v1974
        %v2095 = vpack.c.bf16 %v1983, %v1975
        %v2096 = vpack.c.bf16 %v1984, %v1976
        %v2097 = vpack.c.bf16 %v1993, %v1985
        %v2098 = vpack.c.bf16 %v1994, %v1986
        %v2099 = vpack.c.bf16 %v1995, %v1987
        %v2100 = vpack.c.bf16 %v1996, %v1988
        %v2101 = vpack.c.bf16 %v1997, %v1989
        %v2102 = vpack.c.bf16 %v1998, %v1990
        %v2103 = vpack.c.bf16 %v1999, %v1991
        %v2104 = vpack.c.bf16 %v2000, %v1992
        %v2105 = vpack.c.bf16 %v2009, %v2001
        %v2106 = vpack.c.bf16 %v2010, %v2002
        %v2107 = vpack.c.bf16 %v2011, %v2003
        %v2108 = vpack.c.bf16 %v2012, %v2004
        %v2109 = vpack.c.bf16 %v2013, %v2005
        %v2110 = vpack.c.bf16 %v2014, %v2006
        %v2111 = vpack.c.bf16 %v2015, %v2007
        %v2112 = vpack.c.bf16 %v2016, %v2008
        %v2113 = vpack.c.bf16 %v2025, %v2017
        %v2114 = vpack.c.bf16 %v2026, %v2018
        %v2115 = vpack.c.bf16 %v2027, %v2019
        %v2116 = vpack.c.bf16 %v2028, %v2020
        %v2117 = vpack.c.bf16 %v2029, %v2021
        %v2118 = vpack.c.bf16 %v2030, %v2022
        %v2119 = vpack.c.bf16 %v2031, %v2023
        %v2120 = vpack.c.bf16 %v2032, %v2024
        %v2121 = vpack.c.bf16 %v2041, %v2033
        %v2122 = vpack.c.bf16 %v2042, %v2034
        %v2123 = vpack.c.bf16 %v2043, %v2035
        %v2124 = vpack.c.bf16 %v2044, %v2036
        %v2125 = vpack.c.bf16 %v2045, %v2037
        %v2126 = vpack.c.bf16 %v2046, %v2038
        %v2127 = vpack.c.bf16 %v2047, %v2039
        %v2128 = vpack.c.bf16 %v2048, %v2040
        %v2129 = vpack.c.bf16 %v2057, %v2049
        %v2130 = vpack.c.bf16 %v2058, %v2050
        %v2131 = vpack.c.bf16 %v2059, %v2051
        %v2132 = vpack.c.bf16 %v2060, %v2052
        %v2133 = vpack.c.bf16 %v2061, %v2053
        %v2134 = vpack.c.bf16 %v2062, %v2054
        %v2135 = vpack.c.bf16 %v2063, %v2055
        %v2136 = vpack.c.bf16 %v2064, %v2056
        %v2137 = vpack.c.bf16 %v2073, %v2065
        %v2138 = vpack.c.bf16 %v2074, %v2066
        %v2139 = vpack.c.bf16 %v2075, %v2067
        %v2140 = vpack.c.bf16 %v2076, %v2068
        %v2141 = vpack.c.bf16 %v2077, %v2069
        %v2142 = vpack.c.bf16 %v2078, %v2070
        %v2143 = vpack.c.bf16 %v2079, %v2071
        %v2144 = vpack.c.bf16 %v2080, %v2072
        %v2145 = vld [vmem:[#allocation10] sm:$0xff]
        %v2146 = vld [vmem:[#allocation10 + $0x8] sm:$0xff]
        %v2147 = vld [vmem:[#allocation10 + $0x10] sm:$0xff]
        %v2148 = vld [vmem:[#allocation10 + $0x18] sm:$0xff]
        %v2149 = vld [vmem:[#allocation10 + $0x20] sm:$0xff]
        %v2150 = vld [vmem:[#allocation10 + $0x28] sm:$0xff]
        %v2151 = vld [vmem:[#allocation10 + $0x30] sm:$0xff]
        %v2152 = vld [vmem:[#allocation10 + $0x38] sm:$0xff]
        %v2153 = vld [vmem:[#allocation10 + $0x40] sm:$0xff]
        %v2154 = vld [vmem:[#allocation10 + $0x48] sm:$0xff]
        %v2155 = vld [vmem:[#allocation10 + $0x50] sm:$0xff]
        %v2156 = vld [vmem:[#allocation10 + $0x58] sm:$0xff]
        %v2157 = vld [vmem:[#allocation10 + $0x60] sm:$0xff]
        %v2158 = vld [vmem:[#allocation10 + $0x68] sm:$0xff]
        %v2159 = vld [vmem:[#allocation10 + $0x70] sm:$0xff]
        %v2160 = vld [vmem:[#allocation10 + $0x78] sm:$0xff]
        %v2161 = vld [vmem:[#allocation10 + $0x80] sm:$0xff]
        %v2162 = vld [vmem:[#allocation10 + $0x88] sm:$0xff]
        %v2163 = vld [vmem:[#allocation10 + $0x90] sm:$0xff]
        %v2164 = vld [vmem:[#allocation10 + $0x98] sm:$0xff]
        %v2165 = vld [vmem:[#allocation10 + $0xa0] sm:$0xff]
        %v2166 = vld [vmem:[#allocation10 + $0xa8] sm:$0xff]
        %v2167 = vld [vmem:[#allocation10 + $0xb0] sm:$0xff]
        %v2168 = vld [vmem:[#allocation10 + $0xb8] sm:$0xff]
        %v2169 = vld [vmem:[#allocation10 + $0xc0] sm:$0xff]
        %v2170 = vld [vmem:[#allocation10 + $0xc8] sm:$0xff]
        %v2171 = vld [vmem:[#allocation10 + $0xd0] sm:$0xff]
        %v2172 = vld [vmem:[#allocation10 + $0xd8] sm:$0xff]
        %v2173 = vld [vmem:[#allocation10 + $0xe0] sm:$0xff]
        %v2174 = vld [vmem:[#allocation10 + $0xe8] sm:$0xff]
        %v2175 = vld [vmem:[#allocation10 + $0xf0] sm:$0xff]
        %v2176 = vld [vmem:[#allocation10 + $0xf8] sm:$0xff]
        %v2177 = vld [vmem:[#allocation10 + $0x100] sm:$0xff]
        %v2178 = vld [vmem:[#allocation10 + $0x108] sm:$0xff]
        %v2179 = vld [vmem:[#allocation10 + $0x110] sm:$0xff]
        %v2180 = vld [vmem:[#allocation10 + $0x118] sm:$0xff]
        %v2181 = vld [vmem:[#allocation10 + $0x120] sm:$0xff]
        %v2182 = vld [vmem:[#allocation10 + $0x128] sm:$0xff]
        %v2183 = vld [vmem:[#allocation10 + $0x130] sm:$0xff]
        %v2184 = vld [vmem:[#allocation10 + $0x138] sm:$0xff]
        %v2185 = vld [vmem:[#allocation10 + $0x140] sm:$0xff]
        %v2186 = vld [vmem:[#allocation10 + $0x148] sm:$0xff]
        %v2187 = vld [vmem:[#allocation10 + $0x150] sm:$0xff]
        %v2188 = vld [vmem:[#allocation10 + $0x158] sm:$0xff]
        %v2189 = vld [vmem:[#allocation10 + $0x160] sm:$0xff]
        %v2190 = vld [vmem:[#allocation10 + $0x168] sm:$0xff]
        %v2191 = vld [vmem:[#allocation10 + $0x170] sm:$0xff]
        %v2192 = vld [vmem:[#allocation10 + $0x178] sm:$0xff]
        %v2193 = vld [vmem:[#allocation10 + $0x180] sm:$0xff]
        %v2194 = vld [vmem:[#allocation10 + $0x188] sm:$0xff]
        %v2195 = vld [vmem:[#allocation10 + $0x190] sm:$0xff]
        %v2196 = vld [vmem:[#allocation10 + $0x198] sm:$0xff]
        %v2197 = vld [vmem:[#allocation10 + $0x1a0] sm:$0xff]
        %v2198 = vld [vmem:[#allocation10 + $0x1a8] sm:$0xff]
        %v2199 = vld [vmem:[#allocation10 + $0x1b0] sm:$0xff]
        %v2200 = vld [vmem:[#allocation10 + $0x1b8] sm:$0xff]
        %v2201 = vld [vmem:[#allocation10 + $0x1c0] sm:$0xff]
        %v2202 = vld [vmem:[#allocation10 + $0x1c8] sm:$0xff]
        %v2203 = vld [vmem:[#allocation10 + $0x1d0] sm:$0xff]
        %v2204 = vld [vmem:[#allocation10 + $0x1d8] sm:$0xff]
        %v2205 = vld [vmem:[#allocation10 + $0x1e0] sm:$0xff]
        %v2206 = vld [vmem:[#allocation10 + $0x1e8] sm:$0xff]
        %v2207 = vld [vmem:[#allocation10 + $0x1f0] sm:$0xff]
        %v2208 = vld [vmem:[#allocation10 + $0x1f8] sm:$0xff]
        %v2209 = vld [vmem:[#allocation10 + $0x200] sm:$0xff]
        %v2210 = vld [vmem:[#allocation10 + $0x208] sm:$0xff]
        %v2211 = vld [vmem:[#allocation10 + $0x210] sm:$0xff]
        %v2212 = vld [vmem:[#allocation10 + $0x218] sm:$0xff]
        %v2213 = vld [vmem:[#allocation10 + $0x220] sm:$0xff]
        %v2214 = vld [vmem:[#allocation10 + $0x228] sm:$0xff]
        %v2215 = vld [vmem:[#allocation10 + $0x230] sm:$0xff]
        %v2216 = vld [vmem:[#allocation10 + $0x238] sm:$0xff]
        %v2217 = vld [vmem:[#allocation10 + $0x240] sm:$0xff]
        %v2218 = vld [vmem:[#allocation10 + $0x248] sm:$0xff]
        %v2219 = vld [vmem:[#allocation10 + $0x250] sm:$0xff]
        %v2220 = vld [vmem:[#allocation10 + $0x258] sm:$0xff]
        %v2221 = vld [vmem:[#allocation10 + $0x260] sm:$0xff]
        %v2222 = vld [vmem:[#allocation10 + $0x268] sm:$0xff]
        %v2223 = vld [vmem:[#allocation10 + $0x270] sm:$0xff]
        %v2224 = vld [vmem:[#allocation10 + $0x278] sm:$0xff]
        %v2225 = vld [vmem:[#allocation10 + $0x280] sm:$0xff]
        %v2226 = vld [vmem:[#allocation10 + $0x288] sm:$0xff]
        %v2227 = vld [vmem:[#allocation10 + $0x290] sm:$0xff]
        %v2228 = vld [vmem:[#allocation10 + $0x298] sm:$0xff]
        %v2229 = vld [vmem:[#allocation10 + $0x2a0] sm:$0xff]
        %v2230 = vld [vmem:[#allocation10 + $0x2a8] sm:$0xff]
        %v2231 = vld [vmem:[#allocation10 + $0x2b0] sm:$0xff]
        %v2232 = vld [vmem:[#allocation10 + $0x2b8] sm:$0xff]
        %v2233 = vld [vmem:[#allocation10 + $0x2c0] sm:$0xff]
        %v2234 = vld [vmem:[#allocation10 + $0x2c8] sm:$0xff]
        %v2235 = vld [vmem:[#allocation10 + $0x2d0] sm:$0xff]
        %v2236 = vld [vmem:[#allocation10 + $0x2d8] sm:$0xff]
        %v2237 = vld [vmem:[#allocation10 + $0x2e0] sm:$0xff]
        %v2238 = vld [vmem:[#allocation10 + $0x2e8] sm:$0xff]
        %v2239 = vld [vmem:[#allocation10 + $0x2f0] sm:$0xff]
        %v2240 = vld [vmem:[#allocation10 + $0x2f8] sm:$0xff]
        %v2241 = vld [vmem:[#allocation10 + $0x300] sm:$0xff]
        %v2242 = vld [vmem:[#allocation10 + $0x308] sm:$0xff]
        %v2243 = vld [vmem:[#allocation10 + $0x310] sm:$0xff]
        %v2244 = vld [vmem:[#allocation10 + $0x318] sm:$0xff]
        %v2245 = vld [vmem:[#allocation10 + $0x320] sm:$0xff]
        %v2246 = vld [vmem:[#allocation10 + $0x328] sm:$0xff]
        %v2247 = vld [vmem:[#allocation10 + $0x330] sm:$0xff]
        %v2248 = vld [vmem:[#allocation10 + $0x338] sm:$0xff]
        %v2249 = vld [vmem:[#allocation10 + $0x340] sm:$0xff]
        %v2250 = vld [vmem:[#allocation10 + $0x348] sm:$0xff]
        %v2251 = vld [vmem:[#allocation10 + $0x350] sm:$0xff]
        %v2252 = vld [vmem:[#allocation10 + $0x358] sm:$0xff]
        %v2253 = vld [vmem:[#allocation10 + $0x360] sm:$0xff]
        %v2254 = vld [vmem:[#allocation10 + $0x368] sm:$0xff]
        %v2255 = vld [vmem:[#allocation10 + $0x370] sm:$0xff]
        %v2256 = vld [vmem:[#allocation10 + $0x378] sm:$0xff]
        %v2257 = vld [vmem:[#allocation10 + $0x380] sm:$0xff]
        %v2258 = vld [vmem:[#allocation10 + $0x388] sm:$0xff]
        %v2259 = vld [vmem:[#allocation10 + $0x390] sm:$0xff]
        %v2260 = vld [vmem:[#allocation10 + $0x398] sm:$0xff]
        %v2261 = vld [vmem:[#allocation10 + $0x3a0] sm:$0xff]
        %v2262 = vld [vmem:[#allocation10 + $0x3a8] sm:$0xff]
        %v2263 = vld [vmem:[#allocation10 + $0x3b0] sm:$0xff]
        %v2264 = vld [vmem:[#allocation10 + $0x3b8] sm:$0xff]
        %v2265 = vld [vmem:[#allocation10 + $0x3c0] sm:$0xff]
        %v2266 = vld [vmem:[#allocation10 + $0x3c8] sm:$0xff]
        %v2267 = vld [vmem:[#allocation10 + $0x3d0] sm:$0xff]
        %v2268 = vld [vmem:[#allocation10 + $0x3d8] sm:$0xff]
        %v2269 = vld [vmem:[#allocation10 + $0x3e0] sm:$0xff]
        %v2270 = vld [vmem:[#allocation10 + $0x3e8] sm:$0xff]
        %v2271 = vld [vmem:[#allocation10 + $0x3f0] sm:$0xff]
        %v2272 = vld [vmem:[#allocation10 + $0x3f8] sm:$0xff]
        %v2273 = vld [vmem:[#allocation10 + $0x400] sm:$0xff]
        %v2274 = vld [vmem:[#allocation10 + $0x408] sm:$0xff]
        %v2275 = vld [vmem:[#allocation10 + $0x410] sm:$0xff]
        %v2276 = vld [vmem:[#allocation10 + $0x418] sm:$0xff]
        %v2277 = vld [vmem:[#allocation10 + $0x420] sm:$0xff]
        %v2278 = vld [vmem:[#allocation10 + $0x428] sm:$0xff]
        %v2279 = vld [vmem:[#allocation10 + $0x430] sm:$0xff]
        %v2280 = vld [vmem:[#allocation10 + $0x438] sm:$0xff]
        %v2281 = vld [vmem:[#allocation10 + $0x440] sm:$0xff]
        %v2282 = vld [vmem:[#allocation10 + $0x448] sm:$0xff]
        %v2283 = vld [vmem:[#allocation10 + $0x450] sm:$0xff]
        %v2284 = vld [vmem:[#allocation10 + $0x458] sm:$0xff]
        %v2285 = vld [vmem:[#allocation10 + $0x460] sm:$0xff]
        %v2286 = vld [vmem:[#allocation10 + $0x468] sm:$0xff]
        %v2287 = vld [vmem:[#allocation10 + $0x470] sm:$0xff]
        %v2288 = vld [vmem:[#allocation10 + $0x478] sm:$0xff]
        %v2289 = vld [vmem:[#allocation10 + $0x480] sm:$0xff]
        %v2290 = vld [vmem:[#allocation10 + $0x488] sm:$0xff]
        %v2291 = vld [vmem:[#allocation10 + $0x490] sm:$0xff]
        %v2292 = vld [vmem:[#allocation10 + $0x498] sm:$0xff]
        %v2293 = vld [vmem:[#allocation10 + $0x4a0] sm:$0xff]
        %v2294 = vld [vmem:[#allocation10 + $0x4a8] sm:$0xff]
        %v2295 = vld [vmem:[#allocation10 + $0x4b0] sm:$0xff]
        %v2296 = vld [vmem:[#allocation10 + $0x4b8] sm:$0xff]
        %v2297 = vld [vmem:[#allocation10 + $0x4c0] sm:$0xff]
        %v2298 = vld [vmem:[#allocation10 + $0x4c8] sm:$0xff]
        %v2299 = vld [vmem:[#allocation10 + $0x4d0] sm:$0xff]
        %v2300 = vld [vmem:[#allocation10 + $0x4d8] sm:$0xff]
        %v2301 = vld [vmem:[#allocation10 + $0x4e0] sm:$0xff]
        %v2302 = vld [vmem:[#allocation10 + $0x4e8] sm:$0xff]
        %v2303 = vld [vmem:[#allocation10 + $0x4f0] sm:$0xff]
        %v2304 = vld [vmem:[#allocation10 + $0x4f8] sm:$0xff]
        %v2305 = vld [vmem:[#allocation10 + $0x500] sm:$0xff]
        %v2306 = vld [vmem:[#allocation10 + $0x508] sm:$0xff]
        %v2307 = vld [vmem:[#allocation10 + $0x510] sm:$0xff]
        %v2308 = vld [vmem:[#allocation10 + $0x518] sm:$0xff]
        %v2309 = vld [vmem:[#allocation10 + $0x520] sm:$0xff]
        %v2310 = vld [vmem:[#allocation10 + $0x528] sm:$0xff]
        %v2311 = vld [vmem:[#allocation10 + $0x530] sm:$0xff]
        %v2312 = vld [vmem:[#allocation10 + $0x538] sm:$0xff]
        %v2313 = vld [vmem:[#allocation10 + $0x540] sm:$0xff]
        %v2314 = vld [vmem:[#allocation10 + $0x548] sm:$0xff]
        %v2315 = vld [vmem:[#allocation10 + $0x550] sm:$0xff]
        %v2316 = vld [vmem:[#allocation10 + $0x558] sm:$0xff]
        %v2317 = vld [vmem:[#allocation10 + $0x560] sm:$0xff]
        %v2318 = vld [vmem:[#allocation10 + $0x568] sm:$0xff]
        %v2319 = vld [vmem:[#allocation10 + $0x570] sm:$0xff]
        %v2320 = vld [vmem:[#allocation10 + $0x578] sm:$0xff]
        %v2321 = vld [vmem:[#allocation10 + $0x580] sm:$0xff]
        %v2322 = vld [vmem:[#allocation10 + $0x588] sm:$0xff]
        %v2323 = vld [vmem:[#allocation10 + $0x590] sm:$0xff]
        %v2324 = vld [vmem:[#allocation10 + $0x598] sm:$0xff]
        %v2325 = vld [vmem:[#allocation10 + $0x5a0] sm:$0xff]
        %v2326 = vld [vmem:[#allocation10 + $0x5a8] sm:$0xff]
        %v2327 = vld [vmem:[#allocation10 + $0x5b0] sm:$0xff]
        %v2328 = vld [vmem:[#allocation10 + $0x5b8] sm:$0xff]
        %v2329 = vld [vmem:[#allocation10 + $0x5c0] sm:$0xff]
        %v2330 = vld [vmem:[#allocation10 + $0x5c8] sm:$0xff]
        %v2331 = vld [vmem:[#allocation10 + $0x5d0] sm:$0xff]
        %v2332 = vld [vmem:[#allocation10 + $0x5d8] sm:$0xff]
        %v2333 = vld [vmem:[#allocation10 + $0x5e0] sm:$0xff]
        %v2334 = vld [vmem:[#allocation10 + $0x5e8] sm:$0xff]
        %v2335 = vld [vmem:[#allocation10 + $0x5f0] sm:$0xff]
        %v2336 = vld [vmem:[#allocation10 + $0x5f8] sm:$0xff]
        %v2337 = vld [vmem:[#allocation10 + $0x600] sm:$0xff]
        %v2338 = vld [vmem:[#allocation10 + $0x608] sm:$0xff]
        %v2339 = vld [vmem:[#allocation10 + $0x610] sm:$0xff]
        %v2340 = vld [vmem:[#allocation10 + $0x618] sm:$0xff]
        %v2341 = vld [vmem:[#allocation10 + $0x620] sm:$0xff]
        %v2342 = vld [vmem:[#allocation10 + $0x628] sm:$0xff]
        %v2343 = vld [vmem:[#allocation10 + $0x630] sm:$0xff]
        %v2344 = vld [vmem:[#allocation10 + $0x638] sm:$0xff]
        %v2345 = vld [vmem:[#allocation10 + $0x640] sm:$0xff]
        %v2346 = vld [vmem:[#allocation10 + $0x648] sm:$0xff]
        %v2347 = vld [vmem:[#allocation10 + $0x650] sm:$0xff]
        %v2348 = vld [vmem:[#allocation10 + $0x658] sm:$0xff]
        %v2349 = vld [vmem:[#allocation10 + $0x660] sm:$0xff]
        %v2350 = vld [vmem:[#allocation10 + $0x668] sm:$0xff]
        %v2351 = vld [vmem:[#allocation10 + $0x670] sm:$0xff]
        %v2352 = vld [vmem:[#allocation10 + $0x678] sm:$0xff]
        %v2353 = vld [vmem:[#allocation10 + $0x680] sm:$0xff]
        %v2354 = vld [vmem:[#allocation10 + $0x688] sm:$0xff]
        %v2355 = vld [vmem:[#allocation10 + $0x690] sm:$0xff]
        %v2356 = vld [vmem:[#allocation10 + $0x698] sm:$0xff]
        %v2357 = vld [vmem:[#allocation10 + $0x6a0] sm:$0xff]
        %v2358 = vld [vmem:[#allocation10 + $0x6a8] sm:$0xff]
        %v2359 = vld [vmem:[#allocation10 + $0x6b0] sm:$0xff]
        %v2360 = vld [vmem:[#allocation10 + $0x6b8] sm:$0xff]
        %v2361 = vld [vmem:[#allocation10 + $0x6c0] sm:$0xff]
        %v2362 = vld [vmem:[#allocation10 + $0x6c8] sm:$0xff]
        %v2363 = vld [vmem:[#allocation10 + $0x6d0] sm:$0xff]
        %v2364 = vld [vmem:[#allocation10 + $0x6d8] sm:$0xff]
        %v2365 = vld [vmem:[#allocation10 + $0x6e0] sm:$0xff]
        %v2366 = vld [vmem:[#allocation10 + $0x6e8] sm:$0xff]
        %v2367 = vld [vmem:[#allocation10 + $0x6f0] sm:$0xff]
        %v2368 = vld [vmem:[#allocation10 + $0x6f8] sm:$0xff]
        %v2369 = vld [vmem:[#allocation10 + $0x700] sm:$0xff]
        %v2370 = vld [vmem:[#allocation10 + $0x708] sm:$0xff]
        %v2371 = vld [vmem:[#allocation10 + $0x710] sm:$0xff]
        %v2372 = vld [vmem:[#allocation10 + $0x718] sm:$0xff]
        %v2373 = vld [vmem:[#allocation10 + $0x720] sm:$0xff]
        %v2374 = vld [vmem:[#allocation10 + $0x728] sm:$0xff]
        %v2375 = vld [vmem:[#allocation10 + $0x730] sm:$0xff]
        %v2376 = vld [vmem:[#allocation10 + $0x738] sm:$0xff]
        %v2377 = vld [vmem:[#allocation10 + $0x740] sm:$0xff]
        %v2378 = vld [vmem:[#allocation10 + $0x748] sm:$0xff]
        %v2379 = vld [vmem:[#allocation10 + $0x750] sm:$0xff]
        %v2380 = vld [vmem:[#allocation10 + $0x758] sm:$0xff]
        %v2381 = vld [vmem:[#allocation10 + $0x760] sm:$0xff]
        %v2382 = vld [vmem:[#allocation10 + $0x768] sm:$0xff]
        %v2383 = vld [vmem:[#allocation10 + $0x770] sm:$0xff]
        %v2384 = vld [vmem:[#allocation10 + $0x778] sm:$0xff]
        %v2385 = vld [vmem:[#allocation10 + $0x780] sm:$0xff]
        %v2386 = vld [vmem:[#allocation10 + $0x788] sm:$0xff]
        %v2387 = vld [vmem:[#allocation10 + $0x790] sm:$0xff]
        %v2388 = vld [vmem:[#allocation10 + $0x798] sm:$0xff]
        %v2389 = vld [vmem:[#allocation10 + $0x7a0] sm:$0xff]
        %v2390 = vld [vmem:[#allocation10 + $0x7a8] sm:$0xff]
        %v2391 = vld [vmem:[#allocation10 + $0x7b0] sm:$0xff]
        %v2392 = vld [vmem:[#allocation10 + $0x7b8] sm:$0xff]
        %v2393 = vld [vmem:[#allocation10 + $0x7c0] sm:$0xff]
        %v2394 = vld [vmem:[#allocation10 + $0x7c8] sm:$0xff]
        %v2395 = vld [vmem:[#allocation10 + $0x7d0] sm:$0xff]
        %v2396 = vld [vmem:[#allocation10 + $0x7d8] sm:$0xff]
        %v2397 = vld [vmem:[#allocation10 + $0x7e0] sm:$0xff]
        %v2398 = vld [vmem:[#allocation10 + $0x7e8] sm:$0xff]
        %v2399 = vld [vmem:[#allocation10 + $0x7f0] sm:$0xff]
        %v2400 = vld [vmem:[#allocation10 + $0x7f8] sm:$0xff]
        %v2401 = vld [vmem:[%s5] sm:$0xf]
        %v2403 = vlaneseq
        %v2404 = vshrl.u32 %v2403, 7
        %v2405 = vsub.s32 0, %v2404
        %v2406 = vrot.slane %v2401, %v2405
        %v2407 = vlaneseq
        %v2408 = vshrl.u32 %v2407, 7
        %v2409 = vsub.s32 1, %v2408
        %v2410 = vrot.slane %v2401, %v2409
        %v2411 = vlaneseq
        %v2412 = vshrl.u32 %v2411, 7
        %v2413 = vsub.s32 2, %v2412
        %v2414 = vrot.slane %v2401, %v2413
        %v2415 = vlaneseq
        %v2416 = vshrl.u32 %v2415, 7
        %v2417 = vsub.s32 3, %v2416
        %v2418 = vrot.slane %v2401, %v2417
        %v2679 = vunpack.c.l.b16 %v2145
        %v2680 = vunpack.c.h.b16 %v2145
        %v2681 = vunpack.c.l.b16 %v2146
        %v2682 = vunpack.c.h.b16 %v2146
        %v2683 = vunpack.c.l.b16 %v2147
        %v2684 = vunpack.c.h.b16 %v2147
        %v2685 = vunpack.c.l.b16 %v2148
        %v2686 = vunpack.c.h.b16 %v2148
        %v2687 = vunpack.c.l.b16 %v2149
        %v2688 = vunpack.c.h.b16 %v2149
        %v2689 = vunpack.c.l.b16 %v2150
        %v2690 = vunpack.c.h.b16 %v2150
        %v2691 = vunpack.c.l.b16 %v2151
        %v2692 = vunpack.c.h.b16 %v2151
        %v2693 = vunpack.c.l.b16 %v2152
        %v2694 = vunpack.c.h.b16 %v2152
        %v2695 = vunpack.c.l.b16 %v2153
        %v2696 = vunpack.c.h.b16 %v2153
        %v2697 = vunpack.c.l.b16 %v2154
        %v2698 = vunpack.c.h.b16 %v2154
        %v2699 = vunpack.c.l.b16 %v2155
        %v2700 = vunpack.c.h.b16 %v2155
        %v2701 = vunpack.c.l.b16 %v2156
        %v2702 = vunpack.c.h.b16 %v2156
        %v2703 = vunpack.c.l.b16 %v2157
        %v2704 = vunpack.c.h.b16 %v2157
        %v2705 = vunpack.c.l.b16 %v2158
        %v2706 = vunpack.c.h.b16 %v2158
        %v2707 = vunpack.c.l.b16 %v2159
        %v2708 = vunpack.c.h.b16 %v2159
        %v2709 = vunpack.c.l.b16 %v2160
        %v2710 = vunpack.c.h.b16 %v2160
        %v2711 = vunpack.c.l.b16 %v2161
        %v2712 = vunpack.c.h.b16 %v2161
        %v2713 = vunpack.c.l.b16 %v2162
        %v2714 = vunpack.c.h.b16 %v2162
        %v2715 = vunpack.c.l.b16 %v2163
        %v2716 = vunpack.c.h.b16 %v2163
        %v2717 = vunpack.c.l.b16 %v2164
        %v2718 = vunpack.c.h.b16 %v2164
        %v2719 = vunpack.c.l.b16 %v2165
        %v2720 = vunpack.c.h.b16 %v2165
        %v2721 = vunpack.c.l.b16 %v2166
        %v2722 = vunpack.c.h.b16 %v2166
        %v2723 = vunpack.c.l.b16 %v2167
        %v2724 = vunpack.c.h.b16 %v2167
        %v2725 = vunpack.c.l.b16 %v2168
        %v2726 = vunpack.c.h.b16 %v2168
        %v2727 = vunpack.c.l.b16 %v2169
        %v2728 = vunpack.c.h.b16 %v2169
        %v2729 = vunpack.c.l.b16 %v2170
        %v2730 = vunpack.c.h.b16 %v2170
        %v2731 = vunpack.c.l.b16 %v2171
        %v2732 = vunpack.c.h.b16 %v2171
        %v2733 = vunpack.c.l.b16 %v2172
        %v2734 = vunpack.c.h.b16 %v2172
        %v2735 = vunpack.c.l.b16 %v2173
        %v2736 = vunpack.c.h.b16 %v2173
        %v2737 = vunpack.c.l.b16 %v2174
        %v2738 = vunpack.c.h.b16 %v2174
        %v2739 = vunpack.c.l.b16 %v2175
        %v2740 = vunpack.c.h.b16 %v2175
        %v2741 = vunpack.c.l.b16 %v2176
        %v2742 = vunpack.c.h.b16 %v2176
        %v2743 = vunpack.c.l.b16 %v2177
        %v2744 = vunpack.c.h.b16 %v2177
        %v2745 = vunpack.c.l.b16 %v2178
        %v2746 = vunpack.c.h.b16 %v2178
        %v2747 = vunpack.c.l.b16 %v2179
        %v2748 = vunpack.c.h.b16 %v2179
        %v2749 = vunpack.c.l.b16 %v2180
        %v2750 = vunpack.c.h.b16 %v2180
        %v2751 = vunpack.c.l.b16 %v2181
        %v2752 = vunpack.c.h.b16 %v2181
        %v2753 = vunpack.c.l.b16 %v2182
        %v2754 = vunpack.c.h.b16 %v2182
        %v2755 = vunpack.c.l.b16 %v2183
        %v2756 = vunpack.c.h.b16 %v2183
        %v2757 = vunpack.c.l.b16 %v2184
        %v2758 = vunpack.c.h.b16 %v2184
        %v2759 = vunpack.c.l.b16 %v2185
        %v2760 = vunpack.c.h.b16 %v2185
        %v2761 = vunpack.c.l.b16 %v2186
        %v2762 = vunpack.c.h.b16 %v2186
        %v2763 = vunpack.c.l.b16 %v2187
        %v2764 = vunpack.c.h.b16 %v2187
        %v2765 = vunpack.c.l.b16 %v2188
        %v2766 = vunpack.c.h.b16 %v2188
        %v2767 = vunpack.c.l.b16 %v2189
        %v2768 = vunpack.c.h.b16 %v2189
        %v2769 = vunpack.c.l.b16 %v2190
        %v2770 = vunpack.c.h.b16 %v2190
        %v2771 = vunpack.c.l.b16 %v2191
        %v2772 = vunpack.c.h.b16 %v2191
        %v2773 = vunpack.c.l.b16 %v2192
        %v2774 = vunpack.c.h.b16 %v2192
        %v2775 = vunpack.c.l.b16 %v2193
        %v2776 = vunpack.c.h.b16 %v2193
        %v2777 = vunpack.c.l.b16 %v2194
        %v2778 = vunpack.c.h.b16 %v2194
        %v2779 = vunpack.c.l.b16 %v2195
        %v2780 = vunpack.c.h.b16 %v2195
        %v2781 = vunpack.c.l.b16 %v2196
        %v2782 = vunpack.c.h.b16 %v2196
        %v2783 = vunpack.c.l.b16 %v2197
        %v2784 = vunpack.c.h.b16 %v2197
        %v2785 = vunpack.c.l.b16 %v2198
        %v2786 = vunpack.c.h.b16 %v2198
        %v2787 = vunpack.c.l.b16 %v2199
        %v2788 = vunpack.c.h.b16 %v2199
        %v2789 = vunpack.c.l.b16 %v2200
        %v2790 = vunpack.c.h.b16 %v2200
        %v2791 = vunpack.c.l.b16 %v2201
        %v2792 = vunpack.c.h.b16 %v2201
        %v2793 = vunpack.c.l.b16 %v2202
        %v2794 = vunpack.c.h.b16 %v2202
        %v2795 = vunpack.c.l.b16 %v2203
        %v2796 = vunpack.c.h.b16 %v2203
        %v2797 = vunpack.c.l.b16 %v2204
        %v2798 = vunpack.c.h.b16 %v2204
        %v2799 = vunpack.c.l.b16 %v2205
        %v2800 = vunpack.c.h.b16 %v2205
        %v2801 = vunpack.c.l.b16 %v2206
        %v2802 = vunpack.c.h.b16 %v2206
        %v2803 = vunpack.c.l.b16 %v2207
        %v2804 = vunpack.c.h.b16 %v2207
        %v2805 = vunpack.c.l.b16 %v2208
        %v2806 = vunpack.c.h.b16 %v2208
        %v2807 = vunpack.c.l.b16 %v2209
        %v2808 = vunpack.c.h.b16 %v2209
        %v2809 = vunpack.c.l.b16 %v2210
        %v2810 = vunpack.c.h.b16 %v2210
        %v2811 = vunpack.c.l.b16 %v2211
        %v2812 = vunpack.c.h.b16 %v2211
        %v2813 = vunpack.c.l.b16 %v2212
        %v2814 = vunpack.c.h.b16 %v2212
        %v2815 = vunpack.c.l.b16 %v2213
        %v2816 = vunpack.c.h.b16 %v2213
        %v2817 = vunpack.c.l.b16 %v2214
        %v2818 = vunpack.c.h.b16 %v2214
        %v2819 = vunpack.c.l.b16 %v2215
        %v2820 = vunpack.c.h.b16 %v2215
        %v2821 = vunpack.c.l.b16 %v2216
        %v2822 = vunpack.c.h.b16 %v2216
        %v2823 = vunpack.c.l.b16 %v2217
        %v2824 = vunpack.c.h.b16 %v2217
        %v2825 = vunpack.c.l.b16 %v2218
        %v2826 = vunpack.c.h.b16 %v2218
        %v2827 = vunpack.c.l.b16 %v2219
        %v2828 = vunpack.c.h.b16 %v2219
        %v2829 = vunpack.c.l.b16 %v2220
        %v2830 = vunpack.c.h.b16 %v2220
        %v2831 = vunpack.c.l.b16 %v2221
        %v2832 = vunpack.c.h.b16 %v2221
        %v2833 = vunpack.c.l.b16 %v2222
        %v2834 = vunpack.c.h.b16 %v2222
        %v2835 = vunpack.c.l.b16 %v2223
        %v2836 = vunpack.c.h.b16 %v2223
        %v2837 = vunpack.c.l.b16 %v2224
        %v2838 = vunpack.c.h.b16 %v2224
        %v2839 = vunpack.c.l.b16 %v2225
        %v2840 = vunpack.c.h.b16 %v2225
        %v2841 = vunpack.c.l.b16 %v2226
        %v2842 = vunpack.c.h.b16 %v2226
        %v2843 = vunpack.c.l.b16 %v2227
        %v2844 = vunpack.c.h.b16 %v2227
        %v2845 = vunpack.c.l.b16 %v2228
        %v2846 = vunpack.c.h.b16 %v2228
        %v2847 = vunpack.c.l.b16 %v2229
        %v2848 = vunpack.c.h.b16 %v2229
        %v2849 = vunpack.c.l.b16 %v2230
        %v2850 = vunpack.c.h.b16 %v2230
        %v2851 = vunpack.c.l.b16 %v2231
        %v2852 = vunpack.c.h.b16 %v2231
        %v2853 = vunpack.c.l.b16 %v2232
        %v2854 = vunpack.c.h.b16 %v2232
        %v2855 = vunpack.c.l.b16 %v2233
        %v2856 = vunpack.c.h.b16 %v2233
        %v2857 = vunpack.c.l.b16 %v2234
        %v2858 = vunpack.c.h.b16 %v2234
        %v2859 = vunpack.c.l.b16 %v2235
        %v2860 = vunpack.c.h.b16 %v2235
        %v2861 = vunpack.c.l.b16 %v2236
        %v2862 = vunpack.c.h.b16 %v2236
        %v2863 = vunpack.c.l.b16 %v2237
        %v2864 = vunpack.c.h.b16 %v2237
        %v2865 = vunpack.c.l.b16 %v2238
        %v2866 = vunpack.c.h.b16 %v2238
        %v2867 = vunpack.c.l.b16 %v2239
        %v2868 = vunpack.c.h.b16 %v2239
        %v2869 = vunpack.c.l.b16 %v2240
        %v2870 = vunpack.c.h.b16 %v2240
        %v2871 = vunpack.c.l.b16 %v2241
        %v2872 = vunpack.c.h.b16 %v2241
        %v2873 = vunpack.c.l.b16 %v2242
        %v2874 = vunpack.c.h.b16 %v2242
        %v2875 = vunpack.c.l.b16 %v2243
        %v2876 = vunpack.c.h.b16 %v2243
        %v2877 = vunpack.c.l.b16 %v2244
        %v2878 = vunpack.c.h.b16 %v2244
        %v2879 = vunpack.c.l.b16 %v2245
        %v2880 = vunpack.c.h.b16 %v2245
        %v2881 = vunpack.c.l.b16 %v2246
        %v2882 = vunpack.c.h.b16 %v2246
        %v2883 = vunpack.c.l.b16 %v2247
        %v2884 = vunpack.c.h.b16 %v2247
        %v2885 = vunpack.c.l.b16 %v2248
        %v2886 = vunpack.c.h.b16 %v2248
        %v2887 = vunpack.c.l.b16 %v2249
        %v2888 = vunpack.c.h.b16 %v2249
        %v2889 = vunpack.c.l.b16 %v2250
        %v2890 = vunpack.c.h.b16 %v2250
        %v2891 = vunpack.c.l.b16 %v2251
        %v2892 = vunpack.c.h.b16 %v2251
        %v2893 = vunpack.c.l.b16 %v2252
        %v2894 = vunpack.c.h.b16 %v2252
        %v2895 = vunpack.c.l.b16 %v2253
        %v2896 = vunpack.c.h.b16 %v2253
        %v2897 = vunpack.c.l.b16 %v2254
        %v2898 = vunpack.c.h.b16 %v2254
        %v2899 = vunpack.c.l.b16 %v2255
        %v2900 = vunpack.c.h.b16 %v2255
        %v2901 = vunpack.c.l.b16 %v2256
        %v2902 = vunpack.c.h.b16 %v2256
        %v2903 = vunpack.c.l.b16 %v2257
        %v2904 = vunpack.c.h.b16 %v2257
        %v2905 = vunpack.c.l.b16 %v2258
        %v2906 = vunpack.c.h.b16 %v2258
        %v2907 = vunpack.c.l.b16 %v2259
        %v2908 = vunpack.c.h.b16 %v2259
        %v2909 = vunpack.c.l.b16 %v2260
        %v2910 = vunpack.c.h.b16 %v2260
        %v2911 = vunpack.c.l.b16 %v2261
        %v2912 = vunpack.c.h.b16 %v2261
        %v2913 = vunpack.c.l.b16 %v2262
        %v2914 = vunpack.c.h.b16 %v2262
        %v2915 = vunpack.c.l.b16 %v2263
        %v2916 = vunpack.c.h.b16 %v2263
        %v2917 = vunpack.c.l.b16 %v2264
        %v2918 = vunpack.c.h.b16 %v2264
        %v2919 = vunpack.c.l.b16 %v2265
        %v2920 = vunpack.c.h.b16 %v2265
        %v2921 = vunpack.c.l.b16 %v2266
        %v2922 = vunpack.c.h.b16 %v2266
        %v2923 = vunpack.c.l.b16 %v2267
        %v2924 = vunpack.c.h.b16 %v2267
        %v2925 = vunpack.c.l.b16 %v2268
        %v2926 = vunpack.c.h.b16 %v2268
        %v2927 = vunpack.c.l.b16 %v2269
        %v2928 = vunpack.c.h.b16 %v2269
        %v2929 = vunpack.c.l.b16 %v2270
        %v2930 = vunpack.c.h.b16 %v2270
        %v2931 = vunpack.c.l.b16 %v2271
        %v2932 = vunpack.c.h.b16 %v2271
        %v2933 = vunpack.c.l.b16 %v2272
        %v2934 = vunpack.c.h.b16 %v2272
        %v2935 = vunpack.c.l.b16 %v2273
        %v2936 = vunpack.c.h.b16 %v2273
        %v2937 = vunpack.c.l.b16 %v2274
        %v2938 = vunpack.c.h.b16 %v2274
        %v2939 = vunpack.c.l.b16 %v2275
        %v2940 = vunpack.c.h.b16 %v2275
        %v2941 = vunpack.c.l.b16 %v2276
        %v2942 = vunpack.c.h.b16 %v2276
        %v2943 = vunpack.c.l.b16 %v2277
        %v2944 = vunpack.c.h.b16 %v2277
        %v2945 = vunpack.c.l.b16 %v2278
        %v2946 = vunpack.c.h.b16 %v2278
        %v2947 = vunpack.c.l.b16 %v2279
        %v2948 = vunpack.c.h.b16 %v2279
        %v2949 = vunpack.c.l.b16 %v2280
        %v2950 = vunpack.c.h.b16 %v2280
        %v2951 = vunpack.c.l.b16 %v2281
        %v2952 = vunpack.c.h.b16 %v2281
        %v2953 = vunpack.c.l.b16 %v2282
        %v2954 = vunpack.c.h.b16 %v2282
        %v2955 = vunpack.c.l.b16 %v2283
        %v2956 = vunpack.c.h.b16 %v2283
        %v2957 = vunpack.c.l.b16 %v2284
        %v2958 = vunpack.c.h.b16 %v2284
        %v2959 = vunpack.c.l.b16 %v2285
        %v2960 = vunpack.c.h.b16 %v2285
        %v2961 = vunpack.c.l.b16 %v2286
        %v2962 = vunpack.c.h.b16 %v2286
        %v2963 = vunpack.c.l.b16 %v2287
        %v2964 = vunpack.c.h.b16 %v2287
        %v2965 = vunpack.c.l.b16 %v2288
        %v2966 = vunpack.c.h.b16 %v2288
        %v2967 = vunpack.c.l.b16 %v2289
        %v2968 = vunpack.c.h.b16 %v2289
        %v2969 = vunpack.c.l.b16 %v2290
        %v2970 = vunpack.c.h.b16 %v2290
        %v2971 = vunpack.c.l.b16 %v2291
        %v2972 = vunpack.c.h.b16 %v2291
        %v2973 = vunpack.c.l.b16 %v2292
        %v2974 = vunpack.c.h.b16 %v2292
        %v2975 = vunpack.c.l.b16 %v2293
        %v2976 = vunpack.c.h.b16 %v2293
        %v2977 = vunpack.c.l.b16 %v2294
        %v2978 = vunpack.c.h.b16 %v2294
        %v2979 = vunpack.c.l.b16 %v2295
        %v2980 = vunpack.c.h.b16 %v2295
        %v2981 = vunpack.c.l.b16 %v2296
        %v2982 = vunpack.c.h.b16 %v2296
        %v2983 = vunpack.c.l.b16 %v2297
        %v2984 = vunpack.c.h.b16 %v2297
        %v2985 = vunpack.c.l.b16 %v2298
        %v2986 = vunpack.c.h.b16 %v2298
        %v2987 = vunpack.c.l.b16 %v2299
        %v2988 = vunpack.c.h.b16 %v2299
        %v2989 = vunpack.c.l.b16 %v2300
        %v2990 = vunpack.c.h.b16 %v2300
        %v2991 = vunpack.c.l.b16 %v2301
        %v2992 = vunpack.c.h.b16 %v2301
        %v2993 = vunpack.c.l.b16 %v2302
        %v2994 = vunpack.c.h.b16 %v2302
        %v2995 = vunpack.c.l.b16 %v2303
        %v2996 = vunpack.c.h.b16 %v2303
        %v2997 = vunpack.c.l.b16 %v2304
        %v2998 = vunpack.c.h.b16 %v2304
        %v2999 = vunpack.c.l.b16 %v2305
        %v3000 = vunpack.c.h.b16 %v2305
        %v3001 = vunpack.c.l.b16 %v2306
        %v3002 = vunpack.c.h.b16 %v2306
        %v3003 = vunpack.c.l.b16 %v2307
        %v3004 = vunpack.c.h.b16 %v2307
        %v3005 = vunpack.c.l.b16 %v2308
        %v3006 = vunpack.c.h.b16 %v2308
        %v3007 = vunpack.c.l.b16 %v2309
        %v3008 = vunpack.c.h.b16 %v2309
        %v3009 = vunpack.c.l.b16 %v2310
        %v3010 = vunpack.c.h.b16 %v2310
        %v3011 = vunpack.c.l.b16 %v2311
        %v3012 = vunpack.c.h.b16 %v2311
        %v3013 = vunpack.c.l.b16 %v2312
        %v3014 = vunpack.c.h.b16 %v2312
        %v3015 = vunpack.c.l.b16 %v2313
        %v3016 = vunpack.c.h.b16 %v2313
        %v3017 = vunpack.c.l.b16 %v2314
        %v3018 = vunpack.c.h.b16 %v2314
        %v3019 = vunpack.c.l.b16 %v2315
        %v3020 = vunpack.c.h.b16 %v2315
        %v3021 = vunpack.c.l.b16 %v2316
        %v3022 = vunpack.c.h.b16 %v2316
        %v3023 = vunpack.c.l.b16 %v2317
        %v3024 = vunpack.c.h.b16 %v2317
        %v3025 = vunpack.c.l.b16 %v2318
        %v3026 = vunpack.c.h.b16 %v2318
        %v3027 = vunpack.c.l.b16 %v2319
        %v3028 = vunpack.c.h.b16 %v2319
        %v3029 = vunpack.c.l.b16 %v2320
        %v3030 = vunpack.c.h.b16 %v2320
        %v3031 = vunpack.c.l.b16 %v2321
        %v3032 = vunpack.c.h.b16 %v2321
        %v3033 = vunpack.c.l.b16 %v2322
        %v3034 = vunpack.c.h.b16 %v2322
        %v3035 = vunpack.c.l.b16 %v2323
        %v3036 = vunpack.c.h.b16 %v2323
        %v3037 = vunpack.c.l.b16 %v2324
        %v3038 = vunpack.c.h.b16 %v2324
        %v3039 = vunpack.c.l.b16 %v2325
        %v3040 = vunpack.c.h.b16 %v2325
        %v3041 = vunpack.c.l.b16 %v2326
        %v3042 = vunpack.c.h.b16 %v2326
        %v3043 = vunpack.c.l.b16 %v2327
        %v3044 = vunpack.c.h.b16 %v2327
        %v3045 = vunpack.c.l.b16 %v2328
        %v3046 = vunpack.c.h.b16 %v2328
        %v3047 = vunpack.c.l.b16 %v2329
        %v3048 = vunpack.c.h.b16 %v2329
        %v3049 = vunpack.c.l.b16 %v2330
        %v3050 = vunpack.c.h.b16 %v2330
        %v3051 = vunpack.c.l.b16 %v2331
        %v3052 = vunpack.c.h.b16 %v2331
        %v3053 = vunpack.c.l.b16 %v2332
        %v3054 = vunpack.c.h.b16 %v2332
        %v3055 = vunpack.c.l.b16 %v2333
        %v3056 = vunpack.c.h.b16 %v2333
        %v3057 = vunpack.c.l.b16 %v2334
        %v3058 = vunpack.c.h.b16 %v2334
        %v3059 = vunpack.c.l.b16 %v2335
        %v3060 = vunpack.c.h.b16 %v2335
        %v3061 = vunpack.c.l.b16 %v2336
        %v3062 = vunpack.c.h.b16 %v2336
        %v3063 = vunpack.c.l.b16 %v2337
        %v3064 = vunpack.c.h.b16 %v2337
        %v3065 = vunpack.c.l.b16 %v2338
        %v3066 = vunpack.c.h.b16 %v2338
        %v3067 = vunpack.c.l.b16 %v2339
        %v3068 = vunpack.c.h.b16 %v2339
        %v3069 = vunpack.c.l.b16 %v2340
        %v3070 = vunpack.c.h.b16 %v2340
        %v3071 = vunpack.c.l.b16 %v2341
        %v3072 = vunpack.c.h.b16 %v2341
        %v3073 = vunpack.c.l.b16 %v2342
        %v3074 = vunpack.c.h.b16 %v2342
        %v3075 = vunpack.c.l.b16 %v2343
        %v3076 = vunpack.c.h.b16 %v2343
        %v3077 = vunpack.c.l.b16 %v2344
        %v3078 = vunpack.c.h.b16 %v2344
        %v3079 = vunpack.c.l.b16 %v2345
        %v3080 = vunpack.c.h.b16 %v2345
        %v3081 = vunpack.c.l.b16 %v2346
        %v3082 = vunpack.c.h.b16 %v2346
        %v3083 = vunpack.c.l.b16 %v2347
        %v3084 = vunpack.c.h.b16 %v2347
        %v3085 = vunpack.c.l.b16 %v2348
        %v3086 = vunpack.c.h.b16 %v2348
        %v3087 = vunpack.c.l.b16 %v2349
        %v3088 = vunpack.c.h.b16 %v2349
        %v3089 = vunpack.c.l.b16 %v2350
        %v3090 = vunpack.c.h.b16 %v2350
        %v3091 = vunpack.c.l.b16 %v2351
        %v3092 = vunpack.c.h.b16 %v2351
        %v3093 = vunpack.c.l.b16 %v2352
        %v3094 = vunpack.c.h.b16 %v2352
        %v3095 = vunpack.c.l.b16 %v2353
        %v3096 = vunpack.c.h.b16 %v2353
        %v3097 = vunpack.c.l.b16 %v2354
        %v3098 = vunpack.c.h.b16 %v2354
        %v3099 = vunpack.c.l.b16 %v2355
        %v3100 = vunpack.c.h.b16 %v2355
        %v3101 = vunpack.c.l.b16 %v2356
        %v3102 = vunpack.c.h.b16 %v2356
        %v3103 = vunpack.c.l.b16 %v2357
        %v3104 = vunpack.c.h.b16 %v2357
        %v3105 = vunpack.c.l.b16 %v2358
        %v3106 = vunpack.c.h.b16 %v2358
        %v3107 = vunpack.c.l.b16 %v2359
        %v3108 = vunpack.c.h.b16 %v2359
        %v3109 = vunpack.c.l.b16 %v2360
        %v3110 = vunpack.c.h.b16 %v2360
        %v3111 = vunpack.c.l.b16 %v2361
        %v3112 = vunpack.c.h.b16 %v2361
        %v3113 = vunpack.c.l.b16 %v2362
        %v3114 = vunpack.c.h.b16 %v2362
        %v3115 = vunpack.c.l.b16 %v2363
        %v3116 = vunpack.c.h.b16 %v2363
        %v3117 = vunpack.c.l.b16 %v2364
        %v3118 = vunpack.c.h.b16 %v2364
        %v3119 = vunpack.c.l.b16 %v2365
        %v3120 = vunpack.c.h.b16 %v2365
        %v3121 = vunpack.c.l.b16 %v2366
        %v3122 = vunpack.c.h.b16 %v2366
        %v3123 = vunpack.c.l.b16 %v2367
        %v3124 = vunpack.c.h.b16 %v2367
        %v3125 = vunpack.c.l.b16 %v2368
        %v3126 = vunpack.c.h.b16 %v2368
        %v3127 = vunpack.c.l.b16 %v2369
        %v3128 = vunpack.c.h.b16 %v2369
        %v3129 = vunpack.c.l.b16 %v2370
        %v3130 = vunpack.c.h.b16 %v2370
        %v3131 = vunpack.c.l.b16 %v2371
        %v3132 = vunpack.c.h.b16 %v2371
        %v3133 = vunpack.c.l.b16 %v2372
        %v3134 = vunpack.c.h.b16 %v2372
        %v3135 = vunpack.c.l.b16 %v2373
        %v3136 = vunpack.c.h.b16 %v2373
        %v3137 = vunpack.c.l.b16 %v2374
        %v3138 = vunpack.c.h.b16 %v2374
        %v3139 = vunpack.c.l.b16 %v2375
        %v3140 = vunpack.c.h.b16 %v2375
        %v3141 = vunpack.c.l.b16 %v2376
        %v3142 = vunpack.c.h.b16 %v2376
        %v3143 = vunpack.c.l.b16 %v2377
        %v3144 = vunpack.c.h.b16 %v2377
        %v3145 = vunpack.c.l.b16 %v2378
        %v3146 = vunpack.c.h.b16 %v2378
        %v3147 = vunpack.c.l.b16 %v2379
        %v3148 = vunpack.c.h.b16 %v2379
        %v3149 = vunpack.c.l.b16 %v2380
        %v3150 = vunpack.c.h.b16 %v2380
        %v3151 = vunpack.c.l.b16 %v2381
        %v3152 = vunpack.c.h.b16 %v2381
        %v3153 = vunpack.c.l.b16 %v2382
        %v3154 = vunpack.c.h.b16 %v2382
        %v3155 = vunpack.c.l.b16 %v2383
        %v3156 = vunpack.c.h.b16 %v2383
        %v3157 = vunpack.c.l.b16 %v2384
        %v3158 = vunpack.c.h.b16 %v2384
        %v3159 = vunpack.c.l.b16 %v2385
        %v3160 = vunpack.c.h.b16 %v2385
        %v3161 = vunpack.c.l.b16 %v2386
        %v3162 = vunpack.c.h.b16 %v2386
        %v3163 = vunpack.c.l.b16 %v2387
        %v3164 = vunpack.c.h.b16 %v2387
        %v3165 = vunpack.c.l.b16 %v2388
        %v3166 = vunpack.c.h.b16 %v2388
        %v3167 = vunpack.c.l.b16 %v2389
        %v3168 = vunpack.c.h.b16 %v2389
        %v3169 = vunpack.c.l.b16 %v2390
        %v3170 = vunpack.c.h.b16 %v2390
        %v3171 = vunpack.c.l.b16 %v2391
        %v3172 = vunpack.c.h.b16 %v2391
        %v3173 = vunpack.c.l.b16 %v2392
        %v3174 = vunpack.c.h.b16 %v2392
        %v3175 = vunpack.c.l.b16 %v2393
        %v3176 = vunpack.c.h.b16 %v2393
        %v3177 = vunpack.c.l.b16 %v2394
        %v3178 = vunpack.c.h.b16 %v2394
        %v3179 = vunpack.c.l.b16 %v2395
        %v3180 = vunpack.c.h.b16 %v2395
        %v3181 = vunpack.c.l.b16 %v2396
        %v3182 = vunpack.c.h.b16 %v2396
        %v3183 = vunpack.c.l.b16 %v2397
        %v3184 = vunpack.c.h.b16 %v2397
        %v3185 = vunpack.c.l.b16 %v2398
        %v3186 = vunpack.c.h.b16 %v2398
        %v3187 = vunpack.c.l.b16 %v2399
        %v3188 = vunpack.c.h.b16 %v2399
        %v3189 = vunpack.c.l.b16 %v2400
        %v3190 = vunpack.c.h.b16 %v2400
        %v3191 = vpack.c.b16 %v2683, %v2679
        %v3192 = vpack.c.b16 %v2684, %v2680
        %v3193 = vpack.c.b16 %v2685, %v2681
        %v3194 = vpack.c.b16 %v2686, %v2682
        %v3195 = vpack.c.b16 %v2691, %v2687
        %v3196 = vpack.c.b16 %v2692, %v2688
        %v3197 = vpack.c.b16 %v2693, %v2689
        %v3198 = vpack.c.b16 %v2694, %v2690
        %v3199 = vpack.c.b16 %v2699, %v2695
        %v3200 = vpack.c.b16 %v2700, %v2696
        %v3201 = vpack.c.b16 %v2701, %v2697
        %v3202 = vpack.c.b16 %v2702, %v2698
        %v3203 = vpack.c.b16 %v2707, %v2703
        %v3204 = vpack.c.b16 %v2708, %v2704
        %v3205 = vpack.c.b16 %v2709, %v2705
        %v3206 = vpack.c.b16 %v2710, %v2706
        %v3207 = vpack.c.b16 %v2715, %v2711
        %v3208 = vpack.c.b16 %v2716, %v2712
        %v3209 = vpack.c.b16 %v2717, %v2713
        %v3210 = vpack.c.b16 %v2718, %v2714
        %v3211 = vpack.c.b16 %v2723, %v2719
        %v3212 = vpack.c.b16 %v2724, %v2720
        %v3213 = vpack.c.b16 %v2725, %v2721
        %v3214 = vpack.c.b16 %v2726, %v2722
        %v3215 = vpack.c.b16 %v2731, %v2727
        %v3216 = vpack.c.b16 %v2732, %v2728
        %v3217 = vpack.c.b16 %v2733, %v2729
        %v3218 = vpack.c.b16 %v2734, %v2730
        %v3219 = vpack.c.b16 %v2739, %v2735
        %v3220 = vpack.c.b16 %v2740, %v2736
        %v3221 = vpack.c.b16 %v2741, %v2737
        %v3222 = vpack.c.b16 %v2742, %v2738
        %v3223 = vpack.c.b16 %v2747, %v2743
        %v3224 = vpack.c.b16 %v2748, %v2744
        %v3225 = vpack.c.b16 %v2749, %v2745
        %v3226 = vpack.c.b16 %v2750, %v2746
        %v3227 = vpack.c.b16 %v2755, %v2751
        %v3228 = vpack.c.b16 %v2756, %v2752
        %v3229 = vpack.c.b16 %v2757, %v2753
        %v3230 = vpack.c.b16 %v2758, %v2754
        %v3231 = vpack.c.b16 %v2763, %v2759
        %v3232 = vpack.c.b16 %v2764, %v2760
        %v3233 = vpack.c.b16 %v2765, %v2761
        %v3234 = vpack.c.b16 %v2766, %v2762
        %v3235 = vpack.c.b16 %v2771, %v2767
        %v3236 = vpack.c.b16 %v2772, %v2768
        %v3237 = vpack.c.b16 %v2773, %v2769
        %v3238 = vpack.c.b16 %v2774, %v2770
        %v3239 = vpack.c.b16 %v2779, %v2775
        %v3240 = vpack.c.b16 %v2780, %v2776
        %v3241 = vpack.c.b16 %v2781, %v2777
        %v3242 = vpack.c.b16 %v2782, %v2778
        %v3243 = vpack.c.b16 %v2787, %v2783
        %v3244 = vpack.c.b16 %v2788, %v2784
        %v3245 = vpack.c.b16 %v2789, %v2785
        %v3246 = vpack.c.b16 %v2790, %v2786
        %v3247 = vpack.c.b16 %v2795, %v2791
        %v3248 = vpack.c.b16 %v2796, %v2792
        %v3249 = vpack.c.b16 %v2797, %v2793
        %v3250 = vpack.c.b16 %v2798, %v2794
        %v3251 = vpack.c.b16 %v2803, %v2799
        %v3252 = vpack.c.b16 %v2804, %v2800
        %v3253 = vpack.c.b16 %v2805, %v2801
        %v3254 = vpack.c.b16 %v2806, %v2802
        %v3255 = vpack.c.b16 %v2811, %v2807
        %v3256 = vpack.c.b16 %v2812, %v2808
        %v3257 = vpack.c.b16 %v2813, %v2809
        %v3258 = vpack.c.b16 %v2814, %v2810
        %v3259 = vpack.c.b16 %v2819, %v2815
        %v3260 = vpack.c.b16 %v2820, %v2816
        %v3261 = vpack.c.b16 %v2821, %v2817
        %v3262 = vpack.c.b16 %v2822, %v2818
        %v3263 = vpack.c.b16 %v2827, %v2823
        %v3264 = vpack.c.b16 %v2828, %v2824
        %v3265 = vpack.c.b16 %v2829, %v2825
        %v3266 = vpack.c.b16 %v2830, %v2826
        %v3267 = vpack.c.b16 %v2835, %v2831
        %v3268 = vpack.c.b16 %v2836, %v2832
        %v3269 = vpack.c.b16 %v2837, %v2833
        %v3270 = vpack.c.b16 %v2838, %v2834
        %v3271 = vpack.c.b16 %v2843, %v2839
        %v3272 = vpack.c.b16 %v2844, %v2840
        %v3273 = vpack.c.b16 %v2845, %v2841
        %v3274 = vpack.c.b16 %v2846, %v2842
        %v3275 = vpack.c.b16 %v2851, %v2847
        %v3276 = vpack.c.b16 %v2852, %v2848
        %v3277 = vpack.c.b16 %v2853, %v2849
        %v3278 = vpack.c.b16 %v2854, %v2850
        %v3279 = vpack.c.b16 %v2859, %v2855
        %v3280 = vpack.c.b16 %v2860, %v2856
        %v3281 = vpack.c.b16 %v2861, %v2857
        %v3282 = vpack.c.b16 %v2862, %v2858
        %v3283 = vpack.c.b16 %v2867, %v2863
        %v3284 = vpack.c.b16 %v2868, %v2864
        %v3285 = vpack.c.b16 %v2869, %v2865
        %v3286 = vpack.c.b16 %v2870, %v2866
        %v3287 = vpack.c.b16 %v2875, %v2871
        %v3288 = vpack.c.b16 %v2876, %v2872
        %v3289 = vpack.c.b16 %v2877, %v2873
        %v3290 = vpack.c.b16 %v2878, %v2874
        %v3291 = vpack.c.b16 %v2883, %v2879
        %v3292 = vpack.c.b16 %v2884, %v2880
        %v3293 = vpack.c.b16 %v2885, %v2881
        %v3294 = vpack.c.b16 %v2886, %v2882
        %v3295 = vpack.c.b16 %v2891, %v2887
        %v3296 = vpack.c.b16 %v2892, %v2888
        %v3297 = vpack.c.b16 %v2893, %v2889
        %v3298 = vpack.c.b16 %v2894, %v2890
        %v3299 = vpack.c.b16 %v2899, %v2895
        %v3300 = vpack.c.b16 %v2900, %v2896
        %v3301 = vpack.c.b16 %v2901, %v2897
        %v3302 = vpack.c.b16 %v2902, %v2898
        %v3303 = vpack.c.b16 %v2907, %v2903
        %v3304 = vpack.c.b16 %v2908, %v2904
        %v3305 = vpack.c.b16 %v2909, %v2905
        %v3306 = vpack.c.b16 %v2910, %v2906
        %v3307 = vpack.c.b16 %v2915, %v2911
        %v3308 = vpack.c.b16 %v2916, %v2912
        %v3309 = vpack.c.b16 %v2917, %v2913
        %v3310 = vpack.c.b16 %v2918, %v2914
        %v3311 = vpack.c.b16 %v2923, %v2919
        %v3312 = vpack.c.b16 %v2924, %v2920
        %v3313 = vpack.c.b16 %v2925, %v2921
        %v3314 = vpack.c.b16 %v2926, %v2922
        %v3315 = vpack.c.b16 %v2931, %v2927
        %v3316 = vpack.c.b16 %v2932, %v2928
        %v3317 = vpack.c.b16 %v2933, %v2929
        %v3318 = vpack.c.b16 %v2934, %v2930
        %v3319 = vpack.c.b16 %v2939, %v2935
        %v3320 = vpack.c.b16 %v2940, %v2936
        %v3321 = vpack.c.b16 %v2941, %v2937
        %v3322 = vpack.c.b16 %v2942, %v2938
        %v3323 = vpack.c.b16 %v2947, %v2943
        %v3324 = vpack.c.b16 %v2948, %v2944
        %v3325 = vpack.c.b16 %v2949, %v2945
        %v3326 = vpack.c.b16 %v2950, %v2946
        %v3327 = vpack.c.b16 %v2955, %v2951
        %v3328 = vpack.c.b16 %v2956, %v2952
        %v3329 = vpack.c.b16 %v2957, %v2953
        %v3330 = vpack.c.b16 %v2958, %v2954
        %v3331 = vpack.c.b16 %v2963, %v2959
        %v3332 = vpack.c.b16 %v2964, %v2960
        %v3333 = vpack.c.b16 %v2965, %v2961
        %v3334 = vpack.c.b16 %v2966, %v2962
        %v3335 = vpack.c.b16 %v2971, %v2967
        %v3336 = vpack.c.b16 %v2972, %v2968
        %v3337 = vpack.c.b16 %v2973, %v2969
        %v3338 = vpack.c.b16 %v2974, %v2970
        %v3339 = vpack.c.b16 %v2979, %v2975
        %v3340 = vpack.c.b16 %v2980, %v2976
        %v3341 = vpack.c.b16 %v2981, %v2977
        %v3342 = vpack.c.b16 %v2982, %v2978
        %v3343 = vpack.c.b16 %v2987, %v2983
        %v3344 = vpack.c.b16 %v2988, %v2984
        %v3345 = vpack.c.b16 %v2989, %v2985
        %v3346 = vpack.c.b16 %v2990, %v2986
        %v3347 = vpack.c.b16 %v2995, %v2991
        %v3348 = vpack.c.b16 %v2996, %v2992
        %v3349 = vpack.c.b16 %v2997, %v2993
        %v3350 = vpack.c.b16 %v2998, %v2994
        %v3351 = vpack.c.b16 %v3003, %v2999
        %v3352 = vpack.c.b16 %v3004, %v3000
        %v3353 = vpack.c.b16 %v3005, %v3001
        %v3354 = vpack.c.b16 %v3006, %v3002
        %v3355 = vpack.c.b16 %v3011, %v3007
        %v3356 = vpack.c.b16 %v3012, %v3008
        %v3357 = vpack.c.b16 %v3013, %v3009
        %v3358 = vpack.c.b16 %v3014, %v3010
        %v3359 = vpack.c.b16 %v3019, %v3015
        %v3360 = vpack.c.b16 %v3020, %v3016
        %v3361 = vpack.c.b16 %v3021, %v3017
        %v3362 = vpack.c.b16 %v3022, %v3018
        %v3363 = vpack.c.b16 %v3027, %v3023
        %v3364 = vpack.c.b16 %v3028, %v3024
        %v3365 = vpack.c.b16 %v3029, %v3025
        %v3366 = vpack.c.b16 %v3030, %v3026
        %v3367 = vpack.c.b16 %v3035, %v3031
        %v3368 = vpack.c.b16 %v3036, %v3032
        %v3369 = vpack.c.b16 %v3037, %v3033
        %v3370 = vpack.c.b16 %v3038, %v3034
        %v3371 = vpack.c.b16 %v3043, %v3039
        %v3372 = vpack.c.b16 %v3044, %v3040
        %v3373 = vpack.c.b16 %v3045, %v3041
        %v3374 = vpack.c.b16 %v3046, %v3042
        %v3375 = vpack.c.b16 %v3051, %v3047
        %v3376 = vpack.c.b16 %v3052, %v3048
        %v3377 = vpack.c.b16 %v3053, %v3049
        %v3378 = vpack.c.b16 %v3054, %v3050
        %v3379 = vpack.c.b16 %v3059, %v3055
        %v3380 = vpack.c.b16 %v3060, %v3056
        %v3381 = vpack.c.b16 %v3061, %v3057
        %v3382 = vpack.c.b16 %v3062, %v3058
        %v3383 = vpack.c.b16 %v3067, %v3063
        %v3384 = vpack.c.b16 %v3068, %v3064
        %v3385 = vpack.c.b16 %v3069, %v3065
        %v3386 = vpack.c.b16 %v3070, %v3066
        %v3387 = vpack.c.b16 %v3075, %v3071
        %v3388 = vpack.c.b16 %v3076, %v3072
        %v3389 = vpack.c.b16 %v3077, %v3073
        %v3390 = vpack.c.b16 %v3078, %v3074
        %v3391 = vpack.c.b16 %v3083, %v3079
        %v3392 = vpack.c.b16 %v3084, %v3080
        %v3393 = vpack.c.b16 %v3085, %v3081
        %v3394 = vpack.c.b16 %v3086, %v3082
        %v3395 = vpack.c.b16 %v3091, %v3087
        %v3396 = vpack.c.b16 %v3092, %v3088
        %v3397 = vpack.c.b16 %v3093, %v3089
        %v3398 = vpack.c.b16 %v3094, %v3090
        %v3399 = vpack.c.b16 %v3099, %v3095
        %v3400 = vpack.c.b16 %v3100, %v3096
        %v3401 = vpack.c.b16 %v3101, %v3097
        %v3402 = vpack.c.b16 %v3102, %v3098
        %v3403 = vpack.c.b16 %v3107, %v3103
        %v3404 = vpack.c.b16 %v3108, %v3104
        %v3405 = vpack.c.b16 %v3109, %v3105
        %v3406 = vpack.c.b16 %v3110, %v3106
        %v3407 = vpack.c.b16 %v3115, %v3111
        %v3408 = vpack.c.b16 %v3116, %v3112
        %v3409 = vpack.c.b16 %v3117, %v3113
        %v3410 = vpack.c.b16 %v3118, %v3114
        %v3411 = vpack.c.b16 %v3123, %v3119
        %v3412 = vpack.c.b16 %v3124, %v3120
        %v3413 = vpack.c.b16 %v3125, %v3121
        %v3414 = vpack.c.b16 %v3126, %v3122
        %v3415 = vpack.c.b16 %v3131, %v3127
        %v3416 = vpack.c.b16 %v3132, %v3128
        %v3417 = vpack.c.b16 %v3133, %v3129
        %v3418 = vpack.c.b16 %v3134, %v3130
        %v3419 = vpack.c.b16 %v3139, %v3135
        %v3420 = vpack.c.b16 %v3140, %v3136
        %v3421 = vpack.c.b16 %v3141, %v3137
        %v3422 = vpack.c.b16 %v3142, %v3138
        %v3423 = vpack.c.b16 %v3147, %v3143
        %v3424 = vpack.c.b16 %v3148, %v3144
        %v3425 = vpack.c.b16 %v3149, %v3145
        %v3426 = vpack.c.b16 %v3150, %v3146
        %v3427 = vpack.c.b16 %v3155, %v3151
        %v3428 = vpack.c.b16 %v3156, %v3152
        %v3429 = vpack.c.b16 %v3157, %v3153
        %v3430 = vpack.c.b16 %v3158, %v3154
        %v3431 = vpack.c.b16 %v3163, %v3159
        %v3432 = vpack.c.b16 %v3164, %v3160
        %v3433 = vpack.c.b16 %v3165, %v3161
        %v3434 = vpack.c.b16 %v3166, %v3162
        %v3435 = vpack.c.b16 %v3171, %v3167
        %v3436 = vpack.c.b16 %v3172, %v3168
        %v3437 = vpack.c.b16 %v3173, %v3169
        %v3438 = vpack.c.b16 %v3174, %v3170
        %v3439 = vpack.c.b16 %v3179, %v3175
        %v3440 = vpack.c.b16 %v3180, %v3176
        %v3441 = vpack.c.b16 %v3181, %v3177
        %v3442 = vpack.c.b16 %v3182, %v3178
        %v3443 = vpack.c.b16 %v3187, %v3183
        %v3444 = vpack.c.b16 %v3188, %v3184
        %v3445 = vpack.c.b16 %v3189, %v3185
        %v3446 = vpack.c.b16 %v3190, %v3186
        %3703 = vmatprep.subr.bf16.mxu0 %v3220
        %3704 = vmatpush1.bf16.msra.mxu0 %v3219
        %3705 = vmatprep.subr.bf16.mxu0 %v3216
        %3706 = vmatpush1.bf16.msra.mxu0 %v3215
        %3707 = vmatprep.subr.bf16.mxu0 %v3212
        %3708 = vmatpush1.bf16.msra.mxu0 %v3211
        %3709 = vmatprep.subr.bf16.mxu0 %v3208
        %3710 = vmatpush1.bf16.msra.mxu0 %v3207
        %3711 = vmatprep.subr.bf16.mxu0 %v3204
        %3712 = vmatpush1.bf16.msra.mxu0 %v3203
        %3713 = vmatprep.subr.bf16.mxu0 %v3200
        %3714 = vmatpush1.bf16.msra.mxu0 %v3199
        %3715 = vmatprep.subr.bf16.mxu0 %v3196
        %3716 = vmatpush1.bf16.msra.mxu0 %v3195
        %3717 = vmatprep.subr.bf16.mxu0 %v3192
        %3718 = vmatpush1.bf16.msra.mxu0 %v3191
        %3719 = vmatprep.subr.bf16.mxu0 %v3252
        %3720 = vmatpush2.bf16.msra.mxu0 %v3251
        %3721 = vmatprep.subr.bf16.mxu0 %v3248
        %3722 = vmatpush2.bf16.msra.mxu0 %v3247
        %3723 = vmatprep.subr.bf16.mxu0 %v3244
        %3724 = vmatpush2.bf16.msra.mxu0 %v3243
        %3725 = vmatprep.subr.bf16.mxu0 %v3240
        %3726 = vmatpush2.bf16.msra.mxu0 %v3239
        %3727 = vmatprep.subr.bf16.mxu0 %v3236
        %3728 = vmatpush2.bf16.msra.mxu0 %v3235
        %3729 = vmatprep.subr.bf16.mxu0 %v3232
        %3730 = vmatpush2.bf16.msra.mxu0 %v3231
        %3731 = vmatprep.subr.bf16.mxu0 %v3228
        %3732 = vmatpush2.bf16.msra.mxu0 %v3227
        %3733 = vmatprep.subr.bf16.mxu0 %v3224
        %3734 = vmatpush2.bf16.msra.mxu0 %v3223
        %3735 = vmatprep.mubr.bf16.mxu0 %v2082
        %3736 = vmatmul.mubr.bf16.gmra.mxu0 %v2081
        %v3737 = vpop.f32.mrf.mxu0
        %v3738 = vadd.f32 %v2406, %v3737
        %v3739 = vpop.f32.mrf.mxu0
        %v3740 = vadd.f32 %v2410, %v3739
        %v3741 = vpop.f32.mrf.mxu0
        %v3742 = vadd.f32 %v2406, %v3741
        %v3743 = vpop.f32.mrf.mxu0
        %v3744 = vadd.f32 %v2410, %v3743
        %3745 = vmatprep.mubr.bf16.mxu0 %v2090
        %3746 = vmatmul.mubr.bf16.gmra.mxu0 %v2089
        %v3747 = vpop.f32.mrf.mxu0
        %v3748 = vadd.f32 %v2406, %v3747
        %v3749 = vpop.f32.mrf.mxu0
        %v3750 = vadd.f32 %v2410, %v3749
        %v3751 = vpop.f32.mrf.mxu0
        %v3752 = vadd.f32 %v2406, %v3751
        %v3753 = vpop.f32.mrf.mxu0
        %v3754 = vadd.f32 %v2410, %v3753
        %3755 = vmatprep.mubr.bf16.mxu0 %v2098
        %3756 = vmatmul.mubr.bf16.gmra.mxu0 %v2097
        %v3757 = vpop.f32.mrf.mxu0
        %v3758 = vadd.f32 %v2406, %v3757
        %v3759 = vpop.f32.mrf.mxu0
        %v3760 = vadd.f32 %v2410, %v3759
        %v3761 = vpop.f32.mrf.mxu0
        %v3762 = vadd.f32 %v2406, %v3761
        %v3763 = vpop.f32.mrf.mxu0
        %v3764 = vadd.f32 %v2410, %v3763
        %3765 = vmatprep.mubr.bf16.mxu0 %v2106
        %3766 = vmatmul.mubr.bf16.gmra.mxu0 %v2105
        %v3767 = vpop.f32.mrf.mxu0
        %v3768 = vadd.f32 %v2406, %v3767
        %v3769 = vpop.f32.mrf.mxu0
        %v3770 = vadd.f32 %v2410, %v3769
        %v3771 = vpop.f32.mrf.mxu0
        %v3772 = vadd.f32 %v2406, %v3771
        %v3773 = vpop.f32.mrf.mxu0
        %v3774 = vadd.f32 %v2410, %v3773
        %3775 = vmatprep.mubr.bf16.mxu0 %v2114
        %3776 = vmatmul.mubr.bf16.gmra.mxu0 %v2113
        %v3777 = vpop.f32.mrf.mxu0
        %v3778 = vadd.f32 %v2406, %v3777
        %v3779 = vpop.f32.mrf.mxu0
        %v3780 = vadd.f32 %v2410, %v3779
        %v3781 = vpop.f32.mrf.mxu0
        %v3782 = vadd.f32 %v2406, %v3781
        %v3783 = vpop.f32.mrf.mxu0
        %v3784 = vadd.f32 %v2410, %v3783
        %3785 = vmatprep.mubr.bf16.mxu0 %v2122
        %3786 = vmatmul.mubr.bf16.gmra.mxu0 %v2121
        %v3787 = vpop.f32.mrf.mxu0
        %v3788 = vadd.f32 %v2406, %v3787
        %v3789 = vpop.f32.mrf.mxu0
        %v3790 = vadd.f32 %v2410, %v3789
        %v3791 = vpop.f32.mrf.mxu0
        %v3792 = vadd.f32 %v2406, %v3791
        %v3793 = vpop.f32.mrf.mxu0
        %v3794 = vadd.f32 %v2410, %v3793
        %3795 = vmatprep.mubr.bf16.mxu0 %v2130
        %3796 = vmatmul.mubr.bf16.gmra.mxu0 %v2129
        %v3797 = vpop.f32.mrf.mxu0
        %v3798 = vadd.f32 %v2406, %v3797
        %v3799 = vpop.f32.mrf.mxu0
        %v3800 = vadd.f32 %v2410, %v3799
        %v3801 = vpop.f32.mrf.mxu0
        %v3802 = vadd.f32 %v2406, %v3801
        %v3803 = vpop.f32.mrf.mxu0
        %v3804 = vadd.f32 %v2410, %v3803
        %3805 = vmatprep.mubr.bf16.mxu0 %v2138
        %3806 = vmatmul.mubr.bf16.gmra.mxu0 %v2137
        %v3807 = vpop.f32.mrf.mxu0
        %v3808 = vadd.f32 %v2406, %v3807
        %v3809 = vpop.f32.mrf.mxu0
        %v3810 = vadd.f32 %v2410, %v3809
        %v3811 = vpop.f32.mrf.mxu0
        %v3812 = vadd.f32 %v2406, %v3811
        %v3813 = vpop.f32.mrf.mxu0
        %v3814 = vadd.f32 %v2410, %v3813
        %3815 = vdwg.mxu0
        %3816 = vmatprep.subr.bf16.mxu0 %v3284
        %3817 = vmatpush1.bf16.msra.mxu0 %v3283
        %3818 = vmatprep.subr.bf16.mxu0 %v3280
        %3819 = vmatpush1.bf16.msra.mxu0 %v3279
        %3820 = vmatprep.subr.bf16.mxu0 %v3276
        %3821 = vmatpush1.bf16.msra.mxu0 %v3275
        %3822 = vmatprep.subr.bf16.mxu0 %v3272
        %3823 = vmatpush1.bf16.msra.mxu0 %v3271
        %3824 = vmatprep.subr.bf16.mxu0 %v3268
        %3825 = vmatpush1.bf16.msra.mxu0 %v3267
        %3826 = vmatprep.subr.bf16.mxu0 %v3264
        %3827 = vmatpush1.bf16.msra.mxu0 %v3263
        %3828 = vmatprep.subr.bf16.mxu0 %v3260
        %3829 = vmatpush1.bf16.msra.mxu0 %v3259
        %3830 = vmatprep.subr.bf16.mxu0 %v3256
        %3831 = vmatpush1.bf16.msra.mxu0 %v3255
        %3832 = vmatprep.subr.bf16.mxu0 %v3316
        %3833 = vmatpush2.bf16.msra.mxu0 %v3315
        %3834 = vmatprep.subr.bf16.mxu0 %v3312
        %3835 = vmatpush2.bf16.msra.mxu0 %v3311
        %3836 = vmatprep.subr.bf16.mxu0 %v3308
        %3837 = vmatpush2.bf16.msra.mxu0 %v3307
        %3838 = vmatprep.subr.bf16.mxu0 %v3304
        %3839 = vmatpush2.bf16.msra.mxu0 %v3303
        %3840 = vmatprep.subr.bf16.mxu0 %v3300
        %3841 = vmatpush2.bf16.msra.mxu0 %v3299
        %3842 = vmatprep.subr.bf16.mxu0 %v3296
        %3843 = vmatpush2.bf16.msra.mxu0 %v3295
        %3844 = vmatprep.subr.bf16.mxu0 %v3292
        %3845 = vmatpush2.bf16.msra.mxu0 %v3291
        %3846 = vmatprep.subr.bf16.mxu0 %v3288
        %3847 = vmatpush2.bf16.msra.mxu0 %v3287
        %3848 = vmatprep.mubr.bf16.mxu0 %v2084
        %3849 = vmatmul.mubr.bf16.gmra.mxu0 %v2083
        %v3850 = vpop.f32.mrf.mxu0
        %v3851 = vadd.f32 %v3738, %v3850
        %v3852 = vpop.f32.mrf.mxu0
        %v3853 = vadd.f32 %v3740, %v3852
        %v3854 = vpop.f32.mrf.mxu0
        %v3855 = vadd.f32 %v3742, %v3854
        %v3856 = vpop.f32.mrf.mxu0
        %v3857 = vadd.f32 %v3744, %v3856
        %3858 = vmatprep.mubr.bf16.mxu0 %v2092
        %3859 = vmatmul.mubr.bf16.gmra.mxu0 %v2091
        %v3860 = vpop.f32.mrf.mxu0
        %v3861 = vadd.f32 %v3748, %v3860
        %v3862 = vpop.f32.mrf.mxu0
        %v3863 = vadd.f32 %v3750, %v3862
        %v3864 = vpop.f32.mrf.mxu0
        %v3865 = vadd.f32 %v3752, %v3864
        %v3866 = vpop.f32.mrf.mxu0
        %v3867 = vadd.f32 %v3754, %v3866
        %3868 = vmatprep.mubr.bf16.mxu0 %v2100
        %3869 = vmatmul.mubr.bf16.gmra.mxu0 %v2099
        %v3870 = vpop.f32.mrf.mxu0
        %v3871 = vadd.f32 %v3758, %v3870
        %v3872 = vpop.f32.mrf.mxu0
        %v3873 = vadd.f32 %v3760, %v3872
        %v3874 = vpop.f32.mrf.mxu0
        %v3875 = vadd.f32 %v3762, %v3874
        %v3876 = vpop.f32.mrf.mxu0
        %v3877 = vadd.f32 %v3764, %v3876
        %3878 = vmatprep.mubr.bf16.mxu0 %v2108
        %3879 = vmatmul.mubr.bf16.gmra.mxu0 %v2107
        %v3880 = vpop.f32.mrf.mxu0
        %v3881 = vadd.f32 %v3768, %v3880
        %v3882 = vpop.f32.mrf.mxu0
        %v3883 = vadd.f32 %v3770, %v3882
        %v3884 = vpop.f32.mrf.mxu0
        %v3885 = vadd.f32 %v3772, %v3884
        %v3886 = vpop.f32.mrf.mxu0
        %v3887 = vadd.f32 %v3774, %v3886
        %3888 = vmatprep.mubr.bf16.mxu0 %v2116
        %3889 = vmatmul.mubr.bf16.gmra.mxu0 %v2115
        %v3890 = vpop.f32.mrf.mxu0
        %v3891 = vadd.f32 %v3778, %v3890
        %v3892 = vpop.f32.mrf.mxu0
        %v3893 = vadd.f32 %v3780, %v3892
        %v3894 = vpop.f32.mrf.mxu0
        %v3895 = vadd.f32 %v3782, %v3894
        %v3896 = vpop.f32.mrf.mxu0
        %v3897 = vadd.f32 %v3784, %v3896
        %3898 = vmatprep.mubr.bf16.mxu0 %v2124
        %3899 = vmatmul.mubr.bf16.gmra.mxu0 %v2123
        %v3900 = vpop.f32.mrf.mxu0
        %v3901 = vadd.f32 %v3788, %v3900
        %v3902 = vpop.f32.mrf.mxu0
        %v3903 = vadd.f32 %v3790, %v3902
        %v3904 = vpop.f32.mrf.mxu0
        %v3905 = vadd.f32 %v3792, %v3904
        %v3906 = vpop.f32.mrf.mxu0
        %v3907 = vadd.f32 %v3794, %v3906
        %3908 = vmatprep.mubr.bf16.mxu0 %v2132
        %3909 = vmatmul.mubr.bf16.gmra.mxu0 %v2131
        %v3910 = vpop.f32.mrf.mxu0
        %v3911 = vadd.f32 %v3798, %v3910
        %v3912 = vpop.f32.mrf.mxu0
        %v3913 = vadd.f32 %v3800, %v3912
        %v3914 = vpop.f32.mrf.mxu0
        %v3915 = vadd.f32 %v3802, %v3914
        %v3916 = vpop.f32.mrf.mxu0
        %v3917 = vadd.f32 %v3804, %v3916
        %3918 = vmatprep.mubr.bf16.mxu0 %v2140
        %3919 = vmatmul.mubr.bf16.gmra.mxu0 %v2139
        %v3920 = vpop.f32.mrf.mxu0
        %v3921 = vadd.f32 %v3808, %v3920
        %v3922 = vpop.f32.mrf.mxu0
        %v3923 = vadd.f32 %v3810, %v3922
        %v3924 = vpop.f32.mrf.mxu0
        %v3925 = vadd.f32 %v3812, %v3924
        %v3926 = vpop.f32.mrf.mxu0
        %v3927 = vadd.f32 %v3814, %v3926
        %3928 = vdwg.mxu0
        %3929 = vmatprep.subr.bf16.mxu0 %v3348
        %3930 = vmatpush1.bf16.msra.mxu0 %v3347
        %3931 = vmatprep.subr.bf16.mxu0 %v3344
        %3932 = vmatpush1.bf16.msra.mxu0 %v3343
        %3933 = vmatprep.subr.bf16.mxu0 %v3340
        %3934 = vmatpush1.bf16.msra.mxu0 %v3339
        %3935 = vmatprep.subr.bf16.mxu0 %v3336
        %3936 = vmatpush1.bf16.msra.mxu0 %v3335
        %3937 = vmatprep.subr.bf16.mxu0 %v3332
        %3938 = vmatpush1.bf16.msra.mxu0 %v3331
        %3939 = vmatprep.subr.bf16.mxu0 %v3328
        %3940 = vmatpush1.bf16.msra.mxu0 %v3327
        %3941 = vmatprep.subr.bf16.mxu0 %v3324
        %3942 = vmatpush1.bf16.msra.mxu0 %v3323
        %3943 = vmatprep.subr.bf16.mxu0 %v3320
        %3944 = vmatpush1.bf16.msra.mxu0 %v3319
        %3945 = vmatprep.subr.bf16.mxu0 %v3380
        %3946 = vmatpush2.bf16.msra.mxu0 %v3379
        %3947 = vmatprep.subr.bf16.mxu0 %v3376
        %3948 = vmatpush2.bf16.msra.mxu0 %v3375
        %3949 = vmatprep.subr.bf16.mxu0 %v3372
        %3950 = vmatpush2.bf16.msra.mxu0 %v3371
        %3951 = vmatprep.subr.bf16.mxu0 %v3368
        %3952 = vmatpush2.bf16.msra.mxu0 %v3367
        %3953 = vmatprep.subr.bf16.mxu0 %v3364
        %3954 = vmatpush2.bf16.msra.mxu0 %v3363
        %3955 = vmatprep.subr.bf16.mxu0 %v3360
        %3956 = vmatpush2.bf16.msra.mxu0 %v3359
        %3957 = vmatprep.subr.bf16.mxu0 %v3356
        %3958 = vmatpush2.bf16.msra.mxu0 %v3355
        %3959 = vmatprep.subr.bf16.mxu0 %v3352
        %3960 = vmatpush2.bf16.msra.mxu0 %v3351
        %3961 = vmatprep.mubr.bf16.mxu0 %v2086
        %3962 = vmatmul.mubr.bf16.gmra.mxu0 %v2085
        %v3963 = vpop.f32.mrf.mxu0
        %v3964 = vadd.f32 %v3851, %v3963
        %v3965 = vpop.f32.mrf.mxu0
        %v3966 = vadd.f32 %v3853, %v3965
        %v3967 = vpop.f32.mrf.mxu0
        %v3968 = vadd.f32 %v3855, %v3967
        %v3969 = vpop.f32.mrf.mxu0
        %v3970 = vadd.f32 %v3857, %v3969
        %3971 = vmatprep.mubr.bf16.mxu0 %v2094
        %3972 = vmatmul.mubr.bf16.gmra.mxu0 %v2093
        %v3973 = vpop.f32.mrf.mxu0
        %v3974 = vadd.f32 %v3861, %v3973
        %v3975 = vpop.f32.mrf.mxu0
        %v3976 = vadd.f32 %v3863, %v3975
        %v3977 = vpop.f32.mrf.mxu0
        %v3978 = vadd.f32 %v3865, %v3977
        %v3979 = vpop.f32.mrf.mxu0
        %v3980 = vadd.f32 %v3867, %v3979
        %3981 = vmatprep.mubr.bf16.mxu0 %v2102
        %3982 = vmatmul.mubr.bf16.gmra.mxu0 %v2101
        %v3983 = vpop.f32.mrf.mxu0
        %v3984 = vadd.f32 %v3871, %v3983
        %v3985 = vpop.f32.mrf.mxu0
        %v3986 = vadd.f32 %v3873, %v3985
        %v3987 = vpop.f32.mrf.mxu0
        %v3988 = vadd.f32 %v3875, %v3987
        %v3989 = vpop.f32.mrf.mxu0
        %v3990 = vadd.f32 %v3877, %v3989
        %3991 = vmatprep.mubr.bf16.mxu0 %v2110
        %3992 = vmatmul.mubr.bf16.gmra.mxu0 %v2109
        %v3993 = vpop.f32.mrf.mxu0
        %v3994 = vadd.f32 %v3881, %v3993
        %v3995 = vpop.f32.mrf.mxu0
        %v3996 = vadd.f32 %v3883, %v3995
        %v3997 = vpop.f32.mrf.mxu0
        %v3998 = vadd.f32 %v3885, %v3997
        %v3999 = vpop.f32.mrf.mxu0
        %v4000 = vadd.f32 %v3887, %v3999
        %4001 = vmatprep.mubr.bf16.mxu0 %v2118
        %4002 = vmatmul.mubr.bf16.gmra.mxu0 %v2117
        %v4003 = vpop.f32.mrf.mxu0
        %v4004 = vadd.f32 %v3891, %v4003
        %v4005 = vpop.f32.mrf.mxu0
        %v4006 = vadd.f32 %v3893, %v4005
        %v4007 = vpop.f32.mrf.mxu0
        %v4008 = vadd.f32 %v3895, %v4007
        %v4009 = vpop.f32.mrf.mxu0
        %v4010 = vadd.f32 %v3897, %v4009
        %4011 = vmatprep.mubr.bf16.mxu0 %v2126
        %4012 = vmatmul.mubr.bf16.gmra.mxu0 %v2125
        %v4013 = vpop.f32.mrf.mxu0
        %v4014 = vadd.f32 %v3901, %v4013
        %v4015 = vpop.f32.mrf.mxu0
        %v4016 = vadd.f32 %v3903, %v4015
        %v4017 = vpop.f32.mrf.mxu0
        %v4018 = vadd.f32 %v3905, %v4017
        %v4019 = vpop.f32.mrf.mxu0
        %v4020 = vadd.f32 %v3907, %v4019
        %4021 = vmatprep.mubr.bf16.mxu0 %v2134
        %4022 = vmatmul.mubr.bf16.gmra.mxu0 %v2133
        %v4023 = vpop.f32.mrf.mxu0
        %v4024 = vadd.f32 %v3911, %v4023
        %v4025 = vpop.f32.mrf.mxu0
        %v4026 = vadd.f32 %v3913, %v4025
        %v4027 = vpop.f32.mrf.mxu0
        %v4028 = vadd.f32 %v3915, %v4027
        %v4029 = vpop.f32.mrf.mxu0
        %v4030 = vadd.f32 %v3917, %v4029
        %4031 = vmatprep.mubr.bf16.mxu0 %v2142
        %4032 = vmatmul.mubr.bf16.gmra.mxu0 %v2141
        %v4033 = vpop.f32.mrf.mxu0
        %v4034 = vadd.f32 %v3921, %v4033
        %v4035 = vpop.f32.mrf.mxu0
        %v4036 = vadd.f32 %v3923, %v4035
        %v4037 = vpop.f32.mrf.mxu0
        %v4038 = vadd.f32 %v3925, %v4037
        %v4039 = vpop.f32.mrf.mxu0
        %v4040 = vadd.f32 %v3927, %v4039
        %4041 = vdwg.mxu0
        %4042 = vmatprep.subr.bf16.mxu0 %v3412
        %4043 = vmatpush1.bf16.msra.mxu0 %v3411
        %4044 = vmatprep.subr.bf16.mxu0 %v3408
        %4045 = vmatpush1.bf16.msra.mxu0 %v3407
        %4046 = vmatprep.subr.bf16.mxu0 %v3404
        %4047 = vmatpush1.bf16.msra.mxu0 %v3403
        %4048 = vmatprep.subr.bf16.mxu0 %v3400
        %4049 = vmatpush1.bf16.msra.mxu0 %v3399
        %4050 = vmatprep.subr.bf16.mxu0 %v3396
        %4051 = vmatpush1.bf16.msra.mxu0 %v3395
        %4052 = vmatprep.subr.bf16.mxu0 %v3392
        %4053 = vmatpush1.bf16.msra.mxu0 %v3391
        %4054 = vmatprep.subr.bf16.mxu0 %v3388
        %4055 = vmatpush1.bf16.msra.mxu0 %v3387
        %4056 = vmatprep.subr.bf16.mxu0 %v3384
        %4057 = vmatpush1.bf16.msra.mxu0 %v3383
        %4058 = vmatprep.subr.bf16.mxu0 %v3444
        %4059 = vmatpush2.bf16.msra.mxu0 %v3443
        %4060 = vmatprep.subr.bf16.mxu0 %v3440
        %4061 = vmatpush2.bf16.msra.mxu0 %v3439
        %4062 = vmatprep.subr.bf16.mxu0 %v3436
        %4063 = vmatpush2.bf16.msra.mxu0 %v3435
        %4064 = vmatprep.subr.bf16.mxu0 %v3432
        %4065 = vmatpush2.bf16.msra.mxu0 %v3431
        %4066 = vmatprep.subr.bf16.mxu0 %v3428
        %4067 = vmatpush2.bf16.msra.mxu0 %v3427
        %4068 = vmatprep.subr.bf16.mxu0 %v3424
        %4069 = vmatpush2.bf16.msra.mxu0 %v3423
        %4070 = vmatprep.subr.bf16.mxu0 %v3420
        %4071 = vmatpush2.bf16.msra.mxu0 %v3419
        %4072 = vmatprep.subr.bf16.mxu0 %v3416
        %4073 = vmatpush2.bf16.msra.mxu0 %v3415
        %4074 = vmatprep.mubr.bf16.mxu0 %v2088
        %4075 = vmatmul.mubr.bf16.gmra.mxu0 %v2087
        %v4076 = vpop.f32.mrf.mxu0
        %v4077 = vadd.f32 %v3964, %v4076
        %v4078 = vpop.f32.mrf.mxu0
        %v4079 = vadd.f32 %v3966, %v4078
        %v4080 = vpop.f32.mrf.mxu0
        %v4081 = vadd.f32 %v3968, %v4080
        %v4082 = vpop.f32.mrf.mxu0
        %v4083 = vadd.f32 %v3970, %v4082
        %4084 = vmatprep.mubr.bf16.mxu0 %v2096
        %4085 = vmatmul.mubr.bf16.gmra.mxu0 %v2095
        %v4086 = vpop.f32.mrf.mxu0
        %v4087 = vadd.f32 %v3974, %v4086
        %v4088 = vpop.f32.mrf.mxu0
        %v4089 = vadd.f32 %v3976, %v4088
        %v4090 = vpop.f32.mrf.mxu0
        %v4091 = vadd.f32 %v3978, %v4090
        %v4092 = vpop.f32.mrf.mxu0
        %v4093 = vadd.f32 %v3980, %v4092
        %4094 = vmatprep.mubr.bf16.mxu0 %v2104
        %4095 = vmatmul.mubr.bf16.gmra.mxu0 %v2103
        %v4096 = vpop.f32.mrf.mxu0
        %v4097 = vadd.f32 %v3984, %v4096
        %v4098 = vpop.f32.mrf.mxu0
        %v4099 = vadd.f32 %v3986, %v4098
        %v4100 = vpop.f32.mrf.mxu0
        %v4101 = vadd.f32 %v3988, %v4100
        %v4102 = vpop.f32.mrf.mxu0
        %v4103 = vadd.f32 %v3990, %v4102
        %4104 = vmatprep.mubr.bf16.mxu0 %v2112
        %4105 = vmatmul.mubr.bf16.gmra.mxu0 %v2111
        %v4106 = vpop.f32.mrf.mxu0
        %v4107 = vadd.f32 %v3994, %v4106
        %v4108 = vpop.f32.mrf.mxu0
        %v4109 = vadd.f32 %v3996, %v4108
        %v4110 = vpop.f32.mrf.mxu0
        %v4111 = vadd.f32 %v3998, %v4110
        %v4112 = vpop.f32.mrf.mxu0
        %v4113 = vadd.f32 %v4000, %v4112
        %4114 = vmatprep.mubr.bf16.mxu0 %v2120
        %4115 = vmatmul.mubr.bf16.gmra.mxu0 %v2119
        %v4116 = vpop.f32.mrf.mxu0
        %v4117 = vadd.f32 %v4004, %v4116
        %v4118 = vpop.f32.mrf.mxu0
        %v4119 = vadd.f32 %v4006, %v4118
        %v4120 = vpop.f32.mrf.mxu0
        %v4121 = vadd.f32 %v4008, %v4120
        %v4122 = vpop.f32.mrf.mxu0
        %v4123 = vadd.f32 %v4010, %v4122
        %4124 = vmatprep.mubr.bf16.mxu0 %v2128
        %4125 = vmatmul.mubr.bf16.gmra.mxu0 %v2127
        %v4126 = vpop.f32.mrf.mxu0
        %v4127 = vadd.f32 %v4014, %v4126
        %v4128 = vpop.f32.mrf.mxu0
        %v4129 = vadd.f32 %v4016, %v4128
        %v4130 = vpop.f32.mrf.mxu0
        %v4131 = vadd.f32 %v4018, %v4130
        %v4132 = vpop.f32.mrf.mxu0
        %v4133 = vadd.f32 %v4020, %v4132
        %4134 = vmatprep.mubr.bf16.mxu0 %v2136
        %4135 = vmatmul.mubr.bf16.gmra.mxu0 %v2135
        %v4136 = vpop.f32.mrf.mxu0
        %v4137 = vadd.f32 %v4024, %v4136
        %v4138 = vpop.f32.mrf.mxu0
        %v4139 = vadd.f32 %v4026, %v4138
        %v4140 = vpop.f32.mrf.mxu0
        %v4141 = vadd.f32 %v4028, %v4140
        %v4142 = vpop.f32.mrf.mxu0
        %v4143 = vadd.f32 %v4030, %v4142
        %4144 = vmatprep.mubr.bf16.mxu0 %v2144
        %4145 = vmatmul.mubr.bf16.gmra.mxu0 %v2143
        %v4146 = vpop.f32.mrf.mxu0
        %v4147 = vadd.f32 %v4034, %v4146
        %v4148 = vpop.f32.mrf.mxu0
        %v4149 = vadd.f32 %v4036, %v4148
        %v4150 = vpop.f32.mrf.mxu0
        %v4151 = vadd.f32 %v4038, %v4150
        %v4152 = vpop.f32.mrf.mxu0
        %v4153 = vadd.f32 %v4040, %v4152
        %4154 = vdwg.mxu0
        %4155 = vmatprep.subr.bf16.mxu0 %v3222
        %4156 = vmatpush1.bf16.msra.mxu0 %v3221
        %4157 = vmatprep.subr.bf16.mxu0 %v3218
        %4158 = vmatpush1.bf16.msra.mxu0 %v3217
        %4159 = vmatprep.subr.bf16.mxu0 %v3214
        %4160 = vmatpush1.bf16.msra.mxu0 %v3213
        %4161 = vmatprep.subr.bf16.mxu0 %v3210
        %4162 = vmatpush1.bf16.msra.mxu0 %v3209
        %4163 = vmatprep.subr.bf16.mxu0 %v3206
        %4164 = vmatpush1.bf16.msra.mxu0 %v3205
        %4165 = vmatprep.subr.bf16.mxu0 %v3202
        %4166 = vmatpush1.bf16.msra.mxu0 %v3201
        %4167 = vmatprep.subr.bf16.mxu0 %v3198
        %4168 = vmatpush1.bf16.msra.mxu0 %v3197
        %4169 = vmatprep.subr.bf16.mxu0 %v3194
        %4170 = vmatpush1.bf16.msra.mxu0 %v3193
        %4171 = vmatprep.subr.bf16.mxu0 %v3254
        %4172 = vmatpush2.bf16.msra.mxu0 %v3253
        %4173 = vmatprep.subr.bf16.mxu0 %v3250
        %4174 = vmatpush2.bf16.msra.mxu0 %v3249
        %4175 = vmatprep.subr.bf16.mxu0 %v3246
        %4176 = vmatpush2.bf16.msra.mxu0 %v3245
        %4177 = vmatprep.subr.bf16.mxu0 %v3242
        %4178 = vmatpush2.bf16.msra.mxu0 %v3241
        %4179 = vmatprep.subr.bf16.mxu0 %v3238
        %4180 = vmatpush2.bf16.msra.mxu0 %v3237
        %4181 = vmatprep.subr.bf16.mxu0 %v3234
        %4182 = vmatpush2.bf16.msra.mxu0 %v3233
        %4183 = vmatprep.subr.bf16.mxu0 %v3230
        %4184 = vmatpush2.bf16.msra.mxu0 %v3229
        %4185 = vmatprep.subr.bf16.mxu0 %v3226
        %4186 = vmatpush2.bf16.msra.mxu0 %v3225
        %4187 = vmatprep.mubr.bf16.mxu0 %v2082
        %4188 = vmatmul.mubr.bf16.gmra.mxu0 %v2081
        %v4189 = vpop.f32.mrf.mxu0
        %v4190 = vadd.f32 %v2414, %v4189
        %v4191 = vpop.f32.mrf.mxu0
        %v4192 = vadd.f32 %v2418, %v4191
        %v4193 = vpop.f32.mrf.mxu0
        %v4194 = vadd.f32 %v2414, %v4193
        %v4195 = vpop.f32.mrf.mxu0
        %v4196 = vadd.f32 %v2418, %v4195
        %4197 = vmatprep.mubr.bf16.mxu0 %v2090
        %4198 = vmatmul.mubr.bf16.gmra.mxu0 %v2089
        %v4199 = vpop.f32.mrf.mxu0
        %v4200 = vadd.f32 %v2414, %v4199
        %v4201 = vpop.f32.mrf.mxu0
        %v4202 = vadd.f32 %v2418, %v4201
        %v4203 = vpop.f32.mrf.mxu0
        %v4204 = vadd.f32 %v2414, %v4203
        %v4205 = vpop.f32.mrf.mxu0
        %v4206 = vadd.f32 %v2418, %v4205
        %4207 = vmatprep.mubr.bf16.mxu0 %v2098
        %4208 = vmatmul.mubr.bf16.gmra.mxu0 %v2097
        %v4209 = vpop.f32.mrf.mxu0
        %v4210 = vadd.f32 %v2414, %v4209
        %v4211 = vpop.f32.mrf.mxu0
        %v4212 = vadd.f32 %v2418, %v4211
        %v4213 = vpop.f32.mrf.mxu0
        %v4214 = vadd.f32 %v2414, %v4213
        %v4215 = vpop.f32.mrf.mxu0
        %v4216 = vadd.f32 %v2418, %v4215
        %4217 = vmatprep.mubr.bf16.mxu0 %v2106
        %4218 = vmatmul.mubr.bf16.gmra.mxu0 %v2105
        %v4219 = vpop.f32.mrf.mxu0
        %v4220 = vadd.f32 %v2414, %v4219
        %v4221 = vpop.f32.mrf.mxu0
        %v4222 = vadd.f32 %v2418, %v4221
        %v4223 = vpop.f32.mrf.mxu0
        %v4224 = vadd.f32 %v2414, %v4223
        %v4225 = vpop.f32.mrf.mxu0
        %v4226 = vadd.f32 %v2418, %v4225
        %4227 = vmatprep.mubr.bf16.mxu0 %v2114
        %4228 = vmatmul.mubr.bf16.gmra.mxu0 %v2113
        %v4229 = vpop.f32.mrf.mxu0
        %v4230 = vadd.f32 %v2414, %v4229
        %v4231 = vpop.f32.mrf.mxu0
        %v4232 = vadd.f32 %v2418, %v4231
        %v4233 = vpop.f32.mrf.mxu0
        %v4234 = vadd.f32 %v2414, %v4233
        %v4235 = vpop.f32.mrf.mxu0
        %v4236 = vadd.f32 %v2418, %v4235
        %4237 = vmatprep.mubr.bf16.mxu0 %v2122
        %4238 = vmatmul.mubr.bf16.gmra.mxu0 %v2121
        %v4239 = vpop.f32.mrf.mxu0
        %v4240 = vadd.f32 %v2414, %v4239
        %v4241 = vpop.f32.mrf.mxu0
        %v4242 = vadd.f32 %v2418, %v4241
        %v4243 = vpop.f32.mrf.mxu0
        %v4244 = vadd.f32 %v2414, %v4243
        %v4245 = vpop.f32.mrf.mxu0
        %v4246 = vadd.f32 %v2418, %v4245
        %4247 = vmatprep.mubr.bf16.mxu0 %v2130
        %4248 = vmatmul.mubr.bf16.gmra.mxu0 %v2129
        %v4249 = vpop.f32.mrf.mxu0
        %v4250 = vadd.f32 %v2414, %v4249
        %v4251 = vpop.f32.mrf.mxu0
        %v4252 = vadd.f32 %v2418, %v4251
        %v4253 = vpop.f32.mrf.mxu0
        %v4254 = vadd.f32 %v2414, %v4253
        %v4255 = vpop.f32.mrf.mxu0
        %v4256 = vadd.f32 %v2418, %v4255
        %4257 = vmatprep.mubr.bf16.mxu0 %v2138
        %4258 = vmatmul.mubr.bf16.gmra.mxu0 %v2137
        %v4259 = vpop.f32.mrf.mxu0
        %v4260 = vadd.f32 %v2414, %v4259
        %v4261 = vpop.f32.mrf.mxu0
        %v4262 = vadd.f32 %v2418, %v4261
        %v4263 = vpop.f32.mrf.mxu0
        %v4264 = vadd.f32 %v2414, %v4263
        %v4265 = vpop.f32.mrf.mxu0
        %v4266 = vadd.f32 %v2418, %v4265
        %4267 = vdwg.mxu0
        %4268 = vmatprep.subr.bf16.mxu0 %v3286
        %4269 = vmatpush1.bf16.msra.mxu0 %v3285
        %4270 = vmatprep.subr.bf16.mxu0 %v3282
        %4271 = vmatpush1.bf16.msra.mxu0 %v3281
        %4272 = vmatprep.subr.bf16.mxu0 %v3278
        %4273 = vmatpush1.bf16.msra.mxu0 %v3277
        %4274 = vmatprep.subr.bf16.mxu0 %v3274
        %4275 = vmatpush1.bf16.msra.mxu0 %v3273
        %4276 = vmatprep.subr.bf16.mxu0 %v3270
        %4277 = vmatpush1.bf16.msra.mxu0 %v3269
        %4278 = vmatprep.subr.bf16.mxu0 %v3266
        %4279 = vmatpush1.bf16.msra.mxu0 %v3265
        %4280 = vmatprep.subr.bf16.mxu0 %v3262
        %4281 = vmatpush1.bf16.msra.mxu0 %v3261
        %4282 = vmatprep.subr.bf16.mxu0 %v3258
        %4283 = vmatpush1.bf16.msra.mxu0 %v3257
        %4284 = vmatprep.subr.bf16.mxu0 %v3318
        %4285 = vmatpush2.bf16.msra.mxu0 %v3317
        %4286 = vmatprep.subr.bf16.mxu0 %v3314
        %4287 = vmatpush2.bf16.msra.mxu0 %v3313
        %4288 = vmatprep.subr.bf16.mxu0 %v3310
        %4289 = vmatpush2.bf16.msra.mxu0 %v3309
        %4290 = vmatprep.subr.bf16.mxu0 %v3306
        %4291 = vmatpush2.bf16.msra.mxu0 %v3305
        %4292 = vmatprep.subr.bf16.mxu0 %v3302
        %4293 = vmatpush2.bf16.msra.mxu0 %v3301
        %4294 = vmatprep.subr.bf16.mxu0 %v3298
        %4295 = vmatpush2.bf16.msra.mxu0 %v3297
        %4296 = vmatprep.subr.bf16.mxu0 %v3294
        %4297 = vmatpush2.bf16.msra.mxu0 %v3293
        %4298 = vmatprep.subr.bf16.mxu0 %v3290
        %4299 = vmatpush2.bf16.msra.mxu0 %v3289
        %4300 = vmatprep.mubr.bf16.mxu0 %v2084
        %4301 = vmatmul.mubr.bf16.gmra.mxu0 %v2083
        %v4302 = vpop.f32.mrf.mxu0
        %v4303 = vadd.f32 %v4190, %v4302
        %v4304 = vpop.f32.mrf.mxu0
        %v4305 = vadd.f32 %v4192, %v4304
        %v4306 = vpop.f32.mrf.mxu0
        %v4307 = vadd.f32 %v4194, %v4306
        %v4308 = vpop.f32.mrf.mxu0
        %v4309 = vadd.f32 %v4196, %v4308
        %4310 = vmatprep.mubr.bf16.mxu0 %v2092
        %4311 = vmatmul.mubr.bf16.gmra.mxu0 %v2091
        %v4312 = vpop.f32.mrf.mxu0
        %v4313 = vadd.f32 %v4200, %v4312
        %v4314 = vpop.f32.mrf.mxu0
        %v4315 = vadd.f32 %v4202, %v4314
        %v4316 = vpop.f32.mrf.mxu0
        %v4317 = vadd.f32 %v4204, %v4316
        %v4318 = vpop.f32.mrf.mxu0
        %v4319 = vadd.f32 %v4206, %v4318
        %4320 = vmatprep.mubr.bf16.mxu0 %v2100
        %4321 = vmatmul.mubr.bf16.gmra.mxu0 %v2099
        %v4322 = vpop.f32.mrf.mxu0
        %v4323 = vadd.f32 %v4210, %v4322
        %v4324 = vpop.f32.mrf.mxu0
        %v4325 = vadd.f32 %v4212, %v4324
        %v4326 = vpop.f32.mrf.mxu0
        %v4327 = vadd.f32 %v4214, %v4326
        %v4328 = vpop.f32.mrf.mxu0
        %v4329 = vadd.f32 %v4216, %v4328
        %4330 = vmatprep.mubr.bf16.mxu0 %v2108
        %4331 = vmatmul.mubr.bf16.gmra.mxu0 %v2107
        %v4332 = vpop.f32.mrf.mxu0
        %v4333 = vadd.f32 %v4220, %v4332
        %v4334 = vpop.f32.mrf.mxu0
        %v4335 = vadd.f32 %v4222, %v4334
        %v4336 = vpop.f32.mrf.mxu0
        %v4337 = vadd.f32 %v4224, %v4336
        %v4338 = vpop.f32.mrf.mxu0
        %v4339 = vadd.f32 %v4226, %v4338
        %4340 = vmatprep.mubr.bf16.mxu0 %v2116
        %4341 = vmatmul.mubr.bf16.gmra.mxu0 %v2115
        %v4342 = vpop.f32.mrf.mxu0
        %v4343 = vadd.f32 %v4230, %v4342
        %v4344 = vpop.f32.mrf.mxu0
        %v4345 = vadd.f32 %v4232, %v4344
        %v4346 = vpop.f32.mrf.mxu0
        %v4347 = vadd.f32 %v4234, %v4346
        %v4348 = vpop.f32.mrf.mxu0
        %v4349 = vadd.f32 %v4236, %v4348
        %4350 = vmatprep.mubr.bf16.mxu0 %v2124
        %4351 = vmatmul.mubr.bf16.gmra.mxu0 %v2123
        %v4352 = vpop.f32.mrf.mxu0
        %v4353 = vadd.f32 %v4240, %v4352
        %v4354 = vpop.f32.mrf.mxu0
        %v4355 = vadd.f32 %v4242, %v4354
        %v4356 = vpop.f32.mrf.mxu0
        %v4357 = vadd.f32 %v4244, %v4356
        %v4358 = vpop.f32.mrf.mxu0
        %v4359 = vadd.f32 %v4246, %v4358
        %4360 = vmatprep.mubr.bf16.mxu0 %v2132
        %4361 = vmatmul.mubr.bf16.gmra.mxu0 %v2131
        %v4362 = vpop.f32.mrf.mxu0
        %v4363 = vadd.f32 %v4250, %v4362
        %v4364 = vpop.f32.mrf.mxu0
        %v4365 = vadd.f32 %v4252, %v4364
        %v4366 = vpop.f32.mrf.mxu0
        %v4367 = vadd.f32 %v4254, %v4366
        %v4368 = vpop.f32.mrf.mxu0
        %v4369 = vadd.f32 %v4256, %v4368
        %4370 = vmatprep.mubr.bf16.mxu0 %v2140
        %4371 = vmatmul.mubr.bf16.gmra.mxu0 %v2139
        %v4372 = vpop.f32.mrf.mxu0
        %v4373 = vadd.f32 %v4260, %v4372
        %v4374 = vpop.f32.mrf.mxu0
        %v4375 = vadd.f32 %v4262, %v4374
        %v4376 = vpop.f32.mrf.mxu0
        %v4377 = vadd.f32 %v4264, %v4376
        %v4378 = vpop.f32.mrf.mxu0
        %v4379 = vadd.f32 %v4266, %v4378
        %4380 = vdwg.mxu0
        %4381 = vmatprep.subr.bf16.mxu0 %v3350
        %4382 = vmatpush1.bf16.msra.mxu0 %v3349
        %4383 = vmatprep.subr.bf16.mxu0 %v3346
        %4384 = vmatpush1.bf16.msra.mxu0 %v3345
        %4385 = vmatprep.subr.bf16.mxu0 %v3342
        %4386 = vmatpush1.bf16.msra.mxu0 %v3341
        %4387 = vmatprep.subr.bf16.mxu0 %v3338
        %4388 = vmatpush1.bf16.msra.mxu0 %v3337
        %4389 = vmatprep.subr.bf16.mxu0 %v3334
        %4390 = vmatpush1.bf16.msra.mxu0 %v3333
        %4391 = vmatprep.subr.bf16.mxu0 %v3330
        %4392 = vmatpush1.bf16.msra.mxu0 %v3329
        %4393 = vmatprep.subr.bf16.mxu0 %v3326
        %4394 = vmatpush1.bf16.msra.mxu0 %v3325
        %4395 = vmatprep.subr.bf16.mxu0 %v3322
        %4396 = vmatpush1.bf16.msra.mxu0 %v3321
        %4397 = vmatprep.subr.bf16.mxu0 %v3382
        %4398 = vmatpush2.bf16.msra.mxu0 %v3381
        %4399 = vmatprep.subr.bf16.mxu0 %v3378
        %4400 = vmatpush2.bf16.msra.mxu0 %v3377
        %4401 = vmatprep.subr.bf16.mxu0 %v3374
        %4402 = vmatpush2.bf16.msra.mxu0 %v3373
        %4403 = vmatprep.subr.bf16.mxu0 %v3370
        %4404 = vmatpush2.bf16.msra.mxu0 %v3369
        %4405 = vmatprep.subr.bf16.mxu0 %v3366
        %4406 = vmatpush2.bf16.msra.mxu0 %v3365
        %4407 = vmatprep.subr.bf16.mxu0 %v3362
        %4408 = vmatpush2.bf16.msra.mxu0 %v3361
        %4409 = vmatprep.subr.bf16.mxu0 %v3358
        %4410 = vmatpush2.bf16.msra.mxu0 %v3357
        %4411 = vmatprep.subr.bf16.mxu0 %v3354
        %4412 = vmatpush2.bf16.msra.mxu0 %v3353
        %4413 = vmatprep.mubr.bf16.mxu0 %v2086
        %4414 = vmatmul.mubr.bf16.gmra.mxu0 %v2085
        %v4415 = vpop.f32.mrf.mxu0
        %v4416 = vadd.f32 %v4303, %v4415
        %v4417 = vpop.f32.mrf.mxu0
        %v4418 = vadd.f32 %v4305, %v4417
        %v4419 = vpop.f32.mrf.mxu0
        %v4420 = vadd.f32 %v4307, %v4419
        %v4421 = vpop.f32.mrf.mxu0
        %v4422 = vadd.f32 %v4309, %v4421
        %4423 = vmatprep.mubr.bf16.mxu0 %v2094
        %4424 = vmatmul.mubr.bf16.gmra.mxu0 %v2093
        %v4425 = vpop.f32.mrf.mxu0
        %v4426 = vadd.f32 %v4313, %v4425
        %v4427 = vpop.f32.mrf.mxu0
        %v4428 = vadd.f32 %v4315, %v4427
        %v4429 = vpop.f32.mrf.mxu0
        %v4430 = vadd.f32 %v4317, %v4429
        %v4431 = vpop.f32.mrf.mxu0
        %v4432 = vadd.f32 %v4319, %v4431
        %4433 = vmatprep.mubr.bf16.mxu0 %v2102
        %4434 = vmatmul.mubr.bf16.gmra.mxu0 %v2101
        %v4435 = vpop.f32.mrf.mxu0
        %v4436 = vadd.f32 %v4323, %v4435
        %v4437 = vpop.f32.mrf.mxu0
        %v4438 = vadd.f32 %v4325, %v4437
        %v4439 = vpop.f32.mrf.mxu0
        %v4440 = vadd.f32 %v4327, %v4439
        %v4441 = vpop.f32.mrf.mxu0
        %v4442 = vadd.f32 %v4329, %v4441
        %4443 = vmatprep.mubr.bf16.mxu0 %v2110
        %4444 = vmatmul.mubr.bf16.gmra.mxu0 %v2109
        %v4445 = vpop.f32.mrf.mxu0
        %v4446 = vadd.f32 %v4333, %v4445
        %v4447 = vpop.f32.mrf.mxu0
        %v4448 = vadd.f32 %v4335, %v4447
        %v4449 = vpop.f32.mrf.mxu0
        %v4450 = vadd.f32 %v4337, %v4449
        %v4451 = vpop.f32.mrf.mxu0
        %v4452 = vadd.f32 %v4339, %v4451
        %4453 = vmatprep.mubr.bf16.mxu0 %v2118
        %4454 = vmatmul.mubr.bf16.gmra.mxu0 %v2117
        %v4455 = vpop.f32.mrf.mxu0
        %v4456 = vadd.f32 %v4343, %v4455
        %v4457 = vpop.f32.mrf.mxu0
        %v4458 = vadd.f32 %v4345, %v4457
        %v4459 = vpop.f32.mrf.mxu0
        %v4460 = vadd.f32 %v4347, %v4459
        %v4461 = vpop.f32.mrf.mxu0
        %v4462 = vadd.f32 %v4349, %v4461
        %4463 = vmatprep.mubr.bf16.mxu0 %v2126
        %4464 = vmatmul.mubr.bf16.gmra.mxu0 %v2125
        %v4465 = vpop.f32.mrf.mxu0
        %v4466 = vadd.f32 %v4353, %v4465
        %v4467 = vpop.f32.mrf.mxu0
        %v4468 = vadd.f32 %v4355, %v4467
        %v4469 = vpop.f32.mrf.mxu0
        %v4470 = vadd.f32 %v4357, %v4469
        %v4471 = vpop.f32.mrf.mxu0
        %v4472 = vadd.f32 %v4359, %v4471
        %4473 = vmatprep.mubr.bf16.mxu0 %v2134
        %4474 = vmatmul.mubr.bf16.gmra.mxu0 %v2133
        %v4475 = vpop.f32.mrf.mxu0
        %v4476 = vadd.f32 %v4363, %v4475
        %v4477 = vpop.f32.mrf.mxu0
        %v4478 = vadd.f32 %v4365, %v4477
        %v4479 = vpop.f32.mrf.mxu0
        %v4480 = vadd.f32 %v4367, %v4479
        %v4481 = vpop.f32.mrf.mxu0
        %v4482 = vadd.f32 %v4369, %v4481
        %4483 = vmatprep.mubr.bf16.mxu0 %v2142
        %4484 = vmatmul.mubr.bf16.gmra.mxu0 %v2141
        %v4485 = vpop.f32.mrf.mxu0
        %v4486 = vadd.f32 %v4373, %v4485
        %v4487 = vpop.f32.mrf.mxu0
        %v4488 = vadd.f32 %v4375, %v4487
        %v4489 = vpop.f32.mrf.mxu0
        %v4490 = vadd.f32 %v4377, %v4489
        %v4491 = vpop.f32.mrf.mxu0
        %v4492 = vadd.f32 %v4379, %v4491
        %4493 = vdwg.mxu0
        %4494 = vmatprep.subr.bf16.mxu0 %v3414
        %4495 = vmatpush1.bf16.msra.mxu0 %v3413
        %4496 = vmatprep.subr.bf16.mxu0 %v3410
        %4497 = vmatpush1.bf16.msra.mxu0 %v3409
        %4498 = vmatprep.subr.bf16.mxu0 %v3406
        %4499 = vmatpush1.bf16.msra.mxu0 %v3405
        %4500 = vmatprep.subr.bf16.mxu0 %v3402
        %4501 = vmatpush1.bf16.msra.mxu0 %v3401
        %4502 = vmatprep.subr.bf16.mxu0 %v3398
        %4503 = vmatpush1.bf16.msra.mxu0 %v3397
        %4504 = vmatprep.subr.bf16.mxu0 %v3394
        %4505 = vmatpush1.bf16.msra.mxu0 %v3393
        %4506 = vmatprep.subr.bf16.mxu0 %v3390
        %4507 = vmatpush1.bf16.msra.mxu0 %v3389
        %4508 = vmatprep.subr.bf16.mxu0 %v3386
        %4509 = vmatpush1.bf16.msra.mxu0 %v3385
        %4510 = vmatprep.subr.bf16.mxu0 %v3446
        %4511 = vmatpush2.bf16.msra.mxu0 %v3445
        %4512 = vmatprep.subr.bf16.mxu0 %v3442
        %4513 = vmatpush2.bf16.msra.mxu0 %v3441
        %4514 = vmatprep.subr.bf16.mxu0 %v3438
        %4515 = vmatpush2.bf16.msra.mxu0 %v3437
        %4516 = vmatprep.subr.bf16.mxu0 %v3434
        %4517 = vmatpush2.bf16.msra.mxu0 %v3433
        %4518 = vmatprep.subr.bf16.mxu0 %v3430
        %4519 = vmatpush2.bf16.msra.mxu0 %v3429
        %4520 = vmatprep.subr.bf16.mxu0 %v3426
        %4521 = vmatpush2.bf16.msra.mxu0 %v3425
        %4522 = vmatprep.subr.bf16.mxu0 %v3422
        %4523 = vmatpush2.bf16.msra.mxu0 %v3421
        %4524 = vmatprep.subr.bf16.mxu0 %v3418
        %4525 = vmatpush2.bf16.msra.mxu0 %v3417
        %4526 = vmatprep.mubr.bf16.mxu0 %v2088
        %4527 = vmatmul.mubr.bf16.gmra.mxu0 %v2087
        %v4528 = vpop.f32.mrf.mxu0
        %v4529 = vadd.f32 %v4416, %v4528
        %v4530 = vpop.f32.mrf.mxu0
        %v4531 = vadd.f32 %v4418, %v4530
        %v4532 = vpop.f32.mrf.mxu0
        %v4533 = vadd.f32 %v4420, %v4532
        %v4534 = vpop.f32.mrf.mxu0
        %v4535 = vadd.f32 %v4422, %v4534
        %4536 = vmatprep.mubr.bf16.mxu0 %v2096
        %4537 = vmatmul.mubr.bf16.gmra.mxu0 %v2095
        %v4538 = vpop.f32.mrf.mxu0
        %v4539 = vadd.f32 %v4426, %v4538
        %v4540 = vpop.f32.mrf.mxu0
        %v4541 = vadd.f32 %v4428, %v4540
        %v4542 = vpop.f32.mrf.mxu0
        %v4543 = vadd.f32 %v4430, %v4542
        %v4544 = vpop.f32.mrf.mxu0
        %v4545 = vadd.f32 %v4432, %v4544
        %4546 = vmatprep.mubr.bf16.mxu0 %v2104
        %4547 = vmatmul.mubr.bf16.gmra.mxu0 %v2103
        %v4548 = vpop.f32.mrf.mxu0
        %v4549 = vadd.f32 %v4436, %v4548
        %v4550 = vpop.f32.mrf.mxu0
        %v4551 = vadd.f32 %v4438, %v4550
        %v4552 = vpop.f32.mrf.mxu0
        %v4553 = vadd.f32 %v4440, %v4552
        %v4554 = vpop.f32.mrf.mxu0
        %v4555 = vadd.f32 %v4442, %v4554
        %4556 = vmatprep.mubr.bf16.mxu0 %v2112
        %4557 = vmatmul.mubr.bf16.gmra.mxu0 %v2111
        %v4558 = vpop.f32.mrf.mxu0
        %v4559 = vadd.f32 %v4446, %v4558
        %v4560 = vpop.f32.mrf.mxu0
        %v4561 = vadd.f32 %v4448, %v4560
        %v4562 = vpop.f32.mrf.mxu0
        %v4563 = vadd.f32 %v4450, %v4562
        %v4564 = vpop.f32.mrf.mxu0
        %v4565 = vadd.f32 %v4452, %v4564
        %4566 = vmatprep.mubr.bf16.mxu0 %v2120
        %4567 = vmatmul.mubr.bf16.gmra.mxu0 %v2119
        %v4568 = vpop.f32.mrf.mxu0
        %v4569 = vadd.f32 %v4456, %v4568
        %v4570 = vpop.f32.mrf.mxu0
        %v4571 = vadd.f32 %v4458, %v4570
        %v4572 = vpop.f32.mrf.mxu0
        %v4573 = vadd.f32 %v4460, %v4572
        %v4574 = vpop.f32.mrf.mxu0
        %v4575 = vadd.f32 %v4462, %v4574
        %4576 = vmatprep.mubr.bf16.mxu0 %v2128
        %4577 = vmatmul.mubr.bf16.gmra.mxu0 %v2127
        %v4578 = vpop.f32.mrf.mxu0
        %v4579 = vadd.f32 %v4466, %v4578
        %v4580 = vpop.f32.mrf.mxu0
        %v4581 = vadd.f32 %v4468, %v4580
        %v4582 = vpop.f32.mrf.mxu0
        %v4583 = vadd.f32 %v4470, %v4582
        %v4584 = vpop.f32.mrf.mxu0
        %v4585 = vadd.f32 %v4472, %v4584
        %4586 = vmatprep.mubr.bf16.mxu0 %v2136
        %4587 = vmatmul.mubr.bf16.gmra.mxu0 %v2135
        %v4588 = vpop.f32.mrf.mxu0
        %v4589 = vadd.f32 %v4476, %v4588
        %v4590 = vpop.f32.mrf.mxu0
        %v4591 = vadd.f32 %v4478, %v4590
        %v4592 = vpop.f32.mrf.mxu0
        %v4593 = vadd.f32 %v4480, %v4592
        %v4594 = vpop.f32.mrf.mxu0
        %v4595 = vadd.f32 %v4482, %v4594
        %4596 = vmatprep.mubr.bf16.mxu0 %v2144
        %4597 = vmatmul.mubr.bf16.gmra.mxu0 %v2143
        %v4598 = vpop.f32.mrf.mxu0
        %v4599 = vadd.f32 %v4486, %v4598
        %v4600 = vpop.f32.mrf.mxu0
        %v4601 = vadd.f32 %v4488, %v4600
        %v4602 = vpop.f32.mrf.mxu0
        %v4603 = vadd.f32 %v4490, %v4602
        %v4604 = vpop.f32.mrf.mxu0
        %v4605 = vadd.f32 %v4492, %v4604
        %4606 = vdwg.mxu0
        %v4607 = vmax.f32 %v4077, 0.0
        %v4608 = vmax.f32 %v4079, 0.0
        %v4609 = vmax.f32 %v4529, 0.0
        %v4610 = vmax.f32 %v4531, 0.0
        %v4611 = vmax.f32 %v4081, 0.0
        %v4612 = vmax.f32 %v4083, 0.0
        %v4613 = vmax.f32 %v4533, 0.0
        %v4614 = vmax.f32 %v4535, 0.0
        %v4615 = vmax.f32 %v4087, 0.0
        %v4616 = vmax.f32 %v4089, 0.0
        %v4617 = vmax.f32 %v4539, 0.0
        %v4618 = vmax.f32 %v4541, 0.0
        %v4619 = vmax.f32 %v4091, 0.0
        %v4620 = vmax.f32 %v4093, 0.0
        %v4621 = vmax.f32 %v4543, 0.0
        %v4622 = vmax.f32 %v4545, 0.0
        %v4623 = vmax.f32 %v4097, 0.0
        %v4624 = vmax.f32 %v4099, 0.0
        %v4625 = vmax.f32 %v4549, 0.0
        %v4626 = vmax.f32 %v4551, 0.0
        %v4627 = vmax.f32 %v4101, 0.0
        %v4628 = vmax.f32 %v4103, 0.0
        %v4629 = vmax.f32 %v4553, 0.0
        %v4630 = vmax.f32 %v4555, 0.0
        %v4631 = vmax.f32 %v4107, 0.0
        %v4632 = vmax.f32 %v4109, 0.0
        %v4633 = vmax.f32 %v4559, 0.0
        %v4634 = vmax.f32 %v4561, 0.0
        %v4635 = vmax.f32 %v4111, 0.0
        %v4636 = vmax.f32 %v4113, 0.0
        %v4637 = vmax.f32 %v4563, 0.0
        %v4638 = vmax.f32 %v4565, 0.0
        %v4639 = vmax.f32 %v4117, 0.0
        %v4640 = vmax.f32 %v4119, 0.0
        %v4641 = vmax.f32 %v4569, 0.0
        %v4642 = vmax.f32 %v4571, 0.0
        %v4643 = vmax.f32 %v4121, 0.0
        %v4644 = vmax.f32 %v4123, 0.0
        %v4645 = vmax.f32 %v4573, 0.0
        %v4646 = vmax.f32 %v4575, 0.0
        %v4647 = vmax.f32 %v4127, 0.0
        %v4648 = vmax.f32 %v4129, 0.0
        %v4649 = vmax.f32 %v4579, 0.0
        %v4650 = vmax.f32 %v4581, 0.0
        %v4651 = vmax.f32 %v4131, 0.0
        %v4652 = vmax.f32 %v4133, 0.0
        %v4653 = vmax.f32 %v4583, 0.0
        %v4654 = vmax.f32 %v4585, 0.0
        %v4655 = vmax.f32 %v4137, 0.0
        %v4656 = vmax.f32 %v4139, 0.0
        %v4657 = vmax.f32 %v4589, 0.0
        %v4658 = vmax.f32 %v4591, 0.0
        %v4659 = vmax.f32 %v4141, 0.0
        %v4660 = vmax.f32 %v4143, 0.0
        %v4661 = vmax.f32 %v4593, 0.0
        %v4662 = vmax.f32 %v4595, 0.0
        %v4663 = vmax.f32 %v4147, 0.0
        %v4664 = vmax.f32 %v4149, 0.0
        %v4665 = vmax.f32 %v4599, 0.0
        %v4666 = vmax.f32 %v4601, 0.0
        %v4667 = vmax.f32 %v4151, 0.0
        %v4668 = vmax.f32 %v4153, 0.0
        %v4669 = vmax.f32 %v4603, 0.0
        %v4670 = vmax.f32 %v4605, 0.0
        %v4671 = vpack.c.bf16 %v4611, %v4607
        %v4672 = vpack.c.bf16 %v4612, %v4608
        %v4673 = vpack.c.bf16 %v4613, %v4609
        %v4674 = vpack.c.bf16 %v4614, %v4610
        %v4675 = vpack.c.bf16 %v4619, %v4615
        %v4676 = vpack.c.bf16 %v4620, %v4616
        %v4677 = vpack.c.bf16 %v4621, %v4617
        %v4678 = vpack.c.bf16 %v4622, %v4618
        %v4679 = vpack.c.bf16 %v4627, %v4623
        %v4680 = vpack.c.bf16 %v4628, %v4624
        %v4681 = vpack.c.bf16 %v4629, %v4625
        %v4682 = vpack.c.bf16 %v4630, %v4626
        %v4683 = vpack.c.bf16 %v4635, %v4631
        %v4684 = vpack.c.bf16 %v4636, %v4632
        %v4685 = vpack.c.bf16 %v4637, %v4633
        %v4686 = vpack.c.bf16 %v4638, %v4634
        %v4687 = vpack.c.bf16 %v4643, %v4639
        %v4688 = vpack.c.bf16 %v4644, %v4640
        %v4689 = vpack.c.bf16 %v4645, %v4641
        %v4690 = vpack.c.bf16 %v4646, %v4642
        %v4691 = vpack.c.bf16 %v4651, %v4647
        %v4692 = vpack.c.bf16 %v4652, %v4648
        %v4693 = vpack.c.bf16 %v4653, %v4649
        %v4694 = vpack.c.bf16 %v4654, %v4650
        %v4695 = vpack.c.bf16 %v4659, %v4655
        %v4696 = vpack.c.bf16 %v4660, %v4656
        %v4697 = vpack.c.bf16 %v4661, %v4657
        %v4698 = vpack.c.bf16 %v4662, %v4658
        %v4699 = vpack.c.bf16 %v4667, %v4663
        %v4700 = vpack.c.bf16 %v4668, %v4664
        %v4701 = vpack.c.bf16 %v4669, %v4665
        %v4702 = vpack.c.bf16 %v4670, %v4666
        %v4703 = vld [vmem:[#allocation11] sm:$0xff]
        %v4704 = vld [vmem:[#allocation11 + $0x8] sm:$0xff]
        %v4705 = vld [vmem:[#allocation11 + $0x10] sm:$0xff]
        %v4706 = vld [vmem:[#allocation11 + $0x18] sm:$0xff]
        %v4707 = vld [vmem:[#allocation11 + $0x20] sm:$0xff]
        %v4708 = vld [vmem:[#allocation11 + $0x28] sm:$0xff]
        %v4709 = vld [vmem:[#allocation11 + $0x30] sm:$0xff]
        %v4710 = vld [vmem:[#allocation11 + $0x38] sm:$0xff]
        %v4711 = vld [vmem:[#allocation11 + $0x40] sm:$0xff]
        %v4712 = vld [vmem:[#allocation11 + $0x48] sm:$0xff]
        %v4713 = vld [vmem:[#allocation11 + $0x50] sm:$0xff]
        %v4714 = vld [vmem:[#allocation11 + $0x58] sm:$0xff]
        %v4715 = vld [vmem:[#allocation11 + $0x60] sm:$0xff]
        %v4716 = vld [vmem:[#allocation11 + $0x68] sm:$0xff]
        %v4717 = vld [vmem:[#allocation11 + $0x70] sm:$0xff]
        %v4718 = vld [vmem:[#allocation11 + $0x78] sm:$0xff]
        %v4719 = vld [vmem:[#allocation11 + $0x80] sm:$0xff]
        %v4720 = vld [vmem:[#allocation11 + $0x88] sm:$0xff]
        %v4721 = vld [vmem:[#allocation11 + $0x90] sm:$0xff]
        %v4722 = vld [vmem:[#allocation11 + $0x98] sm:$0xff]
        %v4723 = vld [vmem:[#allocation11 + $0xa0] sm:$0xff]
        %v4724 = vld [vmem:[#allocation11 + $0xa8] sm:$0xff]
        %v4725 = vld [vmem:[#allocation11 + $0xb0] sm:$0xff]
        %v4726 = vld [vmem:[#allocation11 + $0xb8] sm:$0xff]
        %v4727 = vld [vmem:[#allocation11 + $0xc0] sm:$0xff]
        %v4728 = vld [vmem:[#allocation11 + $0xc8] sm:$0xff]
        %v4729 = vld [vmem:[#allocation11 + $0xd0] sm:$0xff]
        %v4730 = vld [vmem:[#allocation11 + $0xd8] sm:$0xff]
        %v4731 = vld [vmem:[#allocation11 + $0xe0] sm:$0xff]
        %v4732 = vld [vmem:[#allocation11 + $0xe8] sm:$0xff]
        %v4733 = vld [vmem:[#allocation11 + $0xf0] sm:$0xff]
        %v4734 = vld [vmem:[#allocation11 + $0xf8] sm:$0xff]
        %v4735 = vld [vmem:[#allocation11 + $0x100] sm:$0xff]
        %v4736 = vld [vmem:[#allocation11 + $0x108] sm:$0xff]
        %v4737 = vld [vmem:[#allocation11 + $0x110] sm:$0xff]
        %v4738 = vld [vmem:[#allocation11 + $0x118] sm:$0xff]
        %v4739 = vld [vmem:[#allocation11 + $0x120] sm:$0xff]
        %v4740 = vld [vmem:[#allocation11 + $0x128] sm:$0xff]
        %v4741 = vld [vmem:[#allocation11 + $0x130] sm:$0xff]
        %v4742 = vld [vmem:[#allocation11 + $0x138] sm:$0xff]
        %v4743 = vld [vmem:[#allocation11 + $0x140] sm:$0xff]
        %v4744 = vld [vmem:[#allocation11 + $0x148] sm:$0xff]
        %v4745 = vld [vmem:[#allocation11 + $0x150] sm:$0xff]
        %v4746 = vld [vmem:[#allocation11 + $0x158] sm:$0xff]
        %v4747 = vld [vmem:[#allocation11 + $0x160] sm:$0xff]
        %v4748 = vld [vmem:[#allocation11 + $0x168] sm:$0xff]
        %v4749 = vld [vmem:[#allocation11 + $0x170] sm:$0xff]
        %v4750 = vld [vmem:[#allocation11 + $0x178] sm:$0xff]
        %v4751 = vld [vmem:[#allocation11 + $0x180] sm:$0xff]
        %v4752 = vld [vmem:[#allocation11 + $0x188] sm:$0xff]
        %v4753 = vld [vmem:[#allocation11 + $0x190] sm:$0xff]
        %v4754 = vld [vmem:[#allocation11 + $0x198] sm:$0xff]
        %v4755 = vld [vmem:[#allocation11 + $0x1a0] sm:$0xff]
        %v4756 = vld [vmem:[#allocation11 + $0x1a8] sm:$0xff]
        %v4757 = vld [vmem:[#allocation11 + $0x1b0] sm:$0xff]
        %v4758 = vld [vmem:[#allocation11 + $0x1b8] sm:$0xff]
        %v4759 = vld [vmem:[#allocation11 + $0x1c0] sm:$0xff]
        %v4760 = vld [vmem:[#allocation11 + $0x1c8] sm:$0xff]
        %v4761 = vld [vmem:[#allocation11 + $0x1d0] sm:$0xff]
        %v4762 = vld [vmem:[#allocation11 + $0x1d8] sm:$0xff]
        %v4763 = vld [vmem:[#allocation11 + $0x1e0] sm:$0xff]
        %v4764 = vld [vmem:[#allocation11 + $0x1e8] sm:$0xff]
        %v4765 = vld [vmem:[#allocation11 + $0x1f0] sm:$0xff]
        %v4766 = vld [vmem:[#allocation11 + $0x1f8] sm:$0xff]
        %v4767 = vld [vmem:[#allocation11 + $0x200] sm:$0xff]
        %v4768 = vld [vmem:[#allocation11 + $0x208] sm:$0xff]
        %v4769 = vld [vmem:[#allocation11 + $0x210] sm:$0xff]
        %v4770 = vld [vmem:[#allocation11 + $0x218] sm:$0xff]
        %v4771 = vld [vmem:[#allocation11 + $0x220] sm:$0xff]
        %v4772 = vld [vmem:[#allocation11 + $0x228] sm:$0xff]
        %v4773 = vld [vmem:[#allocation11 + $0x230] sm:$0xff]
        %v4774 = vld [vmem:[#allocation11 + $0x238] sm:$0xff]
        %v4775 = vld [vmem:[#allocation11 + $0x240] sm:$0xff]
        %v4776 = vld [vmem:[#allocation11 + $0x248] sm:$0xff]
        %v4777 = vld [vmem:[#allocation11 + $0x250] sm:$0xff]
        %v4778 = vld [vmem:[#allocation11 + $0x258] sm:$0xff]
        %v4779 = vld [vmem:[#allocation11 + $0x260] sm:$0xff]
        %v4780 = vld [vmem:[#allocation11 + $0x268] sm:$0xff]
        %v4781 = vld [vmem:[#allocation11 + $0x270] sm:$0xff]
        %v4782 = vld [vmem:[#allocation11 + $0x278] sm:$0xff]
        %v4783 = vld [vmem:[#allocation11 + $0x280] sm:$0xff]
        %v4784 = vld [vmem:[#allocation11 + $0x288] sm:$0xff]
        %v4785 = vld [vmem:[#allocation11 + $0x290] sm:$0xff]
        %v4786 = vld [vmem:[#allocation11 + $0x298] sm:$0xff]
        %v4787 = vld [vmem:[#allocation11 + $0x2a0] sm:$0xff]
        %v4788 = vld [vmem:[#allocation11 + $0x2a8] sm:$0xff]
        %v4789 = vld [vmem:[#allocation11 + $0x2b0] sm:$0xff]
        %v4790 = vld [vmem:[#allocation11 + $0x2b8] sm:$0xff]
        %v4791 = vld [vmem:[#allocation11 + $0x2c0] sm:$0xff]
        %v4792 = vld [vmem:[#allocation11 + $0x2c8] sm:$0xff]
        %v4793 = vld [vmem:[#allocation11 + $0x2d0] sm:$0xff]
        %v4794 = vld [vmem:[#allocation11 + $0x2d8] sm:$0xff]
        %v4795 = vld [vmem:[#allocation11 + $0x2e0] sm:$0xff]
        %v4796 = vld [vmem:[#allocation11 + $0x2e8] sm:$0xff]
        %v4797 = vld [vmem:[#allocation11 + $0x2f0] sm:$0xff]
        %v4798 = vld [vmem:[#allocation11 + $0x2f8] sm:$0xff]
        %v4799 = vld [vmem:[#allocation11 + $0x300] sm:$0xff]
        %v4800 = vld [vmem:[#allocation11 + $0x308] sm:$0xff]
        %v4801 = vld [vmem:[#allocation11 + $0x310] sm:$0xff]
        %v4802 = vld [vmem:[#allocation11 + $0x318] sm:$0xff]
        %v4803 = vld [vmem:[#allocation11 + $0x320] sm:$0xff]
        %v4804 = vld [vmem:[#allocation11 + $0x328] sm:$0xff]
        %v4805 = vld [vmem:[#allocation11 + $0x330] sm:$0xff]
        %v4806 = vld [vmem:[#allocation11 + $0x338] sm:$0xff]
        %v4807 = vld [vmem:[#allocation11 + $0x340] sm:$0xff]
        %v4808 = vld [vmem:[#allocation11 + $0x348] sm:$0xff]
        %v4809 = vld [vmem:[#allocation11 + $0x350] sm:$0xff]
        %v4810 = vld [vmem:[#allocation11 + $0x358] sm:$0xff]
        %v4811 = vld [vmem:[#allocation11 + $0x360] sm:$0xff]
        %v4812 = vld [vmem:[#allocation11 + $0x368] sm:$0xff]
        %v4813 = vld [vmem:[#allocation11 + $0x370] sm:$0xff]
        %v4814 = vld [vmem:[#allocation11 + $0x378] sm:$0xff]
        %v4815 = vld [vmem:[#allocation11 + $0x380] sm:$0xff]
        %v4816 = vld [vmem:[#allocation11 + $0x388] sm:$0xff]
        %v4817 = vld [vmem:[#allocation11 + $0x390] sm:$0xff]
        %v4818 = vld [vmem:[#allocation11 + $0x398] sm:$0xff]
        %v4819 = vld [vmem:[#allocation11 + $0x3a0] sm:$0xff]
        %v4820 = vld [vmem:[#allocation11 + $0x3a8] sm:$0xff]
        %v4821 = vld [vmem:[#allocation11 + $0x3b0] sm:$0xff]
        %v4822 = vld [vmem:[#allocation11 + $0x3b8] sm:$0xff]
        %v4823 = vld [vmem:[#allocation11 + $0x3c0] sm:$0xff]
        %v4824 = vld [vmem:[#allocation11 + $0x3c8] sm:$0xff]
        %v4825 = vld [vmem:[#allocation11 + $0x3d0] sm:$0xff]
        %v4826 = vld [vmem:[#allocation11 + $0x3d8] sm:$0xff]
        %v4827 = vld [vmem:[#allocation11 + $0x3e0] sm:$0xff]
        %v4828 = vld [vmem:[#allocation11 + $0x3e8] sm:$0xff]
        %v4829 = vld [vmem:[#allocation11 + $0x3f0] sm:$0xff]
        %v4830 = vld [vmem:[#allocation11 + $0x3f8] sm:$0xff]
        %v4831 = vld [vmem:[%s7] sm:$0xf]
        %v4833 = vlaneseq
        %v4834 = vshrl.u32 %v4833, 7
        %v4835 = vsub.s32 0, %v4834
        %v4836 = vrot.slane %v4831, %v4835
        %v4837 = vlaneseq
        %v4838 = vshrl.u32 %v4837, 7
        %v4839 = vsub.s32 1, %v4838
        %v4840 = vrot.slane %v4831, %v4839
        %v4841 = vlaneseq
        %v4842 = vshrl.u32 %v4841, 7
        %v4843 = vsub.s32 2, %v4842
        %v4844 = vrot.slane %v4831, %v4843
        %v4845 = vlaneseq
        %v4846 = vshrl.u32 %v4845, 7
        %v4847 = vsub.s32 3, %v4846
        %v4848 = vrot.slane %v4831, %v4847
        %v4981 = vunpack.c.l.b16 %v4703
        %v4982 = vunpack.c.h.b16 %v4703
        %v4983 = vunpack.c.l.b16 %v4704
        %v4984 = vunpack.c.h.b16 %v4704
        %v4985 = vunpack.c.l.b16 %v4705
        %v4986 = vunpack.c.h.b16 %v4705
        %v4987 = vunpack.c.l.b16 %v4706
        %v4988 = vunpack.c.h.b16 %v4706
        %v4989 = vunpack.c.l.b16 %v4707
        %v4990 = vunpack.c.h.b16 %v4707
        %v4991 = vunpack.c.l.b16 %v4708
        %v4992 = vunpack.c.h.b16 %v4708
        %v4993 = vunpack.c.l.b16 %v4709
        %v4994 = vunpack.c.h.b16 %v4709
        %v4995 = vunpack.c.l.b16 %v4710
        %v4996 = vunpack.c.h.b16 %v4710
        %v4997 = vunpack.c.l.b16 %v4711
        %v4998 = vunpack.c.h.b16 %v4711
        %v4999 = vunpack.c.l.b16 %v4712
        %v5000 = vunpack.c.h.b16 %v4712
        %v5001 = vunpack.c.l.b16 %v4713
        %v5002 = vunpack.c.h.b16 %v4713
        %v5003 = vunpack.c.l.b16 %v4714
        %v5004 = vunpack.c.h.b16 %v4714
        %v5005 = vunpack.c.l.b16 %v4715
        %v5006 = vunpack.c.h.b16 %v4715
        %v5007 = vunpack.c.l.b16 %v4716
        %v5008 = vunpack.c.h.b16 %v4716
        %v5009 = vunpack.c.l.b16 %v4717
        %v5010 = vunpack.c.h.b16 %v4717
        %v5011 = vunpack.c.l.b16 %v4718
        %v5012 = vunpack.c.h.b16 %v4718
        %v5013 = vunpack.c.l.b16 %v4719
        %v5014 = vunpack.c.h.b16 %v4719
        %v5015 = vunpack.c.l.b16 %v4720
        %v5016 = vunpack.c.h.b16 %v4720
        %v5017 = vunpack.c.l.b16 %v4721
        %v5018 = vunpack.c.h.b16 %v4721
        %v5019 = vunpack.c.l.b16 %v4722
        %v5020 = vunpack.c.h.b16 %v4722
        %v5021 = vunpack.c.l.b16 %v4723
        %v5022 = vunpack.c.h.b16 %v4723
        %v5023 = vunpack.c.l.b16 %v4724
        %v5024 = vunpack.c.h.b16 %v4724
        %v5025 = vunpack.c.l.b16 %v4725
        %v5026 = vunpack.c.h.b16 %v4725
        %v5027 = vunpack.c.l.b16 %v4726
        %v5028 = vunpack.c.h.b16 %v4726
        %v5029 = vunpack.c.l.b16 %v4727
        %v5030 = vunpack.c.h.b16 %v4727
        %v5031 = vunpack.c.l.b16 %v4728
        %v5032 = vunpack.c.h.b16 %v4728
        %v5033 = vunpack.c.l.b16 %v4729
        %v5034 = vunpack.c.h.b16 %v4729
        %v5035 = vunpack.c.l.b16 %v4730
        %v5036 = vunpack.c.h.b16 %v4730
        %v5037 = vunpack.c.l.b16 %v4731
        %v5038 = vunpack.c.h.b16 %v4731
        %v5039 = vunpack.c.l.b16 %v4732
        %v5040 = vunpack.c.h.b16 %v4732
        %v5041 = vunpack.c.l.b16 %v4733
        %v5042 = vunpack.c.h.b16 %v4733
        %v5043 = vunpack.c.l.b16 %v4734
        %v5044 = vunpack.c.h.b16 %v4734
        %v5045 = vunpack.c.l.b16 %v4735
        %v5046 = vunpack.c.h.b16 %v4735
        %v5047 = vunpack.c.l.b16 %v4736
        %v5048 = vunpack.c.h.b16 %v4736
        %v5049 = vunpack.c.l.b16 %v4737
        %v5050 = vunpack.c.h.b16 %v4737
        %v5051 = vunpack.c.l.b16 %v4738
        %v5052 = vunpack.c.h.b16 %v4738
        %v5053 = vunpack.c.l.b16 %v4739
        %v5054 = vunpack.c.h.b16 %v4739
        %v5055 = vunpack.c.l.b16 %v4740
        %v5056 = vunpack.c.h.b16 %v4740
        %v5057 = vunpack.c.l.b16 %v4741
        %v5058 = vunpack.c.h.b16 %v4741
        %v5059 = vunpack.c.l.b16 %v4742
        %v5060 = vunpack.c.h.b16 %v4742
        %v5061 = vunpack.c.l.b16 %v4743
        %v5062 = vunpack.c.h.b16 %v4743
        %v5063 = vunpack.c.l.b16 %v4744
        %v5064 = vunpack.c.h.b16 %v4744
        %v5065 = vunpack.c.l.b16 %v4745
        %v5066 = vunpack.c.h.b16 %v4745
        %v5067 = vunpack.c.l.b16 %v4746
        %v5068 = vunpack.c.h.b16 %v4746
        %v5069 = vunpack.c.l.b16 %v4747
        %v5070 = vunpack.c.h.b16 %v4747
        %v5071 = vunpack.c.l.b16 %v4748
        %v5072 = vunpack.c.h.b16 %v4748
        %v5073 = vunpack.c.l.b16 %v4749
        %v5074 = vunpack.c.h.b16 %v4749
        %v5075 = vunpack.c.l.b16 %v4750
        %v5076 = vunpack.c.h.b16 %v4750
        %v5077 = vunpack.c.l.b16 %v4751
        %v5078 = vunpack.c.h.b16 %v4751
        %v5079 = vunpack.c.l.b16 %v4752
        %v5080 = vunpack.c.h.b16 %v4752
        %v5081 = vunpack.c.l.b16 %v4753
        %v5082 = vunpack.c.h.b16 %v4753
        %v5083 = vunpack.c.l.b16 %v4754
        %v5084 = vunpack.c.h.b16 %v4754
        %v5085 = vunpack.c.l.b16 %v4755
        %v5086 = vunpack.c.h.b16 %v4755
        %v5087 = vunpack.c.l.b16 %v4756
        %v5088 = vunpack.c.h.b16 %v4756
        %v5089 = vunpack.c.l.b16 %v4757
        %v5090 = vunpack.c.h.b16 %v4757
        %v5091 = vunpack.c.l.b16 %v4758
        %v5092 = vunpack.c.h.b16 %v4758
        %v5093 = vunpack.c.l.b16 %v4759
        %v5094 = vunpack.c.h.b16 %v4759
        %v5095 = vunpack.c.l.b16 %v4760
        %v5096 = vunpack.c.h.b16 %v4760
        %v5097 = vunpack.c.l.b16 %v4761
        %v5098 = vunpack.c.h.b16 %v4761
        %v5099 = vunpack.c.l.b16 %v4762
        %v5100 = vunpack.c.h.b16 %v4762
        %v5101 = vunpack.c.l.b16 %v4763
        %v5102 = vunpack.c.h.b16 %v4763
        %v5103 = vunpack.c.l.b16 %v4764
        %v5104 = vunpack.c.h.b16 %v4764
        %v5105 = vunpack.c.l.b16 %v4765
        %v5106 = vunpack.c.h.b16 %v4765
        %v5107 = vunpack.c.l.b16 %v4766
        %v5108 = vunpack.c.h.b16 %v4766
        %v5109 = vunpack.c.l.b16 %v4767
        %v5110 = vunpack.c.h.b16 %v4767
        %v5111 = vunpack.c.l.b16 %v4768
        %v5112 = vunpack.c.h.b16 %v4768
        %v5113 = vunpack.c.l.b16 %v4769
        %v5114 = vunpack.c.h.b16 %v4769
        %v5115 = vunpack.c.l.b16 %v4770
        %v5116 = vunpack.c.h.b16 %v4770
        %v5117 = vunpack.c.l.b16 %v4771
        %v5118 = vunpack.c.h.b16 %v4771
        %v5119 = vunpack.c.l.b16 %v4772
        %v5120 = vunpack.c.h.b16 %v4772
        %v5121 = vunpack.c.l.b16 %v4773
        %v5122 = vunpack.c.h.b16 %v4773
        %v5123 = vunpack.c.l.b16 %v4774
        %v5124 = vunpack.c.h.b16 %v4774
        %v5125 = vunpack.c.l.b16 %v4775
        %v5126 = vunpack.c.h.b16 %v4775
        %v5127 = vunpack.c.l.b16 %v4776
        %v5128 = vunpack.c.h.b16 %v4776
        %v5129 = vunpack.c.l.b16 %v4777
        %v5130 = vunpack.c.h.b16 %v4777
        %v5131 = vunpack.c.l.b16 %v4778
        %v5132 = vunpack.c.h.b16 %v4778
        %v5133 = vunpack.c.l.b16 %v4779
        %v5134 = vunpack.c.h.b16 %v4779
        %v5135 = vunpack.c.l.b16 %v4780
        %v5136 = vunpack.c.h.b16 %v4780
        %v5137 = vunpack.c.l.b16 %v4781
        %v5138 = vunpack.c.h.b16 %v4781
        %v5139 = vunpack.c.l.b16 %v4782
        %v5140 = vunpack.c.h.b16 %v4782
        %v5141 = vunpack.c.l.b16 %v4783
        %v5142 = vunpack.c.h.b16 %v4783
        %v5143 = vunpack.c.l.b16 %v4784
        %v5144 = vunpack.c.h.b16 %v4784
        %v5145 = vunpack.c.l.b16 %v4785
        %v5146 = vunpack.c.h.b16 %v4785
        %v5147 = vunpack.c.l.b16 %v4786
        %v5148 = vunpack.c.h.b16 %v4786
        %v5149 = vunpack.c.l.b16 %v4787
        %v5150 = vunpack.c.h.b16 %v4787
        %v5151 = vunpack.c.l.b16 %v4788
        %v5152 = vunpack.c.h.b16 %v4788
        %v5153 = vunpack.c.l.b16 %v4789
        %v5154 = vunpack.c.h.b16 %v4789
        %v5155 = vunpack.c.l.b16 %v4790
        %v5156 = vunpack.c.h.b16 %v4790
        %v5157 = vunpack.c.l.b16 %v4791
        %v5158 = vunpack.c.h.b16 %v4791
        %v5159 = vunpack.c.l.b16 %v4792
        %v5160 = vunpack.c.h.b16 %v4792
        %v5161 = vunpack.c.l.b16 %v4793
        %v5162 = vunpack.c.h.b16 %v4793
        %v5163 = vunpack.c.l.b16 %v4794
        %v5164 = vunpack.c.h.b16 %v4794
        %v5165 = vunpack.c.l.b16 %v4795
        %v5166 = vunpack.c.h.b16 %v4795
        %v5167 = vunpack.c.l.b16 %v4796
        %v5168 = vunpack.c.h.b16 %v4796
        %v5169 = vunpack.c.l.b16 %v4797
        %v5170 = vunpack.c.h.b16 %v4797
        %v5171 = vunpack.c.l.b16 %v4798
        %v5172 = vunpack.c.h.b16 %v4798
        %v5173 = vunpack.c.l.b16 %v4799
        %v5174 = vunpack.c.h.b16 %v4799
        %v5175 = vunpack.c.l.b16 %v4800
        %v5176 = vunpack.c.h.b16 %v4800
        %v5177 = vunpack.c.l.b16 %v4801
        %v5178 = vunpack.c.h.b16 %v4801
        %v5179 = vunpack.c.l.b16 %v4802
        %v5180 = vunpack.c.h.b16 %v4802
        %v5181 = vunpack.c.l.b16 %v4803
        %v5182 = vunpack.c.h.b16 %v4803
        %v5183 = vunpack.c.l.b16 %v4804
        %v5184 = vunpack.c.h.b16 %v4804
        %v5185 = vunpack.c.l.b16 %v4805
        %v5186 = vunpack.c.h.b16 %v4805
        %v5187 = vunpack.c.l.b16 %v4806
        %v5188 = vunpack.c.h.b16 %v4806
        %v5189 = vunpack.c.l.b16 %v4807
        %v5190 = vunpack.c.h.b16 %v4807
        %v5191 = vunpack.c.l.b16 %v4808
        %v5192 = vunpack.c.h.b16 %v4808
        %v5193 = vunpack.c.l.b16 %v4809
        %v5194 = vunpack.c.h.b16 %v4809
        %v5195 = vunpack.c.l.b16 %v4810
        %v5196 = vunpack.c.h.b16 %v4810
        %v5197 = vunpack.c.l.b16 %v4811
        %v5198 = vunpack.c.h.b16 %v4811
        %v5199 = vunpack.c.l.b16 %v4812
        %v5200 = vunpack.c.h.b16 %v4812
        %v5201 = vunpack.c.l.b16 %v4813
        %v5202 = vunpack.c.h.b16 %v4813
        %v5203 = vunpack.c.l.b16 %v4814
        %v5204 = vunpack.c.h.b16 %v4814
        %v5205 = vunpack.c.l.b16 %v4815
        %v5206 = vunpack.c.h.b16 %v4815
        %v5207 = vunpack.c.l.b16 %v4816
        %v5208 = vunpack.c.h.b16 %v4816
        %v5209 = vunpack.c.l.b16 %v4817
        %v5210 = vunpack.c.h.b16 %v4817
        %v5211 = vunpack.c.l.b16 %v4818
        %v5212 = vunpack.c.h.b16 %v4818
        %v5213 = vunpack.c.l.b16 %v4819
        %v5214 = vunpack.c.h.b16 %v4819
        %v5215 = vunpack.c.l.b16 %v4820
        %v5216 = vunpack.c.h.b16 %v4820
        %v5217 = vunpack.c.l.b16 %v4821
        %v5218 = vunpack.c.h.b16 %v4821
        %v5219 = vunpack.c.l.b16 %v4822
        %v5220 = vunpack.c.h.b16 %v4822
        %v5221 = vunpack.c.l.b16 %v4823
        %v5222 = vunpack.c.h.b16 %v4823
        %v5223 = vunpack.c.l.b16 %v4824
        %v5224 = vunpack.c.h.b16 %v4824
        %v5225 = vunpack.c.l.b16 %v4825
        %v5226 = vunpack.c.h.b16 %v4825
        %v5227 = vunpack.c.l.b16 %v4826
        %v5228 = vunpack.c.h.b16 %v4826
        %v5229 = vunpack.c.l.b16 %v4827
        %v5230 = vunpack.c.h.b16 %v4827
        %v5231 = vunpack.c.l.b16 %v4828
        %v5232 = vunpack.c.h.b16 %v4828
        %v5233 = vunpack.c.l.b16 %v4829
        %v5234 = vunpack.c.h.b16 %v4829
        %v5235 = vunpack.c.l.b16 %v4830
        %v5236 = vunpack.c.h.b16 %v4830
        %v5237 = vpack.c.b16 %v4985, %v4981
        %v5238 = vpack.c.b16 %v4986, %v4982
        %v5239 = vpack.c.b16 %v4987, %v4983
        %v5240 = vpack.c.b16 %v4988, %v4984
        %v5241 = vpack.c.b16 %v4993, %v4989
        %v5242 = vpack.c.b16 %v4994, %v4990
        %v5243 = vpack.c.b16 %v4995, %v4991
        %v5244 = vpack.c.b16 %v4996, %v4992
        %v5245 = vpack.c.b16 %v5001, %v4997
        %v5246 = vpack.c.b16 %v5002, %v4998
        %v5247 = vpack.c.b16 %v5003, %v4999
        %v5248 = vpack.c.b16 %v5004, %v5000
        %v5249 = vpack.c.b16 %v5009, %v5005
        %v5250 = vpack.c.b16 %v5010, %v5006
        %v5251 = vpack.c.b16 %v5011, %v5007
        %v5252 = vpack.c.b16 %v5012, %v5008
        %v5253 = vpack.c.b16 %v5017, %v5013
        %v5254 = vpack.c.b16 %v5018, %v5014
        %v5255 = vpack.c.b16 %v5019, %v5015
        %v5256 = vpack.c.b16 %v5020, %v5016
        %v5257 = vpack.c.b16 %v5025, %v5021
        %v5258 = vpack.c.b16 %v5026, %v5022
        %v5259 = vpack.c.b16 %v5027, %v5023
        %v5260 = vpack.c.b16 %v5028, %v5024
        %v5261 = vpack.c.b16 %v5033, %v5029
        %v5262 = vpack.c.b16 %v5034, %v5030
        %v5263 = vpack.c.b16 %v5035, %v5031
        %v5264 = vpack.c.b16 %v5036, %v5032
        %v5265 = vpack.c.b16 %v5041, %v5037
        %v5266 = vpack.c.b16 %v5042, %v5038
        %v5267 = vpack.c.b16 %v5043, %v5039
        %v5268 = vpack.c.b16 %v5044, %v5040
        %v5269 = vpack.c.b16 %v5049, %v5045
        %v5270 = vpack.c.b16 %v5050, %v5046
        %v5271 = vpack.c.b16 %v5051, %v5047
        %v5272 = vpack.c.b16 %v5052, %v5048
        %v5273 = vpack.c.b16 %v5057, %v5053
        %v5274 = vpack.c.b16 %v5058, %v5054
        %v5275 = vpack.c.b16 %v5059, %v5055
        %v5276 = vpack.c.b16 %v5060, %v5056
        %v5277 = vpack.c.b16 %v5065, %v5061
        %v5278 = vpack.c.b16 %v5066, %v5062
        %v5279 = vpack.c.b16 %v5067, %v5063
        %v5280 = vpack.c.b16 %v5068, %v5064
        %v5281 = vpack.c.b16 %v5073, %v5069
        %v5282 = vpack.c.b16 %v5074, %v5070
        %v5283 = vpack.c.b16 %v5075, %v5071
        %v5284 = vpack.c.b16 %v5076, %v5072
        %v5285 = vpack.c.b16 %v5081, %v5077
        %v5286 = vpack.c.b16 %v5082, %v5078
        %v5287 = vpack.c.b16 %v5083, %v5079
        %v5288 = vpack.c.b16 %v5084, %v5080
        %v5289 = vpack.c.b16 %v5089, %v5085
        %v5290 = vpack.c.b16 %v5090, %v5086
        %v5291 = vpack.c.b16 %v5091, %v5087
        %v5292 = vpack.c.b16 %v5092, %v5088
        %v5293 = vpack.c.b16 %v5097, %v5093
        %v5294 = vpack.c.b16 %v5098, %v5094
        %v5295 = vpack.c.b16 %v5099, %v5095
        %v5296 = vpack.c.b16 %v5100, %v5096
        %v5297 = vpack.c.b16 %v5105, %v5101
        %v5298 = vpack.c.b16 %v5106, %v5102
        %v5299 = vpack.c.b16 %v5107, %v5103
        %v5300 = vpack.c.b16 %v5108, %v5104
        %v5301 = vpack.c.b16 %v5113, %v5109
        %v5302 = vpack.c.b16 %v5114, %v5110
        %v5303 = vpack.c.b16 %v5115, %v5111
        %v5304 = vpack.c.b16 %v5116, %v5112
        %v5305 = vpack.c.b16 %v5121, %v5117
        %v5306 = vpack.c.b16 %v5122, %v5118
        %v5307 = vpack.c.b16 %v5123, %v5119
        %v5308 = vpack.c.b16 %v5124, %v5120
        %v5309 = vpack.c.b16 %v5129, %v5125
        %v5310 = vpack.c.b16 %v5130, %v5126
        %v5311 = vpack.c.b16 %v5131, %v5127
        %v5312 = vpack.c.b16 %v5132, %v5128
        %v5313 = vpack.c.b16 %v5137, %v5133
        %v5314 = vpack.c.b16 %v5138, %v5134
        %v5315 = vpack.c.b16 %v5139, %v5135
        %v5316 = vpack.c.b16 %v5140, %v5136
        %v5317 = vpack.c.b16 %v5145, %v5141
        %v5318 = vpack.c.b16 %v5146, %v5142
        %v5319 = vpack.c.b16 %v5147, %v5143
        %v5320 = vpack.c.b16 %v5148, %v5144
        %v5321 = vpack.c.b16 %v5153, %v5149
        %v5322 = vpack.c.b16 %v5154, %v5150
        %v5323 = vpack.c.b16 %v5155, %v5151
        %v5324 = vpack.c.b16 %v5156, %v5152
        %v5325 = vpack.c.b16 %v5161, %v5157
        %v5326 = vpack.c.b16 %v5162, %v5158
        %v5327 = vpack.c.b16 %v5163, %v5159
        %v5328 = vpack.c.b16 %v5164, %v5160
        %v5329 = vpack.c.b16 %v5169, %v5165
        %v5330 = vpack.c.b16 %v5170, %v5166
        %v5331 = vpack.c.b16 %v5171, %v5167
        %v5332 = vpack.c.b16 %v5172, %v5168
        %v5333 = vpack.c.b16 %v5177, %v5173
        %v5334 = vpack.c.b16 %v5178, %v5174
        %v5335 = vpack.c.b16 %v5179, %v5175
        %v5336 = vpack.c.b16 %v5180, %v5176
        %v5337 = vpack.c.b16 %v5185, %v5181
        %v5338 = vpack.c.b16 %v5186, %v5182
        %v5339 = vpack.c.b16 %v5187, %v5183
        %v5340 = vpack.c.b16 %v5188, %v5184
        %v5341 = vpack.c.b16 %v5193, %v5189
        %v5342 = vpack.c.b16 %v5194, %v5190
        %v5343 = vpack.c.b16 %v5195, %v5191
        %v5344 = vpack.c.b16 %v5196, %v5192
        %v5345 = vpack.c.b16 %v5201, %v5197
        %v5346 = vpack.c.b16 %v5202, %v5198
        %v5347 = vpack.c.b16 %v5203, %v5199
        %v5348 = vpack.c.b16 %v5204, %v5200
        %v5349 = vpack.c.b16 %v5209, %v5205
        %v5350 = vpack.c.b16 %v5210, %v5206
        %v5351 = vpack.c.b16 %v5211, %v5207
        %v5352 = vpack.c.b16 %v5212, %v5208
        %v5353 = vpack.c.b16 %v5217, %v5213
        %v5354 = vpack.c.b16 %v5218, %v5214
        %v5355 = vpack.c.b16 %v5219, %v5215
        %v5356 = vpack.c.b16 %v5220, %v5216
        %v5357 = vpack.c.b16 %v5225, %v5221
        %v5358 = vpack.c.b16 %v5226, %v5222
        %v5359 = vpack.c.b16 %v5227, %v5223
        %v5360 = vpack.c.b16 %v5228, %v5224
        %v5361 = vpack.c.b16 %v5233, %v5229
        %v5362 = vpack.c.b16 %v5234, %v5230
        %v5363 = vpack.c.b16 %v5235, %v5231
        %v5364 = vpack.c.b16 %v5236, %v5232
        %5493 = vmatprep.subr.bf16.mxu0 %v5266
        %5494 = vmatpush1.bf16.msra.mxu0 %v5265
        %5495 = vmatprep.subr.bf16.mxu0 %v5262
        %5496 = vmatpush1.bf16.msra.mxu0 %v5261
        %5497 = vmatprep.subr.bf16.mxu0 %v5258
        %5498 = vmatpush1.bf16.msra.mxu0 %v5257
        %5499 = vmatprep.subr.bf16.mxu0 %v5254
        %5500 = vmatpush1.bf16.msra.mxu0 %v5253
        %5501 = vmatprep.subr.bf16.mxu0 %v5250
        %5502 = vmatpush1.bf16.msra.mxu0 %v5249
        %5503 = vmatprep.subr.bf16.mxu0 %v5246
        %5504 = vmatpush1.bf16.msra.mxu0 %v5245
        %5505 = vmatprep.subr.bf16.mxu0 %v5242
        %5506 = vmatpush1.bf16.msra.mxu0 %v5241
        %5507 = vmatprep.subr.bf16.mxu0 %v5238
        %5508 = vmatpush1.bf16.msra.mxu0 %v5237
        %5509 = vmatprep.subr.bf16.mxu0 %v5298
        %5510 = vmatpush2.bf16.msra.mxu0 %v5297
        %5511 = vmatprep.subr.bf16.mxu0 %v5294
        %5512 = vmatpush2.bf16.msra.mxu0 %v5293
        %5513 = vmatprep.subr.bf16.mxu0 %v5290
        %5514 = vmatpush2.bf16.msra.mxu0 %v5289
        %5515 = vmatprep.subr.bf16.mxu0 %v5286
        %5516 = vmatpush2.bf16.msra.mxu0 %v5285
        %5517 = vmatprep.subr.bf16.mxu0 %v5282
        %5518 = vmatpush2.bf16.msra.mxu0 %v5281
        %5519 = vmatprep.subr.bf16.mxu0 %v5278
        %5520 = vmatpush2.bf16.msra.mxu0 %v5277
        %5521 = vmatprep.subr.bf16.mxu0 %v5274
        %5522 = vmatpush2.bf16.msra.mxu0 %v5273
        %5523 = vmatprep.subr.bf16.mxu0 %v5270
        %5524 = vmatpush2.bf16.msra.mxu0 %v5269
        %5525 = vmatprep.mubr.bf16.mxu0 %v4672
        %5526 = vmatmul.mubr.bf16.gmra.mxu0 %v4671
        %v5527 = vpop.f32.mrf.mxu0
        %v5528 = vadd.f32 %v4836, %v5527
        %v5529 = vpop.f32.mrf.mxu0
        %v5530 = vadd.f32 %v4840, %v5529
        %v5531 = vpop.f32.mrf.mxu0
        %v5532 = vadd.f32 %v4836, %v5531
        %v5533 = vpop.f32.mrf.mxu0
        %v5534 = vadd.f32 %v4840, %v5533
        %5535 = vmatprep.mubr.bf16.mxu0 %v4676
        %5536 = vmatmul.mubr.bf16.gmra.mxu0 %v4675
        %v5537 = vpop.f32.mrf.mxu0
        %v5538 = vadd.f32 %v4836, %v5537
        %v5539 = vpop.f32.mrf.mxu0
        %v5540 = vadd.f32 %v4840, %v5539
        %v5541 = vpop.f32.mrf.mxu0
        %v5542 = vadd.f32 %v4836, %v5541
        %v5543 = vpop.f32.mrf.mxu0
        %v5544 = vadd.f32 %v4840, %v5543
        %5545 = vmatprep.mubr.bf16.mxu0 %v4680
        %5546 = vmatmul.mubr.bf16.gmra.mxu0 %v4679
        %v5547 = vpop.f32.mrf.mxu0
        %v5548 = vadd.f32 %v4836, %v5547
        %v5549 = vpop.f32.mrf.mxu0
        %v5550 = vadd.f32 %v4840, %v5549
        %v5551 = vpop.f32.mrf.mxu0
        %v5552 = vadd.f32 %v4836, %v5551
        %v5553 = vpop.f32.mrf.mxu0
        %v5554 = vadd.f32 %v4840, %v5553
        %5555 = vmatprep.mubr.bf16.mxu0 %v4684
        %5556 = vmatmul.mubr.bf16.gmra.mxu0 %v4683
        %v5557 = vpop.f32.mrf.mxu0
        %v5558 = vadd.f32 %v4836, %v5557
        %v5559 = vpop.f32.mrf.mxu0
        %v5560 = vadd.f32 %v4840, %v5559
        %v5561 = vpop.f32.mrf.mxu0
        %v5562 = vadd.f32 %v4836, %v5561
        %v5563 = vpop.f32.mrf.mxu0
        %v5564 = vadd.f32 %v4840, %v5563
        %5565 = vmatprep.mubr.bf16.mxu0 %v4688
        %5566 = vmatmul.mubr.bf16.gmra.mxu0 %v4687
        %v5567 = vpop.f32.mrf.mxu0
        %v5568 = vadd.f32 %v4836, %v5567
        %v5569 = vpop.f32.mrf.mxu0
        %v5570 = vadd.f32 %v4840, %v5569
        %v5571 = vpop.f32.mrf.mxu0
        %v5572 = vadd.f32 %v4836, %v5571
        %v5573 = vpop.f32.mrf.mxu0
        %v5574 = vadd.f32 %v4840, %v5573
        %5575 = vmatprep.mubr.bf16.mxu0 %v4692
        %5576 = vmatmul.mubr.bf16.gmra.mxu0 %v4691
        %v5577 = vpop.f32.mrf.mxu0
        %v5578 = vadd.f32 %v4836, %v5577
        %v5579 = vpop.f32.mrf.mxu0
        %v5580 = vadd.f32 %v4840, %v5579
        %v5581 = vpop.f32.mrf.mxu0
        %v5582 = vadd.f32 %v4836, %v5581
        %v5583 = vpop.f32.mrf.mxu0
        %v5584 = vadd.f32 %v4840, %v5583
        %5585 = vmatprep.mubr.bf16.mxu0 %v4696
        %5586 = vmatmul.mubr.bf16.gmra.mxu0 %v4695
        %v5587 = vpop.f32.mrf.mxu0
        %v5588 = vadd.f32 %v4836, %v5587
        %v5589 = vpop.f32.mrf.mxu0
        %v5590 = vadd.f32 %v4840, %v5589
        %v5591 = vpop.f32.mrf.mxu0
        %v5592 = vadd.f32 %v4836, %v5591
        %v5593 = vpop.f32.mrf.mxu0
        %v5594 = vadd.f32 %v4840, %v5593
        %5595 = vmatprep.mubr.bf16.mxu0 %v4700
        %5596 = vmatmul.mubr.bf16.gmra.mxu0 %v4699
        %v5597 = vpop.f32.mrf.mxu0
        %v5598 = vadd.f32 %v4836, %v5597
        %v5599 = vpop.f32.mrf.mxu0
        %v5600 = vadd.f32 %v4840, %v5599
        %v5601 = vpop.f32.mrf.mxu0
        %v5602 = vadd.f32 %v4836, %v5601
        %v5603 = vpop.f32.mrf.mxu0
        %v5604 = vadd.f32 %v4840, %v5603
        %5605 = vdwg.mxu0
        %5606 = vmatprep.subr.bf16.mxu0 %v5330
        %5607 = vmatpush1.bf16.msra.mxu0 %v5329
        %5608 = vmatprep.subr.bf16.mxu0 %v5326
        %5609 = vmatpush1.bf16.msra.mxu0 %v5325
        %5610 = vmatprep.subr.bf16.mxu0 %v5322
        %5611 = vmatpush1.bf16.msra.mxu0 %v5321
        %5612 = vmatprep.subr.bf16.mxu0 %v5318
        %5613 = vmatpush1.bf16.msra.mxu0 %v5317
        %5614 = vmatprep.subr.bf16.mxu0 %v5314
        %5615 = vmatpush1.bf16.msra.mxu0 %v5313
        %5616 = vmatprep.subr.bf16.mxu0 %v5310
        %5617 = vmatpush1.bf16.msra.mxu0 %v5309
        %5618 = vmatprep.subr.bf16.mxu0 %v5306
        %5619 = vmatpush1.bf16.msra.mxu0 %v5305
        %5620 = vmatprep.subr.bf16.mxu0 %v5302
        %5621 = vmatpush1.bf16.msra.mxu0 %v5301
        %5622 = vmatprep.subr.bf16.mxu0 %v5362
        %5623 = vmatpush2.bf16.msra.mxu0 %v5361
        %5624 = vmatprep.subr.bf16.mxu0 %v5358
        %5625 = vmatpush2.bf16.msra.mxu0 %v5357
        %5626 = vmatprep.subr.bf16.mxu0 %v5354
        %5627 = vmatpush2.bf16.msra.mxu0 %v5353
        %5628 = vmatprep.subr.bf16.mxu0 %v5350
        %5629 = vmatpush2.bf16.msra.mxu0 %v5349
        %5630 = vmatprep.subr.bf16.mxu0 %v5346
        %5631 = vmatpush2.bf16.msra.mxu0 %v5345
        %5632 = vmatprep.subr.bf16.mxu0 %v5342
        %5633 = vmatpush2.bf16.msra.mxu0 %v5341
        %5634 = vmatprep.subr.bf16.mxu0 %v5338
        %5635 = vmatpush2.bf16.msra.mxu0 %v5337
        %5636 = vmatprep.subr.bf16.mxu0 %v5334
        %5637 = vmatpush2.bf16.msra.mxu0 %v5333
        %5638 = vmatprep.mubr.bf16.mxu0 %v4674
        %5639 = vmatmul.mubr.bf16.gmra.mxu0 %v4673
        %v5640 = vpop.f32.mrf.mxu0
        %v5641 = vadd.f32 %v5528, %v5640
        %v5642 = vpop.f32.mrf.mxu0
        %v5643 = vadd.f32 %v5530, %v5642
        %v5644 = vpop.f32.mrf.mxu0
        %v5645 = vadd.f32 %v5532, %v5644
        %v5646 = vpop.f32.mrf.mxu0
        %v5647 = vadd.f32 %v5534, %v5646
        %5648 = vmatprep.mubr.bf16.mxu0 %v4678
        %5649 = vmatmul.mubr.bf16.gmra.mxu0 %v4677
        %v5650 = vpop.f32.mrf.mxu0
        %v5651 = vadd.f32 %v5538, %v5650
        %v5652 = vpop.f32.mrf.mxu0
        %v5653 = vadd.f32 %v5540, %v5652
        %v5654 = vpop.f32.mrf.mxu0
        %v5655 = vadd.f32 %v5542, %v5654
        %v5656 = vpop.f32.mrf.mxu0
        %v5657 = vadd.f32 %v5544, %v5656
        %5658 = vmatprep.mubr.bf16.mxu0 %v4682
        %5659 = vmatmul.mubr.bf16.gmra.mxu0 %v4681
        %v5660 = vpop.f32.mrf.mxu0
        %v5661 = vadd.f32 %v5548, %v5660
        %v5662 = vpop.f32.mrf.mxu0
        %v5663 = vadd.f32 %v5550, %v5662
        %v5664 = vpop.f32.mrf.mxu0
        %v5665 = vadd.f32 %v5552, %v5664
        %v5666 = vpop.f32.mrf.mxu0
        %v5667 = vadd.f32 %v5554, %v5666
        %5668 = vmatprep.mubr.bf16.mxu0 %v4686
        %5669 = vmatmul.mubr.bf16.gmra.mxu0 %v4685
        %v5670 = vpop.f32.mrf.mxu0
        %v5671 = vadd.f32 %v5558, %v5670
        %v5672 = vpop.f32.mrf.mxu0
        %v5673 = vadd.f32 %v5560, %v5672
        %v5674 = vpop.f32.mrf.mxu0
        %v5675 = vadd.f32 %v5562, %v5674
        %v5676 = vpop.f32.mrf.mxu0
        %v5677 = vadd.f32 %v5564, %v5676
        %5678 = vmatprep.mubr.bf16.mxu0 %v4690
        %5679 = vmatmul.mubr.bf16.gmra.mxu0 %v4689
        %v5680 = vpop.f32.mrf.mxu0
        %v5681 = vadd.f32 %v5568, %v5680
        %v5682 = vpop.f32.mrf.mxu0
        %v5683 = vadd.f32 %v5570, %v5682
        %v5684 = vpop.f32.mrf.mxu0
        %v5685 = vadd.f32 %v5572, %v5684
        %v5686 = vpop.f32.mrf.mxu0
        %v5687 = vadd.f32 %v5574, %v5686
        %5688 = vmatprep.mubr.bf16.mxu0 %v4694
        %5689 = vmatmul.mubr.bf16.gmra.mxu0 %v4693
        %v5690 = vpop.f32.mrf.mxu0
        %v5691 = vadd.f32 %v5578, %v5690
        %v5692 = vpop.f32.mrf.mxu0
        %v5693 = vadd.f32 %v5580, %v5692
        %v5694 = vpop.f32.mrf.mxu0
        %v5695 = vadd.f32 %v5582, %v5694
        %v5696 = vpop.f32.mrf.mxu0
        %v5697 = vadd.f32 %v5584, %v5696
        %5698 = vmatprep.mubr.bf16.mxu0 %v4698
        %5699 = vmatmul.mubr.bf16.gmra.mxu0 %v4697
        %v5700 = vpop.f32.mrf.mxu0
        %v5701 = vadd.f32 %v5588, %v5700
        %v5702 = vpop.f32.mrf.mxu0
        %v5703 = vadd.f32 %v5590, %v5702
        %v5704 = vpop.f32.mrf.mxu0
        %v5705 = vadd.f32 %v5592, %v5704
        %v5706 = vpop.f32.mrf.mxu0
        %v5707 = vadd.f32 %v5594, %v5706
        %5708 = vmatprep.mubr.bf16.mxu0 %v4702
        %5709 = vmatmul.mubr.bf16.gmra.mxu0 %v4701
        %v5710 = vpop.f32.mrf.mxu0
        %v5711 = vadd.f32 %v5598, %v5710
        %v5712 = vpop.f32.mrf.mxu0
        %v5713 = vadd.f32 %v5600, %v5712
        %v5714 = vpop.f32.mrf.mxu0
        %v5715 = vadd.f32 %v5602, %v5714
        %v5716 = vpop.f32.mrf.mxu0
        %v5717 = vadd.f32 %v5604, %v5716
        %5718 = vdwg.mxu0
        %5719 = vmatprep.subr.bf16.mxu0 %v5268
        %5720 = vmatpush1.bf16.msra.mxu0 %v5267
        %5721 = vmatprep.subr.bf16.mxu0 %v5264
        %5722 = vmatpush1.bf16.msra.mxu0 %v5263
        %5723 = vmatprep.subr.bf16.mxu0 %v5260
        %5724 = vmatpush1.bf16.msra.mxu0 %v5259
        %5725 = vmatprep.subr.bf16.mxu0 %v5256
        %5726 = vmatpush1.bf16.msra.mxu0 %v5255
        %5727 = vmatprep.subr.bf16.mxu0 %v5252
        %5728 = vmatpush1.bf16.msra.mxu0 %v5251
        %5729 = vmatprep.subr.bf16.mxu0 %v5248
        %5730 = vmatpush1.bf16.msra.mxu0 %v5247
        %5731 = vmatprep.subr.bf16.mxu0 %v5244
        %5732 = vmatpush1.bf16.msra.mxu0 %v5243
        %5733 = vmatprep.subr.bf16.mxu0 %v5240
        %5734 = vmatpush1.bf16.msra.mxu0 %v5239
        %5735 = vmatprep.subr.bf16.mxu0 %v5300
        %5736 = vmatpush2.bf16.msra.mxu0 %v5299
        %5737 = vmatprep.subr.bf16.mxu0 %v5296
        %5738 = vmatpush2.bf16.msra.mxu0 %v5295
        %5739 = vmatprep.subr.bf16.mxu0 %v5292
        %5740 = vmatpush2.bf16.msra.mxu0 %v5291
        %5741 = vmatprep.subr.bf16.mxu0 %v5288
        %5742 = vmatpush2.bf16.msra.mxu0 %v5287
        %5743 = vmatprep.subr.bf16.mxu0 %v5284
        %5744 = vmatpush2.bf16.msra.mxu0 %v5283
        %5745 = vmatprep.subr.bf16.mxu0 %v5280
        %5746 = vmatpush2.bf16.msra.mxu0 %v5279
        %5747 = vmatprep.subr.bf16.mxu0 %v5276
        %5748 = vmatpush2.bf16.msra.mxu0 %v5275
        %5749 = vmatprep.subr.bf16.mxu0 %v5272
        %5750 = vmatpush2.bf16.msra.mxu0 %v5271
        %5751 = vmatprep.mubr.bf16.mxu0 %v4672
        %5752 = vmatmul.mubr.bf16.gmra.mxu0 %v4671
        %v5753 = vpop.f32.mrf.mxu0
        %v5754 = vadd.f32 %v4844, %v5753
        %v5755 = vpop.f32.mrf.mxu0
        %v5756 = vadd.f32 %v4848, %v5755
        %v5757 = vpop.f32.mrf.mxu0
        %v5758 = vadd.f32 %v4844, %v5757
        %v5759 = vpop.f32.mrf.mxu0
        %v5760 = vadd.f32 %v4848, %v5759
        %5761 = vmatprep.mubr.bf16.mxu0 %v4676
        %5762 = vmatmul.mubr.bf16.gmra.mxu0 %v4675
        %v5763 = vpop.f32.mrf.mxu0
        %v5764 = vadd.f32 %v4844, %v5763
        %v5765 = vpop.f32.mrf.mxu0
        %v5766 = vadd.f32 %v4848, %v5765
        %v5767 = vpop.f32.mrf.mxu0
        %v5768 = vadd.f32 %v4844, %v5767
        %v5769 = vpop.f32.mrf.mxu0
        %v5770 = vadd.f32 %v4848, %v5769
        %5771 = vmatprep.mubr.bf16.mxu0 %v4680
        %5772 = vmatmul.mubr.bf16.gmra.mxu0 %v4679
        %v5773 = vpop.f32.mrf.mxu0
        %v5774 = vadd.f32 %v4844, %v5773
        %v5775 = vpop.f32.mrf.mxu0
        %v5776 = vadd.f32 %v4848, %v5775
        %v5777 = vpop.f32.mrf.mxu0
        %v5778 = vadd.f32 %v4844, %v5777
        %v5779 = vpop.f32.mrf.mxu0
        %v5780 = vadd.f32 %v4848, %v5779
        %5781 = vmatprep.mubr.bf16.mxu0 %v4684
        %5782 = vmatmul.mubr.bf16.gmra.mxu0 %v4683
        %v5783 = vpop.f32.mrf.mxu0
        %v5784 = vadd.f32 %v4844, %v5783
        %v5785 = vpop.f32.mrf.mxu0
        %v5786 = vadd.f32 %v4848, %v5785
        %v5787 = vpop.f32.mrf.mxu0
        %v5788 = vadd.f32 %v4844, %v5787
        %v5789 = vpop.f32.mrf.mxu0
        %v5790 = vadd.f32 %v4848, %v5789
        %5791 = vmatprep.mubr.bf16.mxu0 %v4688
        %5792 = vmatmul.mubr.bf16.gmra.mxu0 %v4687
        %v5793 = vpop.f32.mrf.mxu0
        %v5794 = vadd.f32 %v4844, %v5793
        %v5795 = vpop.f32.mrf.mxu0
        %v5796 = vadd.f32 %v4848, %v5795
        %v5797 = vpop.f32.mrf.mxu0
        %v5798 = vadd.f32 %v4844, %v5797
        %v5799 = vpop.f32.mrf.mxu0
        %v5800 = vadd.f32 %v4848, %v5799
        %5801 = vmatprep.mubr.bf16.mxu0 %v4692
        %5802 = vmatmul.mubr.bf16.gmra.mxu0 %v4691
        %v5803 = vpop.f32.mrf.mxu0
        %v5804 = vadd.f32 %v4844, %v5803
        %v5805 = vpop.f32.mrf.mxu0
        %v5806 = vadd.f32 %v4848, %v5805
        %v5807 = vpop.f32.mrf.mxu0
        %v5808 = vadd.f32 %v4844, %v5807
        %v5809 = vpop.f32.mrf.mxu0
        %v5810 = vadd.f32 %v4848, %v5809
        %5811 = vmatprep.mubr.bf16.mxu0 %v4696
        %5812 = vmatmul.mubr.bf16.gmra.mxu0 %v4695
        %v5813 = vpop.f32.mrf.mxu0
        %v5814 = vadd.f32 %v4844, %v5813
        %v5815 = vpop.f32.mrf.mxu0
        %v5816 = vadd.f32 %v4848, %v5815
        %v5817 = vpop.f32.mrf.mxu0
        %v5818 = vadd.f32 %v4844, %v5817
        %v5819 = vpop.f32.mrf.mxu0
        %v5820 = vadd.f32 %v4848, %v5819
        %5821 = vmatprep.mubr.bf16.mxu0 %v4700
        %5822 = vmatmul.mubr.bf16.gmra.mxu0 %v4699
        %v5823 = vpop.f32.mrf.mxu0
        %v5824 = vadd.f32 %v4844, %v5823
        %v5825 = vpop.f32.mrf.mxu0
        %v5826 = vadd.f32 %v4848, %v5825
        %v5827 = vpop.f32.mrf.mxu0
        %v5828 = vadd.f32 %v4844, %v5827
        %v5829 = vpop.f32.mrf.mxu0
        %v5830 = vadd.f32 %v4848, %v5829
        %5831 = vdwg.mxu0
        %5832 = vmatprep.subr.bf16.mxu0 %v5332
        %5833 = vmatpush1.bf16.msra.mxu0 %v5331
        %5834 = vmatprep.subr.bf16.mxu0 %v5328
        %5835 = vmatpush1.bf16.msra.mxu0 %v5327
        %5836 = vmatprep.subr.bf16.mxu0 %v5324
        %5837 = vmatpush1.bf16.msra.mxu0 %v5323
        %5838 = vmatprep.subr.bf16.mxu0 %v5320
        %5839 = vmatpush1.bf16.msra.mxu0 %v5319
        %5840 = vmatprep.subr.bf16.mxu0 %v5316
        %5841 = vmatpush1.bf16.msra.mxu0 %v5315
        %5842 = vmatprep.subr.bf16.mxu0 %v5312
        %5843 = vmatpush1.bf16.msra.mxu0 %v5311
        %5844 = vmatprep.subr.bf16.mxu0 %v5308
        %5845 = vmatpush1.bf16.msra.mxu0 %v5307
        %5846 = vmatprep.subr.bf16.mxu0 %v5304
        %5847 = vmatpush1.bf16.msra.mxu0 %v5303
        %5848 = vmatprep.subr.bf16.mxu0 %v5364
        %5849 = vmatpush2.bf16.msra.mxu0 %v5363
        %5850 = vmatprep.subr.bf16.mxu0 %v5360
        %5851 = vmatpush2.bf16.msra.mxu0 %v5359
        %5852 = vmatprep.subr.bf16.mxu0 %v5356
        %5853 = vmatpush2.bf16.msra.mxu0 %v5355
        %5854 = vmatprep.subr.bf16.mxu0 %v5352
        %5855 = vmatpush2.bf16.msra.mxu0 %v5351
        %5856 = vmatprep.subr.bf16.mxu0 %v5348
        %5857 = vmatpush2.bf16.msra.mxu0 %v5347
        %5858 = vmatprep.subr.bf16.mxu0 %v5344
        %5859 = vmatpush2.bf16.msra.mxu0 %v5343
        %5860 = vmatprep.subr.bf16.mxu0 %v5340
        %5861 = vmatpush2.bf16.msra.mxu0 %v5339
        %5862 = vmatprep.subr.bf16.mxu0 %v5336
        %5863 = vmatpush2.bf16.msra.mxu0 %v5335
        %5864 = vmatprep.mubr.bf16.mxu0 %v4674
        %5865 = vmatmul.mubr.bf16.gmra.mxu0 %v4673
        %v5866 = vpop.f32.mrf.mxu0
        %v5867 = vadd.f32 %v5754, %v5866
        %v5868 = vpop.f32.mrf.mxu0
        %v5869 = vadd.f32 %v5756, %v5868
        %v5870 = vpop.f32.mrf.mxu0
        %v5871 = vadd.f32 %v5758, %v5870
        %v5872 = vpop.f32.mrf.mxu0
        %v5873 = vadd.f32 %v5760, %v5872
        %5874 = vmatprep.mubr.bf16.mxu0 %v4678
        %5875 = vmatmul.mubr.bf16.gmra.mxu0 %v4677
        %v5876 = vpop.f32.mrf.mxu0
        %v5877 = vadd.f32 %v5764, %v5876
        %v5878 = vpop.f32.mrf.mxu0
        %v5879 = vadd.f32 %v5766, %v5878
        %v5880 = vpop.f32.mrf.mxu0
        %v5881 = vadd.f32 %v5768, %v5880
        %v5882 = vpop.f32.mrf.mxu0
        %v5883 = vadd.f32 %v5770, %v5882
        %5884 = vmatprep.mubr.bf16.mxu0 %v4682
        %5885 = vmatmul.mubr.bf16.gmra.mxu0 %v4681
        %v5886 = vpop.f32.mrf.mxu0
        %v5887 = vadd.f32 %v5774, %v5886
        %v5888 = vpop.f32.mrf.mxu0
        %v5889 = vadd.f32 %v5776, %v5888
        %v5890 = vpop.f32.mrf.mxu0
        %v5891 = vadd.f32 %v5778, %v5890
        %v5892 = vpop.f32.mrf.mxu0
        %v5893 = vadd.f32 %v5780, %v5892
        %5894 = vmatprep.mubr.bf16.mxu0 %v4686
        %5895 = vmatmul.mubr.bf16.gmra.mxu0 %v4685
        %v5896 = vpop.f32.mrf.mxu0
        %v5897 = vadd.f32 %v5784, %v5896
        %v5898 = vpop.f32.mrf.mxu0
        %v5899 = vadd.f32 %v5786, %v5898
        %v5900 = vpop.f32.mrf.mxu0
        %v5901 = vadd.f32 %v5788, %v5900
        %v5902 = vpop.f32.mrf.mxu0
        %v5903 = vadd.f32 %v5790, %v5902
        %5904 = vmatprep.mubr.bf16.mxu0 %v4690
        %5905 = vmatmul.mubr.bf16.gmra.mxu0 %v4689
        %v5906 = vpop.f32.mrf.mxu0
        %v5907 = vadd.f32 %v5794, %v5906
        %v5908 = vpop.f32.mrf.mxu0
        %v5909 = vadd.f32 %v5796, %v5908
        %v5910 = vpop.f32.mrf.mxu0
        %v5911 = vadd.f32 %v5798, %v5910
        %v5912 = vpop.f32.mrf.mxu0
        %v5913 = vadd.f32 %v5800, %v5912
        %5914 = vmatprep.mubr.bf16.mxu0 %v4694
        %5915 = vmatmul.mubr.bf16.gmra.mxu0 %v4693
        %v5916 = vpop.f32.mrf.mxu0
        %v5917 = vadd.f32 %v5804, %v5916
        %v5918 = vpop.f32.mrf.mxu0
        %v5919 = vadd.f32 %v5806, %v5918
        %v5920 = vpop.f32.mrf.mxu0
        %v5921 = vadd.f32 %v5808, %v5920
        %v5922 = vpop.f32.mrf.mxu0
        %v5923 = vadd.f32 %v5810, %v5922
        %5924 = vmatprep.mubr.bf16.mxu0 %v4698
        %5925 = vmatmul.mubr.bf16.gmra.mxu0 %v4697
        %v5926 = vpop.f32.mrf.mxu0
        %v5927 = vadd.f32 %v5814, %v5926
        %v5928 = vpop.f32.mrf.mxu0
        %v5929 = vadd.f32 %v5816, %v5928
        %v5930 = vpop.f32.mrf.mxu0
        %v5931 = vadd.f32 %v5818, %v5930
        %v5932 = vpop.f32.mrf.mxu0
        %v5933 = vadd.f32 %v5820, %v5932
        %5934 = vmatprep.mubr.bf16.mxu0 %v4702
        %5935 = vmatmul.mubr.bf16.gmra.mxu0 %v4701
        %v5936 = vpop.f32.mrf.mxu0
        %v5937 = vadd.f32 %v5824, %v5936
        %v5938 = vpop.f32.mrf.mxu0
        %v5939 = vadd.f32 %v5826, %v5938
        %v5940 = vpop.f32.mrf.mxu0
        %v5941 = vadd.f32 %v5828, %v5940
        %v5942 = vpop.f32.mrf.mxu0
        %v5943 = vadd.f32 %v5830, %v5942
        %5944 = vdwg.mxu0
        %v5945 = vmax.f32 %v5641, 0.0
        %v5946 = vmax.f32 %v5643, 0.0
        %v5947 = vmax.f32 %v5867, 0.0
        %v5948 = vmax.f32 %v5869, 0.0
        %v5949 = vmax.f32 %v5645, 0.0
        %v5950 = vmax.f32 %v5647, 0.0
        %v5951 = vmax.f32 %v5871, 0.0
        %v5952 = vmax.f32 %v5873, 0.0
        %v5953 = vmax.f32 %v5651, 0.0
        %v5954 = vmax.f32 %v5653, 0.0
        %v5955 = vmax.f32 %v5877, 0.0
        %v5956 = vmax.f32 %v5879, 0.0
        %v5957 = vmax.f32 %v5655, 0.0
        %v5958 = vmax.f32 %v5657, 0.0
        %v5959 = vmax.f32 %v5881, 0.0
        %v5960 = vmax.f32 %v5883, 0.0
        %v5961 = vmax.f32 %v5661, 0.0
        %v5962 = vmax.f32 %v5663, 0.0
        %v5963 = vmax.f32 %v5887, 0.0
        %v5964 = vmax.f32 %v5889, 0.0
        %v5965 = vmax.f32 %v5665, 0.0
        %v5966 = vmax.f32 %v5667, 0.0
        %v5967 = vmax.f32 %v5891, 0.0
        %v5968 = vmax.f32 %v5893, 0.0
        %v5969 = vmax.f32 %v5671, 0.0
        %v5970 = vmax.f32 %v5673, 0.0
        %v5971 = vmax.f32 %v5897, 0.0
        %v5972 = vmax.f32 %v5899, 0.0
        %v5973 = vmax.f32 %v5675, 0.0
        %v5974 = vmax.f32 %v5677, 0.0
        %v5975 = vmax.f32 %v5901, 0.0
        %v5976 = vmax.f32 %v5903, 0.0
        %v5977 = vmax.f32 %v5681, 0.0
        %v5978 = vmax.f32 %v5683, 0.0
        %v5979 = vmax.f32 %v5907, 0.0
        %v5980 = vmax.f32 %v5909, 0.0
        %v5981 = vmax.f32 %v5685, 0.0
        %v5982 = vmax.f32 %v5687, 0.0
        %v5983 = vmax.f32 %v5911, 0.0
        %v5984 = vmax.f32 %v5913, 0.0
        %v5985 = vmax.f32 %v5691, 0.0
        %v5986 = vmax.f32 %v5693, 0.0
        %v5987 = vmax.f32 %v5917, 0.0
        %v5988 = vmax.f32 %v5919, 0.0
        %v5989 = vmax.f32 %v5695, 0.0
        %v5990 = vmax.f32 %v5697, 0.0
        %v5991 = vmax.f32 %v5921, 0.0
        %v5992 = vmax.f32 %v5923, 0.0
        %v5993 = vmax.f32 %v5701, 0.0
        %v5994 = vmax.f32 %v5703, 0.0
        %v5995 = vmax.f32 %v5927, 0.0
        %v5996 = vmax.f32 %v5929, 0.0
        %v5997 = vmax.f32 %v5705, 0.0
        %v5998 = vmax.f32 %v5707, 0.0
        %v5999 = vmax.f32 %v5931, 0.0
        %v6000 = vmax.f32 %v5933, 0.0
        %v6001 = vmax.f32 %v5711, 0.0
        %v6002 = vmax.f32 %v5713, 0.0
        %v6003 = vmax.f32 %v5937, 0.0
        %v6004 = vmax.f32 %v5939, 0.0
        %v6005 = vmax.f32 %v5715, 0.0
        %v6006 = vmax.f32 %v5717, 0.0
        %v6007 = vmax.f32 %v5941, 0.0
        %v6008 = vmax.f32 %v5943, 0.0
        %v6009 = vpack.c.bf16 %v5949, %v5945
        %v6010 = vpack.c.bf16 %v5950, %v5946
        %v6011 = vpack.c.bf16 %v5951, %v5947
        %v6012 = vpack.c.bf16 %v5952, %v5948
        %v6013 = vpack.c.bf16 %v5957, %v5953
        %v6014 = vpack.c.bf16 %v5958, %v5954
        %v6015 = vpack.c.bf16 %v5959, %v5955
        %v6016 = vpack.c.bf16 %v5960, %v5956
        %v6017 = vpack.c.bf16 %v5965, %v5961
        %v6018 = vpack.c.bf16 %v5966, %v5962
        %v6019 = vpack.c.bf16 %v5967, %v5963
        %v6020 = vpack.c.bf16 %v5968, %v5964
        %v6021 = vpack.c.bf16 %v5973, %v5969
        %v6022 = vpack.c.bf16 %v5974, %v5970
        %v6023 = vpack.c.bf16 %v5975, %v5971
        %v6024 = vpack.c.bf16 %v5976, %v5972
        %v6025 = vpack.c.bf16 %v5981, %v5977
        %v6026 = vpack.c.bf16 %v5982, %v5978
        %v6027 = vpack.c.bf16 %v5983, %v5979
        %v6028 = vpack.c.bf16 %v5984, %v5980
        %v6029 = vpack.c.bf16 %v5989, %v5985
        %v6030 = vpack.c.bf16 %v5990, %v5986
        %v6031 = vpack.c.bf16 %v5991, %v5987
        %v6032 = vpack.c.bf16 %v5992, %v5988
        %v6033 = vpack.c.bf16 %v5997, %v5993
        %v6034 = vpack.c.bf16 %v5998, %v5994
        %v6035 = vpack.c.bf16 %v5999, %v5995
        %v6036 = vpack.c.bf16 %v6000, %v5996
        %v6037 = vpack.c.bf16 %v6005, %v6001
        %v6038 = vpack.c.bf16 %v6006, %v6002
        %v6039 = vpack.c.bf16 %v6007, %v6003
        %v6040 = vpack.c.bf16 %v6008, %v6004
        %v6041 = vld [vmem:[%s558] sm:$0xff]
        %v6042 = vld [vmem:[%s558 + $0x8] sm:$0xff]
        %v6043 = vld [vmem:[%s558 + $0x10] sm:$0xff]
        %v6044 = vld [vmem:[%s558 + $0x18] sm:$0xff]
        %v6045 = vld [vmem:[%s558 + $0x20] sm:$0xff]
        %v6046 = vld [vmem:[%s558 + $0x28] sm:$0xff]
        %v6047 = vld [vmem:[%s558 + $0x30] sm:$0xff]
        %v6048 = vld [vmem:[%s558 + $0x38] sm:$0xff]
        %v6049 = vld [vmem:[%s558 + $0x40] sm:$0xff]
        %v6050 = vld [vmem:[%s558 + $0x48] sm:$0xff]
        %v6051 = vld [vmem:[%s558 + $0x50] sm:$0xff]
        %v6052 = vld [vmem:[%s558 + $0x58] sm:$0xff]
        %v6053 = vld [vmem:[%s558 + $0x60] sm:$0xff]
        %v6054 = vld [vmem:[%s558 + $0x68] sm:$0xff]
        %v6055 = vld [vmem:[%s558 + $0x70] sm:$0xff]
        %v6056 = vld [vmem:[%s558 + $0x78] sm:$0xff]
        %v6057 = vld [vmem:[%s558 + $0x80] sm:$0xff]
        %v6058 = vld [vmem:[%s558 + $0x88] sm:$0xff]
        %v6059 = vld [vmem:[%s558 + $0x90] sm:$0xff]
        %v6060 = vld [vmem:[%s558 + $0x98] sm:$0xff]
        %v6061 = vld [vmem:[%s558 + $0xa0] sm:$0xff]
        %v6062 = vld [vmem:[%s558 + $0xa8] sm:$0xff]
        %v6063 = vld [vmem:[%s558 + $0xb0] sm:$0xff]
        %v6064 = vld [vmem:[%s558 + $0xb8] sm:$0xff]
        %v6065 = vld [vmem:[%s558 + $0xc0] sm:$0xff]
        %v6066 = vld [vmem:[%s558 + $0xc8] sm:$0xff]
        %v6067 = vld [vmem:[%s558 + $0xd0] sm:$0xff]
        %v6068 = vld [vmem:[%s558 + $0xd8] sm:$0xff]
        %v6069 = vld [vmem:[%s558 + $0xe0] sm:$0xff]
        %v6070 = vld [vmem:[%s558 + $0xe8] sm:$0xff]
        %v6071 = vld [vmem:[%s558 + $0xf0] sm:$0xff]
        %v6072 = vld [vmem:[%s558 + $0xf8] sm:$0xff]
        %v6105 = vunpack.c.l.b16 %v6041
        %v6106 = vunpack.c.h.b16 %v6041
        %v6107 = vunpack.c.l.b16 %v6042
        %v6108 = vunpack.c.h.b16 %v6042
        %v6109 = vunpack.c.l.b16 %v6043
        %v6110 = vunpack.c.h.b16 %v6043
        %v6111 = vunpack.c.l.b16 %v6044
        %v6112 = vunpack.c.h.b16 %v6044
        %v6113 = vunpack.c.l.b16 %v6045
        %v6114 = vunpack.c.h.b16 %v6045
        %v6115 = vunpack.c.l.b16 %v6046
        %v6116 = vunpack.c.h.b16 %v6046
        %v6117 = vunpack.c.l.b16 %v6047
        %v6118 = vunpack.c.h.b16 %v6047
        %v6119 = vunpack.c.l.b16 %v6048
        %v6120 = vunpack.c.h.b16 %v6048
        %v6121 = vunpack.c.l.b16 %v6049
        %v6122 = vunpack.c.h.b16 %v6049
        %v6123 = vunpack.c.l.b16 %v6050
        %v6124 = vunpack.c.h.b16 %v6050
        %v6125 = vunpack.c.l.b16 %v6051
        %v6126 = vunpack.c.h.b16 %v6051
        %v6127 = vunpack.c.l.b16 %v6052
        %v6128 = vunpack.c.h.b16 %v6052
        %v6129 = vunpack.c.l.b16 %v6053
        %v6130 = vunpack.c.h.b16 %v6053
        %v6131 = vunpack.c.l.b16 %v6054
        %v6132 = vunpack.c.h.b16 %v6054
        %v6133 = vunpack.c.l.b16 %v6055
        %v6134 = vunpack.c.h.b16 %v6055
        %v6135 = vunpack.c.l.b16 %v6056
        %v6136 = vunpack.c.h.b16 %v6056
        %v6137 = vunpack.c.l.b16 %v6057
        %v6138 = vunpack.c.h.b16 %v6057
        %v6139 = vunpack.c.l.b16 %v6058
        %v6140 = vunpack.c.h.b16 %v6058
        %v6141 = vunpack.c.l.b16 %v6059
        %v6142 = vunpack.c.h.b16 %v6059
        %v6143 = vunpack.c.l.b16 %v6060
        %v6144 = vunpack.c.h.b16 %v6060
        %v6145 = vunpack.c.l.b16 %v6061
        %v6146 = vunpack.c.h.b16 %v6061
        %v6147 = vunpack.c.l.b16 %v6062
        %v6148 = vunpack.c.h.b16 %v6062
        %v6149 = vunpack.c.l.b16 %v6063
        %v6150 = vunpack.c.h.b16 %v6063
        %v6151 = vunpack.c.l.b16 %v6064
        %v6152 = vunpack.c.h.b16 %v6064
        %v6153 = vunpack.c.l.b16 %v6065
        %v6154 = vunpack.c.h.b16 %v6065
        %v6155 = vunpack.c.l.b16 %v6066
        %v6156 = vunpack.c.h.b16 %v6066
        %v6157 = vunpack.c.l.b16 %v6067
        %v6158 = vunpack.c.h.b16 %v6067
        %v6159 = vunpack.c.l.b16 %v6068
        %v6160 = vunpack.c.h.b16 %v6068
        %v6161 = vunpack.c.l.b16 %v6069
        %v6162 = vunpack.c.h.b16 %v6069
        %v6163 = vunpack.c.l.b16 %v6070
        %v6164 = vunpack.c.h.b16 %v6070
        %v6165 = vunpack.c.l.b16 %v6071
        %v6166 = vunpack.c.h.b16 %v6071
        %v6167 = vunpack.c.l.b16 %v6072
        %v6168 = vunpack.c.h.b16 %v6072
        %v6169 = vpack.c.b16 %v6109, %v6105
        %v6170 = vpack.c.b16 %v6110, %v6106
        %v6171 = vpack.c.b16 %v6111, %v6107
        %v6172 = vpack.c.b16 %v6112, %v6108
        %v6173 = vpack.c.b16 %v6117, %v6113
        %v6174 = vpack.c.b16 %v6118, %v6114
        %v6175 = vpack.c.b16 %v6119, %v6115
        %v6176 = vpack.c.b16 %v6120, %v6116
        %v6177 = vpack.c.b16 %v6125, %v6121
        %v6178 = vpack.c.b16 %v6126, %v6122
        %v6179 = vpack.c.b16 %v6127, %v6123
        %v6180 = vpack.c.b16 %v6128, %v6124
        %v6181 = vpack.c.b16 %v6133, %v6129
        %v6182 = vpack.c.b16 %v6134, %v6130
        %v6183 = vpack.c.b16 %v6135, %v6131
        %v6184 = vpack.c.b16 %v6136, %v6132
        %v6185 = vpack.c.b16 %v6141, %v6137
        %v6186 = vpack.c.b16 %v6142, %v6138
        %v6187 = vpack.c.b16 %v6143, %v6139
        %v6188 = vpack.c.b16 %v6144, %v6140
        %v6189 = vpack.c.b16 %v6149, %v6145
        %v6190 = vpack.c.b16 %v6150, %v6146
        %v6191 = vpack.c.b16 %v6151, %v6147
        %v6192 = vpack.c.b16 %v6152, %v6148
        %v6193 = vpack.c.b16 %v6157, %v6153
        %v6194 = vpack.c.b16 %v6158, %v6154
        %v6195 = vpack.c.b16 %v6159, %v6155
        %v6196 = vpack.c.b16 %v6160, %v6156
        %v6197 = vpack.c.b16 %v6165, %v6161
        %v6198 = vpack.c.b16 %v6166, %v6162
        %v6199 = vpack.c.b16 %v6167, %v6163
        %v6200 = vpack.c.b16 %v6168, %v6164
        %v6233 = vmul.bf16 %v6009, %v6169
        %v6234 = vmul.bf16 %v6010, %v6170
        %v6235 = vmul.bf16 %v6011, %v6171
        %v6236 = vmul.bf16 %v6012, %v6172
        %v6237 = vmul.bf16 %v6013, %v6173
        %v6238 = vmul.bf16 %v6014, %v6174
        %v6239 = vmul.bf16 %v6015, %v6175
        %v6240 = vmul.bf16 %v6016, %v6176
        %v6241 = vmul.bf16 %v6017, %v6177
        %v6242 = vmul.bf16 %v6018, %v6178
        %v6243 = vmul.bf16 %v6019, %v6179
        %v6244 = vmul.bf16 %v6020, %v6180
        %v6245 = vmul.bf16 %v6021, %v6181
        %v6246 = vmul.bf16 %v6022, %v6182
        %v6247 = vmul.bf16 %v6023, %v6183
        %v6248 = vmul.bf16 %v6024, %v6184
        %v6249 = vmul.bf16 %v6025, %v6185
        %v6250 = vmul.bf16 %v6026, %v6186
        %v6251 = vmul.bf16 %v6027, %v6187
        %v6252 = vmul.bf16 %v6028, %v6188
        %v6253 = vmul.bf16 %v6029, %v6189
        %v6254 = vmul.bf16 %v6030, %v6190
        %v6255 = vmul.bf16 %v6031, %v6191
        %v6256 = vmul.bf16 %v6032, %v6192
        %v6257 = vmul.bf16 %v6033, %v6193
        %v6258 = vmul.bf16 %v6034, %v6194
        %v6259 = vmul.bf16 %v6035, %v6195
        %v6260 = vmul.bf16 %v6036, %v6196
        %v6261 = vmul.bf16 %v6037, %v6197
        %v6262 = vmul.bf16 %v6038, %v6198
        %v6263 = vmul.bf16 %v6039, %v6199
        %v6264 = vmul.bf16 %v6040, %v6200
        %v6265 = vld [vmem:[#allocation13] sm:$0xff]
        %v6266 = vld [vmem:[#allocation13 + $0x8] sm:$0xff]
        %v6267 = vld [vmem:[#allocation13 + $0x10] sm:$0xff]
        %v6268 = vld [vmem:[#allocation13 + $0x18] sm:$0xff]
        %v6269 = vld [vmem:[#allocation13 + $0x20] sm:$0xff]
        %v6270 = vld [vmem:[#allocation13 + $0x28] sm:$0xff]
        %v6271 = vld [vmem:[#allocation13 + $0x30] sm:$0xff]
        %v6272 = vld [vmem:[#allocation13 + $0x38] sm:$0xff]
        %v6273 = vld [vmem:[#allocation13 + $0x40] sm:$0xff]
        %v6274 = vld [vmem:[#allocation13 + $0x48] sm:$0xff]
        %v6275 = vld [vmem:[#allocation13 + $0x50] sm:$0xff]
        %v6276 = vld [vmem:[#allocation13 + $0x58] sm:$0xff]
        %v6277 = vld [vmem:[#allocation13 + $0x60] sm:$0xff]
        %v6278 = vld [vmem:[#allocation13 + $0x68] sm:$0xff]
        %v6279 = vld [vmem:[#allocation13 + $0x70] sm:$0xff]
        %v6280 = vld [vmem:[#allocation13 + $0x78] sm:$0xff]
        %v6281 = vld [vmem:[#allocation13 + $0x80] sm:$0xff]
        %v6282 = vld [vmem:[#allocation13 + $0x88] sm:$0xff]
        %v6283 = vld [vmem:[#allocation13 + $0x90] sm:$0xff]
        %v6284 = vld [vmem:[#allocation13 + $0x98] sm:$0xff]
        %v6285 = vld [vmem:[#allocation13 + $0xa0] sm:$0xff]
        %v6286 = vld [vmem:[#allocation13 + $0xa8] sm:$0xff]
        %v6287 = vld [vmem:[#allocation13 + $0xb0] sm:$0xff]
        %v6288 = vld [vmem:[#allocation13 + $0xb8] sm:$0xff]
        %v6289 = vld [vmem:[#allocation13 + $0xc0] sm:$0xff]
        %v6290 = vld [vmem:[#allocation13 + $0xc8] sm:$0xff]
        %v6291 = vld [vmem:[#allocation13 + $0xd0] sm:$0xff]
        %v6292 = vld [vmem:[#allocation13 + $0xd8] sm:$0xff]
        %v6293 = vld [vmem:[#allocation13 + $0xe0] sm:$0xff]
        %v6294 = vld [vmem:[#allocation13 + $0xe8] sm:$0xff]
        %v6295 = vld [vmem:[#allocation13 + $0xf0] sm:$0xff]
        %v6296 = vld [vmem:[#allocation13 + $0xf8] sm:$0xff]
        %v6297 = vld [vmem:[#allocation13 + $0x100] sm:$0xff]
        %v6298 = vld [vmem:[#allocation13 + $0x108] sm:$0xff]
        %v6299 = vld [vmem:[#allocation13 + $0x110] sm:$0xff]
        %v6300 = vld [vmem:[#allocation13 + $0x118] sm:$0xff]
        %v6301 = vld [vmem:[#allocation13 + $0x120] sm:$0xff]
        %v6302 = vld [vmem:[#allocation13 + $0x128] sm:$0xff]
        %v6303 = vld [vmem:[#allocation13 + $0x130] sm:$0xff]
        %v6304 = vld [vmem:[#allocation13 + $0x138] sm:$0xff]
        %v6305 = vld [vmem:[#allocation13 + $0x140] sm:$0xff]
        %v6306 = vld [vmem:[#allocation13 + $0x148] sm:$0xff]
        %v6307 = vld [vmem:[#allocation13 + $0x150] sm:$0xff]
        %v6308 = vld [vmem:[#allocation13 + $0x158] sm:$0xff]
        %v6309 = vld [vmem:[#allocation13 + $0x160] sm:$0xff]
        %v6310 = vld [vmem:[#allocation13 + $0x168] sm:$0xff]
        %v6311 = vld [vmem:[#allocation13 + $0x170] sm:$0xff]
        %v6312 = vld [vmem:[#allocation13 + $0x178] sm:$0xff]
        %v6313 = vld [vmem:[#allocation13 + $0x180] sm:$0xff]
        %v6314 = vld [vmem:[#allocation13 + $0x188] sm:$0xff]
        %v6315 = vld [vmem:[#allocation13 + $0x190] sm:$0xff]
        %v6316 = vld [vmem:[#allocation13 + $0x198] sm:$0xff]
        %v6317 = vld [vmem:[#allocation13 + $0x1a0] sm:$0xff]
        %v6318 = vld [vmem:[#allocation13 + $0x1a8] sm:$0xff]
        %v6319 = vld [vmem:[#allocation13 + $0x1b0] sm:$0xff]
        %v6320 = vld [vmem:[#allocation13 + $0x1b8] sm:$0xff]
        %v6321 = vld [vmem:[#allocation13 + $0x1c0] sm:$0xff]
        %v6322 = vld [vmem:[#allocation13 + $0x1c8] sm:$0xff]
        %v6323 = vld [vmem:[#allocation13 + $0x1d0] sm:$0xff]
        %v6324 = vld [vmem:[#allocation13 + $0x1d8] sm:$0xff]
        %v6325 = vld [vmem:[#allocation13 + $0x1e0] sm:$0xff]
        %v6326 = vld [vmem:[#allocation13 + $0x1e8] sm:$0xff]
        %v6327 = vld [vmem:[#allocation13 + $0x1f0] sm:$0xff]
        %v6328 = vld [vmem:[#allocation13 + $0x1f8] sm:$0xff]
        %v6329 = vld [vmem:[#allocation13 + $0x200] sm:$0xff]
        %v6330 = vld [vmem:[#allocation13 + $0x208] sm:$0xff]
        %v6331 = vld [vmem:[#allocation13 + $0x210] sm:$0xff]
        %v6332 = vld [vmem:[#allocation13 + $0x218] sm:$0xff]
        %v6333 = vld [vmem:[#allocation13 + $0x220] sm:$0xff]
        %v6334 = vld [vmem:[#allocation13 + $0x228] sm:$0xff]
        %v6335 = vld [vmem:[#allocation13 + $0x230] sm:$0xff]
        %v6336 = vld [vmem:[#allocation13 + $0x238] sm:$0xff]
        %v6337 = vld [vmem:[#allocation13 + $0x240] sm:$0xff]
        %v6338 = vld [vmem:[#allocation13 + $0x248] sm:$0xff]
        %v6339 = vld [vmem:[#allocation13 + $0x250] sm:$0xff]
        %v6340 = vld [vmem:[#allocation13 + $0x258] sm:$0xff]
        %v6341 = vld [vmem:[#allocation13 + $0x260] sm:$0xff]
        %v6342 = vld [vmem:[#allocation13 + $0x268] sm:$0xff]
        %v6343 = vld [vmem:[#allocation13 + $0x270] sm:$0xff]
        %v6344 = vld [vmem:[#allocation13 + $0x278] sm:$0xff]
        %v6345 = vld [vmem:[#allocation13 + $0x280] sm:$0xff]
        %v6346 = vld [vmem:[#allocation13 + $0x288] sm:$0xff]
        %v6347 = vld [vmem:[#allocation13 + $0x290] sm:$0xff]
        %v6348 = vld [vmem:[#allocation13 + $0x298] sm:$0xff]
        %v6349 = vld [vmem:[#allocation13 + $0x2a0] sm:$0xff]
        %v6350 = vld [vmem:[#allocation13 + $0x2a8] sm:$0xff]
        %v6351 = vld [vmem:[#allocation13 + $0x2b0] sm:$0xff]
        %v6352 = vld [vmem:[#allocation13 + $0x2b8] sm:$0xff]
        %v6353 = vld [vmem:[#allocation13 + $0x2c0] sm:$0xff]
        %v6354 = vld [vmem:[#allocation13 + $0x2c8] sm:$0xff]
        %v6355 = vld [vmem:[#allocation13 + $0x2d0] sm:$0xff]
        %v6356 = vld [vmem:[#allocation13 + $0x2d8] sm:$0xff]
        %v6357 = vld [vmem:[#allocation13 + $0x2e0] sm:$0xff]
        %v6358 = vld [vmem:[#allocation13 + $0x2e8] sm:$0xff]
        %v6359 = vld [vmem:[#allocation13 + $0x2f0] sm:$0xff]
        %v6360 = vld [vmem:[#allocation13 + $0x2f8] sm:$0xff]
        %v6361 = vld [vmem:[#allocation13 + $0x300] sm:$0xff]
        %v6362 = vld [vmem:[#allocation13 + $0x308] sm:$0xff]
        %v6363 = vld [vmem:[#allocation13 + $0x310] sm:$0xff]
        %v6364 = vld [vmem:[#allocation13 + $0x318] sm:$0xff]
        %v6365 = vld [vmem:[#allocation13 + $0x320] sm:$0xff]
        %v6366 = vld [vmem:[#allocation13 + $0x328] sm:$0xff]
        %v6367 = vld [vmem:[#allocation13 + $0x330] sm:$0xff]
        %v6368 = vld [vmem:[#allocation13 + $0x338] sm:$0xff]
        %v6369 = vld [vmem:[#allocation13 + $0x340] sm:$0xff]
        %v6370 = vld [vmem:[#allocation13 + $0x348] sm:$0xff]
        %v6371 = vld [vmem:[#allocation13 + $0x350] sm:$0xff]
        %v6372 = vld [vmem:[#allocation13 + $0x358] sm:$0xff]
        %v6373 = vld [vmem:[#allocation13 + $0x360] sm:$0xff]
        %v6374 = vld [vmem:[#allocation13 + $0x368] sm:$0xff]
        %v6375 = vld [vmem:[#allocation13 + $0x370] sm:$0xff]
        %v6376 = vld [vmem:[#allocation13 + $0x378] sm:$0xff]
        %v6377 = vld [vmem:[#allocation13 + $0x380] sm:$0xff]
        %v6378 = vld [vmem:[#allocation13 + $0x388] sm:$0xff]
        %v6379 = vld [vmem:[#allocation13 + $0x390] sm:$0xff]
        %v6380 = vld [vmem:[#allocation13 + $0x398] sm:$0xff]
        %v6381 = vld [vmem:[#allocation13 + $0x3a0] sm:$0xff]
        %v6382 = vld [vmem:[#allocation13 + $0x3a8] sm:$0xff]
        %v6383 = vld [vmem:[#allocation13 + $0x3b0] sm:$0xff]
        %v6384 = vld [vmem:[#allocation13 + $0x3b8] sm:$0xff]
        %v6385 = vld [vmem:[#allocation13 + $0x3c0] sm:$0xff]
        %v6386 = vld [vmem:[#allocation13 + $0x3c8] sm:$0xff]
        %v6387 = vld [vmem:[#allocation13 + $0x3d0] sm:$0xff]
        %v6388 = vld [vmem:[#allocation13 + $0x3d8] sm:$0xff]
        %v6389 = vld [vmem:[#allocation13 + $0x3e0] sm:$0xff]
        %v6390 = vld [vmem:[#allocation13 + $0x3e8] sm:$0xff]
        %v6391 = vld [vmem:[#allocation13 + $0x3f0] sm:$0xff]
        %v6392 = vld [vmem:[#allocation13 + $0x3f8] sm:$0xff]
        %v6393 = vld [vmem:[#allocation14] sm:$0xf]
        %v6395 = vlaneseq
        %v6396 = vshrl.u32 %v6395, 7
        %v6397 = vsub.s32 0, %v6396
        %v6398 = vrot.slane %v6393, %v6397
        %v6399 = vlaneseq
        %v6400 = vshrl.u32 %v6399, 7
        %v6401 = vsub.s32 1, %v6400
        %v6402 = vrot.slane %v6393, %v6401
        %v6403 = vlaneseq
        %v6404 = vshrl.u32 %v6403, 7
        %v6405 = vsub.s32 2, %v6404
        %v6406 = vrot.slane %v6393, %v6405
        %v6407 = vlaneseq
        %v6408 = vshrl.u32 %v6407, 7
        %v6409 = vsub.s32 3, %v6408
        %v6410 = vrot.slane %v6393, %v6409
        %v6543 = vunpack.c.l.b16 %v6265
        %v6544 = vunpack.c.h.b16 %v6265
        %v6545 = vunpack.c.l.b16 %v6266
        %v6546 = vunpack.c.h.b16 %v6266
        %v6547 = vunpack.c.l.b16 %v6267
        %v6548 = vunpack.c.h.b16 %v6267
        %v6549 = vunpack.c.l.b16 %v6268
        %v6550 = vunpack.c.h.b16 %v6268
        %v6551 = vunpack.c.l.b16 %v6269
        %v6552 = vunpack.c.h.b16 %v6269
        %v6553 = vunpack.c.l.b16 %v6270
        %v6554 = vunpack.c.h.b16 %v6270
        %v6555 = vunpack.c.l.b16 %v6271
        %v6556 = vunpack.c.h.b16 %v6271
        %v6557 = vunpack.c.l.b16 %v6272
        %v6558 = vunpack.c.h.b16 %v6272
        %v6559 = vunpack.c.l.b16 %v6273
        %v6560 = vunpack.c.h.b16 %v6273
        %v6561 = vunpack.c.l.b16 %v6274
        %v6562 = vunpack.c.h.b16 %v6274
        %v6563 = vunpack.c.l.b16 %v6275
        %v6564 = vunpack.c.h.b16 %v6275
        %v6565 = vunpack.c.l.b16 %v6276
        %v6566 = vunpack.c.h.b16 %v6276
        %v6567 = vunpack.c.l.b16 %v6277
        %v6568 = vunpack.c.h.b16 %v6277
        %v6569 = vunpack.c.l.b16 %v6278
        %v6570 = vunpack.c.h.b16 %v6278
        %v6571 = vunpack.c.l.b16 %v6279
        %v6572 = vunpack.c.h.b16 %v6279
        %v6573 = vunpack.c.l.b16 %v6280
        %v6574 = vunpack.c.h.b16 %v6280
        %v6575 = vunpack.c.l.b16 %v6281
        %v6576 = vunpack.c.h.b16 %v6281
        %v6577 = vunpack.c.l.b16 %v6282
        %v6578 = vunpack.c.h.b16 %v6282
        %v6579 = vunpack.c.l.b16 %v6283
        %v6580 = vunpack.c.h.b16 %v6283
        %v6581 = vunpack.c.l.b16 %v6284
        %v6582 = vunpack.c.h.b16 %v6284
        %v6583 = vunpack.c.l.b16 %v6285
        %v6584 = vunpack.c.h.b16 %v6285
        %v6585 = vunpack.c.l.b16 %v6286
        %v6586 = vunpack.c.h.b16 %v6286
        %v6587 = vunpack.c.l.b16 %v6287
        %v6588 = vunpack.c.h.b16 %v6287
        %v6589 = vunpack.c.l.b16 %v6288
        %v6590 = vunpack.c.h.b16 %v6288
        %v6591 = vunpack.c.l.b16 %v6289
        %v6592 = vunpack.c.h.b16 %v6289
        %v6593 = vunpack.c.l.b16 %v6290
        %v6594 = vunpack.c.h.b16 %v6290
        %v6595 = vunpack.c.l.b16 %v6291
        %v6596 = vunpack.c.h.b16 %v6291
        %v6597 = vunpack.c.l.b16 %v6292
        %v6598 = vunpack.c.h.b16 %v6292
        %v6599 = vunpack.c.l.b16 %v6293
        %v6600 = vunpack.c.h.b16 %v6293
        %v6601 = vunpack.c.l.b16 %v6294
        %v6602 = vunpack.c.h.b16 %v6294
        %v6603 = vunpack.c.l.b16 %v6295
        %v6604 = vunpack.c.h.b16 %v6295
        %v6605 = vunpack.c.l.b16 %v6296
        %v6606 = vunpack.c.h.b16 %v6296
        %v6607 = vunpack.c.l.b16 %v6297
        %v6608 = vunpack.c.h.b16 %v6297
        %v6609 = vunpack.c.l.b16 %v6298
        %v6610 = vunpack.c.h.b16 %v6298
        %v6611 = vunpack.c.l.b16 %v6299
        %v6612 = vunpack.c.h.b16 %v6299
        %v6613 = vunpack.c.l.b16 %v6300
        %v6614 = vunpack.c.h.b16 %v6300
        %v6615 = vunpack.c.l.b16 %v6301
        %v6616 = vunpack.c.h.b16 %v6301
        %v6617 = vunpack.c.l.b16 %v6302
        %v6618 = vunpack.c.h.b16 %v6302
        %v6619 = vunpack.c.l.b16 %v6303
        %v6620 = vunpack.c.h.b16 %v6303
        %v6621 = vunpack.c.l.b16 %v6304
        %v6622 = vunpack.c.h.b16 %v6304
        %v6623 = vunpack.c.l.b16 %v6305
        %v6624 = vunpack.c.h.b16 %v6305
        %v6625 = vunpack.c.l.b16 %v6306
        %v6626 = vunpack.c.h.b16 %v6306
        %v6627 = vunpack.c.l.b16 %v6307
        %v6628 = vunpack.c.h.b16 %v6307
        %v6629 = vunpack.c.l.b16 %v6308
        %v6630 = vunpack.c.h.b16 %v6308
        %v6631 = vunpack.c.l.b16 %v6309
        %v6632 = vunpack.c.h.b16 %v6309
        %v6633 = vunpack.c.l.b16 %v6310
        %v6634 = vunpack.c.h.b16 %v6310
        %v6635 = vunpack.c.l.b16 %v6311
        %v6636 = vunpack.c.h.b16 %v6311
        %v6637 = vunpack.c.l.b16 %v6312
        %v6638 = vunpack.c.h.b16 %v6312
        %v6639 = vunpack.c.l.b16 %v6313
        %v6640 = vunpack.c.h.b16 %v6313
        %v6641 = vunpack.c.l.b16 %v6314
        %v6642 = vunpack.c.h.b16 %v6314
        %v6643 = vunpack.c.l.b16 %v6315
        %v6644 = vunpack.c.h.b16 %v6315
        %v6645 = vunpack.c.l.b16 %v6316
        %v6646 = vunpack.c.h.b16 %v6316
        %v6647 = vunpack.c.l.b16 %v6317
        %v6648 = vunpack.c.h.b16 %v6317
        %v6649 = vunpack.c.l.b16 %v6318
        %v6650 = vunpack.c.h.b16 %v6318
        %v6651 = vunpack.c.l.b16 %v6319
        %v6652 = vunpack.c.h.b16 %v6319
        %v6653 = vunpack.c.l.b16 %v6320
        %v6654 = vunpack.c.h.b16 %v6320
        %v6655 = vunpack.c.l.b16 %v6321
        %v6656 = vunpack.c.h.b16 %v6321
        %v6657 = vunpack.c.l.b16 %v6322
        %v6658 = vunpack.c.h.b16 %v6322
        %v6659 = vunpack.c.l.b16 %v6323
        %v6660 = vunpack.c.h.b16 %v6323
        %v6661 = vunpack.c.l.b16 %v6324
        %v6662 = vunpack.c.h.b16 %v6324
        %v6663 = vunpack.c.l.b16 %v6325
        %v6664 = vunpack.c.h.b16 %v6325
        %v6665 = vunpack.c.l.b16 %v6326
        %v6666 = vunpack.c.h.b16 %v6326
        %v6667 = vunpack.c.l.b16 %v6327
        %v6668 = vunpack.c.h.b16 %v6327
        %v6669 = vunpack.c.l.b16 %v6328
        %v6670 = vunpack.c.h.b16 %v6328
        %v6671 = vunpack.c.l.b16 %v6329
        %v6672 = vunpack.c.h.b16 %v6329
        %v6673 = vunpack.c.l.b16 %v6330
        %v6674 = vunpack.c.h.b16 %v6330
        %v6675 = vunpack.c.l.b16 %v6331
        %v6676 = vunpack.c.h.b16 %v6331
        %v6677 = vunpack.c.l.b16 %v6332
        %v6678 = vunpack.c.h.b16 %v6332
        %v6679 = vunpack.c.l.b16 %v6333
        %v6680 = vunpack.c.h.b16 %v6333
        %v6681 = vunpack.c.l.b16 %v6334
        %v6682 = vunpack.c.h.b16 %v6334
        %v6683 = vunpack.c.l.b16 %v6335
        %v6684 = vunpack.c.h.b16 %v6335
        %v6685 = vunpack.c.l.b16 %v6336
        %v6686 = vunpack.c.h.b16 %v6336
        %v6687 = vunpack.c.l.b16 %v6337
        %v6688 = vunpack.c.h.b16 %v6337
        %v6689 = vunpack.c.l.b16 %v6338
        %v6690 = vunpack.c.h.b16 %v6338
        %v6691 = vunpack.c.l.b16 %v6339
        %v6692 = vunpack.c.h.b16 %v6339
        %v6693 = vunpack.c.l.b16 %v6340
        %v6694 = vunpack.c.h.b16 %v6340
        %v6695 = vunpack.c.l.b16 %v6341
        %v6696 = vunpack.c.h.b16 %v6341
        %v6697 = vunpack.c.l.b16 %v6342
        %v6698 = vunpack.c.h.b16 %v6342
        %v6699 = vunpack.c.l.b16 %v6343
        %v6700 = vunpack.c.h.b16 %v6343
        %v6701 = vunpack.c.l.b16 %v6344
        %v6702 = vunpack.c.h.b16 %v6344
        %v6703 = vunpack.c.l.b16 %v6345
        %v6704 = vunpack.c.h.b16 %v6345
        %v6705 = vunpack.c.l.b16 %v6346
        %v6706 = vunpack.c.h.b16 %v6346
        %v6707 = vunpack.c.l.b16 %v6347
        %v6708 = vunpack.c.h.b16 %v6347
        %v6709 = vunpack.c.l.b16 %v6348
        %v6710 = vunpack.c.h.b16 %v6348
        %v6711 = vunpack.c.l.b16 %v6349
        %v6712 = vunpack.c.h.b16 %v6349
        %v6713 = vunpack.c.l.b16 %v6350
        %v6714 = vunpack.c.h.b16 %v6350
        %v6715 = vunpack.c.l.b16 %v6351
        %v6716 = vunpack.c.h.b16 %v6351
        %v6717 = vunpack.c.l.b16 %v6352
        %v6718 = vunpack.c.h.b16 %v6352
        %v6719 = vunpack.c.l.b16 %v6353
        %v6720 = vunpack.c.h.b16 %v6353
        %v6721 = vunpack.c.l.b16 %v6354
        %v6722 = vunpack.c.h.b16 %v6354
        %v6723 = vunpack.c.l.b16 %v6355
        %v6724 = vunpack.c.h.b16 %v6355
        %v6725 = vunpack.c.l.b16 %v6356
        %v6726 = vunpack.c.h.b16 %v6356
        %v6727 = vunpack.c.l.b16 %v6357
        %v6728 = vunpack.c.h.b16 %v6357
        %v6729 = vunpack.c.l.b16 %v6358
        %v6730 = vunpack.c.h.b16 %v6358
        %v6731 = vunpack.c.l.b16 %v6359
        %v6732 = vunpack.c.h.b16 %v6359
        %v6733 = vunpack.c.l.b16 %v6360
        %v6734 = vunpack.c.h.b16 %v6360
        %v6735 = vunpack.c.l.b16 %v6361
        %v6736 = vunpack.c.h.b16 %v6361
        %v6737 = vunpack.c.l.b16 %v6362
        %v6738 = vunpack.c.h.b16 %v6362
        %v6739 = vunpack.c.l.b16 %v6363
        %v6740 = vunpack.c.h.b16 %v6363
        %v6741 = vunpack.c.l.b16 %v6364
        %v6742 = vunpack.c.h.b16 %v6364
        %v6743 = vunpack.c.l.b16 %v6365
        %v6744 = vunpack.c.h.b16 %v6365
        %v6745 = vunpack.c.l.b16 %v6366
        %v6746 = vunpack.c.h.b16 %v6366
        %v6747 = vunpack.c.l.b16 %v6367
        %v6748 = vunpack.c.h.b16 %v6367
        %v6749 = vunpack.c.l.b16 %v6368
        %v6750 = vunpack.c.h.b16 %v6368
        %v6751 = vunpack.c.l.b16 %v6369
        %v6752 = vunpack.c.h.b16 %v6369
        %v6753 = vunpack.c.l.b16 %v6370
        %v6754 = vunpack.c.h.b16 %v6370
        %v6755 = vunpack.c.l.b16 %v6371
        %v6756 = vunpack.c.h.b16 %v6371
        %v6757 = vunpack.c.l.b16 %v6372
        %v6758 = vunpack.c.h.b16 %v6372
        %v6759 = vunpack.c.l.b16 %v6373
        %v6760 = vunpack.c.h.b16 %v6373
        %v6761 = vunpack.c.l.b16 %v6374
        %v6762 = vunpack.c.h.b16 %v6374
        %v6763 = vunpack.c.l.b16 %v6375
        %v6764 = vunpack.c.h.b16 %v6375
        %v6765 = vunpack.c.l.b16 %v6376
        %v6766 = vunpack.c.h.b16 %v6376
        %v6767 = vunpack.c.l.b16 %v6377
        %v6768 = vunpack.c.h.b16 %v6377
        %v6769 = vunpack.c.l.b16 %v6378
        %v6770 = vunpack.c.h.b16 %v6378
        %v6771 = vunpack.c.l.b16 %v6379
        %v6772 = vunpack.c.h.b16 %v6379
        %v6773 = vunpack.c.l.b16 %v6380
        %v6774 = vunpack.c.h.b16 %v6380
        %v6775 = vunpack.c.l.b16 %v6381
        %v6776 = vunpack.c.h.b16 %v6381
        %v6777 = vunpack.c.l.b16 %v6382
        %v6778 = vunpack.c.h.b16 %v6382
        %v6779 = vunpack.c.l.b16 %v6383
        %v6780 = vunpack.c.h.b16 %v6383
        %v6781 = vunpack.c.l.b16 %v6384
        %v6782 = vunpack.c.h.b16 %v6384
        %v6783 = vunpack.c.l.b16 %v6385
        %v6784 = vunpack.c.h.b16 %v6385
        %v6785 = vunpack.c.l.b16 %v6386
        %v6786 = vunpack.c.h.b16 %v6386
        %v6787 = vunpack.c.l.b16 %v6387
        %v6788 = vunpack.c.h.b16 %v6387
        %v6789 = vunpack.c.l.b16 %v6388
        %v6790 = vunpack.c.h.b16 %v6388
        %v6791 = vunpack.c.l.b16 %v6389
        %v6792 = vunpack.c.h.b16 %v6389
        %v6793 = vunpack.c.l.b16 %v6390
        %v6794 = vunpack.c.h.b16 %v6390
        %v6795 = vunpack.c.l.b16 %v6391
        %v6796 = vunpack.c.h.b16 %v6391
        %v6797 = vunpack.c.l.b16 %v6392
        %v6798 = vunpack.c.h.b16 %v6392
        %v6799 = vpack.c.b16 %v6547, %v6543
        %v6800 = vpack.c.b16 %v6548, %v6544
        %v6801 = vpack.c.b16 %v6549, %v6545
        %v6802 = vpack.c.b16 %v6550, %v6546
        %v6803 = vpack.c.b16 %v6555, %v6551
        %v6804 = vpack.c.b16 %v6556, %v6552
        %v6805 = vpack.c.b16 %v6557, %v6553
        %v6806 = vpack.c.b16 %v6558, %v6554
        %v6807 = vpack.c.b16 %v6563, %v6559
        %v6808 = vpack.c.b16 %v6564, %v6560
        %v6809 = vpack.c.b16 %v6565, %v6561
        %v6810 = vpack.c.b16 %v6566, %v6562
        %v6811 = vpack.c.b16 %v6571, %v6567
        %v6812 = vpack.c.b16 %v6572, %v6568
        %v6813 = vpack.c.b16 %v6573, %v6569
        %v6814 = vpack.c.b16 %v6574, %v6570
        %v6815 = vpack.c.b16 %v6579, %v6575
        %v6816 = vpack.c.b16 %v6580, %v6576
        %v6817 = vpack.c.b16 %v6581, %v6577
        %v6818 = vpack.c.b16 %v6582, %v6578
        %v6819 = vpack.c.b16 %v6587, %v6583
        %v6820 = vpack.c.b16 %v6588, %v6584
        %v6821 = vpack.c.b16 %v6589, %v6585
        %v6822 = vpack.c.b16 %v6590, %v6586
        %v6823 = vpack.c.b16 %v6595, %v6591
        %v6824 = vpack.c.b16 %v6596, %v6592
        %v6825 = vpack.c.b16 %v6597, %v6593
        %v6826 = vpack.c.b16 %v6598, %v6594
        %v6827 = vpack.c.b16 %v6603, %v6599
        %v6828 = vpack.c.b16 %v6604, %v6600
        %v6829 = vpack.c.b16 %v6605, %v6601
        %v6830 = vpack.c.b16 %v6606, %v6602
        %v6831 = vpack.c.b16 %v6611, %v6607
        %v6832 = vpack.c.b16 %v6612, %v6608
        %v6833 = vpack.c.b16 %v6613, %v6609
        %v6834 = vpack.c.b16 %v6614, %v6610
        %v6835 = vpack.c.b16 %v6619, %v6615
        %v6836 = vpack.c.b16 %v6620, %v6616
        %v6837 = vpack.c.b16 %v6621, %v6617
        %v6838 = vpack.c.b16 %v6622, %v6618
        %v6839 = vpack.c.b16 %v6627, %v6623
        %v6840 = vpack.c.b16 %v6628, %v6624
        %v6841 = vpack.c.b16 %v6629, %v6625
        %v6842 = vpack.c.b16 %v6630, %v6626
        %v6843 = vpack.c.b16 %v6635, %v6631
        %v6844 = vpack.c.b16 %v6636, %v6632
        %v6845 = vpack.c.b16 %v6637, %v6633
        %v6846 = vpack.c.b16 %v6638, %v6634
        %v6847 = vpack.c.b16 %v6643, %v6639
        %v6848 = vpack.c.b16 %v6644, %v6640
        %v6849 = vpack.c.b16 %v6645, %v6641
        %v6850 = vpack.c.b16 %v6646, %v6642
        %v6851 = vpack.c.b16 %v6651, %v6647
        %v6852 = vpack.c.b16 %v6652, %v6648
        %v6853 = vpack.c.b16 %v6653, %v6649
        %v6854 = vpack.c.b16 %v6654, %v6650
        %v6855 = vpack.c.b16 %v6659, %v6655
        %v6856 = vpack.c.b16 %v6660, %v6656
        %v6857 = vpack.c.b16 %v6661, %v6657
        %v6858 = vpack.c.b16 %v6662, %v6658
        %v6859 = vpack.c.b16 %v6667, %v6663
        %v6860 = vpack.c.b16 %v6668, %v6664
        %v6861 = vpack.c.b16 %v6669, %v6665
        %v6862 = vpack.c.b16 %v6670, %v6666
        %v6863 = vpack.c.b16 %v6675, %v6671
        %v6864 = vpack.c.b16 %v6676, %v6672
        %v6865 = vpack.c.b16 %v6677, %v6673
        %v6866 = vpack.c.b16 %v6678, %v6674
        %v6867 = vpack.c.b16 %v6683, %v6679
        %v6868 = vpack.c.b16 %v6684, %v6680
        %v6869 = vpack.c.b16 %v6685, %v6681
        %v6870 = vpack.c.b16 %v6686, %v6682
        %v6871 = vpack.c.b16 %v6691, %v6687
        %v6872 = vpack.c.b16 %v6692, %v6688
        %v6873 = vpack.c.b16 %v6693, %v6689
        %v6874 = vpack.c.b16 %v6694, %v6690
        %v6875 = vpack.c.b16 %v6699, %v6695
        %v6876 = vpack.c.b16 %v6700, %v6696
        %v6877 = vpack.c.b16 %v6701, %v6697
        %v6878 = vpack.c.b16 %v6702, %v6698
        %v6879 = vpack.c.b16 %v6707, %v6703
        %v6880 = vpack.c.b16 %v6708, %v6704
        %v6881 = vpack.c.b16 %v6709, %v6705
        %v6882 = vpack.c.b16 %v6710, %v6706
        %v6883 = vpack.c.b16 %v6715, %v6711
        %v6884 = vpack.c.b16 %v6716, %v6712
        %v6885 = vpack.c.b16 %v6717, %v6713
        %v6886 = vpack.c.b16 %v6718, %v6714
        %v6887 = vpack.c.b16 %v6723, %v6719
        %v6888 = vpack.c.b16 %v6724, %v6720
        %v6889 = vpack.c.b16 %v6725, %v6721
        %v6890 = vpack.c.b16 %v6726, %v6722
        %v6891 = vpack.c.b16 %v6731, %v6727
        %v6892 = vpack.c.b16 %v6732, %v6728
        %v6893 = vpack.c.b16 %v6733, %v6729
        %v6894 = vpack.c.b16 %v6734, %v6730
        %v6895 = vpack.c.b16 %v6739, %v6735
        %v6896 = vpack.c.b16 %v6740, %v6736
        %v6897 = vpack.c.b16 %v6741, %v6737
        %v6898 = vpack.c.b16 %v6742, %v6738
        %v6899 = vpack.c.b16 %v6747, %v6743
        %v6900 = vpack.c.b16 %v6748, %v6744
        %v6901 = vpack.c.b16 %v6749, %v6745
        %v6902 = vpack.c.b16 %v6750, %v6746
        %v6903 = vpack.c.b16 %v6755, %v6751
        %v6904 = vpack.c.b16 %v6756, %v6752
        %v6905 = vpack.c.b16 %v6757, %v6753
        %v6906 = vpack.c.b16 %v6758, %v6754
        %v6907 = vpack.c.b16 %v6763, %v6759
        %v6908 = vpack.c.b16 %v6764, %v6760
        %v6909 = vpack.c.b16 %v6765, %v6761
        %v6910 = vpack.c.b16 %v6766, %v6762
        %v6911 = vpack.c.b16 %v6771, %v6767
        %v6912 = vpack.c.b16 %v6772, %v6768
        %v6913 = vpack.c.b16 %v6773, %v6769
        %v6914 = vpack.c.b16 %v6774, %v6770
        %v6915 = vpack.c.b16 %v6779, %v6775
        %v6916 = vpack.c.b16 %v6780, %v6776
        %v6917 = vpack.c.b16 %v6781, %v6777
        %v6918 = vpack.c.b16 %v6782, %v6778
        %v6919 = vpack.c.b16 %v6787, %v6783
        %v6920 = vpack.c.b16 %v6788, %v6784
        %v6921 = vpack.c.b16 %v6789, %v6785
        %v6922 = vpack.c.b16 %v6790, %v6786
        %v6923 = vpack.c.b16 %v6795, %v6791
        %v6924 = vpack.c.b16 %v6796, %v6792
        %v6925 = vpack.c.b16 %v6797, %v6793
        %v6926 = vpack.c.b16 %v6798, %v6794
        %7055 = vmatprep.subr.bf16.mxu0 %v6828
        %7056 = vmatpush1.bf16.msra.mxu0 %v6827
        %7057 = vmatprep.subr.bf16.mxu0 %v6824
        %7058 = vmatpush1.bf16.msra.mxu0 %v6823
        %7059 = vmatprep.subr.bf16.mxu0 %v6820
        %7060 = vmatpush1.bf16.msra.mxu0 %v6819
        %7061 = vmatprep.subr.bf16.mxu0 %v6816
        %7062 = vmatpush1.bf16.msra.mxu0 %v6815
        %7063 = vmatprep.subr.bf16.mxu0 %v6812
        %7064 = vmatpush1.bf16.msra.mxu0 %v6811
        %7065 = vmatprep.subr.bf16.mxu0 %v6808
        %7066 = vmatpush1.bf16.msra.mxu0 %v6807
        %7067 = vmatprep.subr.bf16.mxu0 %v6804
        %7068 = vmatpush1.bf16.msra.mxu0 %v6803
        %7069 = vmatprep.subr.bf16.mxu0 %v6800
        %7070 = vmatpush1.bf16.msra.mxu0 %v6799
        %7071 = vmatprep.subr.bf16.mxu0 %v6860
        %7072 = vmatpush2.bf16.msra.mxu0 %v6859
        %7073 = vmatprep.subr.bf16.mxu0 %v6856
        %7074 = vmatpush2.bf16.msra.mxu0 %v6855
        %7075 = vmatprep.subr.bf16.mxu0 %v6852
        %7076 = vmatpush2.bf16.msra.mxu0 %v6851
        %7077 = vmatprep.subr.bf16.mxu0 %v6848
        %7078 = vmatpush2.bf16.msra.mxu0 %v6847
        %7079 = vmatprep.subr.bf16.mxu0 %v6844
        %7080 = vmatpush2.bf16.msra.mxu0 %v6843
        %7081 = vmatprep.subr.bf16.mxu0 %v6840
        %7082 = vmatpush2.bf16.msra.mxu0 %v6839
        %7083 = vmatprep.subr.bf16.mxu0 %v6836
        %7084 = vmatpush2.bf16.msra.mxu0 %v6835
        %7085 = vmatprep.subr.bf16.mxu0 %v6832
        %7086 = vmatpush2.bf16.msra.mxu0 %v6831
        %7087 = vmatprep.mubr.bf16.mxu0 %v6234
        %7088 = vmatmul.mubr.bf16.gmra.mxu0 %v6233
        %v7089 = vpop.f32.mrf.mxu0
        %v7090 = vadd.f32 %v6398, %v7089
        %v7091 = vpop.f32.mrf.mxu0
        %v7092 = vadd.f32 %v6402, %v7091
        %v7093 = vpop.f32.mrf.mxu0
        %v7094 = vadd.f32 %v6398, %v7093
        %v7095 = vpop.f32.mrf.mxu0
        %v7096 = vadd.f32 %v6402, %v7095
        %7097 = vmatprep.mubr.bf16.mxu0 %v6238
        %7098 = vmatmul.mubr.bf16.gmra.mxu0 %v6237
        %v7099 = vpop.f32.mrf.mxu0
        %v7100 = vadd.f32 %v6398, %v7099
        %v7101 = vpop.f32.mrf.mxu0
        %v7102 = vadd.f32 %v6402, %v7101
        %v7103 = vpop.f32.mrf.mxu0
        %v7104 = vadd.f32 %v6398, %v7103
        %v7105 = vpop.f32.mrf.mxu0
        %v7106 = vadd.f32 %v6402, %v7105
        %7107 = vmatprep.mubr.bf16.mxu0 %v6242
        %7108 = vmatmul.mubr.bf16.gmra.mxu0 %v6241
        %v7109 = vpop.f32.mrf.mxu0
        %v7110 = vadd.f32 %v6398, %v7109
        %v7111 = vpop.f32.mrf.mxu0
        %v7112 = vadd.f32 %v6402, %v7111
        %v7113 = vpop.f32.mrf.mxu0
        %v7114 = vadd.f32 %v6398, %v7113
        %v7115 = vpop.f32.mrf.mxu0
        %v7116 = vadd.f32 %v6402, %v7115
        %7117 = vmatprep.mubr.bf16.mxu0 %v6246
        %7118 = vmatmul.mubr.bf16.gmra.mxu0 %v6245
        %v7119 = vpop.f32.mrf.mxu0
        %v7120 = vadd.f32 %v6398, %v7119
        %v7121 = vpop.f32.mrf.mxu0
        %v7122 = vadd.f32 %v6402, %v7121
        %v7123 = vpop.f32.mrf.mxu0
        %v7124 = vadd.f32 %v6398, %v7123
        %v7125 = vpop.f32.mrf.mxu0
        %v7126 = vadd.f32 %v6402, %v7125
        %7127 = vmatprep.mubr.bf16.mxu0 %v6250
        %7128 = vmatmul.mubr.bf16.gmra.mxu0 %v6249
        %v7129 = vpop.f32.mrf.mxu0
        %v7130 = vadd.f32 %v6398, %v7129
        %v7131 = vpop.f32.mrf.mxu0
        %v7132 = vadd.f32 %v6402, %v7131
        %v7133 = vpop.f32.mrf.mxu0
        %v7134 = vadd.f32 %v6398, %v7133
        %v7135 = vpop.f32.mrf.mxu0
        %v7136 = vadd.f32 %v6402, %v7135
        %7137 = vmatprep.mubr.bf16.mxu0 %v6254
        %7138 = vmatmul.mubr.bf16.gmra.mxu0 %v6253
        %v7139 = vpop.f32.mrf.mxu0
        %v7140 = vadd.f32 %v6398, %v7139
        %v7141 = vpop.f32.mrf.mxu0
        %v7142 = vadd.f32 %v6402, %v7141
        %v7143 = vpop.f32.mrf.mxu0
        %v7144 = vadd.f32 %v6398, %v7143
        %v7145 = vpop.f32.mrf.mxu0
        %v7146 = vadd.f32 %v6402, %v7145
        %7147 = vmatprep.mubr.bf16.mxu0 %v6258
        %7148 = vmatmul.mubr.bf16.gmra.mxu0 %v6257
        %v7149 = vpop.f32.mrf.mxu0
        %v7150 = vadd.f32 %v6398, %v7149
        %v7151 = vpop.f32.mrf.mxu0
        %v7152 = vadd.f32 %v6402, %v7151
        %v7153 = vpop.f32.mrf.mxu0
        %v7154 = vadd.f32 %v6398, %v7153
        %v7155 = vpop.f32.mrf.mxu0
        %v7156 = vadd.f32 %v6402, %v7155
        %7157 = vmatprep.mubr.bf16.mxu0 %v6262
        %7158 = vmatmul.mubr.bf16.gmra.mxu0 %v6261
        %v7159 = vpop.f32.mrf.mxu0
        %v7160 = vadd.f32 %v6398, %v7159
        %v7161 = vpop.f32.mrf.mxu0
        %v7162 = vadd.f32 %v6402, %v7161
        %v7163 = vpop.f32.mrf.mxu0
        %v7164 = vadd.f32 %v6398, %v7163
        %v7165 = vpop.f32.mrf.mxu0
        %v7166 = vadd.f32 %v6402, %v7165
        %7167 = vdwg.mxu0
        %7168 = vmatprep.subr.bf16.mxu0 %v6892
        %7169 = vmatpush1.bf16.msra.mxu0 %v6891
        %7170 = vmatprep.subr.bf16.mxu0 %v6888
        %7171 = vmatpush1.bf16.msra.mxu0 %v6887
        %7172 = vmatprep.subr.bf16.mxu0 %v6884
        %7173 = vmatpush1.bf16.msra.mxu0 %v6883
        %7174 = vmatprep.subr.bf16.mxu0 %v6880
        %7175 = vmatpush1.bf16.msra.mxu0 %v6879
        %7176 = vmatprep.subr.bf16.mxu0 %v6876
        %7177 = vmatpush1.bf16.msra.mxu0 %v6875
        %7178 = vmatprep.subr.bf16.mxu0 %v6872
        %7179 = vmatpush1.bf16.msra.mxu0 %v6871
        %7180 = vmatprep.subr.bf16.mxu0 %v6868
        %7181 = vmatpush1.bf16.msra.mxu0 %v6867
        %7182 = vmatprep.subr.bf16.mxu0 %v6864
        %7183 = vmatpush1.bf16.msra.mxu0 %v6863
        %7184 = vmatprep.subr.bf16.mxu0 %v6924
        %7185 = vmatpush2.bf16.msra.mxu0 %v6923
        %7186 = vmatprep.subr.bf16.mxu0 %v6920
        %7187 = vmatpush2.bf16.msra.mxu0 %v6919
        %7188 = vmatprep.subr.bf16.mxu0 %v6916
        %7189 = vmatpush2.bf16.msra.mxu0 %v6915
        %7190 = vmatprep.subr.bf16.mxu0 %v6912
        %7191 = vmatpush2.bf16.msra.mxu0 %v6911
        %7192 = vmatprep.subr.bf16.mxu0 %v6908
        %7193 = vmatpush2.bf16.msra.mxu0 %v6907
        %7194 = vmatprep.subr.bf16.mxu0 %v6904
        %7195 = vmatpush2.bf16.msra.mxu0 %v6903
        %7196 = vmatprep.subr.bf16.mxu0 %v6900
        %7197 = vmatpush2.bf16.msra.mxu0 %v6899
        %7198 = vmatprep.subr.bf16.mxu0 %v6896
        %7199 = vmatpush2.bf16.msra.mxu0 %v6895
        %7200 = vmatprep.mubr.bf16.mxu0 %v6236
        %7201 = vmatmul.mubr.bf16.gmra.mxu0 %v6235
        %v7202 = vpop.f32.mrf.mxu0
        %v7203 = vadd.f32 %v7090, %v7202
        %v7204 = vpop.f32.mrf.mxu0
        %v7205 = vadd.f32 %v7092, %v7204
        %v7206 = vpop.f32.mrf.mxu0
        %v7207 = vadd.f32 %v7094, %v7206
        %v7208 = vpop.f32.mrf.mxu0
        %v7209 = vadd.f32 %v7096, %v7208
        %7210 = vmatprep.mubr.bf16.mxu0 %v6240
        %7211 = vmatmul.mubr.bf16.gmra.mxu0 %v6239
        %v7212 = vpop.f32.mrf.mxu0
        %v7213 = vadd.f32 %v7100, %v7212
        %v7214 = vpop.f32.mrf.mxu0
        %v7215 = vadd.f32 %v7102, %v7214
        %v7216 = vpop.f32.mrf.mxu0
        %v7217 = vadd.f32 %v7104, %v7216
        %v7218 = vpop.f32.mrf.mxu0
        %v7219 = vadd.f32 %v7106, %v7218
        %7220 = vmatprep.mubr.bf16.mxu0 %v6244
        %7221 = vmatmul.mubr.bf16.gmra.mxu0 %v6243
        %v7222 = vpop.f32.mrf.mxu0
        %v7223 = vadd.f32 %v7110, %v7222
        %v7224 = vpop.f32.mrf.mxu0
        %v7225 = vadd.f32 %v7112, %v7224
        %v7226 = vpop.f32.mrf.mxu0
        %v7227 = vadd.f32 %v7114, %v7226
        %v7228 = vpop.f32.mrf.mxu0
        %v7229 = vadd.f32 %v7116, %v7228
        %7230 = vmatprep.mubr.bf16.mxu0 %v6248
        %7231 = vmatmul.mubr.bf16.gmra.mxu0 %v6247
        %v7232 = vpop.f32.mrf.mxu0
        %v7233 = vadd.f32 %v7120, %v7232
        %v7234 = vpop.f32.mrf.mxu0
        %v7235 = vadd.f32 %v7122, %v7234
        %v7236 = vpop.f32.mrf.mxu0
        %v7237 = vadd.f32 %v7124, %v7236
        %v7238 = vpop.f32.mrf.mxu0
        %v7239 = vadd.f32 %v7126, %v7238
        %7240 = vmatprep.mubr.bf16.mxu0 %v6252
        %7241 = vmatmul.mubr.bf16.gmra.mxu0 %v6251
        %v7242 = vpop.f32.mrf.mxu0
        %v7243 = vadd.f32 %v7130, %v7242
        %v7244 = vpop.f32.mrf.mxu0
        %v7245 = vadd.f32 %v7132, %v7244
        %v7246 = vpop.f32.mrf.mxu0
        %v7247 = vadd.f32 %v7134, %v7246
        %v7248 = vpop.f32.mrf.mxu0
        %v7249 = vadd.f32 %v7136, %v7248
        %7250 = vmatprep.mubr.bf16.mxu0 %v6256
        %7251 = vmatmul.mubr.bf16.gmra.mxu0 %v6255
        %v7252 = vpop.f32.mrf.mxu0
        %v7253 = vadd.f32 %v7140, %v7252
        %v7254 = vpop.f32.mrf.mxu0
        %v7255 = vadd.f32 %v7142, %v7254
        %v7256 = vpop.f32.mrf.mxu0
        %v7257 = vadd.f32 %v7144, %v7256
        %v7258 = vpop.f32.mrf.mxu0
        %v7259 = vadd.f32 %v7146, %v7258
        %7260 = vmatprep.mubr.bf16.mxu0 %v6260
        %7261 = vmatmul.mubr.bf16.gmra.mxu0 %v6259
        %v7262 = vpop.f32.mrf.mxu0
        %v7263 = vadd.f32 %v7150, %v7262
        %v7264 = vpop.f32.mrf.mxu0
        %v7265 = vadd.f32 %v7152, %v7264
        %v7266 = vpop.f32.mrf.mxu0
        %v7267 = vadd.f32 %v7154, %v7266
        %v7268 = vpop.f32.mrf.mxu0
        %v7269 = vadd.f32 %v7156, %v7268
        %7270 = vmatprep.mubr.bf16.mxu0 %v6264
        %7271 = vmatmul.mubr.bf16.gmra.mxu0 %v6263
        %v7272 = vpop.f32.mrf.mxu0
        %v7273 = vadd.f32 %v7160, %v7272
        %v7274 = vpop.f32.mrf.mxu0
        %v7275 = vadd.f32 %v7162, %v7274
        %v7276 = vpop.f32.mrf.mxu0
        %v7277 = vadd.f32 %v7164, %v7276
        %v7278 = vpop.f32.mrf.mxu0
        %v7279 = vadd.f32 %v7166, %v7278
        %7280 = vdwg.mxu0
        %7281 = vmatprep.subr.bf16.mxu0 %v6830
        %7282 = vmatpush1.bf16.msra.mxu0 %v6829
        %7283 = vmatprep.subr.bf16.mxu0 %v6826
        %7284 = vmatpush1.bf16.msra.mxu0 %v6825
        %7285 = vmatprep.subr.bf16.mxu0 %v6822
        %7286 = vmatpush1.bf16.msra.mxu0 %v6821
        %7287 = vmatprep.subr.bf16.mxu0 %v6818
        %7288 = vmatpush1.bf16.msra.mxu0 %v6817
        %7289 = vmatprep.subr.bf16.mxu0 %v6814
        %7290 = vmatpush1.bf16.msra.mxu0 %v6813
        %7291 = vmatprep.subr.bf16.mxu0 %v6810
        %7292 = vmatpush1.bf16.msra.mxu0 %v6809
        %7293 = vmatprep.subr.bf16.mxu0 %v6806
        %7294 = vmatpush1.bf16.msra.mxu0 %v6805
        %7295 = vmatprep.subr.bf16.mxu0 %v6802
        %7296 = vmatpush1.bf16.msra.mxu0 %v6801
        %7297 = vmatprep.subr.bf16.mxu0 %v6862
        %7298 = vmatpush2.bf16.msra.mxu0 %v6861
        %7299 = vmatprep.subr.bf16.mxu0 %v6858
        %7300 = vmatpush2.bf16.msra.mxu0 %v6857
        %7301 = vmatprep.subr.bf16.mxu0 %v6854
        %7302 = vmatpush2.bf16.msra.mxu0 %v6853
        %7303 = vmatprep.subr.bf16.mxu0 %v6850
        %7304 = vmatpush2.bf16.msra.mxu0 %v6849
        %7305 = vmatprep.subr.bf16.mxu0 %v6846
        %7306 = vmatpush2.bf16.msra.mxu0 %v6845
        %7307 = vmatprep.subr.bf16.mxu0 %v6842
        %7308 = vmatpush2.bf16.msra.mxu0 %v6841
        %7309 = vmatprep.subr.bf16.mxu0 %v6838
        %7310 = vmatpush2.bf16.msra.mxu0 %v6837
        %7311 = vmatprep.subr.bf16.mxu0 %v6834
        %7312 = vmatpush2.bf16.msra.mxu0 %v6833
        %7313 = vmatprep.mubr.bf16.mxu0 %v6234
        %7314 = vmatmul.mubr.bf16.gmra.mxu0 %v6233
        %v7315 = vpop.f32.mrf.mxu0
        %v7316 = vadd.f32 %v6406, %v7315
        %v7317 = vpop.f32.mrf.mxu0
        %v7318 = vadd.f32 %v6410, %v7317
        %v7319 = vpop.f32.mrf.mxu0
        %v7320 = vadd.f32 %v6406, %v7319
        %v7321 = vpop.f32.mrf.mxu0
        %v7322 = vadd.f32 %v6410, %v7321
        %7323 = vmatprep.mubr.bf16.mxu0 %v6238
        %7324 = vmatmul.mubr.bf16.gmra.mxu0 %v6237
        %v7325 = vpop.f32.mrf.mxu0
        %v7326 = vadd.f32 %v6406, %v7325
        %v7327 = vpop.f32.mrf.mxu0
        %v7328 = vadd.f32 %v6410, %v7327
        %v7329 = vpop.f32.mrf.mxu0
        %v7330 = vadd.f32 %v6406, %v7329
        %v7331 = vpop.f32.mrf.mxu0
        %v7332 = vadd.f32 %v6410, %v7331
        %7333 = vmatprep.mubr.bf16.mxu0 %v6242
        %7334 = vmatmul.mubr.bf16.gmra.mxu0 %v6241
        %v7335 = vpop.f32.mrf.mxu0
        %v7336 = vadd.f32 %v6406, %v7335
        %v7337 = vpop.f32.mrf.mxu0
        %v7338 = vadd.f32 %v6410, %v7337
        %v7339 = vpop.f32.mrf.mxu0
        %v7340 = vadd.f32 %v6406, %v7339
        %v7341 = vpop.f32.mrf.mxu0
        %v7342 = vadd.f32 %v6410, %v7341
        %7343 = vmatprep.mubr.bf16.mxu0 %v6246
        %7344 = vmatmul.mubr.bf16.gmra.mxu0 %v6245
        %v7345 = vpop.f32.mrf.mxu0
        %v7346 = vadd.f32 %v6406, %v7345
        %v7347 = vpop.f32.mrf.mxu0
        %v7348 = vadd.f32 %v6410, %v7347
        %v7349 = vpop.f32.mrf.mxu0
        %v7350 = vadd.f32 %v6406, %v7349
        %v7351 = vpop.f32.mrf.mxu0
        %v7352 = vadd.f32 %v6410, %v7351
        %7353 = vmatprep.mubr.bf16.mxu0 %v6250
        %7354 = vmatmul.mubr.bf16.gmra.mxu0 %v6249
        %v7355 = vpop.f32.mrf.mxu0
        %v7356 = vadd.f32 %v6406, %v7355
        %v7357 = vpop.f32.mrf.mxu0
        %v7358 = vadd.f32 %v6410, %v7357
        %v7359 = vpop.f32.mrf.mxu0
        %v7360 = vadd.f32 %v6406, %v7359
        %v7361 = vpop.f32.mrf.mxu0
        %v7362 = vadd.f32 %v6410, %v7361
        %7363 = vmatprep.mubr.bf16.mxu0 %v6254
        %7364 = vmatmul.mubr.bf16.gmra.mxu0 %v6253
        %v7365 = vpop.f32.mrf.mxu0
        %v7366 = vadd.f32 %v6406, %v7365
        %v7367 = vpop.f32.mrf.mxu0
        %v7368 = vadd.f32 %v6410, %v7367
        %v7369 = vpop.f32.mrf.mxu0
        %v7370 = vadd.f32 %v6406, %v7369
        %v7371 = vpop.f32.mrf.mxu0
        %v7372 = vadd.f32 %v6410, %v7371
        %7373 = vmatprep.mubr.bf16.mxu0 %v6258
        %7374 = vmatmul.mubr.bf16.gmra.mxu0 %v6257
        %v7375 = vpop.f32.mrf.mxu0
        %v7376 = vadd.f32 %v6406, %v7375
        %v7377 = vpop.f32.mrf.mxu0
        %v7378 = vadd.f32 %v6410, %v7377
        %v7379 = vpop.f32.mrf.mxu0
        %v7380 = vadd.f32 %v6406, %v7379
        %v7381 = vpop.f32.mrf.mxu0
        %v7382 = vadd.f32 %v6410, %v7381
        %7383 = vmatprep.mubr.bf16.mxu0 %v6262
        %7384 = vmatmul.mubr.bf16.gmra.mxu0 %v6261
        %v7385 = vpop.f32.mrf.mxu0
        %v7386 = vadd.f32 %v6406, %v7385
        %v7387 = vpop.f32.mrf.mxu0
        %v7388 = vadd.f32 %v6410, %v7387
        %v7389 = vpop.f32.mrf.mxu0
        %v7390 = vadd.f32 %v6406, %v7389
        %v7391 = vpop.f32.mrf.mxu0
        %v7392 = vadd.f32 %v6410, %v7391
        %7393 = vdwg.mxu0
        %7394 = vmatprep.subr.bf16.mxu0 %v6894
        %7395 = vmatpush1.bf16.msra.mxu0 %v6893
        %7396 = vmatprep.subr.bf16.mxu0 %v6890
        %7397 = vmatpush1.bf16.msra.mxu0 %v6889
        %7398 = vmatprep.subr.bf16.mxu0 %v6886
        %7399 = vmatpush1.bf16.msra.mxu0 %v6885
        %7400 = vmatprep.subr.bf16.mxu0 %v6882
        %7401 = vmatpush1.bf16.msra.mxu0 %v6881
        %7402 = vmatprep.subr.bf16.mxu0 %v6878
        %7403 = vmatpush1.bf16.msra.mxu0 %v6877
        %7404 = vmatprep.subr.bf16.mxu0 %v6874
        %7405 = vmatpush1.bf16.msra.mxu0 %v6873
        %7406 = vmatprep.subr.bf16.mxu0 %v6870
        %7407 = vmatpush1.bf16.msra.mxu0 %v6869
        %7408 = vmatprep.subr.bf16.mxu0 %v6866
        %7409 = vmatpush1.bf16.msra.mxu0 %v6865
        %7410 = vmatprep.subr.bf16.mxu0 %v6926
        %7411 = vmatpush2.bf16.msra.mxu0 %v6925
        %7412 = vmatprep.subr.bf16.mxu0 %v6922
        %7413 = vmatpush2.bf16.msra.mxu0 %v6921
        %7414 = vmatprep.subr.bf16.mxu0 %v6918
        %7415 = vmatpush2.bf16.msra.mxu0 %v6917
        %7416 = vmatprep.subr.bf16.mxu0 %v6914
        %7417 = vmatpush2.bf16.msra.mxu0 %v6913
        %7418 = vmatprep.subr.bf16.mxu0 %v6910
        %7419 = vmatpush2.bf16.msra.mxu0 %v6909
        %7420 = vmatprep.subr.bf16.mxu0 %v6906
        %7421 = vmatpush2.bf16.msra.mxu0 %v6905
        %7422 = vmatprep.subr.bf16.mxu0 %v6902
        %7423 = vmatpush2.bf16.msra.mxu0 %v6901
        %7424 = vmatprep.subr.bf16.mxu0 %v6898
        %7425 = vmatpush2.bf16.msra.mxu0 %v6897
        %7426 = vmatprep.mubr.bf16.mxu0 %v6236
        %7427 = vmatmul.mubr.bf16.gmra.mxu0 %v6235
        %v7428 = vpop.f32.mrf.mxu0
        %v7429 = vadd.f32 %v7316, %v7428
        %v7430 = vpop.f32.mrf.mxu0
        %v7431 = vadd.f32 %v7318, %v7430
        %v7432 = vpop.f32.mrf.mxu0
        %v7433 = vadd.f32 %v7320, %v7432
        %v7434 = vpop.f32.mrf.mxu0
        %v7435 = vadd.f32 %v7322, %v7434
        %7436 = vmatprep.mubr.bf16.mxu0 %v6240
        %7437 = vmatmul.mubr.bf16.gmra.mxu0 %v6239
        %v7438 = vpop.f32.mrf.mxu0
        %v7439 = vadd.f32 %v7326, %v7438
        %v7440 = vpop.f32.mrf.mxu0
        %v7441 = vadd.f32 %v7328, %v7440
        %v7442 = vpop.f32.mrf.mxu0
        %v7443 = vadd.f32 %v7330, %v7442
        %v7444 = vpop.f32.mrf.mxu0
        %v7445 = vadd.f32 %v7332, %v7444
        %7446 = vmatprep.mubr.bf16.mxu0 %v6244
        %7447 = vmatmul.mubr.bf16.gmra.mxu0 %v6243
        %v7448 = vpop.f32.mrf.mxu0
        %v7449 = vadd.f32 %v7336, %v7448
        %v7450 = vpop.f32.mrf.mxu0
        %v7451 = vadd.f32 %v7338, %v7450
        %v7452 = vpop.f32.mrf.mxu0
        %v7453 = vadd.f32 %v7340, %v7452
        %v7454 = vpop.f32.mrf.mxu0
        %v7455 = vadd.f32 %v7342, %v7454
        %7456 = vmatprep.mubr.bf16.mxu0 %v6248
        %7457 = vmatmul.mubr.bf16.gmra.mxu0 %v6247
        %v7458 = vpop.f32.mrf.mxu0
        %v7459 = vadd.f32 %v7346, %v7458
        %v7460 = vpop.f32.mrf.mxu0
        %v7461 = vadd.f32 %v7348, %v7460
        %v7462 = vpop.f32.mrf.mxu0
        %v7463 = vadd.f32 %v7350, %v7462
        %v7464 = vpop.f32.mrf.mxu0
        %v7465 = vadd.f32 %v7352, %v7464
        %7466 = vmatprep.mubr.bf16.mxu0 %v6252
        %7467 = vmatmul.mubr.bf16.gmra.mxu0 %v6251
        %v7468 = vpop.f32.mrf.mxu0
        %v7469 = vadd.f32 %v7356, %v7468
        %v7470 = vpop.f32.mrf.mxu0
        %v7471 = vadd.f32 %v7358, %v7470
        %v7472 = vpop.f32.mrf.mxu0
        %v7473 = vadd.f32 %v7360, %v7472
        %v7474 = vpop.f32.mrf.mxu0
        %v7475 = vadd.f32 %v7362, %v7474
        %7476 = vmatprep.mubr.bf16.mxu0 %v6256
        %7477 = vmatmul.mubr.bf16.gmra.mxu0 %v6255
        %v7478 = vpop.f32.mrf.mxu0
        %v7479 = vadd.f32 %v7366, %v7478
        %v7480 = vpop.f32.mrf.mxu0
        %v7481 = vadd.f32 %v7368, %v7480
        %v7482 = vpop.f32.mrf.mxu0
        %v7483 = vadd.f32 %v7370, %v7482
        %v7484 = vpop.f32.mrf.mxu0
        %v7485 = vadd.f32 %v7372, %v7484
        %7486 = vmatprep.mubr.bf16.mxu0 %v6260
        %7487 = vmatmul.mubr.bf16.gmra.mxu0 %v6259
        %v7488 = vpop.f32.mrf.mxu0
        %v7489 = vadd.f32 %v7376, %v7488
        %v7490 = vpop.f32.mrf.mxu0
        %v7491 = vadd.f32 %v7378, %v7490
        %v7492 = vpop.f32.mrf.mxu0
        %v7493 = vadd.f32 %v7380, %v7492
        %v7494 = vpop.f32.mrf.mxu0
        %v7495 = vadd.f32 %v7382, %v7494
        %7496 = vmatprep.mubr.bf16.mxu0 %v6264
        %7497 = vmatmul.mubr.bf16.gmra.mxu0 %v6263
        %v7498 = vpop.f32.mrf.mxu0
        %v7499 = vadd.f32 %v7386, %v7498
        %v7500 = vpop.f32.mrf.mxu0
        %v7501 = vadd.f32 %v7388, %v7500
        %v7502 = vpop.f32.mrf.mxu0
        %v7503 = vadd.f32 %v7390, %v7502
        %v7504 = vpop.f32.mrf.mxu0
        %v7505 = vadd.f32 %v7392, %v7504
        %7506 = vdwg.mxu0
        %v7507 = vmax.f32 %v7203, 0.0
        %v7508 = vmax.f32 %v7205, 0.0
        %v7509 = vmax.f32 %v7429, 0.0
        %v7510 = vmax.f32 %v7431, 0.0
        %v7511 = vmax.f32 %v7207, 0.0
        %v7512 = vmax.f32 %v7209, 0.0
        %v7513 = vmax.f32 %v7433, 0.0
        %v7514 = vmax.f32 %v7435, 0.0
        %v7515 = vmax.f32 %v7213, 0.0
        %v7516 = vmax.f32 %v7215, 0.0
        %v7517 = vmax.f32 %v7439, 0.0
        %v7518 = vmax.f32 %v7441, 0.0
        %v7519 = vmax.f32 %v7217, 0.0
        %v7520 = vmax.f32 %v7219, 0.0
        %v7521 = vmax.f32 %v7443, 0.0
        %v7522 = vmax.f32 %v7445, 0.0
        %v7523 = vmax.f32 %v7223, 0.0
        %v7524 = vmax.f32 %v7225, 0.0
        %v7525 = vmax.f32 %v7449, 0.0
        %v7526 = vmax.f32 %v7451, 0.0
        %v7527 = vmax.f32 %v7227, 0.0
        %v7528 = vmax.f32 %v7229, 0.0
        %v7529 = vmax.f32 %v7453, 0.0
        %v7530 = vmax.f32 %v7455, 0.0
        %v7531 = vmax.f32 %v7233, 0.0
        %v7532 = vmax.f32 %v7235, 0.0
        %v7533 = vmax.f32 %v7459, 0.0
        %v7534 = vmax.f32 %v7461, 0.0
        %v7535 = vmax.f32 %v7237, 0.0
        %v7536 = vmax.f32 %v7239, 0.0
        %v7537 = vmax.f32 %v7463, 0.0
        %v7538 = vmax.f32 %v7465, 0.0
        %v7539 = vmax.f32 %v7243, 0.0
        %v7540 = vmax.f32 %v7245, 0.0
        %v7541 = vmax.f32 %v7469, 0.0
        %v7542 = vmax.f32 %v7471, 0.0
        %v7543 = vmax.f32 %v7247, 0.0
        %v7544 = vmax.f32 %v7249, 0.0
        %v7545 = vmax.f32 %v7473, 0.0
        %v7546 = vmax.f32 %v7475, 0.0
        %v7547 = vmax.f32 %v7253, 0.0
        %v7548 = vmax.f32 %v7255, 0.0
        %v7549 = vmax.f32 %v7479, 0.0
        %v7550 = vmax.f32 %v7481, 0.0
        %v7551 = vmax.f32 %v7257, 0.0
        %v7552 = vmax.f32 %v7259, 0.0
        %v7553 = vmax.f32 %v7483, 0.0
        %v7554 = vmax.f32 %v7485, 0.0
        %v7555 = vmax.f32 %v7263, 0.0
        %v7556 = vmax.f32 %v7265, 0.0
        %v7557 = vmax.f32 %v7489, 0.0
        %v7558 = vmax.f32 %v7491, 0.0
        %v7559 = vmax.f32 %v7267, 0.0
        %v7560 = vmax.f32 %v7269, 0.0
        %v7561 = vmax.f32 %v7493, 0.0
        %v7562 = vmax.f32 %v7495, 0.0
        %v7563 = vmax.f32 %v7273, 0.0
        %v7564 = vmax.f32 %v7275, 0.0
        %v7565 = vmax.f32 %v7499, 0.0
        %v7566 = vmax.f32 %v7501, 0.0
        %v7567 = vmax.f32 %v7277, 0.0
        %v7568 = vmax.f32 %v7279, 0.0
        %v7569 = vmax.f32 %v7503, 0.0
        %v7570 = vmax.f32 %v7505, 0.0
        %v7571 = vpack.c.bf16 %v7511, %v7507
        %v7572 = vpack.c.bf16 %v7512, %v7508
        %v7573 = vpack.c.bf16 %v7513, %v7509
        %v7574 = vpack.c.bf16 %v7514, %v7510
        %v7575 = vpack.c.bf16 %v7519, %v7515
        %v7576 = vpack.c.bf16 %v7520, %v7516
        %v7577 = vpack.c.bf16 %v7521, %v7517
        %v7578 = vpack.c.bf16 %v7522, %v7518
        %v7579 = vpack.c.bf16 %v7527, %v7523
        %v7580 = vpack.c.bf16 %v7528, %v7524
        %v7581 = vpack.c.bf16 %v7529, %v7525
        %v7582 = vpack.c.bf16 %v7530, %v7526
        %v7583 = vpack.c.bf16 %v7535, %v7531
        %v7584 = vpack.c.bf16 %v7536, %v7532
        %v7585 = vpack.c.bf16 %v7537, %v7533
        %v7586 = vpack.c.bf16 %v7538, %v7534
        %v7587 = vpack.c.bf16 %v7543, %v7539
        %v7588 = vpack.c.bf16 %v7544, %v7540
        %v7589 = vpack.c.bf16 %v7545, %v7541
        %v7590 = vpack.c.bf16 %v7546, %v7542
        %v7591 = vpack.c.bf16 %v7551, %v7547
        %v7592 = vpack.c.bf16 %v7552, %v7548
        %v7593 = vpack.c.bf16 %v7553, %v7549
        %v7594 = vpack.c.bf16 %v7554, %v7550
        %v7595 = vpack.c.bf16 %v7559, %v7555
        %v7596 = vpack.c.bf16 %v7560, %v7556
        %v7597 = vpack.c.bf16 %v7561, %v7557
        %v7598 = vpack.c.bf16 %v7562, %v7558
        %v7599 = vpack.c.bf16 %v7567, %v7563
        %v7600 = vpack.c.bf16 %v7568, %v7564
        %v7601 = vpack.c.bf16 %v7569, %v7565
        %v7602 = vpack.c.bf16 %v7570, %v7566
        %v7603 = vld [vmem:[#allocation16] sm:$0xff]
        %v7604 = vld [vmem:[#allocation16 + $0x8] sm:$0xff]
        %v7605 = vld [vmem:[#allocation16 + $0x10] sm:$0xff]
        %v7606 = vld [vmem:[#allocation16 + $0x18] sm:$0xff]
        %v7607 = vld [vmem:[#allocation16 + $0x20] sm:$0xff]
        %v7608 = vld [vmem:[#allocation16 + $0x28] sm:$0xff]
        %v7609 = vld [vmem:[#allocation16 + $0x30] sm:$0xff]
        %v7610 = vld [vmem:[#allocation16 + $0x38] sm:$0xff]
        %v7611 = vld [vmem:[#allocation16 + $0x40] sm:$0xff]
        %v7612 = vld [vmem:[#allocation16 + $0x48] sm:$0xff]
        %v7613 = vld [vmem:[#allocation16 + $0x50] sm:$0xff]
        %v7614 = vld [vmem:[#allocation16 + $0x58] sm:$0xff]
        %v7615 = vld [vmem:[#allocation16 + $0x60] sm:$0xff]
        %v7616 = vld [vmem:[#allocation16 + $0x68] sm:$0xff]
        %v7617 = vld [vmem:[#allocation16 + $0x70] sm:$0xff]
        %v7618 = vld [vmem:[#allocation16 + $0x78] sm:$0xff]
        %v7619 = vld [vmem:[#allocation16 + $0x80] sm:$0xff]
        %v7620 = vld [vmem:[#allocation16 + $0x88] sm:$0xff]
        %v7621 = vld [vmem:[#allocation16 + $0x90] sm:$0xff]
        %v7622 = vld [vmem:[#allocation16 + $0x98] sm:$0xff]
        %v7623 = vld [vmem:[#allocation16 + $0xa0] sm:$0xff]
        %v7624 = vld [vmem:[#allocation16 + $0xa8] sm:$0xff]
        %v7625 = vld [vmem:[#allocation16 + $0xb0] sm:$0xff]
        %v7626 = vld [vmem:[#allocation16 + $0xb8] sm:$0xff]
        %v7627 = vld [vmem:[#allocation16 + $0xc0] sm:$0xff]
        %v7628 = vld [vmem:[#allocation16 + $0xc8] sm:$0xff]
        %v7629 = vld [vmem:[#allocation16 + $0xd0] sm:$0xff]
        %v7630 = vld [vmem:[#allocation16 + $0xd8] sm:$0xff]
        %v7631 = vld [vmem:[#allocation16 + $0xe0] sm:$0xff]
        %v7632 = vld [vmem:[#allocation16 + $0xe8] sm:$0xff]
        %v7633 = vld [vmem:[#allocation16 + $0xf0] sm:$0xff]
        %v7634 = vld [vmem:[#allocation16 + $0xf8] sm:$0xff]
        %v7635 = vld [vmem:[#allocation16 + $0x100] sm:$0xff]
        %v7636 = vld [vmem:[#allocation16 + $0x108] sm:$0xff]
        %v7637 = vld [vmem:[#allocation16 + $0x110] sm:$0xff]
        %v7638 = vld [vmem:[#allocation16 + $0x118] sm:$0xff]
        %v7639 = vld [vmem:[#allocation16 + $0x120] sm:$0xff]
        %v7640 = vld [vmem:[#allocation16 + $0x128] sm:$0xff]
        %v7641 = vld [vmem:[#allocation16 + $0x130] sm:$0xff]
        %v7642 = vld [vmem:[#allocation16 + $0x138] sm:$0xff]
        %v7643 = vld [vmem:[#allocation16 + $0x140] sm:$0xff]
        %v7644 = vld [vmem:[#allocation16 + $0x148] sm:$0xff]
        %v7645 = vld [vmem:[#allocation16 + $0x150] sm:$0xff]
        %v7646 = vld [vmem:[#allocation16 + $0x158] sm:$0xff]
        %v7647 = vld [vmem:[#allocation16 + $0x160] sm:$0xff]
        %v7648 = vld [vmem:[#allocation16 + $0x168] sm:$0xff]
        %v7649 = vld [vmem:[#allocation16 + $0x170] sm:$0xff]
        %v7650 = vld [vmem:[#allocation16 + $0x178] sm:$0xff]
        %v7651 = vld [vmem:[#allocation16 + $0x180] sm:$0xff]
        %v7652 = vld [vmem:[#allocation16 + $0x188] sm:$0xff]
        %v7653 = vld [vmem:[#allocation16 + $0x190] sm:$0xff]
        %v7654 = vld [vmem:[#allocation16 + $0x198] sm:$0xff]
        %v7655 = vld [vmem:[#allocation16 + $0x1a0] sm:$0xff]
        %v7656 = vld [vmem:[#allocation16 + $0x1a8] sm:$0xff]
        %v7657 = vld [vmem:[#allocation16 + $0x1b0] sm:$0xff]
        %v7658 = vld [vmem:[#allocation16 + $0x1b8] sm:$0xff]
        %v7659 = vld [vmem:[#allocation16 + $0x1c0] sm:$0xff]
        %v7660 = vld [vmem:[#allocation16 + $0x1c8] sm:$0xff]
        %v7661 = vld [vmem:[#allocation16 + $0x1d0] sm:$0xff]
        %v7662 = vld [vmem:[#allocation16 + $0x1d8] sm:$0xff]
        %v7663 = vld [vmem:[#allocation16 + $0x1e0] sm:$0xff]
        %v7664 = vld [vmem:[#allocation16 + $0x1e8] sm:$0xff]
        %v7665 = vld [vmem:[#allocation16 + $0x1f0] sm:$0xff]
        %v7666 = vld [vmem:[#allocation16 + $0x1f8] sm:$0xff]
        %v7667 = vld [vmem:[#allocation16 + $0x200] sm:$0xff]
        %v7668 = vld [vmem:[#allocation16 + $0x208] sm:$0xff]
        %v7669 = vld [vmem:[#allocation16 + $0x210] sm:$0xff]
        %v7670 = vld [vmem:[#allocation16 + $0x218] sm:$0xff]
        %v7671 = vld [vmem:[#allocation16 + $0x220] sm:$0xff]
        %v7672 = vld [vmem:[#allocation16 + $0x228] sm:$0xff]
        %v7673 = vld [vmem:[#allocation16 + $0x230] sm:$0xff]
        %v7674 = vld [vmem:[#allocation16 + $0x238] sm:$0xff]
        %v7675 = vld [vmem:[#allocation16 + $0x240] sm:$0xff]
        %v7676 = vld [vmem:[#allocation16 + $0x248] sm:$0xff]
        %v7677 = vld [vmem:[#allocation16 + $0x250] sm:$0xff]
        %v7678 = vld [vmem:[#allocation16 + $0x258] sm:$0xff]
        %v7679 = vld [vmem:[#allocation16 + $0x260] sm:$0xff]
        %v7680 = vld [vmem:[#allocation16 + $0x268] sm:$0xff]
        %v7681 = vld [vmem:[#allocation16 + $0x270] sm:$0xff]
        %v7682 = vld [vmem:[#allocation16 + $0x278] sm:$0xff]
        %v7683 = vld [vmem:[#allocation16 + $0x280] sm:$0xff]
        %v7684 = vld [vmem:[#allocation16 + $0x288] sm:$0xff]
        %v7685 = vld [vmem:[#allocation16 + $0x290] sm:$0xff]
        %v7686 = vld [vmem:[#allocation16 + $0x298] sm:$0xff]
        %v7687 = vld [vmem:[#allocation16 + $0x2a0] sm:$0xff]
        %v7688 = vld [vmem:[#allocation16 + $0x2a8] sm:$0xff]
        %v7689 = vld [vmem:[#allocation16 + $0x2b0] sm:$0xff]
        %v7690 = vld [vmem:[#allocation16 + $0x2b8] sm:$0xff]
        %v7691 = vld [vmem:[#allocation16 + $0x2c0] sm:$0xff]
        %v7692 = vld [vmem:[#allocation16 + $0x2c8] sm:$0xff]
        %v7693 = vld [vmem:[#allocation16 + $0x2d0] sm:$0xff]
        %v7694 = vld [vmem:[#allocation16 + $0x2d8] sm:$0xff]
        %v7695 = vld [vmem:[#allocation16 + $0x2e0] sm:$0xff]
        %v7696 = vld [vmem:[#allocation16 + $0x2e8] sm:$0xff]
        %v7697 = vld [vmem:[#allocation16 + $0x2f0] sm:$0xff]
        %v7698 = vld [vmem:[#allocation16 + $0x2f8] sm:$0xff]
        %v7699 = vld [vmem:[#allocation16 + $0x300] sm:$0xff]
        %v7700 = vld [vmem:[#allocation16 + $0x308] sm:$0xff]
        %v7701 = vld [vmem:[#allocation16 + $0x310] sm:$0xff]
        %v7702 = vld [vmem:[#allocation16 + $0x318] sm:$0xff]
        %v7703 = vld [vmem:[#allocation16 + $0x320] sm:$0xff]
        %v7704 = vld [vmem:[#allocation16 + $0x328] sm:$0xff]
        %v7705 = vld [vmem:[#allocation16 + $0x330] sm:$0xff]
        %v7706 = vld [vmem:[#allocation16 + $0x338] sm:$0xff]
        %v7707 = vld [vmem:[#allocation16 + $0x340] sm:$0xff]
        %v7708 = vld [vmem:[#allocation16 + $0x348] sm:$0xff]
        %v7709 = vld [vmem:[#allocation16 + $0x350] sm:$0xff]
        %v7710 = vld [vmem:[#allocation16 + $0x358] sm:$0xff]
        %v7711 = vld [vmem:[#allocation16 + $0x360] sm:$0xff]
        %v7712 = vld [vmem:[#allocation16 + $0x368] sm:$0xff]
        %v7713 = vld [vmem:[#allocation16 + $0x370] sm:$0xff]
        %v7714 = vld [vmem:[#allocation16 + $0x378] sm:$0xff]
        %v7715 = vld [vmem:[#allocation16 + $0x380] sm:$0xff]
        %v7716 = vld [vmem:[#allocation16 + $0x388] sm:$0xff]
        %v7717 = vld [vmem:[#allocation16 + $0x390] sm:$0xff]
        %v7718 = vld [vmem:[#allocation16 + $0x398] sm:$0xff]
        %v7719 = vld [vmem:[#allocation16 + $0x3a0] sm:$0xff]
        %v7720 = vld [vmem:[#allocation16 + $0x3a8] sm:$0xff]
        %v7721 = vld [vmem:[#allocation16 + $0x3b0] sm:$0xff]
        %v7722 = vld [vmem:[#allocation16 + $0x3b8] sm:$0xff]
        %v7723 = vld [vmem:[#allocation16 + $0x3c0] sm:$0xff]
        %v7724 = vld [vmem:[#allocation16 + $0x3c8] sm:$0xff]
        %v7725 = vld [vmem:[#allocation16 + $0x3d0] sm:$0xff]
        %v7726 = vld [vmem:[#allocation16 + $0x3d8] sm:$0xff]
        %v7727 = vld [vmem:[#allocation16 + $0x3e0] sm:$0xff]
        %v7728 = vld [vmem:[#allocation16 + $0x3e8] sm:$0xff]
        %v7729 = vld [vmem:[#allocation16 + $0x3f0] sm:$0xff]
        %v7730 = vld [vmem:[#allocation16 + $0x3f8] sm:$0xff]
        %v7731 = vld [vmem:[#allocation16 + $0x400] sm:$0xff]
        %v7732 = vld [vmem:[#allocation16 + $0x408] sm:$0xff]
        %v7733 = vld [vmem:[#allocation16 + $0x410] sm:$0xff]
        %v7734 = vld [vmem:[#allocation16 + $0x418] sm:$0xff]
        %v7735 = vld [vmem:[#allocation16 + $0x420] sm:$0xff]
        %v7736 = vld [vmem:[#allocation16 + $0x428] sm:$0xff]
        %v7737 = vld [vmem:[#allocation16 + $0x430] sm:$0xff]
        %v7738 = vld [vmem:[#allocation16 + $0x438] sm:$0xff]
        %v7739 = vld [vmem:[#allocation16 + $0x440] sm:$0xff]
        %v7740 = vld [vmem:[#allocation16 + $0x448] sm:$0xff]
        %v7741 = vld [vmem:[#allocation16 + $0x450] sm:$0xff]
        %v7742 = vld [vmem:[#allocation16 + $0x458] sm:$0xff]
        %v7743 = vld [vmem:[#allocation16 + $0x460] sm:$0xff]
        %v7744 = vld [vmem:[#allocation16 + $0x468] sm:$0xff]
        %v7745 = vld [vmem:[#allocation16 + $0x470] sm:$0xff]
        %v7746 = vld [vmem:[#allocation16 + $0x478] sm:$0xff]
        %v7747 = vld [vmem:[#allocation16 + $0x480] sm:$0xff]
        %v7748 = vld [vmem:[#allocation16 + $0x488] sm:$0xff]
        %v7749 = vld [vmem:[#allocation16 + $0x490] sm:$0xff]
        %v7750 = vld [vmem:[#allocation16 + $0x498] sm:$0xff]
        %v7751 = vld [vmem:[#allocation16 + $0x4a0] sm:$0xff]
        %v7752 = vld [vmem:[#allocation16 + $0x4a8] sm:$0xff]
        %v7753 = vld [vmem:[#allocation16 + $0x4b0] sm:$0xff]
        %v7754 = vld [vmem:[#allocation16 + $0x4b8] sm:$0xff]
        %v7755 = vld [vmem:[#allocation16 + $0x4c0] sm:$0xff]
        %v7756 = vld [vmem:[#allocation16 + $0x4c8] sm:$0xff]
        %v7757 = vld [vmem:[#allocation16 + $0x4d0] sm:$0xff]
        %v7758 = vld [vmem:[#allocation16 + $0x4d8] sm:$0xff]
        %v7759 = vld [vmem:[#allocation16 + $0x4e0] sm:$0xff]
        %v7760 = vld [vmem:[#allocation16 + $0x4e8] sm:$0xff]
        %v7761 = vld [vmem:[#allocation16 + $0x4f0] sm:$0xff]
        %v7762 = vld [vmem:[#allocation16 + $0x4f8] sm:$0xff]
        %v7763 = vld [vmem:[#allocation16 + $0x500] sm:$0xff]
        %v7764 = vld [vmem:[#allocation16 + $0x508] sm:$0xff]
        %v7765 = vld [vmem:[#allocation16 + $0x510] sm:$0xff]
        %v7766 = vld [vmem:[#allocation16 + $0x518] sm:$0xff]
        %v7767 = vld [vmem:[#allocation16 + $0x520] sm:$0xff]
        %v7768 = vld [vmem:[#allocation16 + $0x528] sm:$0xff]
        %v7769 = vld [vmem:[#allocation16 + $0x530] sm:$0xff]
        %v7770 = vld [vmem:[#allocation16 + $0x538] sm:$0xff]
        %v7771 = vld [vmem:[#allocation16 + $0x540] sm:$0xff]
        %v7772 = vld [vmem:[#allocation16 + $0x548] sm:$0xff]
        %v7773 = vld [vmem:[#allocation16 + $0x550] sm:$0xff]
        %v7774 = vld [vmem:[#allocation16 + $0x558] sm:$0xff]
        %v7775 = vld [vmem:[#allocation16 + $0x560] sm:$0xff]
        %v7776 = vld [vmem:[#allocation16 + $0x568] sm:$0xff]
        %v7777 = vld [vmem:[#allocation16 + $0x570] sm:$0xff]
        %v7778 = vld [vmem:[#allocation16 + $0x578] sm:$0xff]
        %v7779 = vld [vmem:[#allocation16 + $0x580] sm:$0xff]
        %v7780 = vld [vmem:[#allocation16 + $0x588] sm:$0xff]
        %v7781 = vld [vmem:[#allocation16 + $0x590] sm:$0xff]
        %v7782 = vld [vmem:[#allocation16 + $0x598] sm:$0xff]
        %v7783 = vld [vmem:[#allocation16 + $0x5a0] sm:$0xff]
        %v7784 = vld [vmem:[#allocation16 + $0x5a8] sm:$0xff]
        %v7785 = vld [vmem:[#allocation16 + $0x5b0] sm:$0xff]
        %v7786 = vld [vmem:[#allocation16 + $0x5b8] sm:$0xff]
        %v7787 = vld [vmem:[#allocation16 + $0x5c0] sm:$0xff]
        %v7788 = vld [vmem:[#allocation16 + $0x5c8] sm:$0xff]
        %v7789 = vld [vmem:[#allocation16 + $0x5d0] sm:$0xff]
        %v7790 = vld [vmem:[#allocation16 + $0x5d8] sm:$0xff]
        %v7791 = vld [vmem:[#allocation16 + $0x5e0] sm:$0xff]
        %v7792 = vld [vmem:[#allocation16 + $0x5e8] sm:$0xff]
        %v7793 = vld [vmem:[#allocation16 + $0x5f0] sm:$0xff]
        %v7794 = vld [vmem:[#allocation16 + $0x5f8] sm:$0xff]
        %v7795 = vld [vmem:[#allocation16 + $0x600] sm:$0xff]
        %v7796 = vld [vmem:[#allocation16 + $0x608] sm:$0xff]
        %v7797 = vld [vmem:[#allocation16 + $0x610] sm:$0xff]
        %v7798 = vld [vmem:[#allocation16 + $0x618] sm:$0xff]
        %v7799 = vld [vmem:[#allocation16 + $0x620] sm:$0xff]
        %v7800 = vld [vmem:[#allocation16 + $0x628] sm:$0xff]
        %v7801 = vld [vmem:[#allocation16 + $0x630] sm:$0xff]
        %v7802 = vld [vmem:[#allocation16 + $0x638] sm:$0xff]
        %v7803 = vld [vmem:[#allocation16 + $0x640] sm:$0xff]
        %v7804 = vld [vmem:[#allocation16 + $0x648] sm:$0xff]
        %v7805 = vld [vmem:[#allocation16 + $0x650] sm:$0xff]
        %v7806 = vld [vmem:[#allocation16 + $0x658] sm:$0xff]
        %v7807 = vld [vmem:[#allocation16 + $0x660] sm:$0xff]
        %v7808 = vld [vmem:[#allocation16 + $0x668] sm:$0xff]
        %v7809 = vld [vmem:[#allocation16 + $0x670] sm:$0xff]
        %v7810 = vld [vmem:[#allocation16 + $0x678] sm:$0xff]
        %v7811 = vld [vmem:[#allocation16 + $0x680] sm:$0xff]
        %v7812 = vld [vmem:[#allocation16 + $0x688] sm:$0xff]
        %v7813 = vld [vmem:[#allocation16 + $0x690] sm:$0xff]
        %v7814 = vld [vmem:[#allocation16 + $0x698] sm:$0xff]
        %v7815 = vld [vmem:[#allocation16 + $0x6a0] sm:$0xff]
        %v7816 = vld [vmem:[#allocation16 + $0x6a8] sm:$0xff]
        %v7817 = vld [vmem:[#allocation16 + $0x6b0] sm:$0xff]
        %v7818 = vld [vmem:[#allocation16 + $0x6b8] sm:$0xff]
        %v7819 = vld [vmem:[#allocation16 + $0x6c0] sm:$0xff]
        %v7820 = vld [vmem:[#allocation16 + $0x6c8] sm:$0xff]
        %v7821 = vld [vmem:[#allocation16 + $0x6d0] sm:$0xff]
        %v7822 = vld [vmem:[#allocation16 + $0x6d8] sm:$0xff]
        %v7823 = vld [vmem:[#allocation16 + $0x6e0] sm:$0xff]
        %v7824 = vld [vmem:[#allocation16 + $0x6e8] sm:$0xff]
        %v7825 = vld [vmem:[#allocation16 + $0x6f0] sm:$0xff]
        %v7826 = vld [vmem:[#allocation16 + $0x6f8] sm:$0xff]
        %v7827 = vld [vmem:[#allocation16 + $0x700] sm:$0xff]
        %v7828 = vld [vmem:[#allocation16 + $0x708] sm:$0xff]
        %v7829 = vld [vmem:[#allocation16 + $0x710] sm:$0xff]
        %v7830 = vld [vmem:[#allocation16 + $0x718] sm:$0xff]
        %v7831 = vld [vmem:[#allocation16 + $0x720] sm:$0xff]
        %v7832 = vld [vmem:[#allocation16 + $0x728] sm:$0xff]
        %v7833 = vld [vmem:[#allocation16 + $0x730] sm:$0xff]
        %v7834 = vld [vmem:[#allocation16 + $0x738] sm:$0xff]
        %v7835 = vld [vmem:[#allocation16 + $0x740] sm:$0xff]
        %v7836 = vld [vmem:[#allocation16 + $0x748] sm:$0xff]
        %v7837 = vld [vmem:[#allocation16 + $0x750] sm:$0xff]
        %v7838 = vld [vmem:[#allocation16 + $0x758] sm:$0xff]
        %v7839 = vld [vmem:[#allocation16 + $0x760] sm:$0xff]
        %v7840 = vld [vmem:[#allocation16 + $0x768] sm:$0xff]
        %v7841 = vld [vmem:[#allocation16 + $0x770] sm:$0xff]
        %v7842 = vld [vmem:[#allocation16 + $0x778] sm:$0xff]
        %v7843 = vld [vmem:[#allocation16 + $0x780] sm:$0xff]
        %v7844 = vld [vmem:[#allocation16 + $0x788] sm:$0xff]
        %v7845 = vld [vmem:[#allocation16 + $0x790] sm:$0xff]
        %v7846 = vld [vmem:[#allocation16 + $0x798] sm:$0xff]
        %v7847 = vld [vmem:[#allocation16 + $0x7a0] sm:$0xff]
        %v7848 = vld [vmem:[#allocation16 + $0x7a8] sm:$0xff]
        %v7849 = vld [vmem:[#allocation16 + $0x7b0] sm:$0xff]
        %v7850 = vld [vmem:[#allocation16 + $0x7b8] sm:$0xff]
        %v7851 = vld [vmem:[#allocation16 + $0x7c0] sm:$0xff]
        %v7852 = vld [vmem:[#allocation16 + $0x7c8] sm:$0xff]
        %v7853 = vld [vmem:[#allocation16 + $0x7d0] sm:$0xff]
        %v7854 = vld [vmem:[#allocation16 + $0x7d8] sm:$0xff]
        %v7855 = vld [vmem:[#allocation16 + $0x7e0] sm:$0xff]
        %v7856 = vld [vmem:[#allocation16 + $0x7e8] sm:$0xff]
        %v7857 = vld [vmem:[#allocation16 + $0x7f0] sm:$0xff]
        %v7858 = vld [vmem:[#allocation16 + $0x7f8] sm:$0xff]
        %v7859 = vld [vmem:[%s11] sm:$0xff]
        %v7861 = vlaneseq
        %v7862 = vshrl.u32 %v7861, 7
        %v7863 = vsub.s32 0, %v7862
        %v7864 = vrot.slane %v7859, %v7863
        %v7865 = vlaneseq
        %v7866 = vshrl.u32 %v7865, 7
        %v7867 = vsub.s32 1, %v7866
        %v7868 = vrot.slane %v7859, %v7867
        %v7869 = vlaneseq
        %v7870 = vshrl.u32 %v7869, 7
        %v7871 = vsub.s32 2, %v7870
        %v7872 = vrot.slane %v7859, %v7871
        %v7873 = vlaneseq
        %v7874 = vshrl.u32 %v7873, 7
        %v7875 = vsub.s32 3, %v7874
        %v7876 = vrot.slane %v7859, %v7875
        %v7877 = vlaneseq
        %v7878 = vshrl.u32 %v7877, 7
        %v7879 = vsub.s32 4, %v7878
        %v7880 = vrot.slane %v7859, %v7879
        %v7881 = vlaneseq
        %v7882 = vshrl.u32 %v7881, 7
        %v7883 = vsub.s32 5, %v7882
        %v7884 = vrot.slane %v7859, %v7883
        %v7885 = vlaneseq
        %v7886 = vshrl.u32 %v7885, 7
        %v7887 = vsub.s32 6, %v7886
        %v7888 = vrot.slane %v7859, %v7887
        %v7889 = vlaneseq
        %v7890 = vshrl.u32 %v7889, 7
        %v7891 = vsub.s32 7, %v7890
        %v7892 = vrot.slane %v7859, %v7891
        %v8157 = vunpack.c.l.b16 %v7603
        %v8158 = vunpack.c.h.b16 %v7603
        %v8159 = vunpack.c.l.b16 %v7604
        %v8160 = vunpack.c.h.b16 %v7604
        %v8161 = vunpack.c.l.b16 %v7605
        %v8162 = vunpack.c.h.b16 %v7605
        %v8163 = vunpack.c.l.b16 %v7606
        %v8164 = vunpack.c.h.b16 %v7606
        %v8165 = vunpack.c.l.b16 %v7607
        %v8166 = vunpack.c.h.b16 %v7607
        %v8167 = vunpack.c.l.b16 %v7608
        %v8168 = vunpack.c.h.b16 %v7608
        %v8169 = vunpack.c.l.b16 %v7609
        %v8170 = vunpack.c.h.b16 %v7609
        %v8171 = vunpack.c.l.b16 %v7610
        %v8172 = vunpack.c.h.b16 %v7610
        %v8173 = vunpack.c.l.b16 %v7611
        %v8174 = vunpack.c.h.b16 %v7611
        %v8175 = vunpack.c.l.b16 %v7612
        %v8176 = vunpack.c.h.b16 %v7612
        %v8177 = vunpack.c.l.b16 %v7613
        %v8178 = vunpack.c.h.b16 %v7613
        %v8179 = vunpack.c.l.b16 %v7614
        %v8180 = vunpack.c.h.b16 %v7614
        %v8181 = vunpack.c.l.b16 %v7615
        %v8182 = vunpack.c.h.b16 %v7615
        %v8183 = vunpack.c.l.b16 %v7616
        %v8184 = vunpack.c.h.b16 %v7616
        %v8185 = vunpack.c.l.b16 %v7617
        %v8186 = vunpack.c.h.b16 %v7617
        %v8187 = vunpack.c.l.b16 %v7618
        %v8188 = vunpack.c.h.b16 %v7618
        %v8189 = vunpack.c.l.b16 %v7619
        %v8190 = vunpack.c.h.b16 %v7619
        %v8191 = vunpack.c.l.b16 %v7620
        %v8192 = vunpack.c.h.b16 %v7620
        %v8193 = vunpack.c.l.b16 %v7621
        %v8194 = vunpack.c.h.b16 %v7621
        %v8195 = vunpack.c.l.b16 %v7622
        %v8196 = vunpack.c.h.b16 %v7622
        %v8197 = vunpack.c.l.b16 %v7623
        %v8198 = vunpack.c.h.b16 %v7623
        %v8199 = vunpack.c.l.b16 %v7624
        %v8200 = vunpack.c.h.b16 %v7624
        %v8201 = vunpack.c.l.b16 %v7625
        %v8202 = vunpack.c.h.b16 %v7625
        %v8203 = vunpack.c.l.b16 %v7626
        %v8204 = vunpack.c.h.b16 %v7626
        %v8205 = vunpack.c.l.b16 %v7627
        %v8206 = vunpack.c.h.b16 %v7627
        %v8207 = vunpack.c.l.b16 %v7628
        %v8208 = vunpack.c.h.b16 %v7628
        %v8209 = vunpack.c.l.b16 %v7629
        %v8210 = vunpack.c.h.b16 %v7629
        %v8211 = vunpack.c.l.b16 %v7630
        %v8212 = vunpack.c.h.b16 %v7630
        %v8213 = vunpack.c.l.b16 %v7631
        %v8214 = vunpack.c.h.b16 %v7631
        %v8215 = vunpack.c.l.b16 %v7632
        %v8216 = vunpack.c.h.b16 %v7632
        %v8217 = vunpack.c.l.b16 %v7633
        %v8218 = vunpack.c.h.b16 %v7633
        %v8219 = vunpack.c.l.b16 %v7634
        %v8220 = vunpack.c.h.b16 %v7634
        %v8221 = vunpack.c.l.b16 %v7635
        %v8222 = vunpack.c.h.b16 %v7635
        %v8223 = vunpack.c.l.b16 %v7636
        %v8224 = vunpack.c.h.b16 %v7636
        %v8225 = vunpack.c.l.b16 %v7637
        %v8226 = vunpack.c.h.b16 %v7637
        %v8227 = vunpack.c.l.b16 %v7638
        %v8228 = vunpack.c.h.b16 %v7638
        %v8229 = vunpack.c.l.b16 %v7639
        %v8230 = vunpack.c.h.b16 %v7639
        %v8231 = vunpack.c.l.b16 %v7640
        %v8232 = vunpack.c.h.b16 %v7640
        %v8233 = vunpack.c.l.b16 %v7641
        %v8234 = vunpack.c.h.b16 %v7641
        %v8235 = vunpack.c.l.b16 %v7642
        %v8236 = vunpack.c.h.b16 %v7642
        %v8237 = vunpack.c.l.b16 %v7643
        %v8238 = vunpack.c.h.b16 %v7643
        %v8239 = vunpack.c.l.b16 %v7644
        %v8240 = vunpack.c.h.b16 %v7644
        %v8241 = vunpack.c.l.b16 %v7645
        %v8242 = vunpack.c.h.b16 %v7645
        %v8243 = vunpack.c.l.b16 %v7646
        %v8244 = vunpack.c.h.b16 %v7646
        %v8245 = vunpack.c.l.b16 %v7647
        %v8246 = vunpack.c.h.b16 %v7647
        %v8247 = vunpack.c.l.b16 %v7648
        %v8248 = vunpack.c.h.b16 %v7648
        %v8249 = vunpack.c.l.b16 %v7649
        %v8250 = vunpack.c.h.b16 %v7649
        %v8251 = vunpack.c.l.b16 %v7650
        %v8252 = vunpack.c.h.b16 %v7650
        %v8253 = vunpack.c.l.b16 %v7651
        %v8254 = vunpack.c.h.b16 %v7651
        %v8255 = vunpack.c.l.b16 %v7652
        %v8256 = vunpack.c.h.b16 %v7652
        %v8257 = vunpack.c.l.b16 %v7653
        %v8258 = vunpack.c.h.b16 %v7653
        %v8259 = vunpack.c.l.b16 %v7654
        %v8260 = vunpack.c.h.b16 %v7654
        %v8261 = vunpack.c.l.b16 %v7655
        %v8262 = vunpack.c.h.b16 %v7655
        %v8263 = vunpack.c.l.b16 %v7656
        %v8264 = vunpack.c.h.b16 %v7656
        %v8265 = vunpack.c.l.b16 %v7657
        %v8266 = vunpack.c.h.b16 %v7657
        %v8267 = vunpack.c.l.b16 %v7658
        %v8268 = vunpack.c.h.b16 %v7658
        %v8269 = vunpack.c.l.b16 %v7659
        %v8270 = vunpack.c.h.b16 %v7659
        %v8271 = vunpack.c.l.b16 %v7660
        %v8272 = vunpack.c.h.b16 %v7660
        %v8273 = vunpack.c.l.b16 %v7661
        %v8274 = vunpack.c.h.b16 %v7661
        %v8275 = vunpack.c.l.b16 %v7662
        %v8276 = vunpack.c.h.b16 %v7662
        %v8277 = vunpack.c.l.b16 %v7663
        %v8278 = vunpack.c.h.b16 %v7663
        %v8279 = vunpack.c.l.b16 %v7664
        %v8280 = vunpack.c.h.b16 %v7664
        %v8281 = vunpack.c.l.b16 %v7665
        %v8282 = vunpack.c.h.b16 %v7665
        %v8283 = vunpack.c.l.b16 %v7666
        %v8284 = vunpack.c.h.b16 %v7666
        %v8285 = vunpack.c.l.b16 %v7667
        %v8286 = vunpack.c.h.b16 %v7667
        %v8287 = vunpack.c.l.b16 %v7668
        %v8288 = vunpack.c.h.b16 %v7668
        %v8289 = vunpack.c.l.b16 %v7669
        %v8290 = vunpack.c.h.b16 %v7669
        %v8291 = vunpack.c.l.b16 %v7670
        %v8292 = vunpack.c.h.b16 %v7670
        %v8293 = vunpack.c.l.b16 %v7671
        %v8294 = vunpack.c.h.b16 %v7671
        %v8295 = vunpack.c.l.b16 %v7672
        %v8296 = vunpack.c.h.b16 %v7672
        %v8297 = vunpack.c.l.b16 %v7673
        %v8298 = vunpack.c.h.b16 %v7673
        %v8299 = vunpack.c.l.b16 %v7674
        %v8300 = vunpack.c.h.b16 %v7674
        %v8301 = vunpack.c.l.b16 %v7675
        %v8302 = vunpack.c.h.b16 %v7675
        %v8303 = vunpack.c.l.b16 %v7676
        %v8304 = vunpack.c.h.b16 %v7676
        %v8305 = vunpack.c.l.b16 %v7677
        %v8306 = vunpack.c.h.b16 %v7677
        %v8307 = vunpack.c.l.b16 %v7678
        %v8308 = vunpack.c.h.b16 %v7678
        %v8309 = vunpack.c.l.b16 %v7679
        %v8310 = vunpack.c.h.b16 %v7679
        %v8311 = vunpack.c.l.b16 %v7680
        %v8312 = vunpack.c.h.b16 %v7680
        %v8313 = vunpack.c.l.b16 %v7681
        %v8314 = vunpack.c.h.b16 %v7681
        %v8315 = vunpack.c.l.b16 %v7682
        %v8316 = vunpack.c.h.b16 %v7682
        %v8317 = vunpack.c.l.b16 %v7683
        %v8318 = vunpack.c.h.b16 %v7683
        %v8319 = vunpack.c.l.b16 %v7684
        %v8320 = vunpack.c.h.b16 %v7684
        %v8321 = vunpack.c.l.b16 %v7685
        %v8322 = vunpack.c.h.b16 %v7685
        %v8323 = vunpack.c.l.b16 %v7686
        %v8324 = vunpack.c.h.b16 %v7686
        %v8325 = vunpack.c.l.b16 %v7687
        %v8326 = vunpack.c.h.b16 %v7687
        %v8327 = vunpack.c.l.b16 %v7688
        %v8328 = vunpack.c.h.b16 %v7688
        %v8329 = vunpack.c.l.b16 %v7689
        %v8330 = vunpack.c.h.b16 %v7689
        %v8331 = vunpack.c.l.b16 %v7690
        %v8332 = vunpack.c.h.b16 %v7690
        %v8333 = vunpack.c.l.b16 %v7691
        %v8334 = vunpack.c.h.b16 %v7691
        %v8335 = vunpack.c.l.b16 %v7692
        %v8336 = vunpack.c.h.b16 %v7692
        %v8337 = vunpack.c.l.b16 %v7693
        %v8338 = vunpack.c.h.b16 %v7693
        %v8339 = vunpack.c.l.b16 %v7694
        %v8340 = vunpack.c.h.b16 %v7694
        %v8341 = vunpack.c.l.b16 %v7695
        %v8342 = vunpack.c.h.b16 %v7695
        %v8343 = vunpack.c.l.b16 %v7696
        %v8344 = vunpack.c.h.b16 %v7696
        %v8345 = vunpack.c.l.b16 %v7697
        %v8346 = vunpack.c.h.b16 %v7697
        %v8347 = vunpack.c.l.b16 %v7698
        %v8348 = vunpack.c.h.b16 %v7698
        %v8349 = vunpack.c.l.b16 %v7699
        %v8350 = vunpack.c.h.b16 %v7699
        %v8351 = vunpack.c.l.b16 %v7700
        %v8352 = vunpack.c.h.b16 %v7700
        %v8353 = vunpack.c.l.b16 %v7701
        %v8354 = vunpack.c.h.b16 %v7701
        %v8355 = vunpack.c.l.b16 %v7702
        %v8356 = vunpack.c.h.b16 %v7702
        %v8357 = vunpack.c.l.b16 %v7703
        %v8358 = vunpack.c.h.b16 %v7703
        %v8359 = vunpack.c.l.b16 %v7704
        %v8360 = vunpack.c.h.b16 %v7704
        %v8361 = vunpack.c.l.b16 %v7705
        %v8362 = vunpack.c.h.b16 %v7705
        %v8363 = vunpack.c.l.b16 %v7706
        %v8364 = vunpack.c.h.b16 %v7706
        %v8365 = vunpack.c.l.b16 %v7707
        %v8366 = vunpack.c.h.b16 %v7707
        %v8367 = vunpack.c.l.b16 %v7708
        %v8368 = vunpack.c.h.b16 %v7708
        %v8369 = vunpack.c.l.b16 %v7709
        %v8370 = vunpack.c.h.b16 %v7709
        %v8371 = vunpack.c.l.b16 %v7710
        %v8372 = vunpack.c.h.b16 %v7710
        %v8373 = vunpack.c.l.b16 %v7711
        %v8374 = vunpack.c.h.b16 %v7711
        %v8375 = vunpack.c.l.b16 %v7712
        %v8376 = vunpack.c.h.b16 %v7712
        %v8377 = vunpack.c.l.b16 %v7713
        %v8378 = vunpack.c.h.b16 %v7713
        %v8379 = vunpack.c.l.b16 %v7714
        %v8380 = vunpack.c.h.b16 %v7714
        %v8381 = vunpack.c.l.b16 %v7715
        %v8382 = vunpack.c.h.b16 %v7715
        %v8383 = vunpack.c.l.b16 %v7716
        %v8384 = vunpack.c.h.b16 %v7716
        %v8385 = vunpack.c.l.b16 %v7717
        %v8386 = vunpack.c.h.b16 %v7717
        %v8387 = vunpack.c.l.b16 %v7718
        %v8388 = vunpack.c.h.b16 %v7718
        %v8389 = vunpack.c.l.b16 %v7719
        %v8390 = vunpack.c.h.b16 %v7719
        %v8391 = vunpack.c.l.b16 %v7720
        %v8392 = vunpack.c.h.b16 %v7720
        %v8393 = vunpack.c.l.b16 %v7721
        %v8394 = vunpack.c.h.b16 %v7721
        %v8395 = vunpack.c.l.b16 %v7722
        %v8396 = vunpack.c.h.b16 %v7722
        %v8397 = vunpack.c.l.b16 %v7723
        %v8398 = vunpack.c.h.b16 %v7723
        %v8399 = vunpack.c.l.b16 %v7724
        %v8400 = vunpack.c.h.b16 %v7724
        %v8401 = vunpack.c.l.b16 %v7725
        %v8402 = vunpack.c.h.b16 %v7725
        %v8403 = vunpack.c.l.b16 %v7726
        %v8404 = vunpack.c.h.b16 %v7726
        %v8405 = vunpack.c.l.b16 %v7727
        %v8406 = vunpack.c.h.b16 %v7727
        %v8407 = vunpack.c.l.b16 %v7728
        %v8408 = vunpack.c.h.b16 %v7728
        %v8409 = vunpack.c.l.b16 %v7729
        %v8410 = vunpack.c.h.b16 %v7729
        %v8411 = vunpack.c.l.b16 %v7730
        %v8412 = vunpack.c.h.b16 %v7730
        %v8413 = vunpack.c.l.b16 %v7731
        %v8414 = vunpack.c.h.b16 %v7731
        %v8415 = vunpack.c.l.b16 %v7732
        %v8416 = vunpack.c.h.b16 %v7732
        %v8417 = vunpack.c.l.b16 %v7733
        %v8418 = vunpack.c.h.b16 %v7733
        %v8419 = vunpack.c.l.b16 %v7734
        %v8420 = vunpack.c.h.b16 %v7734
        %v8421 = vunpack.c.l.b16 %v7735
        %v8422 = vunpack.c.h.b16 %v7735
        %v8423 = vunpack.c.l.b16 %v7736
        %v8424 = vunpack.c.h.b16 %v7736
        %v8425 = vunpack.c.l.b16 %v7737
        %v8426 = vunpack.c.h.b16 %v7737
        %v8427 = vunpack.c.l.b16 %v7738
        %v8428 = vunpack.c.h.b16 %v7738
        %v8429 = vunpack.c.l.b16 %v7739
        %v8430 = vunpack.c.h.b16 %v7739
        %v8431 = vunpack.c.l.b16 %v7740
        %v8432 = vunpack.c.h.b16 %v7740
        %v8433 = vunpack.c.l.b16 %v7741
        %v8434 = vunpack.c.h.b16 %v7741
        %v8435 = vunpack.c.l.b16 %v7742
        %v8436 = vunpack.c.h.b16 %v7742
        %v8437 = vunpack.c.l.b16 %v7743
        %v8438 = vunpack.c.h.b16 %v7743
        %v8439 = vunpack.c.l.b16 %v7744
        %v8440 = vunpack.c.h.b16 %v7744
        %v8441 = vunpack.c.l.b16 %v7745
        %v8442 = vunpack.c.h.b16 %v7745
        %v8443 = vunpack.c.l.b16 %v7746
        %v8444 = vunpack.c.h.b16 %v7746
        %v8445 = vunpack.c.l.b16 %v7747
        %v8446 = vunpack.c.h.b16 %v7747
        %v8447 = vunpack.c.l.b16 %v7748
        %v8448 = vunpack.c.h.b16 %v7748
        %v8449 = vunpack.c.l.b16 %v7749
        %v8450 = vunpack.c.h.b16 %v7749
        %v8451 = vunpack.c.l.b16 %v7750
        %v8452 = vunpack.c.h.b16 %v7750
        %v8453 = vunpack.c.l.b16 %v7751
        %v8454 = vunpack.c.h.b16 %v7751
        %v8455 = vunpack.c.l.b16 %v7752
        %v8456 = vunpack.c.h.b16 %v7752
        %v8457 = vunpack.c.l.b16 %v7753
        %v8458 = vunpack.c.h.b16 %v7753
        %v8459 = vunpack.c.l.b16 %v7754
        %v8460 = vunpack.c.h.b16 %v7754
        %v8461 = vunpack.c.l.b16 %v7755
        %v8462 = vunpack.c.h.b16 %v7755
        %v8463 = vunpack.c.l.b16 %v7756
        %v8464 = vunpack.c.h.b16 %v7756
        %v8465 = vunpack.c.l.b16 %v7757
        %v8466 = vunpack.c.h.b16 %v7757
        %v8467 = vunpack.c.l.b16 %v7758
        %v8468 = vunpack.c.h.b16 %v7758
        %v8469 = vunpack.c.l.b16 %v7759
        %v8470 = vunpack.c.h.b16 %v7759
        %v8471 = vunpack.c.l.b16 %v7760
        %v8472 = vunpack.c.h.b16 %v7760
        %v8473 = vunpack.c.l.b16 %v7761
        %v8474 = vunpack.c.h.b16 %v7761
        %v8475 = vunpack.c.l.b16 %v7762
        %v8476 = vunpack.c.h.b16 %v7762
        %v8477 = vunpack.c.l.b16 %v7763
        %v8478 = vunpack.c.h.b16 %v7763
        %v8479 = vunpack.c.l.b16 %v7764
        %v8480 = vunpack.c.h.b16 %v7764
        %v8481 = vunpack.c.l.b16 %v7765
        %v8482 = vunpack.c.h.b16 %v7765
        %v8483 = vunpack.c.l.b16 %v7766
        %v8484 = vunpack.c.h.b16 %v7766
        %v8485 = vunpack.c.l.b16 %v7767
        %v8486 = vunpack.c.h.b16 %v7767
        %v8487 = vunpack.c.l.b16 %v7768
        %v8488 = vunpack.c.h.b16 %v7768
        %v8489 = vunpack.c.l.b16 %v7769
        %v8490 = vunpack.c.h.b16 %v7769
        %v8491 = vunpack.c.l.b16 %v7770
        %v8492 = vunpack.c.h.b16 %v7770
        %v8493 = vunpack.c.l.b16 %v7771
        %v8494 = vunpack.c.h.b16 %v7771
        %v8495 = vunpack.c.l.b16 %v7772
        %v8496 = vunpack.c.h.b16 %v7772
        %v8497 = vunpack.c.l.b16 %v7773
        %v8498 = vunpack.c.h.b16 %v7773
        %v8499 = vunpack.c.l.b16 %v7774
        %v8500 = vunpack.c.h.b16 %v7774
        %v8501 = vunpack.c.l.b16 %v7775
        %v8502 = vunpack.c.h.b16 %v7775
        %v8503 = vunpack.c.l.b16 %v7776
        %v8504 = vunpack.c.h.b16 %v7776
        %v8505 = vunpack.c.l.b16 %v7777
        %v8506 = vunpack.c.h.b16 %v7777
        %v8507 = vunpack.c.l.b16 %v7778
        %v8508 = vunpack.c.h.b16 %v7778
        %v8509 = vunpack.c.l.b16 %v7779
        %v8510 = vunpack.c.h.b16 %v7779
        %v8511 = vunpack.c.l.b16 %v7780
        %v8512 = vunpack.c.h.b16 %v7780
        %v8513 = vunpack.c.l.b16 %v7781
        %v8514 = vunpack.c.h.b16 %v7781
        %v8515 = vunpack.c.l.b16 %v7782
        %v8516 = vunpack.c.h.b16 %v7782
        %v8517 = vunpack.c.l.b16 %v7783
        %v8518 = vunpack.c.h.b16 %v7783
        %v8519 = vunpack.c.l.b16 %v7784
        %v8520 = vunpack.c.h.b16 %v7784
        %v8521 = vunpack.c.l.b16 %v7785
        %v8522 = vunpack.c.h.b16 %v7785
        %v8523 = vunpack.c.l.b16 %v7786
        %v8524 = vunpack.c.h.b16 %v7786
        %v8525 = vunpack.c.l.b16 %v7787
        %v8526 = vunpack.c.h.b16 %v7787
        %v8527 = vunpack.c.l.b16 %v7788
        %v8528 = vunpack.c.h.b16 %v7788
        %v8529 = vunpack.c.l.b16 %v7789
        %v8530 = vunpack.c.h.b16 %v7789
        %v8531 = vunpack.c.l.b16 %v7790
        %v8532 = vunpack.c.h.b16 %v7790
        %v8533 = vunpack.c.l.b16 %v7791
        %v8534 = vunpack.c.h.b16 %v7791
        %v8535 = vunpack.c.l.b16 %v7792
        %v8536 = vunpack.c.h.b16 %v7792
        %v8537 = vunpack.c.l.b16 %v7793
        %v8538 = vunpack.c.h.b16 %v7793
        %v8539 = vunpack.c.l.b16 %v7794
        %v8540 = vunpack.c.h.b16 %v7794
        %v8541 = vunpack.c.l.b16 %v7795
        %v8542 = vunpack.c.h.b16 %v7795
        %v8543 = vunpack.c.l.b16 %v7796
        %v8544 = vunpack.c.h.b16 %v7796
        %v8545 = vunpack.c.l.b16 %v7797
        %v8546 = vunpack.c.h.b16 %v7797
        %v8547 = vunpack.c.l.b16 %v7798
        %v8548 = vunpack.c.h.b16 %v7798
        %v8549 = vunpack.c.l.b16 %v7799
        %v8550 = vunpack.c.h.b16 %v7799
        %v8551 = vunpack.c.l.b16 %v7800
        %v8552 = vunpack.c.h.b16 %v7800
        %v8553 = vunpack.c.l.b16 %v7801
        %v8554 = vunpack.c.h.b16 %v7801
        %v8555 = vunpack.c.l.b16 %v7802
        %v8556 = vunpack.c.h.b16 %v7802
        %v8557 = vunpack.c.l.b16 %v7803
        %v8558 = vunpack.c.h.b16 %v7803
        %v8559 = vunpack.c.l.b16 %v7804
        %v8560 = vunpack.c.h.b16 %v7804
        %v8561 = vunpack.c.l.b16 %v7805
        %v8562 = vunpack.c.h.b16 %v7805
        %v8563 = vunpack.c.l.b16 %v7806
        %v8564 = vunpack.c.h.b16 %v7806
        %v8565 = vunpack.c.l.b16 %v7807
        %v8566 = vunpack.c.h.b16 %v7807
        %v8567 = vunpack.c.l.b16 %v7808
        %v8568 = vunpack.c.h.b16 %v7808
        %v8569 = vunpack.c.l.b16 %v7809
        %v8570 = vunpack.c.h.b16 %v7809
        %v8571 = vunpack.c.l.b16 %v7810
        %v8572 = vunpack.c.h.b16 %v7810
        %v8573 = vunpack.c.l.b16 %v7811
        %v8574 = vunpack.c.h.b16 %v7811
        %v8575 = vunpack.c.l.b16 %v7812
        %v8576 = vunpack.c.h.b16 %v7812
        %v8577 = vunpack.c.l.b16 %v7813
        %v8578 = vunpack.c.h.b16 %v7813
        %v8579 = vunpack.c.l.b16 %v7814
        %v8580 = vunpack.c.h.b16 %v7814
        %v8581 = vunpack.c.l.b16 %v7815
        %v8582 = vunpack.c.h.b16 %v7815
        %v8583 = vunpack.c.l.b16 %v7816
        %v8584 = vunpack.c.h.b16 %v7816
        %v8585 = vunpack.c.l.b16 %v7817
        %v8586 = vunpack.c.h.b16 %v7817
        %v8587 = vunpack.c.l.b16 %v7818
        %v8588 = vunpack.c.h.b16 %v7818
        %v8589 = vunpack.c.l.b16 %v7819
        %v8590 = vunpack.c.h.b16 %v7819
        %v8591 = vunpack.c.l.b16 %v7820
        %v8592 = vunpack.c.h.b16 %v7820
        %v8593 = vunpack.c.l.b16 %v7821
        %v8594 = vunpack.c.h.b16 %v7821
        %v8595 = vunpack.c.l.b16 %v7822
        %v8596 = vunpack.c.h.b16 %v7822
        %v8597 = vunpack.c.l.b16 %v7823
        %v8598 = vunpack.c.h.b16 %v7823
        %v8599 = vunpack.c.l.b16 %v7824
        %v8600 = vunpack.c.h.b16 %v7824
        %v8601 = vunpack.c.l.b16 %v7825
        %v8602 = vunpack.c.h.b16 %v7825
        %v8603 = vunpack.c.l.b16 %v7826
        %v8604 = vunpack.c.h.b16 %v7826
        %v8605 = vunpack.c.l.b16 %v7827
        %v8606 = vunpack.c.h.b16 %v7827
        %v8607 = vunpack.c.l.b16 %v7828
        %v8608 = vunpack.c.h.b16 %v7828
        %v8609 = vunpack.c.l.b16 %v7829
        %v8610 = vunpack.c.h.b16 %v7829
        %v8611 = vunpack.c.l.b16 %v7830
        %v8612 = vunpack.c.h.b16 %v7830
        %v8613 = vunpack.c.l.b16 %v7831
        %v8614 = vunpack.c.h.b16 %v7831
        %v8615 = vunpack.c.l.b16 %v7832
        %v8616 = vunpack.c.h.b16 %v7832
        %v8617 = vunpack.c.l.b16 %v7833
        %v8618 = vunpack.c.h.b16 %v7833
        %v8619 = vunpack.c.l.b16 %v7834
        %v8620 = vunpack.c.h.b16 %v7834
        %v8621 = vunpack.c.l.b16 %v7835
        %v8622 = vunpack.c.h.b16 %v7835
        %v8623 = vunpack.c.l.b16 %v7836
        %v8624 = vunpack.c.h.b16 %v7836
        %v8625 = vunpack.c.l.b16 %v7837
        %v8626 = vunpack.c.h.b16 %v7837
        %v8627 = vunpack.c.l.b16 %v7838
        %v8628 = vunpack.c.h.b16 %v7838
        %v8629 = vunpack.c.l.b16 %v7839
        %v8630 = vunpack.c.h.b16 %v7839
        %v8631 = vunpack.c.l.b16 %v7840
        %v8632 = vunpack.c.h.b16 %v7840
        %v8633 = vunpack.c.l.b16 %v7841
        %v8634 = vunpack.c.h.b16 %v7841
        %v8635 = vunpack.c.l.b16 %v7842
        %v8636 = vunpack.c.h.b16 %v7842
        %v8637 = vunpack.c.l.b16 %v7843
        %v8638 = vunpack.c.h.b16 %v7843
        %v8639 = vunpack.c.l.b16 %v7844
        %v8640 = vunpack.c.h.b16 %v7844
        %v8641 = vunpack.c.l.b16 %v7845
        %v8642 = vunpack.c.h.b16 %v7845
        %v8643 = vunpack.c.l.b16 %v7846
        %v8644 = vunpack.c.h.b16 %v7846
        %v8645 = vunpack.c.l.b16 %v7847
        %v8646 = vunpack.c.h.b16 %v7847
        %v8647 = vunpack.c.l.b16 %v7848
        %v8648 = vunpack.c.h.b16 %v7848
        %v8649 = vunpack.c.l.b16 %v7849
        %v8650 = vunpack.c.h.b16 %v7849
        %v8651 = vunpack.c.l.b16 %v7850
        %v8652 = vunpack.c.h.b16 %v7850
        %v8653 = vunpack.c.l.b16 %v7851
        %v8654 = vunpack.c.h.b16 %v7851
        %v8655 = vunpack.c.l.b16 %v7852
        %v8656 = vunpack.c.h.b16 %v7852
        %v8657 = vunpack.c.l.b16 %v7853
        %v8658 = vunpack.c.h.b16 %v7853
        %v8659 = vunpack.c.l.b16 %v7854
        %v8660 = vunpack.c.h.b16 %v7854
        %v8661 = vunpack.c.l.b16 %v7855
        %v8662 = vunpack.c.h.b16 %v7855
        %v8663 = vunpack.c.l.b16 %v7856
        %v8664 = vunpack.c.h.b16 %v7856
        %v8665 = vunpack.c.l.b16 %v7857
        %v8666 = vunpack.c.h.b16 %v7857
        %v8667 = vunpack.c.l.b16 %v7858
        %v8668 = vunpack.c.h.b16 %v7858
        %v8669 = vpack.c.b16 %v8165, %v8157
        %v8670 = vpack.c.b16 %v8166, %v8158
        %v8671 = vpack.c.b16 %v8167, %v8159
        %v8672 = vpack.c.b16 %v8168, %v8160
        %v8673 = vpack.c.b16 %v8169, %v8161
        %v8674 = vpack.c.b16 %v8170, %v8162
        %v8675 = vpack.c.b16 %v8171, %v8163
        %v8676 = vpack.c.b16 %v8172, %v8164
        %v8677 = vpack.c.b16 %v8181, %v8173
        %v8678 = vpack.c.b16 %v8182, %v8174
        %v8679 = vpack.c.b16 %v8183, %v8175
        %v8680 = vpack.c.b16 %v8184, %v8176
        %v8681 = vpack.c.b16 %v8185, %v8177
        %v8682 = vpack.c.b16 %v8186, %v8178
        %v8683 = vpack.c.b16 %v8187, %v8179
        %v8684 = vpack.c.b16 %v8188, %v8180
        %v8685 = vpack.c.b16 %v8197, %v8189
        %v8686 = vpack.c.b16 %v8198, %v8190
        %v8687 = vpack.c.b16 %v8199, %v8191
        %v8688 = vpack.c.b16 %v8200, %v8192
        %v8689 = vpack.c.b16 %v8201, %v8193
        %v8690 = vpack.c.b16 %v8202, %v8194
        %v8691 = vpack.c.b16 %v8203, %v8195
        %v8692 = vpack.c.b16 %v8204, %v8196
        %v8693 = vpack.c.b16 %v8213, %v8205
        %v8694 = vpack.c.b16 %v8214, %v8206
        %v8695 = vpack.c.b16 %v8215, %v8207
        %v8696 = vpack.c.b16 %v8216, %v8208
        %v8697 = vpack.c.b16 %v8217, %v8209
        %v8698 = vpack.c.b16 %v8218, %v8210
        %v8699 = vpack.c.b16 %v8219, %v8211
        %v8700 = vpack.c.b16 %v8220, %v8212
        %v8701 = vpack.c.b16 %v8229, %v8221
        %v8702 = vpack.c.b16 %v8230, %v8222
        %v8703 = vpack.c.b16 %v8231, %v8223
        %v8704 = vpack.c.b16 %v8232, %v8224
        %v8705 = vpack.c.b16 %v8233, %v8225
        %v8706 = vpack.c.b16 %v8234, %v8226
        %v8707 = vpack.c.b16 %v8235, %v8227
        %v8708 = vpack.c.b16 %v8236, %v8228
        %v8709 = vpack.c.b16 %v8245, %v8237
        %v8710 = vpack.c.b16 %v8246, %v8238
        %v8711 = vpack.c.b16 %v8247, %v8239
        %v8712 = vpack.c.b16 %v8248, %v8240
        %v8713 = vpack.c.b16 %v8249, %v8241
        %v8714 = vpack.c.b16 %v8250, %v8242
        %v8715 = vpack.c.b16 %v8251, %v8243
        %v8716 = vpack.c.b16 %v8252, %v8244
        %v8717 = vpack.c.b16 %v8261, %v8253
        %v8718 = vpack.c.b16 %v8262, %v8254
        %v8719 = vpack.c.b16 %v8263, %v8255
        %v8720 = vpack.c.b16 %v8264, %v8256
        %v8721 = vpack.c.b16 %v8265, %v8257
        %v8722 = vpack.c.b16 %v8266, %v8258
        %v8723 = vpack.c.b16 %v8267, %v8259
        %v8724 = vpack.c.b16 %v8268, %v8260
        %v8725 = vpack.c.b16 %v8277, %v8269
        %v8726 = vpack.c.b16 %v8278, %v8270
        %v8727 = vpack.c.b16 %v8279, %v8271
        %v8728 = vpack.c.b16 %v8280, %v8272
        %v8729 = vpack.c.b16 %v8281, %v8273
        %v8730 = vpack.c.b16 %v8282, %v8274
        %v8731 = vpack.c.b16 %v8283, %v8275
        %v8732 = vpack.c.b16 %v8284, %v8276
        %v8733 = vpack.c.b16 %v8293, %v8285
        %v8734 = vpack.c.b16 %v8294, %v8286
        %v8735 = vpack.c.b16 %v8295, %v8287
        %v8736 = vpack.c.b16 %v8296, %v8288
        %v8737 = vpack.c.b16 %v8297, %v8289
        %v8738 = vpack.c.b16 %v8298, %v8290
        %v8739 = vpack.c.b16 %v8299, %v8291
        %v8740 = vpack.c.b16 %v8300, %v8292
        %v8741 = vpack.c.b16 %v8309, %v8301
        %v8742 = vpack.c.b16 %v8310, %v8302
        %v8743 = vpack.c.b16 %v8311, %v8303
        %v8744 = vpack.c.b16 %v8312, %v8304
        %v8745 = vpack.c.b16 %v8313, %v8305
        %v8746 = vpack.c.b16 %v8314, %v8306
        %v8747 = vpack.c.b16 %v8315, %v8307
        %v8748 = vpack.c.b16 %v8316, %v8308
        %v8749 = vpack.c.b16 %v8325, %v8317
        %v8750 = vpack.c.b16 %v8326, %v8318
        %v8751 = vpack.c.b16 %v8327, %v8319
        %v8752 = vpack.c.b16 %v8328, %v8320
        %v8753 = vpack.c.b16 %v8329, %v8321
        %v8754 = vpack.c.b16 %v8330, %v8322
        %v8755 = vpack.c.b16 %v8331, %v8323
        %v8756 = vpack.c.b16 %v8332, %v8324
        %v8757 = vpack.c.b16 %v8341, %v8333
        %v8758 = vpack.c.b16 %v8342, %v8334
        %v8759 = vpack.c.b16 %v8343, %v8335
        %v8760 = vpack.c.b16 %v8344, %v8336
        %v8761 = vpack.c.b16 %v8345, %v8337
        %v8762 = vpack.c.b16 %v8346, %v8338
        %v8763 = vpack.c.b16 %v8347, %v8339
        %v8764 = vpack.c.b16 %v8348, %v8340
        %v8765 = vpack.c.b16 %v8357, %v8349
        %v8766 = vpack.c.b16 %v8358, %v8350
        %v8767 = vpack.c.b16 %v8359, %v8351
        %v8768 = vpack.c.b16 %v8360, %v8352
        %v8769 = vpack.c.b16 %v8361, %v8353
        %v8770 = vpack.c.b16 %v8362, %v8354
        %v8771 = vpack.c.b16 %v8363, %v8355
        %v8772 = vpack.c.b16 %v8364, %v8356
        %v8773 = vpack.c.b16 %v8373, %v8365
        %v8774 = vpack.c.b16 %v8374, %v8366
        %v8775 = vpack.c.b16 %v8375, %v8367
        %v8776 = vpack.c.b16 %v8376, %v8368
        %v8777 = vpack.c.b16 %v8377, %v8369
        %v8778 = vpack.c.b16 %v8378, %v8370
        %v8779 = vpack.c.b16 %v8379, %v8371
        %v8780 = vpack.c.b16 %v8380, %v8372
        %v8781 = vpack.c.b16 %v8389, %v8381
        %v8782 = vpack.c.b16 %v8390, %v8382
        %v8783 = vpack.c.b16 %v8391, %v8383
        %v8784 = vpack.c.b16 %v8392, %v8384
        %v8785 = vpack.c.b16 %v8393, %v8385
        %v8786 = vpack.c.b16 %v8394, %v8386
        %v8787 = vpack.c.b16 %v8395, %v8387
        %v8788 = vpack.c.b16 %v8396, %v8388
        %v8789 = vpack.c.b16 %v8405, %v8397
        %v8790 = vpack.c.b16 %v8406, %v8398
        %v8791 = vpack.c.b16 %v8407, %v8399
        %v8792 = vpack.c.b16 %v8408, %v8400
        %v8793 = vpack.c.b16 %v8409, %v8401
        %v8794 = vpack.c.b16 %v8410, %v8402
        %v8795 = vpack.c.b16 %v8411, %v8403
        %v8796 = vpack.c.b16 %v8412, %v8404
        %v8797 = vpack.c.b16 %v8421, %v8413
        %v8798 = vpack.c.b16 %v8422, %v8414
        %v8799 = vpack.c.b16 %v8423, %v8415
        %v8800 = vpack.c.b16 %v8424, %v8416
        %v8801 = vpack.c.b16 %v8425, %v8417
        %v8802 = vpack.c.b16 %v8426, %v8418
        %v8803 = vpack.c.b16 %v8427, %v8419
        %v8804 = vpack.c.b16 %v8428, %v8420
        %v8805 = vpack.c.b16 %v8437, %v8429
        %v8806 = vpack.c.b16 %v8438, %v8430
        %v8807 = vpack.c.b16 %v8439, %v8431
        %v8808 = vpack.c.b16 %v8440, %v8432
        %v8809 = vpack.c.b16 %v8441, %v8433
        %v8810 = vpack.c.b16 %v8442, %v8434
        %v8811 = vpack.c.b16 %v8443, %v8435
        %v8812 = vpack.c.b16 %v8444, %v8436
        %v8813 = vpack.c.b16 %v8453, %v8445
        %v8814 = vpack.c.b16 %v8454, %v8446
        %v8815 = vpack.c.b16 %v8455, %v8447
        %v8816 = vpack.c.b16 %v8456, %v8448
        %v8817 = vpack.c.b16 %v8457, %v8449
        %v8818 = vpack.c.b16 %v8458, %v8450
        %v8819 = vpack.c.b16 %v8459, %v8451
        %v8820 = vpack.c.b16 %v8460, %v8452
        %v8821 = vpack.c.b16 %v8469, %v8461
        %v8822 = vpack.c.b16 %v8470, %v8462
        %v8823 = vpack.c.b16 %v8471, %v8463
        %v8824 = vpack.c.b16 %v8472, %v8464
        %v8825 = vpack.c.b16 %v8473, %v8465
        %v8826 = vpack.c.b16 %v8474, %v8466
        %v8827 = vpack.c.b16 %v8475, %v8467
        %v8828 = vpack.c.b16 %v8476, %v8468
        %v8829 = vpack.c.b16 %v8485, %v8477
        %v8830 = vpack.c.b16 %v8486, %v8478
        %v8831 = vpack.c.b16 %v8487, %v8479
        %v8832 = vpack.c.b16 %v8488, %v8480
        %v8833 = vpack.c.b16 %v8489, %v8481
        %v8834 = vpack.c.b16 %v8490, %v8482
        %v8835 = vpack.c.b16 %v8491, %v8483
        %v8836 = vpack.c.b16 %v8492, %v8484
        %v8837 = vpack.c.b16 %v8501, %v8493
        %v8838 = vpack.c.b16 %v8502, %v8494
        %v8839 = vpack.c.b16 %v8503, %v8495
        %v8840 = vpack.c.b16 %v8504, %v8496
        %v8841 = vpack.c.b16 %v8505, %v8497
        %v8842 = vpack.c.b16 %v8506, %v8498
        %v8843 = vpack.c.b16 %v8507, %v8499
        %v8844 = vpack.c.b16 %v8508, %v8500
        %v8845 = vpack.c.b16 %v8517, %v8509
        %v8846 = vpack.c.b16 %v8518, %v8510
        %v8847 = vpack.c.b16 %v8519, %v8511
        %v8848 = vpack.c.b16 %v8520, %v8512
        %v8849 = vpack.c.b16 %v8521, %v8513
        %v8850 = vpack.c.b16 %v8522, %v8514
        %v8851 = vpack.c.b16 %v8523, %v8515
        %v8852 = vpack.c.b16 %v8524, %v8516
        %v8853 = vpack.c.b16 %v8533, %v8525
        %v8854 = vpack.c.b16 %v8534, %v8526
        %v8855 = vpack.c.b16 %v8535, %v8527
        %v8856 = vpack.c.b16 %v8536, %v8528
        %v8857 = vpack.c.b16 %v8537, %v8529
        %v8858 = vpack.c.b16 %v8538, %v8530
        %v8859 = vpack.c.b16 %v8539, %v8531
        %v8860 = vpack.c.b16 %v8540, %v8532
        %v8861 = vpack.c.b16 %v8549, %v8541
        %v8862 = vpack.c.b16 %v8550, %v8542
        %v8863 = vpack.c.b16 %v8551, %v8543
        %v8864 = vpack.c.b16 %v8552, %v8544
        %v8865 = vpack.c.b16 %v8553, %v8545
        %v8866 = vpack.c.b16 %v8554, %v8546
        %v8867 = vpack.c.b16 %v8555, %v8547
        %v8868 = vpack.c.b16 %v8556, %v8548
        %v8869 = vpack.c.b16 %v8565, %v8557
        %v8870 = vpack.c.b16 %v8566, %v8558
        %v8871 = vpack.c.b16 %v8567, %v8559
        %v8872 = vpack.c.b16 %v8568, %v8560
        %v8873 = vpack.c.b16 %v8569, %v8561
        %v8874 = vpack.c.b16 %v8570, %v8562
        %v8875 = vpack.c.b16 %v8571, %v8563
        %v8876 = vpack.c.b16 %v8572, %v8564
        %v8877 = vpack.c.b16 %v8581, %v8573
        %v8878 = vpack.c.b16 %v8582, %v8574
        %v8879 = vpack.c.b16 %v8583, %v8575
        %v8880 = vpack.c.b16 %v8584, %v8576
        %v8881 = vpack.c.b16 %v8585, %v8577
        %v8882 = vpack.c.b16 %v8586, %v8578
        %v8883 = vpack.c.b16 %v8587, %v8579
        %v8884 = vpack.c.b16 %v8588, %v8580
        %v8885 = vpack.c.b16 %v8597, %v8589
        %v8886 = vpack.c.b16 %v8598, %v8590
        %v8887 = vpack.c.b16 %v8599, %v8591
        %v8888 = vpack.c.b16 %v8600, %v8592
        %v8889 = vpack.c.b16 %v8601, %v8593
        %v8890 = vpack.c.b16 %v8602, %v8594
        %v8891 = vpack.c.b16 %v8603, %v8595
        %v8892 = vpack.c.b16 %v8604, %v8596
        %v8893 = vpack.c.b16 %v8613, %v8605
        %v8894 = vpack.c.b16 %v8614, %v8606
        %v8895 = vpack.c.b16 %v8615, %v8607
        %v8896 = vpack.c.b16 %v8616, %v8608
        %v8897 = vpack.c.b16 %v8617, %v8609
        %v8898 = vpack.c.b16 %v8618, %v8610
        %v8899 = vpack.c.b16 %v8619, %v8611
        %v8900 = vpack.c.b16 %v8620, %v8612
        %v8901 = vpack.c.b16 %v8629, %v8621
        %v8902 = vpack.c.b16 %v8630, %v8622
        %v8903 = vpack.c.b16 %v8631, %v8623
        %v8904 = vpack.c.b16 %v8632, %v8624
        %v8905 = vpack.c.b16 %v8633, %v8625
        %v8906 = vpack.c.b16 %v8634, %v8626
        %v8907 = vpack.c.b16 %v8635, %v8627
        %v8908 = vpack.c.b16 %v8636, %v8628
        %v8909 = vpack.c.b16 %v8645, %v8637
        %v8910 = vpack.c.b16 %v8646, %v8638
        %v8911 = vpack.c.b16 %v8647, %v8639
        %v8912 = vpack.c.b16 %v8648, %v8640
        %v8913 = vpack.c.b16 %v8649, %v8641
        %v8914 = vpack.c.b16 %v8650, %v8642
        %v8915 = vpack.c.b16 %v8651, %v8643
        %v8916 = vpack.c.b16 %v8652, %v8644
        %v8917 = vpack.c.b16 %v8661, %v8653
        %v8918 = vpack.c.b16 %v8662, %v8654
        %v8919 = vpack.c.b16 %v8663, %v8655
        %v8920 = vpack.c.b16 %v8664, %v8656
        %v8921 = vpack.c.b16 %v8665, %v8657
        %v8922 = vpack.c.b16 %v8666, %v8658
        %v8923 = vpack.c.b16 %v8667, %v8659
        %v8924 = vpack.c.b16 %v8668, %v8660
        %9181 = vmatprep.subr.bf16.mxu0 %v8726
        %9182 = vmatpush1.bf16.msra.mxu0 %v8725
        %9183 = vmatprep.subr.bf16.mxu0 %v8718
        %9184 = vmatpush1.bf16.msra.mxu0 %v8717
        %9185 = vmatprep.subr.bf16.mxu0 %v8710
        %9186 = vmatpush1.bf16.msra.mxu0 %v8709
        %9187 = vmatprep.subr.bf16.mxu0 %v8702
        %9188 = vmatpush1.bf16.msra.mxu0 %v8701
        %9189 = vmatprep.subr.bf16.mxu0 %v8694
        %9190 = vmatpush1.bf16.msra.mxu0 %v8693
        %9191 = vmatprep.subr.bf16.mxu0 %v8686
        %9192 = vmatpush1.bf16.msra.mxu0 %v8685
        %9193 = vmatprep.subr.bf16.mxu0 %v8678
        %9194 = vmatpush1.bf16.msra.mxu0 %v8677
        %9195 = vmatprep.subr.bf16.mxu0 %v8670
        %9196 = vmatpush1.bf16.msra.mxu0 %v8669
        %9197 = vmatprep.subr.bf16.mxu0 %v8790
        %9198 = vmatpush2.bf16.msra.mxu0 %v8789
        %9199 = vmatprep.subr.bf16.mxu0 %v8782
        %9200 = vmatpush2.bf16.msra.mxu0 %v8781
        %9201 = vmatprep.subr.bf16.mxu0 %v8774
        %9202 = vmatpush2.bf16.msra.mxu0 %v8773
        %9203 = vmatprep.subr.bf16.mxu0 %v8766
        %9204 = vmatpush2.bf16.msra.mxu0 %v8765
        %9205 = vmatprep.subr.bf16.mxu0 %v8758
        %9206 = vmatpush2.bf16.msra.mxu0 %v8757
        %9207 = vmatprep.subr.bf16.mxu0 %v8750
        %9208 = vmatpush2.bf16.msra.mxu0 %v8749
        %9209 = vmatprep.subr.bf16.mxu0 %v8742
        %9210 = vmatpush2.bf16.msra.mxu0 %v8741
        %9211 = vmatprep.subr.bf16.mxu0 %v8734
        %9212 = vmatpush2.bf16.msra.mxu0 %v8733
        %9213 = vmatprep.mubr.bf16.mxu0 %v7572
        %9214 = vmatmul.mubr.bf16.gmra.mxu0 %v7571
        %v9215 = vpop.f32.mrf.mxu0
        %v9216 = vadd.f32 %v7864, %v9215
        %v9217 = vpop.f32.mrf.mxu0
        %v9218 = vadd.f32 %v7868, %v9217
        %v9219 = vpop.f32.mrf.mxu0
        %v9220 = vadd.f32 %v7864, %v9219
        %v9221 = vpop.f32.mrf.mxu0
        %v9222 = vadd.f32 %v7868, %v9221
        %9223 = vmatprep.mubr.bf16.mxu0 %v7576
        %9224 = vmatmul.mubr.bf16.gmra.mxu0 %v7575
        %v9225 = vpop.f32.mrf.mxu0
        %v9226 = vadd.f32 %v7864, %v9225
        %v9227 = vpop.f32.mrf.mxu0
        %v9228 = vadd.f32 %v7868, %v9227
        %v9229 = vpop.f32.mrf.mxu0
        %v9230 = vadd.f32 %v7864, %v9229
        %v9231 = vpop.f32.mrf.mxu0
        %v9232 = vadd.f32 %v7868, %v9231
        %9233 = vmatprep.mubr.bf16.mxu0 %v7580
        %9234 = vmatmul.mubr.bf16.gmra.mxu0 %v7579
        %v9235 = vpop.f32.mrf.mxu0
        %v9236 = vadd.f32 %v7864, %v9235
        %v9237 = vpop.f32.mrf.mxu0
        %v9238 = vadd.f32 %v7868, %v9237
        %v9239 = vpop.f32.mrf.mxu0
        %v9240 = vadd.f32 %v7864, %v9239
        %v9241 = vpop.f32.mrf.mxu0
        %v9242 = vadd.f32 %v7868, %v9241
        %9243 = vmatprep.mubr.bf16.mxu0 %v7584
        %9244 = vmatmul.mubr.bf16.gmra.mxu0 %v7583
        %v9245 = vpop.f32.mrf.mxu0
        %v9246 = vadd.f32 %v7864, %v9245
        %v9247 = vpop.f32.mrf.mxu0
        %v9248 = vadd.f32 %v7868, %v9247
        %v9249 = vpop.f32.mrf.mxu0
        %v9250 = vadd.f32 %v7864, %v9249
        %v9251 = vpop.f32.mrf.mxu0
        %v9252 = vadd.f32 %v7868, %v9251
        %9253 = vmatprep.mubr.bf16.mxu0 %v7588
        %9254 = vmatmul.mubr.bf16.gmra.mxu0 %v7587
        %v9255 = vpop.f32.mrf.mxu0
        %v9256 = vadd.f32 %v7864, %v9255
        %v9257 = vpop.f32.mrf.mxu0
        %v9258 = vadd.f32 %v7868, %v9257
        %v9259 = vpop.f32.mrf.mxu0
        %v9260 = vadd.f32 %v7864, %v9259
        %v9261 = vpop.f32.mrf.mxu0
        %v9262 = vadd.f32 %v7868, %v9261
        %9263 = vmatprep.mubr.bf16.mxu0 %v7592
        %9264 = vmatmul.mubr.bf16.gmra.mxu0 %v7591
        %v9265 = vpop.f32.mrf.mxu0
        %v9266 = vadd.f32 %v7864, %v9265
        %v9267 = vpop.f32.mrf.mxu0
        %v9268 = vadd.f32 %v7868, %v9267
        %v9269 = vpop.f32.mrf.mxu0
        %v9270 = vadd.f32 %v7864, %v9269
        %v9271 = vpop.f32.mrf.mxu0
        %v9272 = vadd.f32 %v7868, %v9271
        %9273 = vmatprep.mubr.bf16.mxu0 %v7596
        %9274 = vmatmul.mubr.bf16.gmra.mxu0 %v7595
        %v9275 = vpop.f32.mrf.mxu0
        %v9276 = vadd.f32 %v7864, %v9275
        %v9277 = vpop.f32.mrf.mxu0
        %v9278 = vadd.f32 %v7868, %v9277
        %v9279 = vpop.f32.mrf.mxu0
        %v9280 = vadd.f32 %v7864, %v9279
        %v9281 = vpop.f32.mrf.mxu0
        %v9282 = vadd.f32 %v7868, %v9281
        %9283 = vmatprep.mubr.bf16.mxu0 %v7600
        %9284 = vmatmul.mubr.bf16.gmra.mxu0 %v7599
        %v9285 = vpop.f32.mrf.mxu0
        %v9286 = vadd.f32 %v7864, %v9285
        %v9287 = vpop.f32.mrf.mxu0
        %v9288 = vadd.f32 %v7868, %v9287
        %v9289 = vpop.f32.mrf.mxu0
        %v9290 = vadd.f32 %v7864, %v9289
        %v9291 = vpop.f32.mrf.mxu0
        %v9292 = vadd.f32 %v7868, %v9291
        %9293 = vdwg.mxu0
        %9294 = vmatprep.subr.bf16.mxu0 %v8854
        %9295 = vmatpush1.bf16.msra.mxu0 %v8853
        %9296 = vmatprep.subr.bf16.mxu0 %v8846
        %9297 = vmatpush1.bf16.msra.mxu0 %v8845
        %9298 = vmatprep.subr.bf16.mxu0 %v8838
        %9299 = vmatpush1.bf16.msra.mxu0 %v8837
        %9300 = vmatprep.subr.bf16.mxu0 %v8830
        %9301 = vmatpush1.bf16.msra.mxu0 %v8829
        %9302 = vmatprep.subr.bf16.mxu0 %v8822
        %9303 = vmatpush1.bf16.msra.mxu0 %v8821
        %9304 = vmatprep.subr.bf16.mxu0 %v8814
        %9305 = vmatpush1.bf16.msra.mxu0 %v8813
        %9306 = vmatprep.subr.bf16.mxu0 %v8806
        %9307 = vmatpush1.bf16.msra.mxu0 %v8805
        %9308 = vmatprep.subr.bf16.mxu0 %v8798
        %9309 = vmatpush1.bf16.msra.mxu0 %v8797
        %9310 = vmatprep.subr.bf16.mxu0 %v8918
        %9311 = vmatpush2.bf16.msra.mxu0 %v8917
        %9312 = vmatprep.subr.bf16.mxu0 %v8910
        %9313 = vmatpush2.bf16.msra.mxu0 %v8909
        %9314 = vmatprep.subr.bf16.mxu0 %v8902
        %9315 = vmatpush2.bf16.msra.mxu0 %v8901
        %9316 = vmatprep.subr.bf16.mxu0 %v8894
        %9317 = vmatpush2.bf16.msra.mxu0 %v8893
        %9318 = vmatprep.subr.bf16.mxu0 %v8886
        %9319 = vmatpush2.bf16.msra.mxu0 %v8885
        %9320 = vmatprep.subr.bf16.mxu0 %v8878
        %9321 = vmatpush2.bf16.msra.mxu0 %v8877
        %9322 = vmatprep.subr.bf16.mxu0 %v8870
        %9323 = vmatpush2.bf16.msra.mxu0 %v8869
        %9324 = vmatprep.subr.bf16.mxu0 %v8862
        %9325 = vmatpush2.bf16.msra.mxu0 %v8861
        %9326 = vmatprep.mubr.bf16.mxu0 %v7574
        %9327 = vmatmul.mubr.bf16.gmra.mxu0 %v7573
        %v9328 = vpop.f32.mrf.mxu0
        %v9329 = vadd.f32 %v9216, %v9328
        %v9330 = vpop.f32.mrf.mxu0
        %v9331 = vadd.f32 %v9218, %v9330
        %v9332 = vpop.f32.mrf.mxu0
        %v9333 = vadd.f32 %v9220, %v9332
        %v9334 = vpop.f32.mrf.mxu0
        %v9335 = vadd.f32 %v9222, %v9334
        %9336 = vmatprep.mubr.bf16.mxu0 %v7578
        %9337 = vmatmul.mubr.bf16.gmra.mxu0 %v7577
        %v9338 = vpop.f32.mrf.mxu0
        %v9339 = vadd.f32 %v9226, %v9338
        %v9340 = vpop.f32.mrf.mxu0
        %v9341 = vadd.f32 %v9228, %v9340
        %v9342 = vpop.f32.mrf.mxu0
        %v9343 = vadd.f32 %v9230, %v9342
        %v9344 = vpop.f32.mrf.mxu0
        %v9345 = vadd.f32 %v9232, %v9344
        %9346 = vmatprep.mubr.bf16.mxu0 %v7582
        %9347 = vmatmul.mubr.bf16.gmra.mxu0 %v7581
        %v9348 = vpop.f32.mrf.mxu0
        %v9349 = vadd.f32 %v9236, %v9348
        %v9350 = vpop.f32.mrf.mxu0
        %v9351 = vadd.f32 %v9238, %v9350
        %v9352 = vpop.f32.mrf.mxu0
        %v9353 = vadd.f32 %v9240, %v9352
        %v9354 = vpop.f32.mrf.mxu0
        %v9355 = vadd.f32 %v9242, %v9354
        %9356 = vmatprep.mubr.bf16.mxu0 %v7586
        %9357 = vmatmul.mubr.bf16.gmra.mxu0 %v7585
        %v9358 = vpop.f32.mrf.mxu0
        %v9359 = vadd.f32 %v9246, %v9358
        %v9360 = vpop.f32.mrf.mxu0
        %v9361 = vadd.f32 %v9248, %v9360
        %v9362 = vpop.f32.mrf.mxu0
        %v9363 = vadd.f32 %v9250, %v9362
        %v9364 = vpop.f32.mrf.mxu0
        %v9365 = vadd.f32 %v9252, %v9364
        %9366 = vmatprep.mubr.bf16.mxu0 %v7590
        %9367 = vmatmul.mubr.bf16.gmra.mxu0 %v7589
        %v9368 = vpop.f32.mrf.mxu0
        %v9369 = vadd.f32 %v9256, %v9368
        %v9370 = vpop.f32.mrf.mxu0
        %v9371 = vadd.f32 %v9258, %v9370
        %v9372 = vpop.f32.mrf.mxu0
        %v9373 = vadd.f32 %v9260, %v9372
        %v9374 = vpop.f32.mrf.mxu0
        %v9375 = vadd.f32 %v9262, %v9374
        %9376 = vmatprep.mubr.bf16.mxu0 %v7594
        %9377 = vmatmul.mubr.bf16.gmra.mxu0 %v7593
        %v9378 = vpop.f32.mrf.mxu0
        %v9379 = vadd.f32 %v9266, %v9378
        %v9380 = vpop.f32.mrf.mxu0
        %v9381 = vadd.f32 %v9268, %v9380
        %v9382 = vpop.f32.mrf.mxu0
        %v9383 = vadd.f32 %v9270, %v9382
        %v9384 = vpop.f32.mrf.mxu0
        %v9385 = vadd.f32 %v9272, %v9384
        %9386 = vmatprep.mubr.bf16.mxu0 %v7598
        %9387 = vmatmul.mubr.bf16.gmra.mxu0 %v7597
        %v9388 = vpop.f32.mrf.mxu0
        %v9389 = vadd.f32 %v9276, %v9388
        %v9390 = vpop.f32.mrf.mxu0
        %v9391 = vadd.f32 %v9278, %v9390
        %v9392 = vpop.f32.mrf.mxu0
        %v9393 = vadd.f32 %v9280, %v9392
        %v9394 = vpop.f32.mrf.mxu0
        %v9395 = vadd.f32 %v9282, %v9394
        %9396 = vmatprep.mubr.bf16.mxu0 %v7602
        %9397 = vmatmul.mubr.bf16.gmra.mxu0 %v7601
        %v9398 = vpop.f32.mrf.mxu0
        %v9399 = vadd.f32 %v9286, %v9398
        %v9400 = vpop.f32.mrf.mxu0
        %v9401 = vadd.f32 %v9288, %v9400
        %v9402 = vpop.f32.mrf.mxu0
        %v9403 = vadd.f32 %v9290, %v9402
        %v9404 = vpop.f32.mrf.mxu0
        %v9405 = vadd.f32 %v9292, %v9404
        %9406 = vdwg.mxu0
        %9407 = vmatprep.subr.bf16.mxu0 %v8728
        %9408 = vmatpush1.bf16.msra.mxu0 %v8727
        %9409 = vmatprep.subr.bf16.mxu0 %v8720
        %9410 = vmatpush1.bf16.msra.mxu0 %v8719
        %9411 = vmatprep.subr.bf16.mxu0 %v8712
        %9412 = vmatpush1.bf16.msra.mxu0 %v8711
        %9413 = vmatprep.subr.bf16.mxu0 %v8704
        %9414 = vmatpush1.bf16.msra.mxu0 %v8703
        %9415 = vmatprep.subr.bf16.mxu0 %v8696
        %9416 = vmatpush1.bf16.msra.mxu0 %v8695
        %9417 = vmatprep.subr.bf16.mxu0 %v8688
        %9418 = vmatpush1.bf16.msra.mxu0 %v8687
        %9419 = vmatprep.subr.bf16.mxu0 %v8680
        %9420 = vmatpush1.bf16.msra.mxu0 %v8679
        %9421 = vmatprep.subr.bf16.mxu0 %v8672
        %9422 = vmatpush1.bf16.msra.mxu0 %v8671
        %9423 = vmatprep.subr.bf16.mxu0 %v8792
        %9424 = vmatpush2.bf16.msra.mxu0 %v8791
        %9425 = vmatprep.subr.bf16.mxu0 %v8784
        %9426 = vmatpush2.bf16.msra.mxu0 %v8783
        %9427 = vmatprep.subr.bf16.mxu0 %v8776
        %9428 = vmatpush2.bf16.msra.mxu0 %v8775
        %9429 = vmatprep.subr.bf16.mxu0 %v8768
        %9430 = vmatpush2.bf16.msra.mxu0 %v8767
        %9431 = vmatprep.subr.bf16.mxu0 %v8760
        %9432 = vmatpush2.bf16.msra.mxu0 %v8759
        %9433 = vmatprep.subr.bf16.mxu0 %v8752
        %9434 = vmatpush2.bf16.msra.mxu0 %v8751
        %9435 = vmatprep.subr.bf16.mxu0 %v8744
        %9436 = vmatpush2.bf16.msra.mxu0 %v8743
        %9437 = vmatprep.subr.bf16.mxu0 %v8736
        %9438 = vmatpush2.bf16.msra.mxu0 %v8735
        %9439 = vmatprep.mubr.bf16.mxu0 %v7572
        %9440 = vmatmul.mubr.bf16.gmra.mxu0 %v7571
        %v9441 = vpop.f32.mrf.mxu0
        %v9442 = vadd.f32 %v7872, %v9441
        %v9443 = vpop.f32.mrf.mxu0
        %v9444 = vadd.f32 %v7876, %v9443
        %v9445 = vpop.f32.mrf.mxu0
        %v9446 = vadd.f32 %v7872, %v9445
        %v9447 = vpop.f32.mrf.mxu0
        %v9448 = vadd.f32 %v7876, %v9447
        %9449 = vmatprep.mubr.bf16.mxu0 %v7576
        %9450 = vmatmul.mubr.bf16.gmra.mxu0 %v7575
        %v9451 = vpop.f32.mrf.mxu0
        %v9452 = vadd.f32 %v7872, %v9451
        %v9453 = vpop.f32.mrf.mxu0
        %v9454 = vadd.f32 %v7876, %v9453
        %v9455 = vpop.f32.mrf.mxu0
        %v9456 = vadd.f32 %v7872, %v9455
        %v9457 = vpop.f32.mrf.mxu0
        %v9458 = vadd.f32 %v7876, %v9457
        %9459 = vmatprep.mubr.bf16.mxu0 %v7580
        %9460 = vmatmul.mubr.bf16.gmra.mxu0 %v7579
        %v9461 = vpop.f32.mrf.mxu0
        %v9462 = vadd.f32 %v7872, %v9461
        %v9463 = vpop.f32.mrf.mxu0
        %v9464 = vadd.f32 %v7876, %v9463
        %v9465 = vpop.f32.mrf.mxu0
        %v9466 = vadd.f32 %v7872, %v9465
        %v9467 = vpop.f32.mrf.mxu0
        %v9468 = vadd.f32 %v7876, %v9467
        %9469 = vmatprep.mubr.bf16.mxu0 %v7584
        %9470 = vmatmul.mubr.bf16.gmra.mxu0 %v7583
        %v9471 = vpop.f32.mrf.mxu0
        %v9472 = vadd.f32 %v7872, %v9471
        %v9473 = vpop.f32.mrf.mxu0
        %v9474 = vadd.f32 %v7876, %v9473
        %v9475 = vpop.f32.mrf.mxu0
        %v9476 = vadd.f32 %v7872, %v9475
        %v9477 = vpop.f32.mrf.mxu0
        %v9478 = vadd.f32 %v7876, %v9477
        %9479 = vmatprep.mubr.bf16.mxu0 %v7588
        %9480 = vmatmul.mubr.bf16.gmra.mxu0 %v7587
        %v9481 = vpop.f32.mrf.mxu0
        %v9482 = vadd.f32 %v7872, %v9481
        %v9483 = vpop.f32.mrf.mxu0
        %v9484 = vadd.f32 %v7876, %v9483
        %v9485 = vpop.f32.mrf.mxu0
        %v9486 = vadd.f32 %v7872, %v9485
        %v9487 = vpop.f32.mrf.mxu0
        %v9488 = vadd.f32 %v7876, %v9487
        %9489 = vmatprep.mubr.bf16.mxu0 %v7592
        %9490 = vmatmul.mubr.bf16.gmra.mxu0 %v7591
        %v9491 = vpop.f32.mrf.mxu0
        %v9492 = vadd.f32 %v7872, %v9491
        %v9493 = vpop.f32.mrf.mxu0
        %v9494 = vadd.f32 %v7876, %v9493
        %v9495 = vpop.f32.mrf.mxu0
        %v9496 = vadd.f32 %v7872, %v9495
        %v9497 = vpop.f32.mrf.mxu0
        %v9498 = vadd.f32 %v7876, %v9497
        %9499 = vmatprep.mubr.bf16.mxu0 %v7596
        %9500 = vmatmul.mubr.bf16.gmra.mxu0 %v7595
        %v9501 = vpop.f32.mrf.mxu0
        %v9502 = vadd.f32 %v7872, %v9501
        %v9503 = vpop.f32.mrf.mxu0
        %v9504 = vadd.f32 %v7876, %v9503
        %v9505 = vpop.f32.mrf.mxu0
        %v9506 = vadd.f32 %v7872, %v9505
        %v9507 = vpop.f32.mrf.mxu0
        %v9508 = vadd.f32 %v7876, %v9507
        %9509 = vmatprep.mubr.bf16.mxu0 %v7600
        %9510 = vmatmul.mubr.bf16.gmra.mxu0 %v7599
        %v9511 = vpop.f32.mrf.mxu0
        %v9512 = vadd.f32 %v7872, %v9511
        %v9513 = vpop.f32.mrf.mxu0
        %v9514 = vadd.f32 %v7876, %v9513
        %v9515 = vpop.f32.mrf.mxu0
        %v9516 = vadd.f32 %v7872, %v9515
        %v9517 = vpop.f32.mrf.mxu0
        %v9518 = vadd.f32 %v7876, %v9517
        %9519 = vdwg.mxu0
        %9520 = vmatprep.subr.bf16.mxu0 %v8856
        %9521 = vmatpush1.bf16.msra.mxu0 %v8855
        %9522 = vmatprep.subr.bf16.mxu0 %v8848
        %9523 = vmatpush1.bf16.msra.mxu0 %v8847
        %9524 = vmatprep.subr.bf16.mxu0 %v8840
        %9525 = vmatpush1.bf16.msra.mxu0 %v8839
        %9526 = vmatprep.subr.bf16.mxu0 %v8832
        %9527 = vmatpush1.bf16.msra.mxu0 %v8831
        %9528 = vmatprep.subr.bf16.mxu0 %v8824
        %9529 = vmatpush1.bf16.msra.mxu0 %v8823
        %9530 = vmatprep.subr.bf16.mxu0 %v8816
        %9531 = vmatpush1.bf16.msra.mxu0 %v8815
        %9532 = vmatprep.subr.bf16.mxu0 %v8808
        %9533 = vmatpush1.bf16.msra.mxu0 %v8807
        %9534 = vmatprep.subr.bf16.mxu0 %v8800
        %9535 = vmatpush1.bf16.msra.mxu0 %v8799
        %9536 = vmatprep.subr.bf16.mxu0 %v8920
        %9537 = vmatpush2.bf16.msra.mxu0 %v8919
        %9538 = vmatprep.subr.bf16.mxu0 %v8912
        %9539 = vmatpush2.bf16.msra.mxu0 %v8911
        %9540 = vmatprep.subr.bf16.mxu0 %v8904
        %9541 = vmatpush2.bf16.msra.mxu0 %v8903
        %9542 = vmatprep.subr.bf16.mxu0 %v8896
        %9543 = vmatpush2.bf16.msra.mxu0 %v8895
        %9544 = vmatprep.subr.bf16.mxu0 %v8888
        %9545 = vmatpush2.bf16.msra.mxu0 %v8887
        %9546 = vmatprep.subr.bf16.mxu0 %v8880
        %9547 = vmatpush2.bf16.msra.mxu0 %v8879
        %9548 = vmatprep.subr.bf16.mxu0 %v8872
        %9549 = vmatpush2.bf16.msra.mxu0 %v8871
        %9550 = vmatprep.subr.bf16.mxu0 %v8864
        %9551 = vmatpush2.bf16.msra.mxu0 %v8863
        %9552 = vmatprep.mubr.bf16.mxu0 %v7574
        %9553 = vmatmul.mubr.bf16.gmra.mxu0 %v7573
        %v9554 = vpop.f32.mrf.mxu0
        %v9555 = vadd.f32 %v9442, %v9554
        %v9556 = vpop.f32.mrf.mxu0
        %v9557 = vadd.f32 %v9444, %v9556
        %v9558 = vpop.f32.mrf.mxu0
        %v9559 = vadd.f32 %v9446, %v9558
        %v9560 = vpop.f32.mrf.mxu0
        %v9561 = vadd.f32 %v9448, %v9560
        %9562 = vmatprep.mubr.bf16.mxu0 %v7578
        %9563 = vmatmul.mubr.bf16.gmra.mxu0 %v7577
        %v9564 = vpop.f32.mrf.mxu0
        %v9565 = vadd.f32 %v9452, %v9564
        %v9566 = vpop.f32.mrf.mxu0
        %v9567 = vadd.f32 %v9454, %v9566
        %v9568 = vpop.f32.mrf.mxu0
        %v9569 = vadd.f32 %v9456, %v9568
        %v9570 = vpop.f32.mrf.mxu0
        %v9571 = vadd.f32 %v9458, %v9570
        %9572 = vmatprep.mubr.bf16.mxu0 %v7582
        %9573 = vmatmul.mubr.bf16.gmra.mxu0 %v7581
        %v9574 = vpop.f32.mrf.mxu0
        %v9575 = vadd.f32 %v9462, %v9574
        %v9576 = vpop.f32.mrf.mxu0
        %v9577 = vadd.f32 %v9464, %v9576
        %v9578 = vpop.f32.mrf.mxu0
        %v9579 = vadd.f32 %v9466, %v9578
        %v9580 = vpop.f32.mrf.mxu0
        %v9581 = vadd.f32 %v9468, %v9580
        %9582 = vmatprep.mubr.bf16.mxu0 %v7586
        %9583 = vmatmul.mubr.bf16.gmra.mxu0 %v7585
        %v9584 = vpop.f32.mrf.mxu0
        %v9585 = vadd.f32 %v9472, %v9584
        %v9586 = vpop.f32.mrf.mxu0
        %v9587 = vadd.f32 %v9474, %v9586
        %v9588 = vpop.f32.mrf.mxu0
        %v9589 = vadd.f32 %v9476, %v9588
        %v9590 = vpop.f32.mrf.mxu0
        %v9591 = vadd.f32 %v9478, %v9590
        %9592 = vmatprep.mubr.bf16.mxu0 %v7590
        %9593 = vmatmul.mubr.bf16.gmra.mxu0 %v7589
        %v9594 = vpop.f32.mrf.mxu0
        %v9595 = vadd.f32 %v9482, %v9594
        %v9596 = vpop.f32.mrf.mxu0
        %v9597 = vadd.f32 %v9484, %v9596
        %v9598 = vpop.f32.mrf.mxu0
        %v9599 = vadd.f32 %v9486, %v9598
        %v9600 = vpop.f32.mrf.mxu0
        %v9601 = vadd.f32 %v9488, %v9600
        %9602 = vmatprep.mubr.bf16.mxu0 %v7594
        %9603 = vmatmul.mubr.bf16.gmra.mxu0 %v7593
        %v9604 = vpop.f32.mrf.mxu0
        %v9605 = vadd.f32 %v9492, %v9604
        %v9606 = vpop.f32.mrf.mxu0
        %v9607 = vadd.f32 %v9494, %v9606
        %v9608 = vpop.f32.mrf.mxu0
        %v9609 = vadd.f32 %v9496, %v9608
        %v9610 = vpop.f32.mrf.mxu0
        %v9611 = vadd.f32 %v9498, %v9610
        %9612 = vmatprep.mubr.bf16.mxu0 %v7598
        %9613 = vmatmul.mubr.bf16.gmra.mxu0 %v7597
        %v9614 = vpop.f32.mrf.mxu0
        %v9615 = vadd.f32 %v9502, %v9614
        %v9616 = vpop.f32.mrf.mxu0
        %v9617 = vadd.f32 %v9504, %v9616
        %v9618 = vpop.f32.mrf.mxu0
        %v9619 = vadd.f32 %v9506, %v9618
        %v9620 = vpop.f32.mrf.mxu0
        %v9621 = vadd.f32 %v9508, %v9620
        %9622 = vmatprep.mubr.bf16.mxu0 %v7602
        %9623 = vmatmul.mubr.bf16.gmra.mxu0 %v7601
        %v9624 = vpop.f32.mrf.mxu0
        %v9625 = vadd.f32 %v9512, %v9624
        %v9626 = vpop.f32.mrf.mxu0
        %v9627 = vadd.f32 %v9514, %v9626
        %v9628 = vpop.f32.mrf.mxu0
        %v9629 = vadd.f32 %v9516, %v9628
        %v9630 = vpop.f32.mrf.mxu0
        %v9631 = vadd.f32 %v9518, %v9630
        %9632 = vdwg.mxu0
        %9633 = vmatprep.subr.bf16.mxu0 %v8730
        %9634 = vmatpush1.bf16.msra.mxu0 %v8729
        %9635 = vmatprep.subr.bf16.mxu0 %v8722
        %9636 = vmatpush1.bf16.msra.mxu0 %v8721
        %9637 = vmatprep.subr.bf16.mxu0 %v8714
        %9638 = vmatpush1.bf16.msra.mxu0 %v8713
        %9639 = vmatprep.subr.bf16.mxu0 %v8706
        %9640 = vmatpush1.bf16.msra.mxu0 %v8705
        %9641 = vmatprep.subr.bf16.mxu0 %v8698
        %9642 = vmatpush1.bf16.msra.mxu0 %v8697
        %9643 = vmatprep.subr.bf16.mxu0 %v8690
        %9644 = vmatpush1.bf16.msra.mxu0 %v8689
        %9645 = vmatprep.subr.bf16.mxu0 %v8682
        %9646 = vmatpush1.bf16.msra.mxu0 %v8681
        %9647 = vmatprep.subr.bf16.mxu0 %v8674
        %9648 = vmatpush1.bf16.msra.mxu0 %v8673
        %9649 = vmatprep.subr.bf16.mxu0 %v8794
        %9650 = vmatpush2.bf16.msra.mxu0 %v8793
        %9651 = vmatprep.subr.bf16.mxu0 %v8786
        %9652 = vmatpush2.bf16.msra.mxu0 %v8785
        %9653 = vmatprep.subr.bf16.mxu0 %v8778
        %9654 = vmatpush2.bf16.msra.mxu0 %v8777
        %9655 = vmatprep.subr.bf16.mxu0 %v8770
        %9656 = vmatpush2.bf16.msra.mxu0 %v8769
        %9657 = vmatprep.subr.bf16.mxu0 %v8762
        %9658 = vmatpush2.bf16.msra.mxu0 %v8761
        %9659 = vmatprep.subr.bf16.mxu0 %v8754
        %9660 = vmatpush2.bf16.msra.mxu0 %v8753
        %9661 = vmatprep.subr.bf16.mxu0 %v8746
        %9662 = vmatpush2.bf16.msra.mxu0 %v8745
        %9663 = vmatprep.subr.bf16.mxu0 %v8738
        %9664 = vmatpush2.bf16.msra.mxu0 %v8737
        %9665 = vmatprep.mubr.bf16.mxu0 %v7572
        %9666 = vmatmul.mubr.bf16.gmra.mxu0 %v7571
        %v9667 = vpop.f32.mrf.mxu0
        %v9668 = vadd.f32 %v7880, %v9667
        %v9669 = vpop.f32.mrf.mxu0
        %v9670 = vadd.f32 %v7884, %v9669
        %v9671 = vpop.f32.mrf.mxu0
        %v9672 = vadd.f32 %v7880, %v9671
        %v9673 = vpop.f32.mrf.mxu0
        %v9674 = vadd.f32 %v7884, %v9673
        %9675 = vmatprep.mubr.bf16.mxu0 %v7576
        %9676 = vmatmul.mubr.bf16.gmra.mxu0 %v7575
        %v9677 = vpop.f32.mrf.mxu0
        %v9678 = vadd.f32 %v7880, %v9677
        %v9679 = vpop.f32.mrf.mxu0
        %v9680 = vadd.f32 %v7884, %v9679
        %v9681 = vpop.f32.mrf.mxu0
        %v9682 = vadd.f32 %v7880, %v9681
        %v9683 = vpop.f32.mrf.mxu0
        %v9684 = vadd.f32 %v7884, %v9683
        %9685 = vmatprep.mubr.bf16.mxu0 %v7580
        %9686 = vmatmul.mubr.bf16.gmra.mxu0 %v7579
        %v9687 = vpop.f32.mrf.mxu0
        %v9688 = vadd.f32 %v7880, %v9687
        %v9689 = vpop.f32.mrf.mxu0
        %v9690 = vadd.f32 %v7884, %v9689
        %v9691 = vpop.f32.mrf.mxu0
        %v9692 = vadd.f32 %v7880, %v9691
        %v9693 = vpop.f32.mrf.mxu0
        %v9694 = vadd.f32 %v7884, %v9693
        %9695 = vmatprep.mubr.bf16.mxu0 %v7584
        %9696 = vmatmul.mubr.bf16.gmra.mxu0 %v7583
        %v9697 = vpop.f32.mrf.mxu0
        %v9698 = vadd.f32 %v7880, %v9697
        %v9699 = vpop.f32.mrf.mxu0
        %v9700 = vadd.f32 %v7884, %v9699
        %v9701 = vpop.f32.mrf.mxu0
        %v9702 = vadd.f32 %v7880, %v9701
        %v9703 = vpop.f32.mrf.mxu0
        %v9704 = vadd.f32 %v7884, %v9703
        %9705 = vmatprep.mubr.bf16.mxu0 %v7588
        %9706 = vmatmul.mubr.bf16.gmra.mxu0 %v7587
        %v9707 = vpop.f32.mrf.mxu0
        %v9708 = vadd.f32 %v7880, %v9707
        %v9709 = vpop.f32.mrf.mxu0
        %v9710 = vadd.f32 %v7884, %v9709
        %v9711 = vpop.f32.mrf.mxu0
        %v9712 = vadd.f32 %v7880, %v9711
        %v9713 = vpop.f32.mrf.mxu0
        %v9714 = vadd.f32 %v7884, %v9713
        %9715 = vmatprep.mubr.bf16.mxu0 %v7592
        %9716 = vmatmul.mubr.bf16.gmra.mxu0 %v7591
        %v9717 = vpop.f32.mrf.mxu0
        %v9718 = vadd.f32 %v7880, %v9717
        %v9719 = vpop.f32.mrf.mxu0
        %v9720 = vadd.f32 %v7884, %v9719
        %v9721 = vpop.f32.mrf.mxu0
        %v9722 = vadd.f32 %v7880, %v9721
        %v9723 = vpop.f32.mrf.mxu0
        %v9724 = vadd.f32 %v7884, %v9723
        %9725 = vmatprep.mubr.bf16.mxu0 %v7596
        %9726 = vmatmul.mubr.bf16.gmra.mxu0 %v7595
        %v9727 = vpop.f32.mrf.mxu0
        %v9728 = vadd.f32 %v7880, %v9727
        %v9729 = vpop.f32.mrf.mxu0
        %v9730 = vadd.f32 %v7884, %v9729
        %v9731 = vpop.f32.mrf.mxu0
        %v9732 = vadd.f32 %v7880, %v9731
        %v9733 = vpop.f32.mrf.mxu0
        %v9734 = vadd.f32 %v7884, %v9733
        %9735 = vmatprep.mubr.bf16.mxu0 %v7600
        %9736 = vmatmul.mubr.bf16.gmra.mxu0 %v7599
        %v9737 = vpop.f32.mrf.mxu0
        %v9738 = vadd.f32 %v7880, %v9737
        %v9739 = vpop.f32.mrf.mxu0
        %v9740 = vadd.f32 %v7884, %v9739
        %v9741 = vpop.f32.mrf.mxu0
        %v9742 = vadd.f32 %v7880, %v9741
        %v9743 = vpop.f32.mrf.mxu0
        %v9744 = vadd.f32 %v7884, %v9743
        %9745 = vdwg.mxu0
        %9746 = vmatprep.subr.bf16.mxu0 %v8858
        %9747 = vmatpush1.bf16.msra.mxu0 %v8857
        %9748 = vmatprep.subr.bf16.mxu0 %v8850
        %9749 = vmatpush1.bf16.msra.mxu0 %v8849
        %9750 = vmatprep.subr.bf16.mxu0 %v8842
        %9751 = vmatpush1.bf16.msra.mxu0 %v8841
        %9752 = vmatprep.subr.bf16.mxu0 %v8834
        %9753 = vmatpush1.bf16.msra.mxu0 %v8833
        %9754 = vmatprep.subr.bf16.mxu0 %v8826
        %9755 = vmatpush1.bf16.msra.mxu0 %v8825
        %9756 = vmatprep.subr.bf16.mxu0 %v8818
        %9757 = vmatpush1.bf16.msra.mxu0 %v8817
        %9758 = vmatprep.subr.bf16.mxu0 %v8810
        %9759 = vmatpush1.bf16.msra.mxu0 %v8809
        %9760 = vmatprep.subr.bf16.mxu0 %v8802
        %9761 = vmatpush1.bf16.msra.mxu0 %v8801
        %9762 = vmatprep.subr.bf16.mxu0 %v8922
        %9763 = vmatpush2.bf16.msra.mxu0 %v8921
        %9764 = vmatprep.subr.bf16.mxu0 %v8914
        %9765 = vmatpush2.bf16.msra.mxu0 %v8913
        %9766 = vmatprep.subr.bf16.mxu0 %v8906
        %9767 = vmatpush2.bf16.msra.mxu0 %v8905
        %9768 = vmatprep.subr.bf16.mxu0 %v8898
        %9769 = vmatpush2.bf16.msra.mxu0 %v8897
        %9770 = vmatprep.subr.bf16.mxu0 %v8890
        %9771 = vmatpush2.bf16.msra.mxu0 %v8889
        %9772 = vmatprep.subr.bf16.mxu0 %v8882
        %9773 = vmatpush2.bf16.msra.mxu0 %v8881
        %9774 = vmatprep.subr.bf16.mxu0 %v8874
        %9775 = vmatpush2.bf16.msra.mxu0 %v8873
        %9776 = vmatprep.subr.bf16.mxu0 %v8866
        %9777 = vmatpush2.bf16.msra.mxu0 %v8865
        %9778 = vmatprep.mubr.bf16.mxu0 %v7574
        %9779 = vmatmul.mubr.bf16.gmra.mxu0 %v7573
        %v9780 = vpop.f32.mrf.mxu0
        %v9781 = vadd.f32 %v9668, %v9780
        %v9782 = vpop.f32.mrf.mxu0
        %v9783 = vadd.f32 %v9670, %v9782
        %v9784 = vpop.f32.mrf.mxu0
        %v9785 = vadd.f32 %v9672, %v9784
        %v9786 = vpop.f32.mrf.mxu0
        %v9787 = vadd.f32 %v9674, %v9786
        %9788 = vmatprep.mubr.bf16.mxu0 %v7578
        %9789 = vmatmul.mubr.bf16.gmra.mxu0 %v7577
        %v9790 = vpop.f32.mrf.mxu0
        %v9791 = vadd.f32 %v9678, %v9790
        %v9792 = vpop.f32.mrf.mxu0
        %v9793 = vadd.f32 %v9680, %v9792
        %v9794 = vpop.f32.mrf.mxu0
        %v9795 = vadd.f32 %v9682, %v9794
        %v9796 = vpop.f32.mrf.mxu0
        %v9797 = vadd.f32 %v9684, %v9796
        %9798 = vmatprep.mubr.bf16.mxu0 %v7582
        %9799 = vmatmul.mubr.bf16.gmra.mxu0 %v7581
        %v9800 = vpop.f32.mrf.mxu0
        %v9801 = vadd.f32 %v9688, %v9800
        %v9802 = vpop.f32.mrf.mxu0
        %v9803 = vadd.f32 %v9690, %v9802
        %v9804 = vpop.f32.mrf.mxu0
        %v9805 = vadd.f32 %v9692, %v9804
        %v9806 = vpop.f32.mrf.mxu0
        %v9807 = vadd.f32 %v9694, %v9806
        %9808 = vmatprep.mubr.bf16.mxu0 %v7586
        %9809 = vmatmul.mubr.bf16.gmra.mxu0 %v7585
        %v9810 = vpop.f32.mrf.mxu0
        %v9811 = vadd.f32 %v9698, %v9810
        %v9812 = vpop.f32.mrf.mxu0
        %v9813 = vadd.f32 %v9700, %v9812
        %v9814 = vpop.f32.mrf.mxu0
        %v9815 = vadd.f32 %v9702, %v9814
        %v9816 = vpop.f32.mrf.mxu0
        %v9817 = vadd.f32 %v9704, %v9816
        %9818 = vmatprep.mubr.bf16.mxu0 %v7590
        %9819 = vmatmul.mubr.bf16.gmra.mxu0 %v7589
        %v9820 = vpop.f32.mrf.mxu0
        %v9821 = vadd.f32 %v9708, %v9820
        %v9822 = vpop.f32.mrf.mxu0
        %v9823 = vadd.f32 %v9710, %v9822
        %v9824 = vpop.f32.mrf.mxu0
        %v9825 = vadd.f32 %v9712, %v9824
        %v9826 = vpop.f32.mrf.mxu0
        %v9827 = vadd.f32 %v9714, %v9826
        %9828 = vmatprep.mubr.bf16.mxu0 %v7594
        %9829 = vmatmul.mubr.bf16.gmra.mxu0 %v7593
        %v9830 = vpop.f32.mrf.mxu0
        %v9831 = vadd.f32 %v9718, %v9830
        %v9832 = vpop.f32.mrf.mxu0
        %v9833 = vadd.f32 %v9720, %v9832
        %v9834 = vpop.f32.mrf.mxu0
        %v9835 = vadd.f32 %v9722, %v9834
        %v9836 = vpop.f32.mrf.mxu0
        %v9837 = vadd.f32 %v9724, %v9836
        %9838 = vmatprep.mubr.bf16.mxu0 %v7598
        %9839 = vmatmul.mubr.bf16.gmra.mxu0 %v7597
        %v9840 = vpop.f32.mrf.mxu0
        %v9841 = vadd.f32 %v9728, %v9840
        %v9842 = vpop.f32.mrf.mxu0
        %v9843 = vadd.f32 %v9730, %v9842
        %v9844 = vpop.f32.mrf.mxu0
        %v9845 = vadd.f32 %v9732, %v9844
        %v9846 = vpop.f32.mrf.mxu0
        %v9847 = vadd.f32 %v9734, %v9846
        %9848 = vmatprep.mubr.bf16.mxu0 %v7602
        %9849 = vmatmul.mubr.bf16.gmra.mxu0 %v7601
        %v9850 = vpop.f32.mrf.mxu0
        %v9851 = vadd.f32 %v9738, %v9850
        %v9852 = vpop.f32.mrf.mxu0
        %v9853 = vadd.f32 %v9740, %v9852
        %v9854 = vpop.f32.mrf.mxu0
        %v9855 = vadd.f32 %v9742, %v9854
        %v9856 = vpop.f32.mrf.mxu0
        %v9857 = vadd.f32 %v9744, %v9856
        %9858 = vdwg.mxu0
        %9859 = vmatprep.subr.bf16.mxu0 %v8732
        %9860 = vmatpush1.bf16.msra.mxu0 %v8731
        %9861 = vmatprep.subr.bf16.mxu0 %v8724
        %9862 = vmatpush1.bf16.msra.mxu0 %v8723
        %9863 = vmatprep.subr.bf16.mxu0 %v8716
        %9864 = vmatpush1.bf16.msra.mxu0 %v8715
        %9865 = vmatprep.subr.bf16.mxu0 %v8708
        %9866 = vmatpush1.bf16.msra.mxu0 %v8707
        %9867 = vmatprep.subr.bf16.mxu0 %v8700
        %9868 = vmatpush1.bf16.msra.mxu0 %v8699
        %9869 = vmatprep.subr.bf16.mxu0 %v8692
        %9870 = vmatpush1.bf16.msra.mxu0 %v8691
        %9871 = vmatprep.subr.bf16.mxu0 %v8684
        %9872 = vmatpush1.bf16.msra.mxu0 %v8683
        %9873 = vmatprep.subr.bf16.mxu0 %v8676
        %9874 = vmatpush1.bf16.msra.mxu0 %v8675
        %9875 = vmatprep.subr.bf16.mxu0 %v8796
        %9876 = vmatpush2.bf16.msra.mxu0 %v8795
        %9877 = vmatprep.subr.bf16.mxu0 %v8788
        %9878 = vmatpush2.bf16.msra.mxu0 %v8787
        %9879 = vmatprep.subr.bf16.mxu0 %v8780
        %9880 = vmatpush2.bf16.msra.mxu0 %v8779
        %9881 = vmatprep.subr.bf16.mxu0 %v8772
        %9882 = vmatpush2.bf16.msra.mxu0 %v8771
        %9883 = vmatprep.subr.bf16.mxu0 %v8764
        %9884 = vmatpush2.bf16.msra.mxu0 %v8763
        %9885 = vmatprep.subr.bf16.mxu0 %v8756
        %9886 = vmatpush2.bf16.msra.mxu0 %v8755
        %9887 = vmatprep.subr.bf16.mxu0 %v8748
        %9888 = vmatpush2.bf16.msra.mxu0 %v8747
        %9889 = vmatprep.subr.bf16.mxu0 %v8740
        %9890 = vmatpush2.bf16.msra.mxu0 %v8739
        %9891 = vmatprep.mubr.bf16.mxu0 %v7572
        %9892 = vmatmul.mubr.bf16.gmra.mxu0 %v7571
        %v9893 = vpop.f32.mrf.mxu0
        %v9894 = vadd.f32 %v7888, %v9893
        %v9895 = vpop.f32.mrf.mxu0
        %v9896 = vadd.f32 %v7892, %v9895
        %v9897 = vpop.f32.mrf.mxu0
        %v9898 = vadd.f32 %v7888, %v9897
        %v9899 = vpop.f32.mrf.mxu0
        %v9900 = vadd.f32 %v7892, %v9899
        %9901 = vmatprep.mubr.bf16.mxu0 %v7576
        %9902 = vmatmul.mubr.bf16.gmra.mxu0 %v7575
        %v9903 = vpop.f32.mrf.mxu0
        %v9904 = vadd.f32 %v7888, %v9903
        %v9905 = vpop.f32.mrf.mxu0
        %v9906 = vadd.f32 %v7892, %v9905
        %v9907 = vpop.f32.mrf.mxu0
        %v9908 = vadd.f32 %v7888, %v9907
        %v9909 = vpop.f32.mrf.mxu0
        %v9910 = vadd.f32 %v7892, %v9909
        %9911 = vmatprep.mubr.bf16.mxu0 %v7580
        %9912 = vmatmul.mubr.bf16.gmra.mxu0 %v7579
        %v9913 = vpop.f32.mrf.mxu0
        %v9914 = vadd.f32 %v7888, %v9913
        %v9915 = vpop.f32.mrf.mxu0
        %v9916 = vadd.f32 %v7892, %v9915
        %v9917 = vpop.f32.mrf.mxu0
        %v9918 = vadd.f32 %v7888, %v9917
        %v9919 = vpop.f32.mrf.mxu0
        %v9920 = vadd.f32 %v7892, %v9919
        %9921 = vmatprep.mubr.bf16.mxu0 %v7584
        %9922 = vmatmul.mubr.bf16.gmra.mxu0 %v7583
        %v9923 = vpop.f32.mrf.mxu0
        %v9924 = vadd.f32 %v7888, %v9923
        %v9925 = vpop.f32.mrf.mxu0
        %v9926 = vadd.f32 %v7892, %v9925
        %v9927 = vpop.f32.mrf.mxu0
        %v9928 = vadd.f32 %v7888, %v9927
        %v9929 = vpop.f32.mrf.mxu0
        %v9930 = vadd.f32 %v7892, %v9929
        %9931 = vmatprep.mubr.bf16.mxu0 %v7588
        %9932 = vmatmul.mubr.bf16.gmra.mxu0 %v7587
        %v9933 = vpop.f32.mrf.mxu0
        %v9934 = vadd.f32 %v7888, %v9933
        %v9935 = vpop.f32.mrf.mxu0
        %v9936 = vadd.f32 %v7892, %v9935
        %v9937 = vpop.f32.mrf.mxu0
        %v9938 = vadd.f32 %v7888, %v9937
        %v9939 = vpop.f32.mrf.mxu0
        %v9940 = vadd.f32 %v7892, %v9939
        %9941 = vmatprep.mubr.bf16.mxu0 %v7592
        %9942 = vmatmul.mubr.bf16.gmra.mxu0 %v7591
        %v9943 = vpop.f32.mrf.mxu0
        %v9944 = vadd.f32 %v7888, %v9943
        %v9945 = vpop.f32.mrf.mxu0
        %v9946 = vadd.f32 %v7892, %v9945
        %v9947 = vpop.f32.mrf.mxu0
        %v9948 = vadd.f32 %v7888, %v9947
        %v9949 = vpop.f32.mrf.mxu0
        %v9950 = vadd.f32 %v7892, %v9949
        %9951 = vmatprep.mubr.bf16.mxu0 %v7596
        %9952 = vmatmul.mubr.bf16.gmra.mxu0 %v7595
        %v9953 = vpop.f32.mrf.mxu0
        %v9954 = vadd.f32 %v7888, %v9953
        %v9955 = vpop.f32.mrf.mxu0
        %v9956 = vadd.f32 %v7892, %v9955
        %v9957 = vpop.f32.mrf.mxu0
        %v9958 = vadd.f32 %v7888, %v9957
        %v9959 = vpop.f32.mrf.mxu0
        %v9960 = vadd.f32 %v7892, %v9959
        %9961 = vmatprep.mubr.bf16.mxu0 %v7600
        %9962 = vmatmul.mubr.bf16.gmra.mxu0 %v7599
        %v9963 = vpop.f32.mrf.mxu0
        %v9964 = vadd.f32 %v7888, %v9963
        %v9965 = vpop.f32.mrf.mxu0
        %v9966 = vadd.f32 %v7892, %v9965
        %v9967 = vpop.f32.mrf.mxu0
        %v9968 = vadd.f32 %v7888, %v9967
        %v9969 = vpop.f32.mrf.mxu0
        %v9970 = vadd.f32 %v7892, %v9969
        %9971 = vdwg.mxu0
        %9972 = vmatprep.subr.bf16.mxu0 %v8860
        %9973 = vmatpush1.bf16.msra.mxu0 %v8859
        %9974 = vmatprep.subr.bf16.mxu0 %v8852
        %9975 = vmatpush1.bf16.msra.mxu0 %v8851
        %9976 = vmatprep.subr.bf16.mxu0 %v8844
        %9977 = vmatpush1.bf16.msra.mxu0 %v8843
        %9978 = vmatprep.subr.bf16.mxu0 %v8836
        %9979 = vmatpush1.bf16.msra.mxu0 %v8835
        %9980 = vmatprep.subr.bf16.mxu0 %v8828
        %9981 = vmatpush1.bf16.msra.mxu0 %v8827
        %9982 = vmatprep.subr.bf16.mxu0 %v8820
        %9983 = vmatpush1.bf16.msra.mxu0 %v8819
        %9984 = vmatprep.subr.bf16.mxu0 %v8812
        %9985 = vmatpush1.bf16.msra.mxu0 %v8811
        %9986 = vmatprep.subr.bf16.mxu0 %v8804
        %9987 = vmatpush1.bf16.msra.mxu0 %v8803
        %9988 = vmatprep.subr.bf16.mxu0 %v8924
        %9989 = vmatpush2.bf16.msra.mxu0 %v8923
        %9990 = vmatprep.subr.bf16.mxu0 %v8916
        %9991 = vmatpush2.bf16.msra.mxu0 %v8915
        %9992 = vmatprep.subr.bf16.mxu0 %v8908
        %9993 = vmatpush2.bf16.msra.mxu0 %v8907
        %9994 = vmatprep.subr.bf16.mxu0 %v8900
        %9995 = vmatpush2.bf16.msra.mxu0 %v8899
        %9996 = vmatprep.subr.bf16.mxu0 %v8892
        %9997 = vmatpush2.bf16.msra.mxu0 %v8891
        %9998 = vmatprep.subr.bf16.mxu0 %v8884
        %9999 = vmatpush2.bf16.msra.mxu0 %v8883
        %10000 = vmatprep.subr.bf16.mxu0 %v8876
        %10001 = vmatpush2.bf16.msra.mxu0 %v8875
        %10002 = vmatprep.subr.bf16.mxu0 %v8868
        %10003 = vmatpush2.bf16.msra.mxu0 %v8867
        %10004 = vmatprep.mubr.bf16.mxu0 %v7574
        %10005 = vmatmul.mubr.bf16.gmra.mxu0 %v7573
        %v10006 = vpop.f32.mrf.mxu0
        %v10007 = vadd.f32 %v9894, %v10006
        %v10008 = vpop.f32.mrf.mxu0
        %v10009 = vadd.f32 %v9896, %v10008
        %v10010 = vpop.f32.mrf.mxu0
        %v10011 = vadd.f32 %v9898, %v10010
        %v10012 = vpop.f32.mrf.mxu0
        %v10013 = vadd.f32 %v9900, %v10012
        %10014 = vmatprep.mubr.bf16.mxu0 %v7578
        %10015 = vmatmul.mubr.bf16.gmra.mxu0 %v7577
        %v10016 = vpop.f32.mrf.mxu0
        %v10017 = vadd.f32 %v9904, %v10016
        %v10018 = vpop.f32.mrf.mxu0
        %v10019 = vadd.f32 %v9906, %v10018
        %v10020 = vpop.f32.mrf.mxu0
        %v10021 = vadd.f32 %v9908, %v10020
        %v10022 = vpop.f32.mrf.mxu0
        %v10023 = vadd.f32 %v9910, %v10022
        %10024 = vmatprep.mubr.bf16.mxu0 %v7582
        %10025 = vmatmul.mubr.bf16.gmra.mxu0 %v7581
        %v10026 = vpop.f32.mrf.mxu0
        %v10027 = vadd.f32 %v9914, %v10026
        %v10028 = vpop.f32.mrf.mxu0
        %v10029 = vadd.f32 %v9916, %v10028
        %v10030 = vpop.f32.mrf.mxu0
        %v10031 = vadd.f32 %v9918, %v10030
        %v10032 = vpop.f32.mrf.mxu0
        %v10033 = vadd.f32 %v9920, %v10032
        %10034 = vmatprep.mubr.bf16.mxu0 %v7586
        %10035 = vmatmul.mubr.bf16.gmra.mxu0 %v7585
        %v10036 = vpop.f32.mrf.mxu0
        %v10037 = vadd.f32 %v9924, %v10036
        %v10038 = vpop.f32.mrf.mxu0
        %v10039 = vadd.f32 %v9926, %v10038
        %v10040 = vpop.f32.mrf.mxu0
        %v10041 = vadd.f32 %v9928, %v10040
        %v10042 = vpop.f32.mrf.mxu0
        %v10043 = vadd.f32 %v9930, %v10042
        %10044 = vmatprep.mubr.bf16.mxu0 %v7590
        %10045 = vmatmul.mubr.bf16.gmra.mxu0 %v7589
        %v10046 = vpop.f32.mrf.mxu0
        %v10047 = vadd.f32 %v9934, %v10046
        %v10048 = vpop.f32.mrf.mxu0
        %v10049 = vadd.f32 %v9936, %v10048
        %v10050 = vpop.f32.mrf.mxu0
        %v10051 = vadd.f32 %v9938, %v10050
        %v10052 = vpop.f32.mrf.mxu0
        %v10053 = vadd.f32 %v9940, %v10052
        %10054 = vmatprep.mubr.bf16.mxu0 %v7594
        %10055 = vmatmul.mubr.bf16.gmra.mxu0 %v7593
        %v10056 = vpop.f32.mrf.mxu0
        %v10057 = vadd.f32 %v9944, %v10056
        %v10058 = vpop.f32.mrf.mxu0
        %v10059 = vadd.f32 %v9946, %v10058
        %v10060 = vpop.f32.mrf.mxu0
        %v10061 = vadd.f32 %v9948, %v10060
        %v10062 = vpop.f32.mrf.mxu0
        %v10063 = vadd.f32 %v9950, %v10062
        %10064 = vmatprep.mubr.bf16.mxu0 %v7598
        %10065 = vmatmul.mubr.bf16.gmra.mxu0 %v7597
        %v10066 = vpop.f32.mrf.mxu0
        %v10067 = vadd.f32 %v9954, %v10066
        %v10068 = vpop.f32.mrf.mxu0
        %v10069 = vadd.f32 %v9956, %v10068
        %v10070 = vpop.f32.mrf.mxu0
        %v10071 = vadd.f32 %v9958, %v10070
        %v10072 = vpop.f32.mrf.mxu0
        %v10073 = vadd.f32 %v9960, %v10072
        %10074 = vmatprep.mubr.bf16.mxu0 %v7602
        %10075 = vmatmul.mubr.bf16.gmra.mxu0 %v7601
        %v10076 = vpop.f32.mrf.mxu0
        %v10077 = vadd.f32 %v9964, %v10076
        %v10078 = vpop.f32.mrf.mxu0
        %v10079 = vadd.f32 %v9966, %v10078
        %v10080 = vpop.f32.mrf.mxu0
        %v10081 = vadd.f32 %v9968, %v10080
        %v10082 = vpop.f32.mrf.mxu0
        %v10083 = vadd.f32 %v9970, %v10082
        %10084 = vdwg.mxu0
        %v10085 = vmax.f32 %v9329, 0.0
        %v10086 = vmax.f32 %v9331, 0.0
        %v10087 = vmax.f32 %v9555, 0.0
        %v10088 = vmax.f32 %v9557, 0.0
        %v10089 = vmax.f32 %v9781, 0.0
        %v10090 = vmax.f32 %v9783, 0.0
        %v10091 = vmax.f32 %v10007, 0.0
        %v10092 = vmax.f32 %v10009, 0.0
        %v10093 = vmax.f32 %v9333, 0.0
        %v10094 = vmax.f32 %v9335, 0.0
        %v10095 = vmax.f32 %v9559, 0.0
        %v10096 = vmax.f32 %v9561, 0.0
        %v10097 = vmax.f32 %v9785, 0.0
        %v10098 = vmax.f32 %v9787, 0.0
        %v10099 = vmax.f32 %v10011, 0.0
        %v10100 = vmax.f32 %v10013, 0.0
        %v10101 = vmax.f32 %v9339, 0.0
        %v10102 = vmax.f32 %v9341, 0.0
        %v10103 = vmax.f32 %v9565, 0.0
        %v10104 = vmax.f32 %v9567, 0.0
        %v10105 = vmax.f32 %v9791, 0.0
        %v10106 = vmax.f32 %v9793, 0.0
        %v10107 = vmax.f32 %v10017, 0.0
        %v10108 = vmax.f32 %v10019, 0.0
        %v10109 = vmax.f32 %v9343, 0.0
        %v10110 = vmax.f32 %v9345, 0.0
        %v10111 = vmax.f32 %v9569, 0.0
        %v10112 = vmax.f32 %v9571, 0.0
        %v10113 = vmax.f32 %v9795, 0.0
        %v10114 = vmax.f32 %v9797, 0.0
        %v10115 = vmax.f32 %v10021, 0.0
        %v10116 = vmax.f32 %v10023, 0.0
        %v10117 = vmax.f32 %v9349, 0.0
        %v10118 = vmax.f32 %v9351, 0.0
        %v10119 = vmax.f32 %v9575, 0.0
        %v10120 = vmax.f32 %v9577, 0.0
        %v10121 = vmax.f32 %v9801, 0.0
        %v10122 = vmax.f32 %v9803, 0.0
        %v10123 = vmax.f32 %v10027, 0.0
        %v10124 = vmax.f32 %v10029, 0.0
        %v10125 = vmax.f32 %v9353, 0.0
        %v10126 = vmax.f32 %v9355, 0.0
        %v10127 = vmax.f32 %v9579, 0.0
        %v10128 = vmax.f32 %v9581, 0.0
        %v10129 = vmax.f32 %v9805, 0.0
        %v10130 = vmax.f32 %v9807, 0.0
        %v10131 = vmax.f32 %v10031, 0.0
        %v10132 = vmax.f32 %v10033, 0.0
        %v10133 = vmax.f32 %v9359, 0.0
        %v10134 = vmax.f32 %v9361, 0.0
        %v10135 = vmax.f32 %v9585, 0.0
        %v10136 = vmax.f32 %v9587, 0.0
        %v10137 = vmax.f32 %v9811, 0.0
        %v10138 = vmax.f32 %v9813, 0.0
        %v10139 = vmax.f32 %v10037, 0.0
        %v10140 = vmax.f32 %v10039, 0.0
        %v10141 = vmax.f32 %v9363, 0.0
        %v10142 = vmax.f32 %v9365, 0.0
        %v10143 = vmax.f32 %v9589, 0.0
        %v10144 = vmax.f32 %v9591, 0.0
        %v10145 = vmax.f32 %v9815, 0.0
        %v10146 = vmax.f32 %v9817, 0.0
        %v10147 = vmax.f32 %v10041, 0.0
        %v10148 = vmax.f32 %v10043, 0.0
        %v10149 = vmax.f32 %v9369, 0.0
        %v10150 = vmax.f32 %v9371, 0.0
        %v10151 = vmax.f32 %v9595, 0.0
        %v10152 = vmax.f32 %v9597, 0.0
        %v10153 = vmax.f32 %v9821, 0.0
        %v10154 = vmax.f32 %v9823, 0.0
        %v10155 = vmax.f32 %v10047, 0.0
        %v10156 = vmax.f32 %v10049, 0.0
        %v10157 = vmax.f32 %v9373, 0.0
        %v10158 = vmax.f32 %v9375, 0.0
        %v10159 = vmax.f32 %v9599, 0.0
        %v10160 = vmax.f32 %v9601, 0.0
        %v10161 = vmax.f32 %v9825, 0.0
        %v10162 = vmax.f32 %v9827, 0.0
        %v10163 = vmax.f32 %v10051, 0.0
        %v10164 = vmax.f32 %v10053, 0.0
        %v10165 = vmax.f32 %v9379, 0.0
        %v10166 = vmax.f32 %v9381, 0.0
        %v10167 = vmax.f32 %v9605, 0.0
        %v10168 = vmax.f32 %v9607, 0.0
        %v10169 = vmax.f32 %v9831, 0.0
        %v10170 = vmax.f32 %v9833, 0.0
        %v10171 = vmax.f32 %v10057, 0.0
        %v10172 = vmax.f32 %v10059, 0.0
        %v10173 = vmax.f32 %v9383, 0.0
        %v10174 = vmax.f32 %v9385, 0.0
        %v10175 = vmax.f32 %v9609, 0.0
        %v10176 = vmax.f32 %v9611, 0.0
        %v10177 = vmax.f32 %v9835, 0.0
        %v10178 = vmax.f32 %v9837, 0.0
        %v10179 = vmax.f32 %v10061, 0.0
        %v10180 = vmax.f32 %v10063, 0.0
        %v10181 = vmax.f32 %v9389, 0.0
        %v10182 = vmax.f32 %v9391, 0.0
        %v10183 = vmax.f32 %v9615, 0.0
        %v10184 = vmax.f32 %v9617, 0.0
        %v10185 = vmax.f32 %v9841, 0.0
        %v10186 = vmax.f32 %v9843, 0.0
        %v10187 = vmax.f32 %v10067, 0.0
        %v10188 = vmax.f32 %v10069, 0.0
        %v10189 = vmax.f32 %v9393, 0.0
        %v10190 = vmax.f32 %v9395, 0.0
        %v10191 = vmax.f32 %v9619, 0.0
        %v10192 = vmax.f32 %v9621, 0.0
        %v10193 = vmax.f32 %v9845, 0.0
        %v10194 = vmax.f32 %v9847, 0.0
        %v10195 = vmax.f32 %v10071, 0.0
        %v10196 = vmax.f32 %v10073, 0.0
        %v10197 = vmax.f32 %v9399, 0.0
        %v10198 = vmax.f32 %v9401, 0.0
        %v10199 = vmax.f32 %v9625, 0.0
        %v10200 = vmax.f32 %v9627, 0.0
        %v10201 = vmax.f32 %v9851, 0.0
        %v10202 = vmax.f32 %v9853, 0.0
        %v10203 = vmax.f32 %v10077, 0.0
        %v10204 = vmax.f32 %v10079, 0.0
        %v10205 = vmax.f32 %v9403, 0.0
        %v10206 = vmax.f32 %v9405, 0.0
        %v10207 = vmax.f32 %v9629, 0.0
        %v10208 = vmax.f32 %v9631, 0.0
        %v10209 = vmax.f32 %v9855, 0.0
        %v10210 = vmax.f32 %v9857, 0.0
        %v10211 = vmax.f32 %v10081, 0.0
        %v10212 = vmax.f32 %v10083, 0.0
        %v10213 = vpack.c.bf16 %v10093, %v10085
        %v10214 = vpack.c.bf16 %v10094, %v10086
        %v10215 = vpack.c.bf16 %v10095, %v10087
        %v10216 = vpack.c.bf16 %v10096, %v10088
        %v10217 = vpack.c.bf16 %v10097, %v10089
        %v10218 = vpack.c.bf16 %v10098, %v10090
        %v10219 = vpack.c.bf16 %v10099, %v10091
        %v10220 = vpack.c.bf16 %v10100, %v10092
        %v10221 = vpack.c.bf16 %v10109, %v10101
        %v10222 = vpack.c.bf16 %v10110, %v10102
        %v10223 = vpack.c.bf16 %v10111, %v10103
        %v10224 = vpack.c.bf16 %v10112, %v10104
        %v10225 = vpack.c.bf16 %v10113, %v10105
        %v10226 = vpack.c.bf16 %v10114, %v10106
        %v10227 = vpack.c.bf16 %v10115, %v10107
        %v10228 = vpack.c.bf16 %v10116, %v10108
        %v10229 = vpack.c.bf16 %v10125, %v10117
        %v10230 = vpack.c.bf16 %v10126, %v10118
        %v10231 = vpack.c.bf16 %v10127, %v10119
        %v10232 = vpack.c.bf16 %v10128, %v10120
        %v10233 = vpack.c.bf16 %v10129, %v10121
        %v10234 = vpack.c.bf16 %v10130, %v10122
        %v10235 = vpack.c.bf16 %v10131, %v10123
        %v10236 = vpack.c.bf16 %v10132, %v10124
        %v10237 = vpack.c.bf16 %v10141, %v10133
        %v10238 = vpack.c.bf16 %v10142, %v10134
        %v10239 = vpack.c.bf16 %v10143, %v10135
        %v10240 = vpack.c.bf16 %v10144, %v10136
        %v10241 = vpack.c.bf16 %v10145, %v10137
        %v10242 = vpack.c.bf16 %v10146, %v10138
        %v10243 = vpack.c.bf16 %v10147, %v10139
        %v10244 = vpack.c.bf16 %v10148, %v10140
        %v10245 = vpack.c.bf16 %v10157, %v10149
        %v10246 = vpack.c.bf16 %v10158, %v10150
        %v10247 = vpack.c.bf16 %v10159, %v10151
        %v10248 = vpack.c.bf16 %v10160, %v10152
        %v10249 = vpack.c.bf16 %v10161, %v10153
        %v10250 = vpack.c.bf16 %v10162, %v10154
        %v10251 = vpack.c.bf16 %v10163, %v10155
        %v10252 = vpack.c.bf16 %v10164, %v10156
        %v10253 = vpack.c.bf16 %v10173, %v10165
        %v10254 = vpack.c.bf16 %v10174, %v10166
        %v10255 = vpack.c.bf16 %v10175, %v10167
        %v10256 = vpack.c.bf16 %v10176, %v10168
        %v10257 = vpack.c.bf16 %v10177, %v10169
        %v10258 = vpack.c.bf16 %v10178, %v10170
        %v10259 = vpack.c.bf16 %v10179, %v10171
        %v10260 = vpack.c.bf16 %v10180, %v10172
        %v10261 = vpack.c.bf16 %v10189, %v10181
        %v10262 = vpack.c.bf16 %v10190, %v10182
        %v10263 = vpack.c.bf16 %v10191, %v10183
        %v10264 = vpack.c.bf16 %v10192, %v10184
        %v10265 = vpack.c.bf16 %v10193, %v10185
        %v10266 = vpack.c.bf16 %v10194, %v10186
        %v10267 = vpack.c.bf16 %v10195, %v10187
        %v10268 = vpack.c.bf16 %v10196, %v10188
        %v10269 = vpack.c.bf16 %v10205, %v10197
        %v10270 = vpack.c.bf16 %v10206, %v10198
        %v10271 = vpack.c.bf16 %v10207, %v10199
        %v10272 = vpack.c.bf16 %v10208, %v10200
        %v10273 = vpack.c.bf16 %v10209, %v10201
        %v10274 = vpack.c.bf16 %v10210, %v10202
        %v10275 = vpack.c.bf16 %v10211, %v10203
        %v10276 = vpack.c.bf16 %v10212, %v10204
        %v10277 = vld [vmem:[#allocation17] sm:$0xff]
        %v10278 = vld [vmem:[#allocation17 + $0x8] sm:$0xff]
        %v10279 = vld [vmem:[#allocation17 + $0x10] sm:$0xff]
        %v10280 = vld [vmem:[#allocation17 + $0x18] sm:$0xff]
        %v10281 = vld [vmem:[#allocation17 + $0x20] sm:$0xff]
        %v10282 = vld [vmem:[#allocation17 + $0x28] sm:$0xff]
        %v10283 = vld [vmem:[#allocation17 + $0x30] sm:$0xff]
        %v10284 = vld [vmem:[#allocation17 + $0x38] sm:$0xff]
        %v10285 = vld [vmem:[#allocation17 + $0x40] sm:$0xff]
        %v10286 = vld [vmem:[#allocation17 + $0x48] sm:$0xff]
        %v10287 = vld [vmem:[#allocation17 + $0x50] sm:$0xff]
        %v10288 = vld [vmem:[#allocation17 + $0x58] sm:$0xff]
        %v10289 = vld [vmem:[#allocation17 + $0x60] sm:$0xff]
        %v10290 = vld [vmem:[#allocation17 + $0x68] sm:$0xff]
        %v10291 = vld [vmem:[#allocation17 + $0x70] sm:$0xff]
        %v10292 = vld [vmem:[#allocation17 + $0x78] sm:$0xff]
        %v10293 = vld [vmem:[#allocation17 + $0x80] sm:$0xff]
        %v10294 = vld [vmem:[#allocation17 + $0x88] sm:$0xff]
        %v10295 = vld [vmem:[#allocation17 + $0x90] sm:$0xff]
        %v10296 = vld [vmem:[#allocation17 + $0x98] sm:$0xff]
        %v10297 = vld [vmem:[#allocation17 + $0xa0] sm:$0xff]
        %v10298 = vld [vmem:[#allocation17 + $0xa8] sm:$0xff]
        %v10299 = vld [vmem:[#allocation17 + $0xb0] sm:$0xff]
        %v10300 = vld [vmem:[#allocation17 + $0xb8] sm:$0xff]
        %v10301 = vld [vmem:[#allocation17 + $0xc0] sm:$0xff]
        %v10302 = vld [vmem:[#allocation17 + $0xc8] sm:$0xff]
        %v10303 = vld [vmem:[#allocation17 + $0xd0] sm:$0xff]
        %v10304 = vld [vmem:[#allocation17 + $0xd8] sm:$0xff]
        %v10305 = vld [vmem:[#allocation17 + $0xe0] sm:$0xff]
        %v10306 = vld [vmem:[#allocation17 + $0xe8] sm:$0xff]
        %v10307 = vld [vmem:[#allocation17 + $0xf0] sm:$0xff]
        %v10308 = vld [vmem:[#allocation17 + $0xf8] sm:$0xff]
        %v10309 = vld [vmem:[#allocation17 + $0x100] sm:$0xff]
        %v10310 = vld [vmem:[#allocation17 + $0x108] sm:$0xff]
        %v10311 = vld [vmem:[#allocation17 + $0x110] sm:$0xff]
        %v10312 = vld [vmem:[#allocation17 + $0x118] sm:$0xff]
        %v10313 = vld [vmem:[#allocation17 + $0x120] sm:$0xff]
        %v10314 = vld [vmem:[#allocation17 + $0x128] sm:$0xff]
        %v10315 = vld [vmem:[#allocation17 + $0x130] sm:$0xff]
        %v10316 = vld [vmem:[#allocation17 + $0x138] sm:$0xff]
        %v10317 = vld [vmem:[#allocation17 + $0x140] sm:$0xff]
        %v10318 = vld [vmem:[#allocation17 + $0x148] sm:$0xff]
        %v10319 = vld [vmem:[#allocation17 + $0x150] sm:$0xff]
        %v10320 = vld [vmem:[#allocation17 + $0x158] sm:$0xff]
        %v10321 = vld [vmem:[#allocation17 + $0x160] sm:$0xff]
        %v10322 = vld [vmem:[#allocation17 + $0x168] sm:$0xff]
        %v10323 = vld [vmem:[#allocation17 + $0x170] sm:$0xff]
        %v10324 = vld [vmem:[#allocation17 + $0x178] sm:$0xff]
        %v10325 = vld [vmem:[#allocation17 + $0x180] sm:$0xff]
        %v10326 = vld [vmem:[#allocation17 + $0x188] sm:$0xff]
        %v10327 = vld [vmem:[#allocation17 + $0x190] sm:$0xff]
        %v10328 = vld [vmem:[#allocation17 + $0x198] sm:$0xff]
        %v10329 = vld [vmem:[#allocation17 + $0x1a0] sm:$0xff]
        %v10330 = vld [vmem:[#allocation17 + $0x1a8] sm:$0xff]
        %v10331 = vld [vmem:[#allocation17 + $0x1b0] sm:$0xff]
        %v10332 = vld [vmem:[#allocation17 + $0x1b8] sm:$0xff]
        %v10333 = vld [vmem:[#allocation17 + $0x1c0] sm:$0xff]
        %v10334 = vld [vmem:[#allocation17 + $0x1c8] sm:$0xff]
        %v10335 = vld [vmem:[#allocation17 + $0x1d0] sm:$0xff]
        %v10336 = vld [vmem:[#allocation17 + $0x1d8] sm:$0xff]
        %v10337 = vld [vmem:[#allocation17 + $0x1e0] sm:$0xff]
        %v10338 = vld [vmem:[#allocation17 + $0x1e8] sm:$0xff]
        %v10339 = vld [vmem:[#allocation17 + $0x1f0] sm:$0xff]
        %v10340 = vld [vmem:[#allocation17 + $0x1f8] sm:$0xff]
        %v10341 = vld [vmem:[#allocation17 + $0x200] sm:$0xff]
        %v10342 = vld [vmem:[#allocation17 + $0x208] sm:$0xff]
        %v10343 = vld [vmem:[#allocation17 + $0x210] sm:$0xff]
        %v10344 = vld [vmem:[#allocation17 + $0x218] sm:$0xff]
        %v10345 = vld [vmem:[#allocation17 + $0x220] sm:$0xff]
        %v10346 = vld [vmem:[#allocation17 + $0x228] sm:$0xff]
        %v10347 = vld [vmem:[#allocation17 + $0x230] sm:$0xff]
        %v10348 = vld [vmem:[#allocation17 + $0x238] sm:$0xff]
        %v10349 = vld [vmem:[#allocation17 + $0x240] sm:$0xff]
        %v10350 = vld [vmem:[#allocation17 + $0x248] sm:$0xff]
        %v10351 = vld [vmem:[#allocation17 + $0x250] sm:$0xff]
        %v10352 = vld [vmem:[#allocation17 + $0x258] sm:$0xff]
        %v10353 = vld [vmem:[#allocation17 + $0x260] sm:$0xff]
        %v10354 = vld [vmem:[#allocation17 + $0x268] sm:$0xff]
        %v10355 = vld [vmem:[#allocation17 + $0x270] sm:$0xff]
        %v10356 = vld [vmem:[#allocation17 + $0x278] sm:$0xff]
        %v10357 = vld [vmem:[#allocation17 + $0x280] sm:$0xff]
        %v10358 = vld [vmem:[#allocation17 + $0x288] sm:$0xff]
        %v10359 = vld [vmem:[#allocation17 + $0x290] sm:$0xff]
        %v10360 = vld [vmem:[#allocation17 + $0x298] sm:$0xff]
        %v10361 = vld [vmem:[#allocation17 + $0x2a0] sm:$0xff]
        %v10362 = vld [vmem:[#allocation17 + $0x2a8] sm:$0xff]
        %v10363 = vld [vmem:[#allocation17 + $0x2b0] sm:$0xff]
        %v10364 = vld [vmem:[#allocation17 + $0x2b8] sm:$0xff]
        %v10365 = vld [vmem:[#allocation17 + $0x2c0] sm:$0xff]
        %v10366 = vld [vmem:[#allocation17 + $0x2c8] sm:$0xff]
        %v10367 = vld [vmem:[#allocation17 + $0x2d0] sm:$0xff]
        %v10368 = vld [vmem:[#allocation17 + $0x2d8] sm:$0xff]
        %v10369 = vld [vmem:[#allocation17 + $0x2e0] sm:$0xff]
        %v10370 = vld [vmem:[#allocation17 + $0x2e8] sm:$0xff]
        %v10371 = vld [vmem:[#allocation17 + $0x2f0] sm:$0xff]
        %v10372 = vld [vmem:[#allocation17 + $0x2f8] sm:$0xff]
        %v10373 = vld [vmem:[#allocation17 + $0x300] sm:$0xff]
        %v10374 = vld [vmem:[#allocation17 + $0x308] sm:$0xff]
        %v10375 = vld [vmem:[#allocation17 + $0x310] sm:$0xff]
        %v10376 = vld [vmem:[#allocation17 + $0x318] sm:$0xff]
        %v10377 = vld [vmem:[#allocation17 + $0x320] sm:$0xff]
        %v10378 = vld [vmem:[#allocation17 + $0x328] sm:$0xff]
        %v10379 = vld [vmem:[#allocation17 + $0x330] sm:$0xff]
        %v10380 = vld [vmem:[#allocation17 + $0x338] sm:$0xff]
        %v10381 = vld [vmem:[#allocation17 + $0x340] sm:$0xff]
        %v10382 = vld [vmem:[#allocation17 + $0x348] sm:$0xff]
        %v10383 = vld [vmem:[#allocation17 + $0x350] sm:$0xff]
        %v10384 = vld [vmem:[#allocation17 + $0x358] sm:$0xff]
        %v10385 = vld [vmem:[#allocation17 + $0x360] sm:$0xff]
        %v10386 = vld [vmem:[#allocation17 + $0x368] sm:$0xff]
        %v10387 = vld [vmem:[#allocation17 + $0x370] sm:$0xff]
        %v10388 = vld [vmem:[#allocation17 + $0x378] sm:$0xff]
        %v10389 = vld [vmem:[#allocation17 + $0x380] sm:$0xff]
        %v10390 = vld [vmem:[#allocation17 + $0x388] sm:$0xff]
        %v10391 = vld [vmem:[#allocation17 + $0x390] sm:$0xff]
        %v10392 = vld [vmem:[#allocation17 + $0x398] sm:$0xff]
        %v10393 = vld [vmem:[#allocation17 + $0x3a0] sm:$0xff]
        %v10394 = vld [vmem:[#allocation17 + $0x3a8] sm:$0xff]
        %v10395 = vld [vmem:[#allocation17 + $0x3b0] sm:$0xff]
        %v10396 = vld [vmem:[#allocation17 + $0x3b8] sm:$0xff]
        %v10397 = vld [vmem:[#allocation17 + $0x3c0] sm:$0xff]
        %v10398 = vld [vmem:[#allocation17 + $0x3c8] sm:$0xff]
        %v10399 = vld [vmem:[#allocation17 + $0x3d0] sm:$0xff]
        %v10400 = vld [vmem:[#allocation17 + $0x3d8] sm:$0xff]
        %v10401 = vld [vmem:[#allocation17 + $0x3e0] sm:$0xff]
        %v10402 = vld [vmem:[#allocation17 + $0x3e8] sm:$0xff]
        %v10403 = vld [vmem:[#allocation17 + $0x3f0] sm:$0xff]
        %v10404 = vld [vmem:[#allocation17 + $0x3f8] sm:$0xff]
        %v10405 = vld [vmem:[%s13] sm:$0x3]
        %v10407 = vlaneseq
        %v10408 = vshrl.u32 %v10407, 7
        %v10409 = vsub.s32 0, %v10408
        %v10410 = vrot.slane %v10405, %v10409
        %v10411 = vlaneseq
        %v10412 = vshrl.u32 %v10411, 7
        %v10413 = vsub.s32 1, %v10412
        %v10414 = vrot.slane %v10405, %v10413
        %v10545 = vunpack.c.l.b16 %v10277
        %v10546 = vunpack.c.h.b16 %v10277
        %v10547 = vunpack.c.l.b16 %v10278
        %v10548 = vunpack.c.h.b16 %v10278
        %v10549 = vunpack.c.l.b16 %v10279
        %v10550 = vunpack.c.h.b16 %v10279
        %v10551 = vunpack.c.l.b16 %v10280
        %v10552 = vunpack.c.h.b16 %v10280
        %v10553 = vunpack.c.l.b16 %v10281
        %v10554 = vunpack.c.h.b16 %v10281
        %v10555 = vunpack.c.l.b16 %v10282
        %v10556 = vunpack.c.h.b16 %v10282
        %v10557 = vunpack.c.l.b16 %v10283
        %v10558 = vunpack.c.h.b16 %v10283
        %v10559 = vunpack.c.l.b16 %v10284
        %v10560 = vunpack.c.h.b16 %v10284
        %v10561 = vunpack.c.l.b16 %v10285
        %v10562 = vunpack.c.h.b16 %v10285
        %v10563 = vunpack.c.l.b16 %v10286
        %v10564 = vunpack.c.h.b16 %v10286
        %v10565 = vunpack.c.l.b16 %v10287
        %v10566 = vunpack.c.h.b16 %v10287
        %v10567 = vunpack.c.l.b16 %v10288
        %v10568 = vunpack.c.h.b16 %v10288
        %v10569 = vunpack.c.l.b16 %v10289
        %v10570 = vunpack.c.h.b16 %v10289
        %v10571 = vunpack.c.l.b16 %v10290
        %v10572 = vunpack.c.h.b16 %v10290
        %v10573 = vunpack.c.l.b16 %v10291
        %v10574 = vunpack.c.h.b16 %v10291
        %v10575 = vunpack.c.l.b16 %v10292
        %v10576 = vunpack.c.h.b16 %v10292
        %v10577 = vunpack.c.l.b16 %v10293
        %v10578 = vunpack.c.h.b16 %v10293
        %v10579 = vunpack.c.l.b16 %v10294
        %v10580 = vunpack.c.h.b16 %v10294
        %v10581 = vunpack.c.l.b16 %v10295
        %v10582 = vunpack.c.h.b16 %v10295
        %v10583 = vunpack.c.l.b16 %v10296
        %v10584 = vunpack.c.h.b16 %v10296
        %v10585 = vunpack.c.l.b16 %v10297
        %v10586 = vunpack.c.h.b16 %v10297
        %v10587 = vunpack.c.l.b16 %v10298
        %v10588 = vunpack.c.h.b16 %v10298
        %v10589 = vunpack.c.l.b16 %v10299
        %v10590 = vunpack.c.h.b16 %v10299
        %v10591 = vunpack.c.l.b16 %v10300
        %v10592 = vunpack.c.h.b16 %v10300
        %v10593 = vunpack.c.l.b16 %v10301
        %v10594 = vunpack.c.h.b16 %v10301
        %v10595 = vunpack.c.l.b16 %v10302
        %v10596 = vunpack.c.h.b16 %v10302
        %v10597 = vunpack.c.l.b16 %v10303
        %v10598 = vunpack.c.h.b16 %v10303
        %v10599 = vunpack.c.l.b16 %v10304
        %v10600 = vunpack.c.h.b16 %v10304
        %v10601 = vunpack.c.l.b16 %v10305
        %v10602 = vunpack.c.h.b16 %v10305
        %v10603 = vunpack.c.l.b16 %v10306
        %v10604 = vunpack.c.h.b16 %v10306
        %v10605 = vunpack.c.l.b16 %v10307
        %v10606 = vunpack.c.h.b16 %v10307
        %v10607 = vunpack.c.l.b16 %v10308
        %v10608 = vunpack.c.h.b16 %v10308
        %v10609 = vunpack.c.l.b16 %v10309
        %v10610 = vunpack.c.h.b16 %v10309
        %v10611 = vunpack.c.l.b16 %v10310
        %v10612 = vunpack.c.h.b16 %v10310
        %v10613 = vunpack.c.l.b16 %v10311
        %v10614 = vunpack.c.h.b16 %v10311
        %v10615 = vunpack.c.l.b16 %v10312
        %v10616 = vunpack.c.h.b16 %v10312
        %v10617 = vunpack.c.l.b16 %v10313
        %v10618 = vunpack.c.h.b16 %v10313
        %v10619 = vunpack.c.l.b16 %v10314
        %v10620 = vunpack.c.h.b16 %v10314
        %v10621 = vunpack.c.l.b16 %v10315
        %v10622 = vunpack.c.h.b16 %v10315
        %v10623 = vunpack.c.l.b16 %v10316
        %v10624 = vunpack.c.h.b16 %v10316
        %v10625 = vunpack.c.l.b16 %v10317
        %v10626 = vunpack.c.h.b16 %v10317
        %v10627 = vunpack.c.l.b16 %v10318
        %v10628 = vunpack.c.h.b16 %v10318
        %v10629 = vunpack.c.l.b16 %v10319
        %v10630 = vunpack.c.h.b16 %v10319
        %v10631 = vunpack.c.l.b16 %v10320
        %v10632 = vunpack.c.h.b16 %v10320
        %v10633 = vunpack.c.l.b16 %v10321
        %v10634 = vunpack.c.h.b16 %v10321
        %v10635 = vunpack.c.l.b16 %v10322
        %v10636 = vunpack.c.h.b16 %v10322
        %v10637 = vunpack.c.l.b16 %v10323
        %v10638 = vunpack.c.h.b16 %v10323
        %v10639 = vunpack.c.l.b16 %v10324
        %v10640 = vunpack.c.h.b16 %v10324
        %v10641 = vunpack.c.l.b16 %v10325
        %v10642 = vunpack.c.h.b16 %v10325
        %v10643 = vunpack.c.l.b16 %v10326
        %v10644 = vunpack.c.h.b16 %v10326
        %v10645 = vunpack.c.l.b16 %v10327
        %v10646 = vunpack.c.h.b16 %v10327
        %v10647 = vunpack.c.l.b16 %v10328
        %v10648 = vunpack.c.h.b16 %v10328
        %v10649 = vunpack.c.l.b16 %v10329
        %v10650 = vunpack.c.h.b16 %v10329
        %v10651 = vunpack.c.l.b16 %v10330
        %v10652 = vunpack.c.h.b16 %v10330
        %v10653 = vunpack.c.l.b16 %v10331
        %v10654 = vunpack.c.h.b16 %v10331
        %v10655 = vunpack.c.l.b16 %v10332
        %v10656 = vunpack.c.h.b16 %v10332
        %v10657 = vunpack.c.l.b16 %v10333
        %v10658 = vunpack.c.h.b16 %v10333
        %v10659 = vunpack.c.l.b16 %v10334
        %v10660 = vunpack.c.h.b16 %v10334
        %v10661 = vunpack.c.l.b16 %v10335
        %v10662 = vunpack.c.h.b16 %v10335
        %v10663 = vunpack.c.l.b16 %v10336
        %v10664 = vunpack.c.h.b16 %v10336
        %v10665 = vunpack.c.l.b16 %v10337
        %v10666 = vunpack.c.h.b16 %v10337
        %v10667 = vunpack.c.l.b16 %v10338
        %v10668 = vunpack.c.h.b16 %v10338
        %v10669 = vunpack.c.l.b16 %v10339
        %v10670 = vunpack.c.h.b16 %v10339
        %v10671 = vunpack.c.l.b16 %v10340
        %v10672 = vunpack.c.h.b16 %v10340
        %v10673 = vunpack.c.l.b16 %v10341
        %v10674 = vunpack.c.h.b16 %v10341
        %v10675 = vunpack.c.l.b16 %v10342
        %v10676 = vunpack.c.h.b16 %v10342
        %v10677 = vunpack.c.l.b16 %v10343
        %v10678 = vunpack.c.h.b16 %v10343
        %v10679 = vunpack.c.l.b16 %v10344
        %v10680 = vunpack.c.h.b16 %v10344
        %v10681 = vunpack.c.l.b16 %v10345
        %v10682 = vunpack.c.h.b16 %v10345
        %v10683 = vunpack.c.l.b16 %v10346
        %v10684 = vunpack.c.h.b16 %v10346
        %v10685 = vunpack.c.l.b16 %v10347
        %v10686 = vunpack.c.h.b16 %v10347
        %v10687 = vunpack.c.l.b16 %v10348
        %v10688 = vunpack.c.h.b16 %v10348
        %v10689 = vunpack.c.l.b16 %v10349
        %v10690 = vunpack.c.h.b16 %v10349
        %v10691 = vunpack.c.l.b16 %v10350
        %v10692 = vunpack.c.h.b16 %v10350
        %v10693 = vunpack.c.l.b16 %v10351
        %v10694 = vunpack.c.h.b16 %v10351
        %v10695 = vunpack.c.l.b16 %v10352
        %v10696 = vunpack.c.h.b16 %v10352
        %v10697 = vunpack.c.l.b16 %v10353
        %v10698 = vunpack.c.h.b16 %v10353
        %v10699 = vunpack.c.l.b16 %v10354
        %v10700 = vunpack.c.h.b16 %v10354
        %v10701 = vunpack.c.l.b16 %v10355
        %v10702 = vunpack.c.h.b16 %v10355
        %v10703 = vunpack.c.l.b16 %v10356
        %v10704 = vunpack.c.h.b16 %v10356
        %v10705 = vunpack.c.l.b16 %v10357
        %v10706 = vunpack.c.h.b16 %v10357
        %v10707 = vunpack.c.l.b16 %v10358
        %v10708 = vunpack.c.h.b16 %v10358
        %v10709 = vunpack.c.l.b16 %v10359
        %v10710 = vunpack.c.h.b16 %v10359
        %v10711 = vunpack.c.l.b16 %v10360
        %v10712 = vunpack.c.h.b16 %v10360
        %v10713 = vunpack.c.l.b16 %v10361
        %v10714 = vunpack.c.h.b16 %v10361
        %v10715 = vunpack.c.l.b16 %v10362
        %v10716 = vunpack.c.h.b16 %v10362
        %v10717 = vunpack.c.l.b16 %v10363
        %v10718 = vunpack.c.h.b16 %v10363
        %v10719 = vunpack.c.l.b16 %v10364
        %v10720 = vunpack.c.h.b16 %v10364
        %v10721 = vunpack.c.l.b16 %v10365
        %v10722 = vunpack.c.h.b16 %v10365
        %v10723 = vunpack.c.l.b16 %v10366
        %v10724 = vunpack.c.h.b16 %v10366
        %v10725 = vunpack.c.l.b16 %v10367
        %v10726 = vunpack.c.h.b16 %v10367
        %v10727 = vunpack.c.l.b16 %v10368
        %v10728 = vunpack.c.h.b16 %v10368
        %v10729 = vunpack.c.l.b16 %v10369
        %v10730 = vunpack.c.h.b16 %v10369
        %v10731 = vunpack.c.l.b16 %v10370
        %v10732 = vunpack.c.h.b16 %v10370
        %v10733 = vunpack.c.l.b16 %v10371
        %v10734 = vunpack.c.h.b16 %v10371
        %v10735 = vunpack.c.l.b16 %v10372
        %v10736 = vunpack.c.h.b16 %v10372
        %v10737 = vunpack.c.l.b16 %v10373
        %v10738 = vunpack.c.h.b16 %v10373
        %v10739 = vunpack.c.l.b16 %v10374
        %v10740 = vunpack.c.h.b16 %v10374
        %v10741 = vunpack.c.l.b16 %v10375
        %v10742 = vunpack.c.h.b16 %v10375
        %v10743 = vunpack.c.l.b16 %v10376
        %v10744 = vunpack.c.h.b16 %v10376
        %v10745 = vunpack.c.l.b16 %v10377
        %v10746 = vunpack.c.h.b16 %v10377
        %v10747 = vunpack.c.l.b16 %v10378
        %v10748 = vunpack.c.h.b16 %v10378
        %v10749 = vunpack.c.l.b16 %v10379
        %v10750 = vunpack.c.h.b16 %v10379
        %v10751 = vunpack.c.l.b16 %v10380
        %v10752 = vunpack.c.h.b16 %v10380
        %v10753 = vunpack.c.l.b16 %v10381
        %v10754 = vunpack.c.h.b16 %v10381
        %v10755 = vunpack.c.l.b16 %v10382
        %v10756 = vunpack.c.h.b16 %v10382
        %v10757 = vunpack.c.l.b16 %v10383
        %v10758 = vunpack.c.h.b16 %v10383
        %v10759 = vunpack.c.l.b16 %v10384
        %v10760 = vunpack.c.h.b16 %v10384
        %v10761 = vunpack.c.l.b16 %v10385
        %v10762 = vunpack.c.h.b16 %v10385
        %v10763 = vunpack.c.l.b16 %v10386
        %v10764 = vunpack.c.h.b16 %v10386
        %v10765 = vunpack.c.l.b16 %v10387
        %v10766 = vunpack.c.h.b16 %v10387
        %v10767 = vunpack.c.l.b16 %v10388
        %v10768 = vunpack.c.h.b16 %v10388
        %v10769 = vunpack.c.l.b16 %v10389
        %v10770 = vunpack.c.h.b16 %v10389
        %v10771 = vunpack.c.l.b16 %v10390
        %v10772 = vunpack.c.h.b16 %v10390
        %v10773 = vunpack.c.l.b16 %v10391
        %v10774 = vunpack.c.h.b16 %v10391
        %v10775 = vunpack.c.l.b16 %v10392
        %v10776 = vunpack.c.h.b16 %v10392
        %v10777 = vunpack.c.l.b16 %v10393
        %v10778 = vunpack.c.h.b16 %v10393
        %v10779 = vunpack.c.l.b16 %v10394
        %v10780 = vunpack.c.h.b16 %v10394
        %v10781 = vunpack.c.l.b16 %v10395
        %v10782 = vunpack.c.h.b16 %v10395
        %v10783 = vunpack.c.l.b16 %v10396
        %v10784 = vunpack.c.h.b16 %v10396
        %v10785 = vunpack.c.l.b16 %v10397
        %v10786 = vunpack.c.h.b16 %v10397
        %v10787 = vunpack.c.l.b16 %v10398
        %v10788 = vunpack.c.h.b16 %v10398
        %v10789 = vunpack.c.l.b16 %v10399
        %v10790 = vunpack.c.h.b16 %v10399
        %v10791 = vunpack.c.l.b16 %v10400
        %v10792 = vunpack.c.h.b16 %v10400
        %v10793 = vunpack.c.l.b16 %v10401
        %v10794 = vunpack.c.h.b16 %v10401
        %v10795 = vunpack.c.l.b16 %v10402
        %v10796 = vunpack.c.h.b16 %v10402
        %v10797 = vunpack.c.l.b16 %v10403
        %v10798 = vunpack.c.h.b16 %v10403
        %v10799 = vunpack.c.l.b16 %v10404
        %v10800 = vunpack.c.h.b16 %v10404
        %v10801 = vpack.c.b16 %v10547, %v10545
        %v10802 = vpack.c.b16 %v10548, %v10546
        %v10803 = vpack.c.b16 %v10551, %v10549
        %v10804 = vpack.c.b16 %v10552, %v10550
        %v10805 = vpack.c.b16 %v10555, %v10553
        %v10806 = vpack.c.b16 %v10556, %v10554
        %v10807 = vpack.c.b16 %v10559, %v10557
        %v10808 = vpack.c.b16 %v10560, %v10558
        %v10809 = vpack.c.b16 %v10563, %v10561
        %v10810 = vpack.c.b16 %v10564, %v10562
        %v10811 = vpack.c.b16 %v10567, %v10565
        %v10812 = vpack.c.b16 %v10568, %v10566
        %v10813 = vpack.c.b16 %v10571, %v10569
        %v10814 = vpack.c.b16 %v10572, %v10570
        %v10815 = vpack.c.b16 %v10575, %v10573
        %v10816 = vpack.c.b16 %v10576, %v10574
        %v10817 = vpack.c.b16 %v10579, %v10577
        %v10818 = vpack.c.b16 %v10580, %v10578
        %v10819 = vpack.c.b16 %v10583, %v10581
        %v10820 = vpack.c.b16 %v10584, %v10582
        %v10821 = vpack.c.b16 %v10587, %v10585
        %v10822 = vpack.c.b16 %v10588, %v10586
        %v10823 = vpack.c.b16 %v10591, %v10589
        %v10824 = vpack.c.b16 %v10592, %v10590
        %v10825 = vpack.c.b16 %v10595, %v10593
        %v10826 = vpack.c.b16 %v10596, %v10594
        %v10827 = vpack.c.b16 %v10599, %v10597
        %v10828 = vpack.c.b16 %v10600, %v10598
        %v10829 = vpack.c.b16 %v10603, %v10601
        %v10830 = vpack.c.b16 %v10604, %v10602
        %v10831 = vpack.c.b16 %v10607, %v10605
        %v10832 = vpack.c.b16 %v10608, %v10606
        %v10833 = vpack.c.b16 %v10611, %v10609
        %v10834 = vpack.c.b16 %v10612, %v10610
        %v10835 = vpack.c.b16 %v10615, %v10613
        %v10836 = vpack.c.b16 %v10616, %v10614
        %v10837 = vpack.c.b16 %v10619, %v10617
        %v10838 = vpack.c.b16 %v10620, %v10618
        %v10839 = vpack.c.b16 %v10623, %v10621
        %v10840 = vpack.c.b16 %v10624, %v10622
        %v10841 = vpack.c.b16 %v10627, %v10625
        %v10842 = vpack.c.b16 %v10628, %v10626
        %v10843 = vpack.c.b16 %v10631, %v10629
        %v10844 = vpack.c.b16 %v10632, %v10630
        %v10845 = vpack.c.b16 %v10635, %v10633
        %v10846 = vpack.c.b16 %v10636, %v10634
        %v10847 = vpack.c.b16 %v10639, %v10637
        %v10848 = vpack.c.b16 %v10640, %v10638
        %v10849 = vpack.c.b16 %v10643, %v10641
        %v10850 = vpack.c.b16 %v10644, %v10642
        %v10851 = vpack.c.b16 %v10647, %v10645
        %v10852 = vpack.c.b16 %v10648, %v10646
        %v10853 = vpack.c.b16 %v10651, %v10649
        %v10854 = vpack.c.b16 %v10652, %v10650
        %v10855 = vpack.c.b16 %v10655, %v10653
        %v10856 = vpack.c.b16 %v10656, %v10654
        %v10857 = vpack.c.b16 %v10659, %v10657
        %v10858 = vpack.c.b16 %v10660, %v10658
        %v10859 = vpack.c.b16 %v10663, %v10661
        %v10860 = vpack.c.b16 %v10664, %v10662
        %v10861 = vpack.c.b16 %v10667, %v10665
        %v10862 = vpack.c.b16 %v10668, %v10666
        %v10863 = vpack.c.b16 %v10671, %v10669
        %v10864 = vpack.c.b16 %v10672, %v10670
        %v10865 = vpack.c.b16 %v10675, %v10673
        %v10866 = vpack.c.b16 %v10676, %v10674
        %v10867 = vpack.c.b16 %v10679, %v10677
        %v10868 = vpack.c.b16 %v10680, %v10678
        %v10869 = vpack.c.b16 %v10683, %v10681
        %v10870 = vpack.c.b16 %v10684, %v10682
        %v10871 = vpack.c.b16 %v10687, %v10685
        %v10872 = vpack.c.b16 %v10688, %v10686
        %v10873 = vpack.c.b16 %v10691, %v10689
        %v10874 = vpack.c.b16 %v10692, %v10690
        %v10875 = vpack.c.b16 %v10695, %v10693
        %v10876 = vpack.c.b16 %v10696, %v10694
        %v10877 = vpack.c.b16 %v10699, %v10697
        %v10878 = vpack.c.b16 %v10700, %v10698
        %v10879 = vpack.c.b16 %v10703, %v10701
        %v10880 = vpack.c.b16 %v10704, %v10702
        %v10881 = vpack.c.b16 %v10707, %v10705
        %v10882 = vpack.c.b16 %v10708, %v10706
        %v10883 = vpack.c.b16 %v10711, %v10709
        %v10884 = vpack.c.b16 %v10712, %v10710
        %v10885 = vpack.c.b16 %v10715, %v10713
        %v10886 = vpack.c.b16 %v10716, %v10714
        %v10887 = vpack.c.b16 %v10719, %v10717
        %v10888 = vpack.c.b16 %v10720, %v10718
        %v10889 = vpack.c.b16 %v10723, %v10721
        %v10890 = vpack.c.b16 %v10724, %v10722
        %v10891 = vpack.c.b16 %v10727, %v10725
        %v10892 = vpack.c.b16 %v10728, %v10726
        %v10893 = vpack.c.b16 %v10731, %v10729
        %v10894 = vpack.c.b16 %v10732, %v10730
        %v10895 = vpack.c.b16 %v10735, %v10733
        %v10896 = vpack.c.b16 %v10736, %v10734
        %v10897 = vpack.c.b16 %v10739, %v10737
        %v10898 = vpack.c.b16 %v10740, %v10738
        %v10899 = vpack.c.b16 %v10743, %v10741
        %v10900 = vpack.c.b16 %v10744, %v10742
        %v10901 = vpack.c.b16 %v10747, %v10745
        %v10902 = vpack.c.b16 %v10748, %v10746
        %v10903 = vpack.c.b16 %v10751, %v10749
        %v10904 = vpack.c.b16 %v10752, %v10750
        %v10905 = vpack.c.b16 %v10755, %v10753
        %v10906 = vpack.c.b16 %v10756, %v10754
        %v10907 = vpack.c.b16 %v10759, %v10757
        %v10908 = vpack.c.b16 %v10760, %v10758
        %v10909 = vpack.c.b16 %v10763, %v10761
        %v10910 = vpack.c.b16 %v10764, %v10762
        %v10911 = vpack.c.b16 %v10767, %v10765
        %v10912 = vpack.c.b16 %v10768, %v10766
        %v10913 = vpack.c.b16 %v10771, %v10769
        %v10914 = vpack.c.b16 %v10772, %v10770
        %v10915 = vpack.c.b16 %v10775, %v10773
        %v10916 = vpack.c.b16 %v10776, %v10774
        %v10917 = vpack.c.b16 %v10779, %v10777
        %v10918 = vpack.c.b16 %v10780, %v10778
        %v10919 = vpack.c.b16 %v10783, %v10781
        %v10920 = vpack.c.b16 %v10784, %v10782
        %v10921 = vpack.c.b16 %v10787, %v10785
        %v10922 = vpack.c.b16 %v10788, %v10786
        %v10923 = vpack.c.b16 %v10791, %v10789
        %v10924 = vpack.c.b16 %v10792, %v10790
        %v10925 = vpack.c.b16 %v10795, %v10793
        %v10926 = vpack.c.b16 %v10796, %v10794
        %v10927 = vpack.c.b16 %v10799, %v10797
        %v10928 = vpack.c.b16 %v10800, %v10798
        %11057 = vmatprep.subr.bf16.mxu0 %v10816
        %11058 = vmatpush1.bf16.msra.mxu0 %v10815
        %11059 = vmatprep.subr.bf16.mxu0 %v10814
        %11060 = vmatpush1.bf16.msra.mxu0 %v10813
        %11061 = vmatprep.subr.bf16.mxu0 %v10812
        %11062 = vmatpush1.bf16.msra.mxu0 %v10811
        %11063 = vmatprep.subr.bf16.mxu0 %v10810
        %11064 = vmatpush1.bf16.msra.mxu0 %v10809
        %11065 = vmatprep.subr.bf16.mxu0 %v10808
        %11066 = vmatpush1.bf16.msra.mxu0 %v10807
        %11067 = vmatprep.subr.bf16.mxu0 %v10806
        %11068 = vmatpush1.bf16.msra.mxu0 %v10805
        %11069 = vmatprep.subr.bf16.mxu0 %v10804
        %11070 = vmatpush1.bf16.msra.mxu0 %v10803
        %11071 = vmatprep.subr.bf16.mxu0 %v10802
        %11072 = vmatpush1.bf16.msra.mxu0 %v10801
        %11073 = vmatprep.subr.bf16.mxu0 %v10832
        %11074 = vmatpush2.bf16.msra.mxu0 %v10831
        %11075 = vmatprep.subr.bf16.mxu0 %v10830
        %11076 = vmatpush2.bf16.msra.mxu0 %v10829
        %11077 = vmatprep.subr.bf16.mxu0 %v10828
        %11078 = vmatpush2.bf16.msra.mxu0 %v10827
        %11079 = vmatprep.subr.bf16.mxu0 %v10826
        %11080 = vmatpush2.bf16.msra.mxu0 %v10825
        %11081 = vmatprep.subr.bf16.mxu0 %v10824
        %11082 = vmatpush2.bf16.msra.mxu0 %v10823
        %11083 = vmatprep.subr.bf16.mxu0 %v10822
        %11084 = vmatpush2.bf16.msra.mxu0 %v10821
        %11085 = vmatprep.subr.bf16.mxu0 %v10820
        %11086 = vmatpush2.bf16.msra.mxu0 %v10819
        %11087 = vmatprep.subr.bf16.mxu0 %v10818
        %11088 = vmatpush2.bf16.msra.mxu0 %v10817
        %11089 = vmatprep.mubr.bf16.mxu0 %v10214
        %11090 = vmatmul.mubr.bf16.gmra.mxu0 %v10213
        %v11091 = vpop.f32.mrf.mxu0
        %v11092 = vadd.f32 %v10410, %v11091
        %v11093 = vpop.f32.mrf.mxu0
        %v11094 = vadd.f32 %v10414, %v11093
        %v11095 = vpop.f32.mrf.mxu0
        %v11096 = vadd.f32 %v10410, %v11095
        %v11097 = vpop.f32.mrf.mxu0
        %v11098 = vadd.f32 %v10414, %v11097
        %11099 = vmatprep.mubr.bf16.mxu0 %v10222
        %11100 = vmatmul.mubr.bf16.gmra.mxu0 %v10221
        %v11101 = vpop.f32.mrf.mxu0
        %v11102 = vadd.f32 %v10410, %v11101
        %v11103 = vpop.f32.mrf.mxu0
        %v11104 = vadd.f32 %v10414, %v11103
        %v11105 = vpop.f32.mrf.mxu0
        %v11106 = vadd.f32 %v10410, %v11105
        %v11107 = vpop.f32.mrf.mxu0
        %v11108 = vadd.f32 %v10414, %v11107
        %11109 = vmatprep.mubr.bf16.mxu0 %v10230
        %11110 = vmatmul.mubr.bf16.gmra.mxu0 %v10229
        %v11111 = vpop.f32.mrf.mxu0
        %v11112 = vadd.f32 %v10410, %v11111
        %v11113 = vpop.f32.mrf.mxu0
        %v11114 = vadd.f32 %v10414, %v11113
        %v11115 = vpop.f32.mrf.mxu0
        %v11116 = vadd.f32 %v10410, %v11115
        %v11117 = vpop.f32.mrf.mxu0
        %v11118 = vadd.f32 %v10414, %v11117
        %11119 = vmatprep.mubr.bf16.mxu0 %v10238
        %11120 = vmatmul.mubr.bf16.gmra.mxu0 %v10237
        %v11121 = vpop.f32.mrf.mxu0
        %v11122 = vadd.f32 %v10410, %v11121
        %v11123 = vpop.f32.mrf.mxu0
        %v11124 = vadd.f32 %v10414, %v11123
        %v11125 = vpop.f32.mrf.mxu0
        %v11126 = vadd.f32 %v10410, %v11125
        %v11127 = vpop.f32.mrf.mxu0
        %v11128 = vadd.f32 %v10414, %v11127
        %11129 = vmatprep.mubr.bf16.mxu0 %v10246
        %11130 = vmatmul.mubr.bf16.gmra.mxu0 %v10245
        %v11131 = vpop.f32.mrf.mxu0
        %v11132 = vadd.f32 %v10410, %v11131
        %v11133 = vpop.f32.mrf.mxu0
        %v11134 = vadd.f32 %v10414, %v11133
        %v11135 = vpop.f32.mrf.mxu0
        %v11136 = vadd.f32 %v10410, %v11135
        %v11137 = vpop.f32.mrf.mxu0
        %v11138 = vadd.f32 %v10414, %v11137
        %11139 = vmatprep.mubr.bf16.mxu0 %v10254
        %11140 = vmatmul.mubr.bf16.gmra.mxu0 %v10253
        %v11141 = vpop.f32.mrf.mxu0
        %v11142 = vadd.f32 %v10410, %v11141
        %v11143 = vpop.f32.mrf.mxu0
        %v11144 = vadd.f32 %v10414, %v11143
        %v11145 = vpop.f32.mrf.mxu0
        %v11146 = vadd.f32 %v10410, %v11145
        %v11147 = vpop.f32.mrf.mxu0
        %v11148 = vadd.f32 %v10414, %v11147
        %11149 = vmatprep.mubr.bf16.mxu0 %v10262
        %11150 = vmatmul.mubr.bf16.gmra.mxu0 %v10261
        %v11151 = vpop.f32.mrf.mxu0
        %v11152 = vadd.f32 %v10410, %v11151
        %v11153 = vpop.f32.mrf.mxu0
        %v11154 = vadd.f32 %v10414, %v11153
        %v11155 = vpop.f32.mrf.mxu0
        %v11156 = vadd.f32 %v10410, %v11155
        %v11157 = vpop.f32.mrf.mxu0
        %v11158 = vadd.f32 %v10414, %v11157
        %11159 = vmatprep.mubr.bf16.mxu0 %v10270
        %11160 = vmatmul.mubr.bf16.gmra.mxu0 %v10269
        %v11161 = vpop.f32.mrf.mxu0
        %v11162 = vadd.f32 %v10410, %v11161
        %v11163 = vpop.f32.mrf.mxu0
        %v11164 = vadd.f32 %v10414, %v11163
        %v11165 = vpop.f32.mrf.mxu0
        %v11166 = vadd.f32 %v10410, %v11165
        %v11167 = vpop.f32.mrf.mxu0
        %v11168 = vadd.f32 %v10414, %v11167
        %11169 = vdwg.mxu0
        %11170 = vmatprep.subr.bf16.mxu0 %v10848
        %11171 = vmatpush1.bf16.msra.mxu0 %v10847
        %11172 = vmatprep.subr.bf16.mxu0 %v10846
        %11173 = vmatpush1.bf16.msra.mxu0 %v10845
        %11174 = vmatprep.subr.bf16.mxu0 %v10844
        %11175 = vmatpush1.bf16.msra.mxu0 %v10843
        %11176 = vmatprep.subr.bf16.mxu0 %v10842
        %11177 = vmatpush1.bf16.msra.mxu0 %v10841
        %11178 = vmatprep.subr.bf16.mxu0 %v10840
        %11179 = vmatpush1.bf16.msra.mxu0 %v10839
        %11180 = vmatprep.subr.bf16.mxu0 %v10838
        %11181 = vmatpush1.bf16.msra.mxu0 %v10837
        %11182 = vmatprep.subr.bf16.mxu0 %v10836
        %11183 = vmatpush1.bf16.msra.mxu0 %v10835
        %11184 = vmatprep.subr.bf16.mxu0 %v10834
        %11185 = vmatpush1.bf16.msra.mxu0 %v10833
        %11186 = vmatprep.subr.bf16.mxu0 %v10864
        %11187 = vmatpush2.bf16.msra.mxu0 %v10863
        %11188 = vmatprep.subr.bf16.mxu0 %v10862
        %11189 = vmatpush2.bf16.msra.mxu0 %v10861
        %11190 = vmatprep.subr.bf16.mxu0 %v10860
        %11191 = vmatpush2.bf16.msra.mxu0 %v10859
        %11192 = vmatprep.subr.bf16.mxu0 %v10858
        %11193 = vmatpush2.bf16.msra.mxu0 %v10857
        %11194 = vmatprep.subr.bf16.mxu0 %v10856
        %11195 = vmatpush2.bf16.msra.mxu0 %v10855
        %11196 = vmatprep.subr.bf16.mxu0 %v10854
        %11197 = vmatpush2.bf16.msra.mxu0 %v10853
        %11198 = vmatprep.subr.bf16.mxu0 %v10852
        %11199 = vmatpush2.bf16.msra.mxu0 %v10851
        %11200 = vmatprep.subr.bf16.mxu0 %v10850
        %11201 = vmatpush2.bf16.msra.mxu0 %v10849
        %11202 = vmatprep.mubr.bf16.mxu0 %v10216
        %11203 = vmatmul.mubr.bf16.gmra.mxu0 %v10215
        %v11204 = vpop.f32.mrf.mxu0
        %v11205 = vadd.f32 %v11092, %v11204
        %v11206 = vpop.f32.mrf.mxu0
        %v11207 = vadd.f32 %v11094, %v11206
        %v11208 = vpop.f32.mrf.mxu0
        %v11209 = vadd.f32 %v11096, %v11208
        %v11210 = vpop.f32.mrf.mxu0
        %v11211 = vadd.f32 %v11098, %v11210
        %11212 = vmatprep.mubr.bf16.mxu0 %v10224
        %11213 = vmatmul.mubr.bf16.gmra.mxu0 %v10223
        %v11214 = vpop.f32.mrf.mxu0
        %v11215 = vadd.f32 %v11102, %v11214
        %v11216 = vpop.f32.mrf.mxu0
        %v11217 = vadd.f32 %v11104, %v11216
        %v11218 = vpop.f32.mrf.mxu0
        %v11219 = vadd.f32 %v11106, %v11218
        %v11220 = vpop.f32.mrf.mxu0
        %v11221 = vadd.f32 %v11108, %v11220
        %11222 = vmatprep.mubr.bf16.mxu0 %v10232
        %11223 = vmatmul.mubr.bf16.gmra.mxu0 %v10231
        %v11224 = vpop.f32.mrf.mxu0
        %v11225 = vadd.f32 %v11112, %v11224
        %v11226 = vpop.f32.mrf.mxu0
        %v11227 = vadd.f32 %v11114, %v11226
        %v11228 = vpop.f32.mrf.mxu0
        %v11229 = vadd.f32 %v11116, %v11228
        %v11230 = vpop.f32.mrf.mxu0
        %v11231 = vadd.f32 %v11118, %v11230
        %11232 = vmatprep.mubr.bf16.mxu0 %v10240
        %11233 = vmatmul.mubr.bf16.gmra.mxu0 %v10239
        %v11234 = vpop.f32.mrf.mxu0
        %v11235 = vadd.f32 %v11122, %v11234
        %v11236 = vpop.f32.mrf.mxu0
        %v11237 = vadd.f32 %v11124, %v11236
        %v11238 = vpop.f32.mrf.mxu0
        %v11239 = vadd.f32 %v11126, %v11238
        %v11240 = vpop.f32.mrf.mxu0
        %v11241 = vadd.f32 %v11128, %v11240
        %11242 = vmatprep.mubr.bf16.mxu0 %v10248
        %11243 = vmatmul.mubr.bf16.gmra.mxu0 %v10247
        %v11244 = vpop.f32.mrf.mxu0
        %v11245 = vadd.f32 %v11132, %v11244
        %v11246 = vpop.f32.mrf.mxu0
        %v11247 = vadd.f32 %v11134, %v11246
        %v11248 = vpop.f32.mrf.mxu0
        %v11249 = vadd.f32 %v11136, %v11248
        %v11250 = vpop.f32.mrf.mxu0
        %v11251 = vadd.f32 %v11138, %v11250
        %11252 = vmatprep.mubr.bf16.mxu0 %v10256
        %11253 = vmatmul.mubr.bf16.gmra.mxu0 %v10255
        %v11254 = vpop.f32.mrf.mxu0
        %v11255 = vadd.f32 %v11142, %v11254
        %v11256 = vpop.f32.mrf.mxu0
        %v11257 = vadd.f32 %v11144, %v11256
        %v11258 = vpop.f32.mrf.mxu0
        %v11259 = vadd.f32 %v11146, %v11258
        %v11260 = vpop.f32.mrf.mxu0
        %v11261 = vadd.f32 %v11148, %v11260
        %11262 = vmatprep.mubr.bf16.mxu0 %v10264
        %11263 = vmatmul.mubr.bf16.gmra.mxu0 %v10263
        %v11264 = vpop.f32.mrf.mxu0
        %v11265 = vadd.f32 %v11152, %v11264
        %v11266 = vpop.f32.mrf.mxu0
        %v11267 = vadd.f32 %v11154, %v11266
        %v11268 = vpop.f32.mrf.mxu0
        %v11269 = vadd.f32 %v11156, %v11268
        %v11270 = vpop.f32.mrf.mxu0
        %v11271 = vadd.f32 %v11158, %v11270
        %11272 = vmatprep.mubr.bf16.mxu0 %v10272
        %11273 = vmatmul.mubr.bf16.gmra.mxu0 %v10271
        %v11274 = vpop.f32.mrf.mxu0
        %v11275 = vadd.f32 %v11162, %v11274
        %v11276 = vpop.f32.mrf.mxu0
        %v11277 = vadd.f32 %v11164, %v11276
        %v11278 = vpop.f32.mrf.mxu0
        %v11279 = vadd.f32 %v11166, %v11278
        %v11280 = vpop.f32.mrf.mxu0
        %v11281 = vadd.f32 %v11168, %v11280
        %11282 = vdwg.mxu0
        %11283 = vmatprep.subr.bf16.mxu0 %v10880
        %11284 = vmatpush1.bf16.msra.mxu0 %v10879
        %11285 = vmatprep.subr.bf16.mxu0 %v10878
        %11286 = vmatpush1.bf16.msra.mxu0 %v10877
        %11287 = vmatprep.subr.bf16.mxu0 %v10876
        %11288 = vmatpush1.bf16.msra.mxu0 %v10875
        %11289 = vmatprep.subr.bf16.mxu0 %v10874
        %11290 = vmatpush1.bf16.msra.mxu0 %v10873
        %11291 = vmatprep.subr.bf16.mxu0 %v10872
        %11292 = vmatpush1.bf16.msra.mxu0 %v10871
        %11293 = vmatprep.subr.bf16.mxu0 %v10870
        %11294 = vmatpush1.bf16.msra.mxu0 %v10869
        %11295 = vmatprep.subr.bf16.mxu0 %v10868
        %11296 = vmatpush1.bf16.msra.mxu0 %v10867
        %11297 = vmatprep.subr.bf16.mxu0 %v10866
        %11298 = vmatpush1.bf16.msra.mxu0 %v10865
        %11299 = vmatprep.subr.bf16.mxu0 %v10896
        %11300 = vmatpush2.bf16.msra.mxu0 %v10895
        %11301 = vmatprep.subr.bf16.mxu0 %v10894
        %11302 = vmatpush2.bf16.msra.mxu0 %v10893
        %11303 = vmatprep.subr.bf16.mxu0 %v10892
        %11304 = vmatpush2.bf16.msra.mxu0 %v10891
        %11305 = vmatprep.subr.bf16.mxu0 %v10890
        %11306 = vmatpush2.bf16.msra.mxu0 %v10889
        %11307 = vmatprep.subr.bf16.mxu0 %v10888
        %11308 = vmatpush2.bf16.msra.mxu0 %v10887
        %11309 = vmatprep.subr.bf16.mxu0 %v10886
        %11310 = vmatpush2.bf16.msra.mxu0 %v10885
        %11311 = vmatprep.subr.bf16.mxu0 %v10884
        %11312 = vmatpush2.bf16.msra.mxu0 %v10883
        %11313 = vmatprep.subr.bf16.mxu0 %v10882
        %11314 = vmatpush2.bf16.msra.mxu0 %v10881
        %11315 = vmatprep.mubr.bf16.mxu0 %v10218
        %11316 = vmatmul.mubr.bf16.gmra.mxu0 %v10217
        %v11317 = vpop.f32.mrf.mxu0
        %v11318 = vadd.f32 %v11205, %v11317
        %v11319 = vpop.f32.mrf.mxu0
        %v11320 = vadd.f32 %v11207, %v11319
        %v11321 = vpop.f32.mrf.mxu0
        %v11322 = vadd.f32 %v11209, %v11321
        %v11323 = vpop.f32.mrf.mxu0
        %v11324 = vadd.f32 %v11211, %v11323
        %11325 = vmatprep.mubr.bf16.mxu0 %v10226
        %11326 = vmatmul.mubr.bf16.gmra.mxu0 %v10225
        %v11327 = vpop.f32.mrf.mxu0
        %v11328 = vadd.f32 %v11215, %v11327
        %v11329 = vpop.f32.mrf.mxu0
        %v11330 = vadd.f32 %v11217, %v11329
        %v11331 = vpop.f32.mrf.mxu0
        %v11332 = vadd.f32 %v11219, %v11331
        %v11333 = vpop.f32.mrf.mxu0
        %v11334 = vadd.f32 %v11221, %v11333
        %11335 = vmatprep.mubr.bf16.mxu0 %v10234
        %11336 = vmatmul.mubr.bf16.gmra.mxu0 %v10233
        %v11337 = vpop.f32.mrf.mxu0
        %v11338 = vadd.f32 %v11225, %v11337
        %v11339 = vpop.f32.mrf.mxu0
        %v11340 = vadd.f32 %v11227, %v11339
        %v11341 = vpop.f32.mrf.mxu0
        %v11342 = vadd.f32 %v11229, %v11341
        %v11343 = vpop.f32.mrf.mxu0
        %v11344 = vadd.f32 %v11231, %v11343
        %11345 = vmatprep.mubr.bf16.mxu0 %v10242
        %11346 = vmatmul.mubr.bf16.gmra.mxu0 %v10241
        %v11347 = vpop.f32.mrf.mxu0
        %v11348 = vadd.f32 %v11235, %v11347
        %v11349 = vpop.f32.mrf.mxu0
        %v11350 = vadd.f32 %v11237, %v11349
        %v11351 = vpop.f32.mrf.mxu0
        %v11352 = vadd.f32 %v11239, %v11351
        %v11353 = vpop.f32.mrf.mxu0
        %v11354 = vadd.f32 %v11241, %v11353
        %11355 = vmatprep.mubr.bf16.mxu0 %v10250
        %11356 = vmatmul.mubr.bf16.gmra.mxu0 %v10249
        %v11357 = vpop.f32.mrf.mxu0
        %v11358 = vadd.f32 %v11245, %v11357
        %v11359 = vpop.f32.mrf.mxu0
        %v11360 = vadd.f32 %v11247, %v11359
        %v11361 = vpop.f32.mrf.mxu0
        %v11362 = vadd.f32 %v11249, %v11361
        %v11363 = vpop.f32.mrf.mxu0
        %v11364 = vadd.f32 %v11251, %v11363
        %11365 = vmatprep.mubr.bf16.mxu0 %v10258
        %11366 = vmatmul.mubr.bf16.gmra.mxu0 %v10257
        %v11367 = vpop.f32.mrf.mxu0
        %v11368 = vadd.f32 %v11255, %v11367
        %v11369 = vpop.f32.mrf.mxu0
        %v11370 = vadd.f32 %v11257, %v11369
        %v11371 = vpop.f32.mrf.mxu0
        %v11372 = vadd.f32 %v11259, %v11371
        %v11373 = vpop.f32.mrf.mxu0
        %v11374 = vadd.f32 %v11261, %v11373
        %11375 = vmatprep.mubr.bf16.mxu0 %v10266
        %11376 = vmatmul.mubr.bf16.gmra.mxu0 %v10265
        %v11377 = vpop.f32.mrf.mxu0
        %v11378 = vadd.f32 %v11265, %v11377
        %v11379 = vpop.f32.mrf.mxu0
        %v11380 = vadd.f32 %v11267, %v11379
        %v11381 = vpop.f32.mrf.mxu0
        %v11382 = vadd.f32 %v11269, %v11381
        %v11383 = vpop.f32.mrf.mxu0
        %v11384 = vadd.f32 %v11271, %v11383
        %11385 = vmatprep.mubr.bf16.mxu0 %v10274
        %11386 = vmatmul.mubr.bf16.gmra.mxu0 %v10273
        %v11387 = vpop.f32.mrf.mxu0
        %v11388 = vadd.f32 %v11275, %v11387
        %v11389 = vpop.f32.mrf.mxu0
        %v11390 = vadd.f32 %v11277, %v11389
        %v11391 = vpop.f32.mrf.mxu0
        %v11392 = vadd.f32 %v11279, %v11391
        %v11393 = vpop.f32.mrf.mxu0
        %v11394 = vadd.f32 %v11281, %v11393
        %11395 = vdwg.mxu0
        %11396 = vmatprep.subr.bf16.mxu0 %v10912
        %11397 = vmatpush1.bf16.msra.mxu0 %v10911
        %11398 = vmatprep.subr.bf16.mxu0 %v10910
        %11399 = vmatpush1.bf16.msra.mxu0 %v10909
        %11400 = vmatprep.subr.bf16.mxu0 %v10908
        %11401 = vmatpush1.bf16.msra.mxu0 %v10907
        %11402 = vmatprep.subr.bf16.mxu0 %v10906
        %11403 = vmatpush1.bf16.msra.mxu0 %v10905
        %11404 = vmatprep.subr.bf16.mxu0 %v10904
        %11405 = vmatpush1.bf16.msra.mxu0 %v10903
        %11406 = vmatprep.subr.bf16.mxu0 %v10902
        %11407 = vmatpush1.bf16.msra.mxu0 %v10901
        %11408 = vmatprep.subr.bf16.mxu0 %v10900
        %11409 = vmatpush1.bf16.msra.mxu0 %v10899
        %11410 = vmatprep.subr.bf16.mxu0 %v10898
        %11411 = vmatpush1.bf16.msra.mxu0 %v10897
        %11412 = vmatprep.subr.bf16.mxu0 %v10928
        %11413 = vmatpush2.bf16.msra.mxu0 %v10927
        %11414 = vmatprep.subr.bf16.mxu0 %v10926
        %11415 = vmatpush2.bf16.msra.mxu0 %v10925
        %11416 = vmatprep.subr.bf16.mxu0 %v10924
        %11417 = vmatpush2.bf16.msra.mxu0 %v10923
        %11418 = vmatprep.subr.bf16.mxu0 %v10922
        %11419 = vmatpush2.bf16.msra.mxu0 %v10921
        %11420 = vmatprep.subr.bf16.mxu0 %v10920
        %11421 = vmatpush2.bf16.msra.mxu0 %v10919
        %11422 = vmatprep.subr.bf16.mxu0 %v10918
        %11423 = vmatpush2.bf16.msra.mxu0 %v10917
        %11424 = vmatprep.subr.bf16.mxu0 %v10916
        %11425 = vmatpush2.bf16.msra.mxu0 %v10915
        %11426 = vmatprep.subr.bf16.mxu0 %v10914
        %11427 = vmatpush2.bf16.msra.mxu0 %v10913
        %11428 = vmatprep.mubr.bf16.mxu0 %v10220
        %11429 = vmatmul.mubr.bf16.gmra.mxu0 %v10219
        %v11430 = vpop.f32.mrf.mxu0
        %v11431 = vadd.f32 %v11318, %v11430
        %v11432 = vpop.f32.mrf.mxu0
        %v11433 = vadd.f32 %v11320, %v11432
        %v11434 = vpop.f32.mrf.mxu0
        %v11435 = vadd.f32 %v11322, %v11434
        %v11436 = vpop.f32.mrf.mxu0
        %v11437 = vadd.f32 %v11324, %v11436
        %11438 = vmatprep.mubr.bf16.mxu0 %v10228
        %11439 = vmatmul.mubr.bf16.gmra.mxu0 %v10227
        %v11440 = vpop.f32.mrf.mxu0
        %v11441 = vadd.f32 %v11328, %v11440
        %v11442 = vpop.f32.mrf.mxu0
        %v11443 = vadd.f32 %v11330, %v11442
        %v11444 = vpop.f32.mrf.mxu0
        %v11445 = vadd.f32 %v11332, %v11444
        %v11446 = vpop.f32.mrf.mxu0
        %v11447 = vadd.f32 %v11334, %v11446
        %11448 = vmatprep.mubr.bf16.mxu0 %v10236
        %11449 = vmatmul.mubr.bf16.gmra.mxu0 %v10235
        %v11450 = vpop.f32.mrf.mxu0
        %v11451 = vadd.f32 %v11338, %v11450
        %v11452 = vpop.f32.mrf.mxu0
        %v11453 = vadd.f32 %v11340, %v11452
        %v11454 = vpop.f32.mrf.mxu0
        %v11455 = vadd.f32 %v11342, %v11454
        %v11456 = vpop.f32.mrf.mxu0
        %v11457 = vadd.f32 %v11344, %v11456
        %11458 = vmatprep.mubr.bf16.mxu0 %v10244
        %11459 = vmatmul.mubr.bf16.gmra.mxu0 %v10243
        %v11460 = vpop.f32.mrf.mxu0
        %v11461 = vadd.f32 %v11348, %v11460
        %v11462 = vpop.f32.mrf.mxu0
        %v11463 = vadd.f32 %v11350, %v11462
        %v11464 = vpop.f32.mrf.mxu0
        %v11465 = vadd.f32 %v11352, %v11464
        %v11466 = vpop.f32.mrf.mxu0
        %v11467 = vadd.f32 %v11354, %v11466
        %11468 = vmatprep.mubr.bf16.mxu0 %v10252
        %11469 = vmatmul.mubr.bf16.gmra.mxu0 %v10251
        %v11470 = vpop.f32.mrf.mxu0
        %v11471 = vadd.f32 %v11358, %v11470
        %v11472 = vpop.f32.mrf.mxu0
        %v11473 = vadd.f32 %v11360, %v11472
        %v11474 = vpop.f32.mrf.mxu0
        %v11475 = vadd.f32 %v11362, %v11474
        %v11476 = vpop.f32.mrf.mxu0
        %v11477 = vadd.f32 %v11364, %v11476
        %11478 = vmatprep.mubr.bf16.mxu0 %v10260
        %11479 = vmatmul.mubr.bf16.gmra.mxu0 %v10259
        %v11480 = vpop.f32.mrf.mxu0
        %v11481 = vadd.f32 %v11368, %v11480
        %v11482 = vpop.f32.mrf.mxu0
        %v11483 = vadd.f32 %v11370, %v11482
        %v11484 = vpop.f32.mrf.mxu0
        %v11485 = vadd.f32 %v11372, %v11484
        %v11486 = vpop.f32.mrf.mxu0
        %v11487 = vadd.f32 %v11374, %v11486
        %11488 = vmatprep.mubr.bf16.mxu0 %v10268
        %11489 = vmatmul.mubr.bf16.gmra.mxu0 %v10267
        %v11490 = vpop.f32.mrf.mxu0
        %v11491 = vadd.f32 %v11378, %v11490
        %v11492 = vpop.f32.mrf.mxu0
        %v11493 = vadd.f32 %v11380, %v11492
        %v11494 = vpop.f32.mrf.mxu0
        %v11495 = vadd.f32 %v11382, %v11494
        %v11496 = vpop.f32.mrf.mxu0
        %v11497 = vadd.f32 %v11384, %v11496
        %11498 = vmatprep.mubr.bf16.mxu0 %v10276
        %11499 = vmatmul.mubr.bf16.gmra.mxu0 %v10275
        %v11500 = vpop.f32.mrf.mxu0
        %v11501 = vadd.f32 %v11388, %v11500
        %v11502 = vpop.f32.mrf.mxu0
        %v11503 = vadd.f32 %v11390, %v11502
        %v11504 = vpop.f32.mrf.mxu0
        %v11505 = vadd.f32 %v11392, %v11504
        %v11506 = vpop.f32.mrf.mxu0
        %v11507 = vadd.f32 %v11394, %v11506
        %11508 = vdwg.mxu0
        %v11509 = vmax.f32 %v11431, 0.0
        %v11510 = vmax.f32 %v11433, 0.0
        %v11511 = vmax.f32 %v11435, 0.0
        %v11512 = vmax.f32 %v11437, 0.0
        %v11513 = vmax.f32 %v11441, 0.0
        %v11514 = vmax.f32 %v11443, 0.0
        %v11515 = vmax.f32 %v11445, 0.0
        %v11516 = vmax.f32 %v11447, 0.0
        %v11517 = vmax.f32 %v11451, 0.0
        %v11518 = vmax.f32 %v11453, 0.0
        %v11519 = vmax.f32 %v11455, 0.0
        %v11520 = vmax.f32 %v11457, 0.0
        %v11521 = vmax.f32 %v11461, 0.0
        %v11522 = vmax.f32 %v11463, 0.0
        %v11523 = vmax.f32 %v11465, 0.0
        %v11524 = vmax.f32 %v11467, 0.0
        %v11525 = vmax.f32 %v11471, 0.0
        %v11526 = vmax.f32 %v11473, 0.0
        %v11527 = vmax.f32 %v11475, 0.0
        %v11528 = vmax.f32 %v11477, 0.0
        %v11529 = vmax.f32 %v11481, 0.0
        %v11530 = vmax.f32 %v11483, 0.0
        %v11531 = vmax.f32 %v11485, 0.0
        %v11532 = vmax.f32 %v11487, 0.0
        %v11533 = vmax.f32 %v11491, 0.0
        %v11534 = vmax.f32 %v11493, 0.0
        %v11535 = vmax.f32 %v11495, 0.0
        %v11536 = vmax.f32 %v11497, 0.0
        %v11537 = vmax.f32 %v11501, 0.0
        %v11538 = vmax.f32 %v11503, 0.0
        %v11539 = vmax.f32 %v11505, 0.0
        %v11540 = vmax.f32 %v11507, 0.0
        %11541 = vst [vmem:[%s639] sm:$0xff] %v11509
        %11542 = vst [vmem:[%s639 + $0x8] sm:$0xff] %v11510
        %11543 = vst [vmem:[%s639 + $0x10] sm:$0xff] %v11511
        %11544 = vst [vmem:[%s639 + $0x18] sm:$0xff] %v11512
        %11545 = vst [vmem:[%s639 + $0x20] sm:$0xff] %v11513
        %11546 = vst [vmem:[%s639 + $0x28] sm:$0xff] %v11514
        %11547 = vst [vmem:[%s639 + $0x30] sm:$0xff] %v11515
        %11548 = vst [vmem:[%s639 + $0x38] sm:$0xff] %v11516
        %11549 = vst [vmem:[%s639 + $0x40] sm:$0xff] %v11517
        %11550 = vst [vmem:[%s639 + $0x48] sm:$0xff] %v11518
        %11551 = vst [vmem:[%s639 + $0x50] sm:$0xff] %v11519
        %11552 = vst [vmem:[%s639 + $0x58] sm:$0xff] %v11520
        %11553 = vst [vmem:[%s639 + $0x60] sm:$0xff] %v11521
        %11554 = vst [vmem:[%s639 + $0x68] sm:$0xff] %v11522
        %11555 = vst [vmem:[%s639 + $0x70] sm:$0xff] %v11523
        %11556 = vst [vmem:[%s639 + $0x78] sm:$0xff] %v11524
        %11557 = vst [vmem:[%s639 + $0x80] sm:$0xff] %v11525
        %11558 = vst [vmem:[%s639 + $0x88] sm:$0xff] %v11526
        %11559 = vst [vmem:[%s639 + $0x90] sm:$0xff] %v11527
        %11560 = vst [vmem:[%s639 + $0x98] sm:$0xff] %v11528
        %11561 = vst [vmem:[%s639 + $0xa0] sm:$0xff] %v11529
        %11562 = vst [vmem:[%s639 + $0xa8] sm:$0xff] %v11530
        %11563 = vst [vmem:[%s639 + $0xb0] sm:$0xff] %v11531
        %11564 = vst [vmem:[%s639 + $0xb8] sm:$0xff] %v11532
        %11565 = vst [vmem:[%s639 + $0xc0] sm:$0xff] %v11533
        %11566 = vst [vmem:[%s639 + $0xc8] sm:$0xff] %v11534
        %11567 = vst [vmem:[%s639 + $0xd0] sm:$0xff] %v11535
        %11568 = vst [vmem:[%s639 + $0xd8] sm:$0xff] %v11536
        %11569 = vst [vmem:[%s639 + $0xe0] sm:$0xff] %v11537
        %11570 = vst [vmem:[%s639 + $0xe8] sm:$0xff] %v11538
        %11571 = vst [vmem:[%s639 + $0xf0] sm:$0xff] %v11539
        %11572 = vst [vmem:[%s639 + $0xf8] sm:$0xff] %v11540
        %s11573 = sand.u32 %s350, 1
        %s11574 = scalar_lea.sflag [#allocation4], %s11573
        %s11575 = sand.u32 %s350, 1
        %s11576 = smul.addr %s11575, 256
        %s11577 = scalar_lea.vmem [#allocation19], %s11576
        // Predicated region
        $region117: #{tpu_custom_call.1} parent=75 // pred_check
          %p11578 = pneg %p360
        $region118: #{tpu_custom_call.1} parent=75 // pred_check_branch
          %11580 = sbr.rel (%p11578) target = $region120
        $region119: #{tpu_custom_call.1} parent=75 // pred_region
          %s11581 = smul.u32 16, %s38
          %s11583 = ssub.s32 4096, 4096
          %11584 = vsyncadd %s11574, %s11583
          %s11585 = smul.addr %s11581, 2
          %s11586 = smul.addr %s11585, 128
          %s11587 = scalar_lea.hbm %s14, %s11586
          %s11588 = sshll.u32 %s11577, 4
          %s11589 = int_to_ptr.vmem [resolvable:$true] %s11588
          %11594 = dma.vmem_to_hbm [thread:$0]  %s11589, 4096, %s11587, %s11574, 256, 256, 16
        $region120: #{tpu_custom_call.1} parent=75 // pred_fallthru
          _
      $region76: #{tpu_custom_call.1} parent=5 // pred_fallthru
        _
      %p11595 = scmp.le.s32.totalorder 2, %s33
      // Predicated region
      $region121: #{tpu_custom_call.1} parent=5 // pred_check
        %p11596 = pneg %p11595
      $region122: #{tpu_custom_call.1} parent=5 // pred_check_branch
        %11598 = sbr.rel (%p11596) target = $region124
      $region123: #{tpu_custom_call.1} parent=5 // pred_region
        %s11599 = ssub.s32 %s33, 2
        // Predicated region
        $region125: #{tpu_custom_call.1} parent=123 // pred_check
          %p11600 = pneg %p366
        $region126: #{tpu_custom_call.1} parent=123 // pred_check_branch
          %11602 = sbr.rel (%p11600) target = $region128
        $region127: #{tpu_custom_call.1} parent=123 // pred_region
          %s11603 = sand.u32 %s351, 1
          %s11604 = scalar_lea.sflag [#allocation4], %s11603
          %s11605 = sand.u32 %s351, 1
          %s11606 = smul.addr %s11605, 256
          %s11607 = scalar_lea.vmem [#allocation19], %s11606
          %11608 = dma.done %s11604, 4096
        $region128: #{tpu_custom_call.1} parent=123 // pred_fallthru
          _
      $region124: #{tpu_custom_call.1} parent=5 // pred_fallthru
        _
    $region6: #{tpu_custom_call.1} parent=1 // loop_footer
      %s37 = sadd.s32 1, %s33
    $region7: #{tpu_custom_call.1} parent=1 // loop_footer_branch
      %32 = sbr.rel target = $region3
    $region8: #{tpu_custom_call.1} parent=1 // loop_exit
      _
    %11609 = vsyncpa [#allocation3], 1
    %s11610 = scalar_lea.sflag [#allocation3], 1
    %11611 = vsyncpa %s11610, 1
    %11612 = vsyncpa [#allocation6], 1
    %s11613 = scalar_lea.sflag [#allocation6], 1
    %11614 = vsyncpa %s11613, 1
    %11615 = vsyncpa [#allocation9], 1
    %11616 = vsyncpa [#allocation12], 1
    %11617 = vsyncpa [#allocation15], 1
    %11618 = vsyncpa [#allocation18], 1
    %11619 = vsyncpa [#allocation4], 1
    %s11620 = scalar_lea.sflag [#allocation4], 1
    %11621 = vsyncpa %s11620, 1

</llo_original>
